<compile_context>
chip_gen: v6e
topology: v6e:2x2x1
jax: 0.10.0
libtpu: 0.0.40
codegen_flags: <defaults>
</compile_context>

<pallas_src>
import jax
import jax.numpy as jnp
import numpy as np
from jax.experimental import pallas as pl
from jax.experimental.pallas import tpu as pltpu


# ------------------------- fused Pallas kernel -------------------------

def _double_conv_kernel(x_ref, w1_ref, b1_ref, w2_ref, b2_ref, g_ref, bt_ref,
                        o_ref, xpad_ref, hpad_ref, pat1_ref, pat2_ref):
    # x_ref:  (N, H, W, Cin)        NHWC activation
    # w1_ref: (9*Cin, Cout)         im2col-layout conv1 weights
    # w2_ref: (9*Cout, Cout)        im2col-layout conv2 weights
    # b1/b2/g/bt: (1, Cout)
    # scratch: xpad (N,H+2,W+2,Cin), hpad (N,H+2,W+2,Cout),
    #          pat1 (M, 9*Cin), pat2 (M, 9*Cout)  -- all VMEM-resident
    N, H, W, Cin = x_ref.shape
    Cout = o_ref.shape[-1]
    M = N * H * W
    eps = 1e-5
    inv_m = 1.0 / M

    # ---------------- conv1: in-VMEM zero halo + im2col + one MXU matmul ----
    xpad_ref[...] = jnp.zeros_like(xpad_ref)
    xpad_ref[:, 1:H + 1, 1:W + 1, :] = x_ref[...]
    for t in range(9):                       # static, fully unrolled
        kh, kw = t // 3, t % 3
        pat1_ref[:, t * Cin:(t + 1) * Cin] = (
            xpad_ref[:, kh:kh + H, kw:kw + W, :].reshape(M, Cin))
    h = jnp.dot(pat1_ref[...], w1_ref[...],
                preferred_element_type=jnp.float32) + b1_ref[...]

    # ---- BatchNorm (training-mode batch stats, biased var) + ReLU epilogue ----
    mean = jnp.sum(h, axis=0, keepdims=True) * inv_m
    var = jnp.sum((h - mean) ** 2, axis=0, keepdims=True) * inv_m
    h = jnp.maximum((h - mean) * jax.lax.rsqrt(var + eps) * g_ref[...]
                    + bt_ref[...], 0.0)

    # ---------------- conv2 (same structure) --------------------------------
    hpad_ref[...] = jnp.zeros_like(hpad_ref)
    hpad_ref[:, 1:H + 1, 1:W + 1, :] = h.reshape(N, H, W, Cout)
    for t in range(9):
        kh, kw = t // 3, t % 3
        pat2_ref[:, t * Cout:(t + 1) * Cout] = (
            hpad_ref[:, kh:kh + H, kw:kw + W, :].reshape(M, Cout))
    h2 = jnp.dot(pat2_ref[...], w2_ref[...],
                 preferred_element_type=jnp.float32) + b2_ref[...]

    mean2 = jnp.sum(h2, axis=0, keepdims=True) * inv_m
    var2 = jnp.sum((h2 - mean2) ** 2, axis=0, keepdims=True) * inv_m
    h2 = jnp.maximum((h2 - mean2) * jax.lax.rsqrt(var2 + eps) * g_ref[...]
                     + bt_ref[...], 0.0)

    o_ref[...] = h2.reshape(N, H, W, Cout).astype(o_ref.dtype)


# ------------------------- wrapper -------------------------

def prepare_params(p):
    """Hoisted (once-per-parameter-set) weight re-layouts: OIHW -> im2col matrix."""
    Cout, Cin, _, _ = p['c1_w'].shape
    w1 = jnp.transpose(p['c1_w'], (2, 3, 1, 0)).reshape(9 * Cin, Cout)
    w2 = jnp.transpose(p['c2_w'], (2, 3, 1, 0)).reshape(9 * Cout, Cout)
    return {
        'w1': w1, 'b1': p['c1_b'].reshape(1, Cout),
        'w2': w2, 'b2': p['c2_b'].reshape(1, Cout),
        'gamma': p['bn_g'].reshape(1, Cout), 'beta': p['bn_b'].reshape(1, Cout),
    }


def double_conv_forward(x_nchw, pp):
    """DoubleConv.forward — NCHW in, NCHW out (PyTorch convention)."""
    N, Cin, H, W = x_nchw.shape
    Cout = pp['w1'].shape[1]
    M = N * H * W

    x = jnp.transpose(x_nchw, (0, 2, 3, 1))          # NCHW -> NHWC (C on lanes)

    flops = 2 * M * 9 * Cin * Cout + 2 * M * 9 * Cout * Cout
    bytes_accessed = 4 * (N * H * W * Cin + 9 * Cin * Cout + 9 * Cout * Cout
                          + 4 * Cout + N * H * W * Cout)

    out = pl.pallas_call(
        _double_conv_kernel,
        out_shape=jax.ShapeDtypeStruct((N, H, W, Cout), jnp.float32),
        grid=(1,),
        in_specs=[
            pl.BlockSpec((N, H, W, Cin), lambda i: (0, 0, 0, 0)),
            pl.BlockSpec((9 * Cin, Cout), lambda i: (0, 0)),
            pl.BlockSpec((1, Cout), lambda i: (0, 0)),
            pl.BlockSpec((9 * Cout, Cout), lambda i: (0, 0)),
            pl.BlockSpec((1, Cout), lambda i: (0, 0)),
            pl.BlockSpec((1, Cout), lambda i: (0, 0)),
            pl.BlockSpec((1, Cout), lambda i: (0, 0)),
        ],
        out_specs=pl.BlockSpec((N, H, W, Cout), lambda i: (0, 0, 0, 0)),
        scratch_shapes=[
            pltpu.VMEM((N, H + 2, W + 2, Cin), jnp.float32),   # conv1 halo buffer
            pltpu.VMEM((N, H + 2, W + 2, Cout), jnp.float32),  # conv2 halo buffer
            pltpu.VMEM((M, 9 * Cin), jnp.float32),             # im2col patches #1
            pltpu.VMEM((M, 9 * Cout), jnp.float32),            # im2col patches #2
        ],
        compiler_params=pltpu.CompilerParams(
            dimension_semantics=("arbitrary",)),
        cost_estimate=pl.CostEstimate(
            flops=flops, transcendentals=2 * Cout,
            bytes_accessed=bytes_accessed),
    )(x, pp['w1'], pp['b1'], pp['w2'], pp['b2'], pp['gamma'], pp['beta'])

    return jnp.transpose(out, (0, 3, 1, 2))          # NHWC -> NCHW


# ------------------------- pure-JAX reference -------------------------

def _reference_double_conv(x_nchw, p):
    x = jnp.transpose(x_nchw, (0, 2, 3, 1))

    def conv(xh, w_oihw, b):
        w = jnp.transpose(w_oihw, (2, 3, 1, 0))
        return jax.lax.conv_general_dilated(
            xh, w, (1, 1), 'SAME',
            dimension_numbers=('NHWC', 'HWIO', 'NHWC')) + b

    def bnrelu(xh, g, b):
        mean = xh.mean(axis=(0, 1, 2), keepdims=True)
        var = ((xh - mean) ** 2).mean(axis=(0, 1, 2), keepdims=True)
        z = (xh - mean) * jax.lax.rsqrt(var + 1e-5) * g + b
        return jnp.maximum(z, 0.0)

    h = conv(x, p['c1_w'], p['c1_b'])
    h = bnrelu(h, p['bn_g'], p['bn_b'])
    h = conv(h, p['c2_w'], p['c2_b'])
    h = bnrelu(h, p['bn_g'], p['bn_b'])
    return jnp.transpose(h, (0, 3, 1, 2))


# ------------------------- main -------------------------

if __name__ == "__main__":
    key = jax.random.PRNGKey(0)
    in_channels, out_channels = 4, 8
    N, H, W = 2, 16, 16
    ks = jax.random.split(key, 8)

    params = {
        'c1_w': 0.2 * jax.random.normal(ks[0], (out_channels, in_channels, 3, 3), jnp.float32),
        'c1_b': 0.1 * jax.random.normal(ks[1], (out_channels,), jnp.float32),
        'c2_w': 0.2 * jax.random.normal(ks[2], (out_channels, out_channels, 3, 3), jnp.float32),
        'c2_b': 0.1 * jax.random.normal(ks[3], (out_channels,), jnp.float32),
        'bn_g': 1.0 + 0.1 * jax.random.normal(ks[4], (out_channels,), jnp.float32),
        'bn_b': 0.1 * jax.random.normal(ks[5], (out_channels,), jnp.float32),
    }
    x = jax.random.normal(ks[6], (N, in_channels, H, W), jnp.float32)

    # TODO(synk): BatchNorm2d running-mean/var buffer updates (training-time side
    # effect) are not implemented; the forward output uses batch statistics,
    # matching PyTorch train-mode forward.
    pp = prepare_params(params)                 # hoisted weight re-layouts
    fwd = jax.jit(double_conv_forward)

    out = jax.block_until_ready(fwd(x, pp))
    ref = jax.block_until_ready(_reference_double_conv(x, params))

    assert out.shape == (N, out_channels, H, W)
    np.testing.assert_allclose(np.asarray(out), np.asarray(ref), rtol=1e-3, atol=1e-3)
    print("KERNEL_OK")
</pallas_src>

<mosaic_0001>
module attributes {stable_mosaic.version = 11 : i64} {
  func.func @_double_conv_kernel(%arg0: i32, %arg1: memref<2x16x16x4xf32, #tpu.memory_space<vmem>>, %arg2: memref<36x8xf32, #tpu.memory_space<vmem>>, %arg3: memref<1x8xf32, #tpu.memory_space<vmem>>, %arg4: memref<72x8xf32, #tpu.memory_space<vmem>>, %arg5: memref<1x8xf32, #tpu.memory_space<vmem>>, %arg6: memref<1x8xf32, #tpu.memory_space<vmem>>, %arg7: memref<1x8xf32, #tpu.memory_space<vmem>>, %arg8: memref<2x16x16x8xf32, #tpu.memory_space<vmem>>, %arg9: memref<2x18x18x4xf32, #tpu.memory_space<vmem>>, %arg10: memref<2x18x18x8xf32, #tpu.memory_space<vmem>>, %arg11: memref<512x36xf32, #tpu.memory_space<vmem>>, %arg12: memref<512x72xf32, #tpu.memory_space<vmem>>) attributes {dimension_semantics = [#tpu.dimension_semantics<arbitrary>], iteration_bounds = array<i64: 1>, scalar_prefetch = 0 : i64, scratch_operands = 4 : i64, tpu.core_type = #tpu.core_type<tc>, window_params = [{pipeline_mode = #tpu.pipeline_mode<synchronous>, transform_indices = @transform_0, window_bounds = array<i64: 2, 16, 16, 4>}, {pipeline_mode = #tpu.pipeline_mode<synchronous>, transform_indices = @transform_1, window_bounds = array<i64: 36, 8>}, {pipeline_mode = #tpu.pipeline_mode<synchronous>, transform_indices = @transform_2, window_bounds = array<i64: 1, 8>}, {pipeline_mode = #tpu.pipeline_mode<synchronous>, transform_indices = @transform_3, window_bounds = array<i64: 72, 8>}, {pipeline_mode = #tpu.pipeline_mode<synchronous>, transform_indices = @transform_4, window_bounds = array<i64: 1, 8>}, {pipeline_mode = #tpu.pipeline_mode<synchronous>, transform_indices = @transform_5, window_bounds = array<i64: 1, 8>}, {pipeline_mode = #tpu.pipeline_mode<synchronous>, transform_indices = @transform_6, window_bounds = array<i64: 1, 8>}, {pipeline_mode = #tpu.pipeline_mode<synchronous>, transform_indices = @transform_7, window_bounds = array<i64: 2, 16, 16, 8>}]} {
    %cst = arith.constant 0.000000e+00 : f32
    %0 = vector.broadcast %cst : f32 to vector<2x18x18x4xf32>
    %c0 = arith.constant 0 : index
    %c0_0 = arith.constant 0 : index
    %c0_1 = arith.constant 0 : index
    %c0_2 = arith.constant 0 : index
    %1 = vector.load %arg9[%c0, %c0_0, %c0_1, %c0_2] : memref<2x18x18x4xf32, #tpu.memory_space<vmem>>, vector<2x18x18x4xf32>
    tpu.vector_store %arg9[%c0, %c0_0, %c0_1, %c0_2], %0 {strides = array<i32>} : memref<2x18x18x4xf32, #tpu.memory_space<vmem>>, vector<2x18x18x4xf32>,
    %c0_3 = arith.constant 0 : index
    %c0_4 = arith.constant 0 : index
    %c0_5 = arith.constant 0 : index
    %c0_6 = arith.constant 0 : index
    %2 = vector.load %arg1[%c0_3, %c0_4, %c0_5, %c0_6] : memref<2x16x16x4xf32, #tpu.memory_space<vmem>>, vector<2x16x16x4xf32>
    %c0_7 = arith.constant 0 : index
    %c1 = arith.constant 1 : index
    %c1_8 = arith.constant 1 : index
    %c0_9 = arith.constant 0 : index
    %3 = vector.load %arg9[%c0_7, %c1, %c1_8, %c0_9] : memref<2x18x18x4xf32, #tpu.memory_space<vmem>>, vector<2x16x16x4xf32>
    tpu.vector_store %arg9[%c0_7, %c1, %c1_8, %c0_9], %2 {strides = array<i32>} : memref<2x18x18x4xf32, #tpu.memory_space<vmem>>, vector<2x16x16x4xf32>,
    %c0_10 = arith.constant 0 : index
    %c0_11 = arith.constant 0 : index
    %c0_12 = arith.constant 0 : index
    %c0_13 = arith.constant 0 : index
    %4 = vector.load %arg9[%c0_10, %c0_11, %c0_12, %c0_13] : memref<2x18x18x4xf32, #tpu.memory_space<vmem>>, vector<2x16x16x4xf32>
    %5 = vector.shape_cast %4 : vector<2x16x16x4xf32> to vector<512x4xf32>
    %c0_14 = arith.constant 0 : index
    %c0_15 = arith.constant 0 : index
    %6 = vector.load %arg11[%c0_14, %c0_15] : memref<512x36xf32, #tpu.memory_space<vmem>>, vector<512x4xf32>
    tpu.vector_store %arg11[%c0_14, %c0_15], %5 {strides = array<i32>} : memref<512x36xf32, #tpu.memory_space<vmem>>, vector<512x4xf32>,
    %c0_16 = arith.constant 0 : index
    %c0_17 = arith.constant 0 : index
    %c1_18 = arith.constant 1 : index
    %c0_19 = arith.constant 0 : index
    %7 = vector.load %arg9[%c0_16, %c0_17, %c1_18, %c0_19] : memref<2x18x18x4xf32, #tpu.memory_space<vmem>>, vector<2x16x16x4xf32>
    %8 = vector.shape_cast %7 : vector<2x16x16x4xf32> to vector<512x4xf32>
    %c0_20 = arith.constant 0 : index
    %c4 = arith.constant 4 : index
    %9 = vector.load %arg11[%c0_20, %c4] : memref<512x36xf32, #tpu.memory_space<vmem>>, vector<512x4xf32>
    tpu.vector_store %arg11[%c0_20, %c4], %8 {strides = array<i32>} : memref<512x36xf32, #tpu.memory_space<vmem>>, vector<512x4xf32>,
    %c0_21 = arith.constant 0 : index
    %c0_22 = arith.constant 0 : index
    %c2 = arith.constant 2 : index
    %c0_23 = arith.constant 0 : index
    %10 = vector.load %arg9[%c0_21, %c0_22, %c2, %c0_23] : memref<2x18x18x4xf32, #tpu.memory_space<vmem>>, vector<2x16x16x4xf32>
    %11 = vector.shape_cast %10 : vector<2x16x16x4xf32> to vector<512x4xf32>
    %c0_24 = arith.constant 0 : index
    %c8 = arith.constant 8 : index
    %12 = vector.load %arg11[%c0_24, %c8] : memref<512x36xf32, #tpu.memory_space<vmem>>, vector<512x4xf32>
    tpu.vector_store %arg11[%c0_24, %c8], %11 {strides = array<i32>} : memref<512x36xf32, #tpu.memory_space<vmem>>, vector<512x4xf32>,
    %c0_25 = arith.constant 0 : index
    %c1_26 = arith.constant 1 : index
    %c0_27 = arith.constant 0 : index
    %c0_28 = arith.constant 0 : index
    %13 = vector.load %arg9[%c0_25, %c1_26, %c0_27, %c0_28] : memref<2x18x18x4xf32, #tpu.memory_space<vmem>>, vector<2x16x16x4xf32>
    %14 = vector.shape_cast %13 : vector<2x16x16x4xf32> to vector<512x4xf32>
    %c0_29 = arith.constant 0 : index
    %c12 = arith.constant 12 : index
    %15 = vector.load %arg11[%c0_29, %c12] : memref<512x36xf32, #tpu.memory_space<vmem>>, vector<512x4xf32>
    tpu.vector_store %arg11[%c0_29, %c12], %14 {strides = array<i32>} : memref<512x36xf32, #tpu.memory_space<vmem>>, vector<512x4xf32>,
    %c0_30 = arith.constant 0 : index
    %c1_31 = arith.constant 1 : index
    %c1_32 = arith.constant 1 : index
    %c0_33 = arith.constant 0 : index
    %16 = vector.load %arg9[%c0_30, %c1_31, %c1_32, %c0_33] : memref<2x18x18x4xf32, #tpu.memory_space<vmem>>, vector<2x16x16x4xf32>
    %17 = vector.shape_cast %16 : vector<2x16x16x4xf32> to vector<512x4xf32>
    %c0_34 = arith.constant 0 : index
    %c16 = arith.constant 16 : index
    %18 = vector.load %arg11[%c0_34, %c16] : memref<512x36xf32, #tpu.memory_space<vmem>>, vector<512x4xf32>
    tpu.vector_store %arg11[%c0_34, %c16], %17 {strides = array<i32>} : memref<512x36xf32, #tpu.memory_space<vmem>>, vector<512x4xf32>,
    %c0_35 = arith.constant 0 : index
    %c1_36 = arith.constant 1 : index
    %c2_37 = arith.constant 2 : index
    %c0_38 = arith.constant 0 : index
    %19 = vector.load %arg9[%c0_35, %c1_36, %c2_37, %c0_38] : memref<2x18x18x4xf32, #tpu.memory_space<vmem>>, vector<2x16x16x4xf32>
    %20 = vector.shape_cast %19 : vector<2x16x16x4xf32> to vector<512x4xf32>
    %c0_39 = arith.constant 0 : index
    %c20 = arith.constant 20 : index
    %21 = vector.load %arg11[%c0_39, %c20] : memref<512x36xf32, #tpu.memory_space<vmem>>, vector<512x4xf32>
    tpu.vector_store %arg11[%c0_39, %c20], %20 {strides = array<i32>} : memref<512x36xf32, #tpu.memory_space<vmem>>, vector<512x4xf32>,
    %c0_40 = arith.constant 0 : index
    %c2_41 = arith.constant 2 : index
    %c0_42 = arith.constant 0 : index
    %c0_43 = arith.constant 0 : index
    %22 = vector.load %arg9[%c0_40, %c2_41, %c0_42, %c0_43] : memref<2x18x18x4xf32, #tpu.memory_space<vmem>>, vector<2x16x16x4xf32>
    %23 = vector.shape_cast %22 : vector<2x16x16x4xf32> to vector<512x4xf32>
    %c0_44 = arith.constant 0 : index
    %c24 = arith.constant 24 : index
    %24 = vector.load %arg11[%c0_44, %c24] : memref<512x36xf32, #tpu.memory_space<vmem>>, vector<512x4xf32>
    tpu.vector_store %arg11[%c0_44, %c24], %23 {strides = array<i32>} : memref<512x36xf32, #tpu.memory_space<vmem>>, vector<512x4xf32>,
    %c0_45 = arith.constant 0 : index
    %c2_46 = arith.constant 2 : index
    %c1_47 = arith.constant 1 : index
    %c0_48 = arith.constant 0 : index
    %25 = vector.load %arg9[%c0_45, %c2_46, %c1_47, %c0_48] : memref<2x18x18x4xf32, #tpu.memory_space<vmem>>, vector<2x16x16x4xf32>
    %26 = vector.shape_cast %25 : vector<2x16x16x4xf32> to vector<512x4xf32>
    %c0_49 = arith.constant 0 : index
    %c28 = arith.constant 28 : index
    %27 = vector.load %arg11[%c0_49, %c28] : memref<512x36xf32, #tpu.memory_space<vmem>>, vector<512x4xf32>
    tpu.vector_store %arg11[%c0_49, %c28], %26 {strides = array<i32>} : memref<512x36xf32, #tpu.memory_space<vmem>>, vector<512x4xf32>,
    %c0_50 = arith.constant 0 : index
    %c2_51 = arith.constant 2 : index
    %c2_52 = arith.constant 2 : index
    %c0_53 = arith.constant 0 : index
    %28 = vector.load %arg9[%c0_50, %c2_51, %c2_52, %c0_53] : memref<2x18x18x4xf32, #tpu.memory_space<vmem>>, vector<2x16x16x4xf32>
    %29 = vector.shape_cast %28 : vector<2x16x16x4xf32> to vector<512x4xf32>
    %c0_54 = arith.constant 0 : index
    %c32 = arith.constant 32 : index
    %30 = vector.load %arg11[%c0_54, %c32] : memref<512x36xf32, #tpu.memory_space<vmem>>, vector<512x4xf32>
    tpu.vector_store %arg11[%c0_54, %c32], %29 {strides = array<i32>} : memref<512x36xf32, #tpu.memory_space<vmem>>, vector<512x4xf32>,
    %c0_55 = arith.constant 0 : index
    %c0_56 = arith.constant 0 : index
    %31 = vector.load %arg11[%c0_55, %c0_56] : memref<512x36xf32, #tpu.memory_space<vmem>>, vector<512x36xf32>
    %c0_57 = arith.constant 0 : index
    %c0_58 = arith.constant 0 : index
    %32 = vector.load %arg2[%c0_57, %c0_58] : memref<36x8xf32, #tpu.memory_space<vmem>>, vector<36x8xf32>
    %cst_59 = arith.constant dense<0.000000e+00> : vector<512x8xf32>
    %33 = tpu.matmul %31, %32, %cst_59 {dimension_numbers = #tpu.dot_dimension_numbers<[1], [0], [0], [1], [0, 0, 1, 1], [], []>} : vector<512x36xf32>, vector<36x8xf32>, vector<512x8xf32> -> vector<512x8xf32>
    %c0_60 = arith.constant 0 : index
    %c0_61 = arith.constant 0 : index
    %34 = vector.load %arg3[%c0_60, %c0_61] : memref<1x8xf32, #tpu.memory_space<vmem>>, vector<1x8xf32>
    %35 = vector.broadcast %34 : vector<1x8xf32> to vector<512x8xf32>
    %36 = arith.addf %33, %35 : vector<512x8xf32>
    %cst_62 = arith.constant dense<0.000000e+00> : vector<8xf32>
    %37 = vector.multi_reduction <add>, %36, %cst_62 [0] : vector<512x8xf32> to vector<8xf32>
    %38 = vector.shape_cast %37 : vector<8xf32> to vector<1x8xf32>
    %cst_63 = arith.constant 0.001953125 : f32
    %39 = vector.broadcast %cst_63 : f32 to vector<1x8xf32>
    %40 = arith.mulf %38, %39 : vector<1x8xf32>
    %41 = vector.broadcast %40 : vector<1x8xf32> to vector<512x8xf32>
    %42 = arith.subf %36, %41 : vector<512x8xf32>
    %43 = arith.mulf %42, %42 : vector<512x8xf32>
    %cst_64 = arith.constant dense<0.000000e+00> : vector<8xf32>
    %44 = vector.multi_reduction <add>, %43, %cst_64 [0] : vector<512x8xf32> to vector<8xf32>
    %45 = vector.shape_cast %44 : vector<8xf32> to vector<1x8xf32>
    %cst_65 = arith.constant 0.001953125 : f32
    %46 = vector.broadcast %cst_65 : f32 to vector<1x8xf32>
    %47 = arith.mulf %45, %46 : vector<1x8xf32>
    %48 = vector.broadcast %40 : vector<1x8xf32> to vector<512x8xf32>
    %49 = arith.subf %36, %48 : vector<512x8xf32>
    %cst_66 = arith.constant 9.99999974E-6 : f32
    %50 = vector.broadcast %cst_66 : f32 to vector<1x8xf32>
    %51 = arith.addf %47, %50 : vector<1x8xf32>
    %52 = math.rsqrt %51 : vector<1x8xf32>
    %53 = vector.broadcast %52 : vector<1x8xf32> to vector<512x8xf32>
    %54 = arith.mulf %49, %53 : vector<512x8xf32>
    %c0_67 = arith.constant 0 : index
    %c0_68 = arith.constant 0 : index
    %55 = vector.load %arg6[%c0_67, %c0_68] : memref<1x8xf32, #tpu.memory_space<vmem>>, vector<1x8xf32>
    %56 = vector.broadcast %55 : vector<1x8xf32> to vector<512x8xf32>
    %57 = arith.mulf %54, %56 : vector<512x8xf32>
    %c0_69 = arith.constant 0 : index
    %c0_70 = arith.constant 0 : index
    %58 = vector.load %arg7[%c0_69, %c0_70] : memref<1x8xf32, #tpu.memory_space<vmem>>, vector<1x8xf32>
    %59 = vector.broadcast %58 : vector<1x8xf32> to vector<512x8xf32>
    %60 = arith.addf %57, %59 : vector<512x8xf32>
    %cst_71 = arith.constant 0.000000e+00 : f32
    %61 = vector.broadcast %cst_71 : f32 to vector<512x8xf32>
    %62 = arith.maximumf %60, %61 : vector<512x8xf32>
    %cst_72 = arith.constant 0.000000e+00 : f32
    %63 = vector.broadcast %cst_72 : f32 to vector<2x18x18x8xf32>
    %c0_73 = arith.constant 0 : index
    %c0_74 = arith.constant 0 : index
    %c0_75 = arith.constant 0 : index
    %c0_76 = arith.constant 0 : index
    %64 = vector.load %arg10[%c0_73, %c0_74, %c0_75, %c0_76] : memref<2x18x18x8xf32, #tpu.memory_space<vmem>>, vector<2x18x18x8xf32>
    tpu.vector_store %arg10[%c0_73, %c0_74, %c0_75, %c0_76], %63 {strides = array<i32>} : memref<2x18x18x8xf32, #tpu.memory_space<vmem>>, vector<2x18x18x8xf32>,
    %65 = vector.shape_cast %62 : vector<512x8xf32> to vector<2x16x16x8xf32>
    %c0_77 = arith.constant 0 : index
    %c1_78 = arith.constant 1 : index
    %c1_79 = arith.constant 1 : index
    %c0_80 = arith.constant 0 : index
    %66 = vector.load %arg10[%c0_77, %c1_78, %c1_79, %c0_80] : memref<2x18x18x8xf32, #tpu.memory_space<vmem>>, vector<2x16x16x8xf32>
    tpu.vector_store %arg10[%c0_77, %c1_78, %c1_79, %c0_80], %65 {strides = array<i32>} : memref<2x18x18x8xf32, #tpu.memory_space<vmem>>, vector<2x16x16x8xf32>,
    %c0_81 = arith.constant 0 : index
    %c0_82 = arith.constant 0 : index
    %c0_83 = arith.constant 0 : index
    %c0_84 = arith.constant 0 : index
    %67 = vector.load %arg10[%c0_81, %c0_82, %c0_83, %c0_84] : memref<2x18x18x8xf32, #tpu.memory_space<vmem>>, vector<2x16x16x8xf32>
    %68 = vector.shape_cast %67 : vector<2x16x16x8xf32> to vector<512x8xf32>
    %c0_85 = arith.constant 0 : index
    %c0_86 = arith.constant 0 : index
    %69 = vector.load %arg12[%c0_85, %c0_86] : memref<512x72xf32, #tpu.memory_space<vmem>>, vector<512x8xf32>
    tpu.vector_store %arg12[%c0_85, %c0_86], %68 {strides = array<i32>} : memref<512x72xf32, #tpu.memory_space<vmem>>, vector<512x8xf32>,
    %c0_87 = arith.constant 0 : index
    %c0_88 = arith.constant 0 : index
    %c1_89 = arith.constant 1 : index
    %c0_90 = arith.constant 0 : index
    %70 = vector.load %arg10[%c0_87, %c0_88, %c1_89, %c0_90] : memref<2x18x18x8xf32, #tpu.memory_space<vmem>>, vector<2x16x16x8xf32>
    %71 = vector.shape_cast %70 : vector<2x16x16x8xf32> to vector<512x8xf32>
    %c0_91 = arith.constant 0 : index
    %c8_92 = arith.constant 8 : index
    %72 = vector.load %arg12[%c0_91, %c8_92] : memref<512x72xf32, #tpu.memory_space<vmem>>, vector<512x8xf32>
    tpu.vector_store %arg12[%c0_91, %c8_92], %71 {strides = array<i32>} : memref<512x72xf32, #tpu.memory_space<vmem>>, vector<512x8xf32>,
    %c0_93 = arith.constant 0 : index
    %c0_94 = arith.constant 0 : index
    %c2_95 = arith.constant 2 : index
    %c0_96 = arith.constant 0 : index
    %73 = vector.load %arg10[%c0_93, %c0_94, %c2_95, %c0_96] : memref<2x18x18x8xf32, #tpu.memory_space<vmem>>, vector<2x16x16x8xf32>
    %74 = vector.shape_cast %73 : vector<2x16x16x8xf32> to vector<512x8xf32>
    %c0_97 = arith.constant 0 : index
    %c16_98 = arith.constant 16 : index
    %75 = vector.load %arg12[%c0_97, %c16_98] : memref<512x72xf32, #tpu.memory_space<vmem>>, vector<512x8xf32>
    tpu.vector_store %arg12[%c0_97, %c16_98], %74 {strides = array<i32>} : memref<512x72xf32, #tpu.memory_space<vmem>>, vector<512x8xf32>,
    %c0_99 = arith.constant 0 : index
    %c1_100 = arith.constant 1 : index
    %c0_101 = arith.constant 0 : index
    %c0_102 = arith.constant 0 : index
    %76 = vector.load %arg10[%c0_99, %c1_100, %c0_101, %c0_102] : memref<2x18x18x8xf32, #tpu.memory_space<vmem>>, vector<2x16x16x8xf32>
    %77 = vector.shape_cast %76 : vector<2x16x16x8xf32> to vector<512x8xf32>
    %c0_103 = arith.constant 0 : index
    %c24_104 = arith.constant 24 : index
    %78 = vector.load %arg12[%c0_103, %c24_104] : memref<512x72xf32, #tpu.memory_space<vmem>>, vector<512x8xf32>
    tpu.vector_store %arg12[%c0_103, %c24_104], %77 {strides = array<i32>} : memref<512x72xf32, #tpu.memory_space<vmem>>, vector<512x8xf32>,
    %c0_105 = arith.constant 0 : index
    %c1_106 = arith.constant 1 : index
    %c1_107 = arith.constant 1 : index
    %c0_108 = arith.constant 0 : index
    %79 = vector.load %arg10[%c0_105, %c1_106, %c1_107, %c0_108] : memref<2x18x18x8xf32, #tpu.memory_space<vmem>>, vector<2x16x16x8xf32>
    %80 = vector.shape_cast %79 : vector<2x16x16x8xf32> to vector<512x8xf32>
    %c0_109 = arith.constant 0 : index
    %c32_110 = arith.constant 32 : index
    %81 = vector.load %arg12[%c0_109, %c32_110] : memref<512x72xf32, #tpu.memory_space<vmem>>, vector<512x8xf32>
    tpu.vector_store %arg12[%c0_109, %c32_110], %80 {strides = array<i32>} : memref<512x72xf32, #tpu.memory_space<vmem>>, vector<512x8xf32>,
    %c0_111 = arith.constant 0 : index
    %c1_112 = arith.constant 1 : index
    %c2_113 = arith.constant 2 : index
    %c0_114 = arith.constant 0 : index
    %82 = vector.load %arg10[%c0_111, %c1_112, %c2_113, %c0_114] : memref<2x18x18x8xf32, #tpu.memory_space<vmem>>, vector<2x16x16x8xf32>
    %83 = vector.shape_cast %82 : vector<2x16x16x8xf32> to vector<512x8xf32>
    %c0_115 = arith.constant 0 : index
    %c40 = arith.constant 40 : index
    %84 = vector.load %arg12[%c0_115, %c40] : memref<512x72xf32, #tpu.memory_space<vmem>>, vector<512x8xf32>
    tpu.vector_store %arg12[%c0_115, %c40], %83 {strides = array<i32>} : memref<512x72xf32, #tpu.memory_space<vmem>>, vector<512x8xf32>,
    %c0_116 = arith.constant 0 : index
    %c2_117 = arith.constant 2 : index
    %c0_118 = arith.constant 0 : index
    %c0_119 = arith.constant 0 : index
    %85 = vector.load %arg10[%c0_116, %c2_117, %c0_118, %c0_119] : memref<2x18x18x8xf32, #tpu.memory_space<vmem>>, vector<2x16x16x8xf32>
    %86 = vector.shape_cast %85 : vector<2x16x16x8xf32> to vector<512x8xf32>
    %c0_120 = arith.constant 0 : index
    %c48 = arith.constant 48 : index
    %87 = vector.load %arg12[%c0_120, %c48] : memref<512x72xf32, #tpu.memory_space<vmem>>, vector<512x8xf32>
    tpu.vector_store %arg12[%c0_120, %c48], %86 {strides = array<i32>} : memref<512x72xf32, #tpu.memory_space<vmem>>, vector<512x8xf32>,
    %c0_121 = arith.constant 0 : index
    %c2_122 = arith.constant 2 : index
    %c1_123 = arith.constant 1 : index
    %c0_124 = arith.constant 0 : index
    %88 = vector.load %arg10[%c0_121, %c2_122, %c1_123, %c0_124] : memref<2x18x18x8xf32, #tpu.memory_space<vmem>>, vector<2x16x16x8xf32>
    %89 = vector.shape_cast %88 : vector<2x16x16x8xf32> to vector<512x8xf32>
    %c0_125 = arith.constant 0 : index
    %c56 = arith.constant 56 : index
    %90 = vector.load %arg12[%c0_125, %c56] : memref<512x72xf32, #tpu.memory_space<vmem>>, vector<512x8xf32>
    tpu.vector_store %arg12[%c0_125, %c56], %89 {strides = array<i32>} : memref<512x72xf32, #tpu.memory_space<vmem>>, vector<512x8xf32>,
    %c0_126 = arith.constant 0 : index
    %c2_127 = arith.constant 2 : index
    %c2_128 = arith.constant 2 : index
    %c0_129 = arith.constant 0 : index
    %91 = vector.load %arg10[%c0_126, %c2_127, %c2_128, %c0_129] : memref<2x18x18x8xf32, #tpu.memory_space<vmem>>, vector<2x16x16x8xf32>
    %92 = vector.shape_cast %91 : vector<2x16x16x8xf32> to vector<512x8xf32>
    %c0_130 = arith.constant 0 : index
    %c64 = arith.constant 64 : index
    %93 = vector.load %arg12[%c0_130, %c64] : memref<512x72xf32, #tpu.memory_space<vmem>>, vector<512x8xf32>
    tpu.vector_store %arg12[%c0_130, %c64], %92 {strides = array<i32>} : memref<512x72xf32, #tpu.memory_space<vmem>>, vector<512x8xf32>,
    %c0_131 = arith.constant 0 : index
    %c0_132 = arith.constant 0 : index
    %94 = vector.load %arg12[%c0_131, %c0_132] : memref<512x72xf32, #tpu.memory_space<vmem>>, vector<512x72xf32>
    %c0_133 = arith.constant 0 : index
    %c0_134 = arith.constant 0 : index
    %95 = vector.load %arg4[%c0_133, %c0_134] : memref<72x8xf32, #tpu.memory_space<vmem>>, vector<72x8xf32>
    %cst_135 = arith.constant dense<0.000000e+00> : vector<512x8xf32>
    %96 = tpu.matmul %94, %95, %cst_135 {dimension_numbers = #tpu.dot_dimension_numbers<[1], [0], [0], [1], [0, 0, 1, 1], [], []>} : vector<512x72xf32>, vector<72x8xf32>, vector<512x8xf32> -> vector<512x8xf32>
    %c0_136 = arith.constant 0 : index
    %c0_137 = arith.constant 0 : index
    %97 = vector.load %arg5[%c0_136, %c0_137] : memref<1x8xf32, #tpu.memory_space<vmem>>, vector<1x8xf32>
    %98 = vector.broadcast %97 : vector<1x8xf32> to vector<512x8xf32>
    %99 = arith.addf %96, %98 : vector<512x8xf32>
    %cst_138 = arith.constant dense<0.000000e+00> : vector<8xf32>
    %100 = vector.multi_reduction <add>, %99, %cst_138 [0] : vector<512x8xf32> to vector<8xf32>
    %101 = vector.shape_cast %100 : vector<8xf32> to vector<1x8xf32>
    %cst_139 = arith.constant 0.001953125 : f32
    %102 = vector.broadcast %cst_139 : f32 to vector<1x8xf32>
    %103 = arith.mulf %101, %102 : vector<1x8xf32>
    %104 = vector.broadcast %103 : vector<1x8xf32> to vector<512x8xf32>
    %105 = arith.subf %99, %104 : vector<512x8xf32>
    %106 = arith.mulf %105, %105 : vector<512x8xf32>
    %cst_140 = arith.constant dense<0.000000e+00> : vector<8xf32>
    %107 = vector.multi_reduction <add>, %106, %cst_140 [0] : vector<512x8xf32> to vector<8xf32>
    %108 = vector.shape_cast %107 : vector<8xf32> to vector<1x8xf32>
    %cst_141 = arith.constant 0.001953125 : f32
    %109 = vector.broadcast %cst_141 : f32 to vector<1x8xf32>
    %110 = arith.mulf %108, %109 : vector<1x8xf32>
    %111 = vector.broadcast %103 : vector<1x8xf32> to vector<512x8xf32>
    %112 = arith.subf %99, %111 : vector<512x8xf32>
    %cst_142 = arith.constant 9.99999974E-6 : f32
    %113 = vector.broadcast %cst_142 : f32 to vector<1x8xf32>
    %114 = arith.addf %110, %113 : vector<1x8xf32>
    %115 = math.rsqrt %114 : vector<1x8xf32>
    %116 = vector.broadcast %115 : vector<1x8xf32> to vector<512x8xf32>
    %117 = arith.mulf %112, %116 : vector<512x8xf32>
    %c0_143 = arith.constant 0 : index
    %c0_144 = arith.constant 0 : index
    %118 = vector.load %arg6[%c0_143, %c0_144] : memref<1x8xf32, #tpu.memory_space<vmem>>, vector<1x8xf32>
    %119 = vector.broadcast %118 : vector<1x8xf32> to vector<512x8xf32>
    %120 = arith.mulf %117, %119 : vector<512x8xf32>
    %c0_145 = arith.constant 0 : index
    %c0_146 = arith.constant 0 : index
    %121 = vector.load %arg7[%c0_145, %c0_146] : memref<1x8xf32, #tpu.memory_space<vmem>>, vector<1x8xf32>
    %122 = vector.broadcast %121 : vector<1x8xf32> to vector<512x8xf32>
    %123 = arith.addf %120, %122 : vector<512x8xf32>
    %cst_147 = arith.constant 0.000000e+00 : f32
    %124 = vector.broadcast %cst_147 : f32 to vector<512x8xf32>
    %125 = arith.maximumf %123, %124 : vector<512x8xf32>
    %126 = vector.shape_cast %125 : vector<512x8xf32> to vector<2x16x16x8xf32>
    %c0_148 = arith.constant 0 : index
    %c0_149 = arith.constant 0 : index
    %c0_150 = arith.constant 0 : index
    %c0_151 = arith.constant 0 : index
    %127 = vector.load %arg8[%c0_148, %c0_149, %c0_150, %c0_151] : memref<2x16x16x8xf32, #tpu.memory_space<vmem>>, vector<2x16x16x8xf32>
    tpu.vector_store %arg8[%c0_148, %c0_149, %c0_150, %c0_151], %126 {strides = array<i32>} : memref<2x16x16x8xf32, #tpu.memory_space<vmem>>, vector<2x16x16x8xf32>,
    return
  }
  func.func @transform_0(%arg0: i32) -> (i32, i32, i32, i32) {
    %c0_i32 = arith.constant 0 : i32
    %c0_i32_0 = arith.constant 0 : i32
    %c0_i32_1 = arith.constant 0 : i32
    %c0_i32_2 = arith.constant 0 : i32
    %c0_i32_3 = arith.constant 0 : i32
    return %c0_i32, %c0_i32_0, %c0_i32_1, %c0_i32_2 : i32, i32, i32, i32
  }
  func.func @transform_1(%arg0: i32) -> (i32, i32) {
    %c0_i32 = arith.constant 0 : i32
    %c0_i32_0 = arith.constant 0 : i32
    %c0_i32_1 = arith.constant 0 : i32
    return %c0_i32, %c0_i32_0 : i32, i32
  }
  func.func @transform_2(%arg0: i32) -> (i32, i32) {
    %c0_i32 = arith.constant 0 : i32
    %c0_i32_0 = arith.constant 0 : i32
    %c0_i32_1 = arith.constant 0 : i32
    return %c0_i32, %c0_i32_0 : i32, i32
  }
  func.func @transform_3(%arg0: i32) -> (i32, i32) {
    %c0_i32 = arith.constant 0 : i32
    %c0_i32_0 = arith.constant 0 : i32
    %c0_i32_1 = arith.constant 0 : i32
    return %c0_i32, %c0_i32_0 : i32, i32
  }
  func.func @transform_4(%arg0: i32) -> (i32, i32) {
    %c0_i32 = arith.constant 0 : i32
    %c0_i32_0 = arith.constant 0 : i32
    %c0_i32_1 = arith.constant 0 : i32
    return %c0_i32, %c0_i32_0 : i32, i32
  }
  func.func @transform_5(%arg0: i32) -> (i32, i32) {
    %c0_i32 = arith.constant 0 : i32
    %c0_i32_0 = arith.constant 0 : i32
    %c0_i32_1 = arith.constant 0 : i32
    return %c0_i32, %c0_i32_0 : i32, i32
  }
  func.func @transform_6(%arg0: i32) -> (i32, i32) {
    %c0_i32 = arith.constant 0 : i32
    %c0_i32_0 = arith.constant 0 : i32
    %c0_i32_1 = arith.constant 0 : i32
    return %c0_i32, %c0_i32_0 : i32, i32
  }
  func.func @transform_7(%arg0: i32) -> (i32, i32, i32, i32) {
    %c0_i32 = arith.constant 0 : i32
    %c0_i32_0 = arith.constant 0 : i32
    %c0_i32_1 = arith.constant 0 : i32
    %c0_i32_2 = arith.constant 0 : i32
    %c0_i32_3 = arith.constant 0 : i32
    return %c0_i32, %c0_i32_0, %c0_i32_1, %c0_i32_2 : i32, i32, i32, i32
  }
}

</mosaic_0001>

<llo_original>
// kernel: double_conv_forward.1
$region0: #{double_conv_forward.1}
  #allocation0 [shape = 'u32[]', space=smem, size = 0x4, offset = 0x4, fixed_abs, tag = 'smem constant byte address 0x4 - core index']
  #allocation1 [shape = 'u32[144,128]{1,0:T(1,128)}', space=vmem, size = 0x12000, scoped, tag = 'internal scratch']
  #allocation2 [shape = 'f32[2,18,18,4]{3,2,1,0:T(8,128)}', space=vmem, size = 0x6c000, scoped, tag = 'scratch operand']
  #allocation3 [shape = 'f32[2,18,18,8]{3,2,1,0:T(8,128)}', space=vmem, size = 0x6c000, scoped, tag = 'scratch operand']
  #allocation4 [shape = 'f32[512,36]{1,0:T(8,128)}', space=vmem, size = 0x40000, scoped, tag = 'scratch operand']
  #allocation5 [shape = 'f32[512,72]{1,0:T(8,128)}', space=vmem, size = 0x40000, scoped, tag = 'scratch operand']
  %s0 = inlined_call_operand.vmem [shape: f32[2,16,16,4], index: 0, kind: input, shape index: {}]
  %s1 = inlined_call_operand.vmem [shape: f32[36,8], index: 1, kind: input, shape index: {}]
  %s2 = inlined_call_operand.vmem [shape: f32[1,8], index: 2, kind: input, shape index: {}]
  %s3 = inlined_call_operand.vmem [shape: f32[72,8], index: 3, kind: input, shape index: {}]
  %s4 = inlined_call_operand.vmem [shape: f32[1,8], index: 4, kind: input, shape index: {}]
  %s5 = inlined_call_operand.vmem [shape: f32[1,8], index: 5, kind: input, shape index: {}]
  %s6 = inlined_call_operand.vmem [shape: f32[1,8], index: 6, kind: input, shape index: {}]
  %s7 = inlined_call_operand.vmem [shape: f32[2,16,16,8], index: 7, kind: output, shape index: {}]
  %s8 = sld [smem:[#allocation0]]
  $region38: #{double_conv_forward.1} parent=0
    _
  %s10 = ssub.s32 1, %s8
  %s11 = scalar_select 0, %s10, %s8
  // Predicated region
  $region2: #{double_conv_forward.1} parent=0 // pred_check
    _
  $region3: #{double_conv_forward.1} parent=0 // pred_check_branch
    %13 = sbr.rel (0) target = $region5
  $region4: #{double_conv_forward.1} parent=0 // pred_region
    _
  $region5: #{double_conv_forward.1} parent=0 // pred_fallthru
    _
  // Predicated region
  $region6: #{double_conv_forward.1} parent=0 // pred_check
    _
  $region7: #{double_conv_forward.1} parent=0 // pred_check_branch
    %15 = sbr.rel (0) target = $region9
  $region8: #{double_conv_forward.1} parent=0 // pred_region
    _
  $region9: #{double_conv_forward.1} parent=0 // pred_fallthru
    _
  // Predicated region
  $region10: #{double_conv_forward.1} parent=0 // pred_check
    _
  $region11: #{double_conv_forward.1} parent=0 // pred_check_branch
    %17 = sbr.rel (0) target = $region13
  $region12: #{double_conv_forward.1} parent=0 // pred_region
    _
  $region13: #{double_conv_forward.1} parent=0 // pred_fallthru
    _
  // Predicated region
  $region14: #{double_conv_forward.1} parent=0 // pred_check
    _
  $region15: #{double_conv_forward.1} parent=0 // pred_check_branch
    %19 = sbr.rel (0) target = $region17
  $region16: #{double_conv_forward.1} parent=0 // pred_region
    _
  $region17: #{double_conv_forward.1} parent=0 // pred_fallthru
    _
  // Predicated region
  $region18: #{double_conv_forward.1} parent=0 // pred_check
    _
  $region19: #{double_conv_forward.1} parent=0 // pred_check_branch
    %21 = sbr.rel (0) target = $region21
  $region20: #{double_conv_forward.1} parent=0 // pred_region
    _
  $region21: #{double_conv_forward.1} parent=0 // pred_fallthru
    _
  // Predicated region
  $region22: #{double_conv_forward.1} parent=0 // pred_check
    _
  $region23: #{double_conv_forward.1} parent=0 // pred_check_branch
    %23 = sbr.rel (0) target = $region25
  $region24: #{double_conv_forward.1} parent=0 // pred_region
    _
  $region25: #{double_conv_forward.1} parent=0 // pred_fallthru
    _
  // Predicated region
  $region26: #{double_conv_forward.1} parent=0 // pred_check
    _
  $region27: #{double_conv_forward.1} parent=0 // pred_check_branch
    %25 = sbr.rel (0) target = $region29
  $region28: #{double_conv_forward.1} parent=0 // pred_region
    _
  $region29: #{double_conv_forward.1} parent=0 // pred_fallthru
    _
  %vm26 = vcmask 31744
  %27 = vst.msk [vmem:[#allocation2] sm:$0xff] %vm26, 0.0
  %28 = vst.msk [vmem:[#allocation2 + $0x8] sm:$0xff] %vm26, 0.0
  %vm29 = vcmask 25600
  %30 = vst.msk [vmem:[#allocation2 + $0x10] sm:$0x3] %vm29, 0.0
  %31 = vst.msk [vmem:[#allocation2 + $0x18] sm:$0xff] %vm26, 0.0
  %32 = vst.msk [vmem:[#allocation2 + $0x20] sm:$0xff] %vm26, 0.0
  %33 = vst.msk [vmem:[#allocation2 + $0x28] sm:$0x3] %vm29, 0.0
  %34 = vst.msk [vmem:[#allocation2 + $0x30] sm:$0xff] %vm26, 0.0
  %35 = vst.msk [vmem:[#allocation2 + $0x38] sm:$0xff] %vm26, 0.0
  %36 = vst.msk [vmem:[#allocation2 + $0x40] sm:$0x3] %vm29, 0.0
  %37 = vst.msk [vmem:[#allocation2 + $0x48] sm:$0xff] %vm26, 0.0
  %38 = vst.msk [vmem:[#allocation2 + $0x50] sm:$0xff] %vm26, 0.0
  %39 = vst.msk [vmem:[#allocation2 + $0x58] sm:$0x3] %vm29, 0.0
  %40 = vst.msk [vmem:[#allocation2 + $0x60] sm:$0xff] %vm26, 0.0
  %41 = vst.msk [vmem:[#allocation2 + $0x68] sm:$0xff] %vm26, 0.0
  %42 = vst.msk [vmem:[#allocation2 + $0x70] sm:$0x3] %vm29, 0.0
  %43 = vst.msk [vmem:[#allocation2 + $0x78] sm:$0xff] %vm26, 0.0
  %44 = vst.msk [vmem:[#allocation2 + $0x80] sm:$0xff] %vm26, 0.0
  %45 = vst.msk [vmem:[#allocation2 + $0x88] sm:$0x3] %vm29, 0.0
  %46 = vst.msk [vmem:[#allocation2 + $0x90] sm:$0xff] %vm26, 0.0
  %47 = vst.msk [vmem:[#allocation2 + $0x98] sm:$0xff] %vm26, 0.0
  %48 = vst.msk [vmem:[#allocation2 + $0xa0] sm:$0x3] %vm29, 0.0
  %49 = vst.msk [vmem:[#allocation2 + $0xa8] sm:$0xff] %vm26, 0.0
  %50 = vst.msk [vmem:[#allocation2 + $0xb0] sm:$0xff] %vm26, 0.0
  %51 = vst.msk [vmem:[#allocation2 + $0xb8] sm:$0x3] %vm29, 0.0
  %52 = vst.msk [vmem:[#allocation2 + $0xc0] sm:$0xff] %vm26, 0.0
  %53 = vst.msk [vmem:[#allocation2 + $0xc8] sm:$0xff] %vm26, 0.0
  %54 = vst.msk [vmem:[#allocation2 + $0xd0] sm:$0x3] %vm29, 0.0
  %55 = vst.msk [vmem:[#allocation2 + $0xd8] sm:$0xff] %vm26, 0.0
  %56 = vst.msk [vmem:[#allocation2 + $0xe0] sm:$0xff] %vm26, 0.0
  %57 = vst.msk [vmem:[#allocation2 + $0xe8] sm:$0x3] %vm29, 0.0
  %58 = vst.msk [vmem:[#allocation2 + $0xf0] sm:$0xff] %vm26, 0.0
  %59 = vst.msk [vmem:[#allocation2 + $0xf8] sm:$0xff] %vm26, 0.0
  %60 = vst.msk [vmem:[#allocation2 + $0x100] sm:$0x3] %vm29, 0.0
  %61 = vst.msk [vmem:[#allocation2 + $0x108] sm:$0xff] %vm26, 0.0
  %62 = vst.msk [vmem:[#allocation2 + $0x110] sm:$0xff] %vm26, 0.0
  %63 = vst.msk [vmem:[#allocation2 + $0x118] sm:$0x3] %vm29, 0.0
  %64 = vst.msk [vmem:[#allocation2 + $0x120] sm:$0xff] %vm26, 0.0
  %65 = vst.msk [vmem:[#allocation2 + $0x128] sm:$0xff] %vm26, 0.0
  %66 = vst.msk [vmem:[#allocation2 + $0x130] sm:$0x3] %vm29, 0.0
  %67 = vst.msk [vmem:[#allocation2 + $0x138] sm:$0xff] %vm26, 0.0
  %68 = vst.msk [vmem:[#allocation2 + $0x140] sm:$0xff] %vm26, 0.0
  %69 = vst.msk [vmem:[#allocation2 + $0x148] sm:$0x3] %vm29, 0.0
  %70 = vst.msk [vmem:[#allocation2 + $0x150] sm:$0xff] %vm26, 0.0
  %71 = vst.msk [vmem:[#allocation2 + $0x158] sm:$0xff] %vm26, 0.0
  %72 = vst.msk [vmem:[#allocation2 + $0x160] sm:$0x3] %vm29, 0.0
  %73 = vst.msk [vmem:[#allocation2 + $0x168] sm:$0xff] %vm26, 0.0
  %74 = vst.msk [vmem:[#allocation2 + $0x170] sm:$0xff] %vm26, 0.0
  %75 = vst.msk [vmem:[#allocation2 + $0x178] sm:$0x3] %vm29, 0.0
  %76 = vst.msk [vmem:[#allocation2 + $0x180] sm:$0xff] %vm26, 0.0
  %77 = vst.msk [vmem:[#allocation2 + $0x188] sm:$0xff] %vm26, 0.0
  %78 = vst.msk [vmem:[#allocation2 + $0x190] sm:$0x3] %vm29, 0.0
  %79 = vst.msk [vmem:[#allocation2 + $0x198] sm:$0xff] %vm26, 0.0
  %80 = vst.msk [vmem:[#allocation2 + $0x1a0] sm:$0xff] %vm26, 0.0
  %81 = vst.msk [vmem:[#allocation2 + $0x1a8] sm:$0x3] %vm29, 0.0
  %82 = vst.msk [vmem:[#allocation2 + $0x1b0] sm:$0xff] %vm26, 0.0
  %83 = vst.msk [vmem:[#allocation2 + $0x1b8] sm:$0xff] %vm26, 0.0
  %84 = vst.msk [vmem:[#allocation2 + $0x1c0] sm:$0x3] %vm29, 0.0
  %85 = vst.msk [vmem:[#allocation2 + $0x1c8] sm:$0xff] %vm26, 0.0
  %86 = vst.msk [vmem:[#allocation2 + $0x1d0] sm:$0xff] %vm26, 0.0
  %87 = vst.msk [vmem:[#allocation2 + $0x1d8] sm:$0x3] %vm29, 0.0
  %88 = vst.msk [vmem:[#allocation2 + $0x1e0] sm:$0xff] %vm26, 0.0
  %89 = vst.msk [vmem:[#allocation2 + $0x1e8] sm:$0xff] %vm26, 0.0
  %90 = vst.msk [vmem:[#allocation2 + $0x1f0] sm:$0x3] %vm29, 0.0
  %91 = vst.msk [vmem:[#allocation2 + $0x1f8] sm:$0xff] %vm26, 0.0
  %92 = vst.msk [vmem:[#allocation2 + $0x200] sm:$0xff] %vm26, 0.0
  %93 = vst.msk [vmem:[#allocation2 + $0x208] sm:$0x3] %vm29, 0.0
  %94 = vst.msk [vmem:[#allocation2 + $0x210] sm:$0xff] %vm26, 0.0
  %95 = vst.msk [vmem:[#allocation2 + $0x218] sm:$0xff] %vm26, 0.0
  %96 = vst.msk [vmem:[#allocation2 + $0x220] sm:$0x3] %vm29, 0.0
  %97 = vst.msk [vmem:[#allocation2 + $0x228] sm:$0xff] %vm26, 0.0
  %98 = vst.msk [vmem:[#allocation2 + $0x230] sm:$0xff] %vm26, 0.0
  %99 = vst.msk [vmem:[#allocation2 + $0x238] sm:$0x3] %vm29, 0.0
  %100 = vst.msk [vmem:[#allocation2 + $0x240] sm:$0xff] %vm26, 0.0
  %101 = vst.msk [vmem:[#allocation2 + $0x248] sm:$0xff] %vm26, 0.0
  %102 = vst.msk [vmem:[#allocation2 + $0x250] sm:$0x3] %vm29, 0.0
  %103 = vst.msk [vmem:[#allocation2 + $0x258] sm:$0xff] %vm26, 0.0
  %104 = vst.msk [vmem:[#allocation2 + $0x260] sm:$0xff] %vm26, 0.0
  %105 = vst.msk [vmem:[#allocation2 + $0x268] sm:$0x3] %vm29, 0.0
  %106 = vst.msk [vmem:[#allocation2 + $0x270] sm:$0xff] %vm26, 0.0
  %107 = vst.msk [vmem:[#allocation2 + $0x278] sm:$0xff] %vm26, 0.0
  %108 = vst.msk [vmem:[#allocation2 + $0x280] sm:$0x3] %vm29, 0.0
  %109 = vst.msk [vmem:[#allocation2 + $0x288] sm:$0xff] %vm26, 0.0
  %110 = vst.msk [vmem:[#allocation2 + $0x290] sm:$0xff] %vm26, 0.0
  %111 = vst.msk [vmem:[#allocation2 + $0x298] sm:$0x3] %vm29, 0.0
  %112 = vst.msk [vmem:[#allocation2 + $0x2a0] sm:$0xff] %vm26, 0.0
  %113 = vst.msk [vmem:[#allocation2 + $0x2a8] sm:$0xff] %vm26, 0.0
  %114 = vst.msk [vmem:[#allocation2 + $0x2b0] sm:$0x3] %vm29, 0.0
  %115 = vst.msk [vmem:[#allocation2 + $0x2b8] sm:$0xff] %vm26, 0.0
  %116 = vst.msk [vmem:[#allocation2 + $0x2c0] sm:$0xff] %vm26, 0.0
  %117 = vst.msk [vmem:[#allocation2 + $0x2c8] sm:$0x3] %vm29, 0.0
  %118 = vst.msk [vmem:[#allocation2 + $0x2d0] sm:$0xff] %vm26, 0.0
  %119 = vst.msk [vmem:[#allocation2 + $0x2d8] sm:$0xff] %vm26, 0.0
  %120 = vst.msk [vmem:[#allocation2 + $0x2e0] sm:$0x3] %vm29, 0.0
  %121 = vst.msk [vmem:[#allocation2 + $0x2e8] sm:$0xff] %vm26, 0.0
  %122 = vst.msk [vmem:[#allocation2 + $0x2f0] sm:$0xff] %vm26, 0.0
  %123 = vst.msk [vmem:[#allocation2 + $0x2f8] sm:$0x3] %vm29, 0.0
  %124 = vst.msk [vmem:[#allocation2 + $0x300] sm:$0xff] %vm26, 0.0
  %125 = vst.msk [vmem:[#allocation2 + $0x308] sm:$0xff] %vm26, 0.0
  %126 = vst.msk [vmem:[#allocation2 + $0x310] sm:$0x3] %vm29, 0.0
  %127 = vst.msk [vmem:[#allocation2 + $0x318] sm:$0xff] %vm26, 0.0
  %128 = vst.msk [vmem:[#allocation2 + $0x320] sm:$0xff] %vm26, 0.0
  %129 = vst.msk [vmem:[#allocation2 + $0x328] sm:$0x3] %vm29, 0.0
  %130 = vst.msk [vmem:[#allocation2 + $0x330] sm:$0xff] %vm26, 0.0
  %131 = vst.msk [vmem:[#allocation2 + $0x338] sm:$0xff] %vm26, 0.0
  %132 = vst.msk [vmem:[#allocation2 + $0x340] sm:$0x3] %vm29, 0.0
  %133 = vst.msk [vmem:[#allocation2 + $0x348] sm:$0xff] %vm26, 0.0
  %134 = vst.msk [vmem:[#allocation2 + $0x350] sm:$0xff] %vm26, 0.0
  %135 = vst.msk [vmem:[#allocation2 + $0x358] sm:$0x3] %vm29, 0.0
  %v136 = vld [vmem:[%s0] sm:$0xff]
  %v137 = vld [vmem:[%s0 + $0x8] sm:$0xff]
  %v138 = vld [vmem:[%s0 + $0x10] sm:$0xff]
  %v139 = vld [vmem:[%s0 + $0x18] sm:$0xff]
  %v140 = vld [vmem:[%s0 + $0x20] sm:$0xff]
  %v141 = vld [vmem:[%s0 + $0x28] sm:$0xff]
  %v142 = vld [vmem:[%s0 + $0x30] sm:$0xff]
  %v143 = vld [vmem:[%s0 + $0x38] sm:$0xff]
  %v144 = vld [vmem:[%s0 + $0x40] sm:$0xff]
  %v145 = vld [vmem:[%s0 + $0x48] sm:$0xff]
  %v146 = vld [vmem:[%s0 + $0x50] sm:$0xff]
  %v147 = vld [vmem:[%s0 + $0x58] sm:$0xff]
  %v148 = vld [vmem:[%s0 + $0x60] sm:$0xff]
  %v149 = vld [vmem:[%s0 + $0x68] sm:$0xff]
  %v150 = vld [vmem:[%s0 + $0x70] sm:$0xff]
  %v151 = vld [vmem:[%s0 + $0x78] sm:$0xff]
  %v152 = vld [vmem:[%s0 + $0x80] sm:$0xff]
  %v153 = vld [vmem:[%s0 + $0x88] sm:$0xff]
  %v154 = vld [vmem:[%s0 + $0x90] sm:$0xff]
  %v155 = vld [vmem:[%s0 + $0x98] sm:$0xff]
  %v156 = vld [vmem:[%s0 + $0xa0] sm:$0xff]
  %v157 = vld [vmem:[%s0 + $0xa8] sm:$0xff]
  %v158 = vld [vmem:[%s0 + $0xb0] sm:$0xff]
  %v159 = vld [vmem:[%s0 + $0xb8] sm:$0xff]
  %v160 = vld [vmem:[%s0 + $0xc0] sm:$0xff]
  %v161 = vld [vmem:[%s0 + $0xc8] sm:$0xff]
  %v162 = vld [vmem:[%s0 + $0xd0] sm:$0xff]
  %v163 = vld [vmem:[%s0 + $0xd8] sm:$0xff]
  %v164 = vld [vmem:[%s0 + $0xe0] sm:$0xff]
  %v165 = vld [vmem:[%s0 + $0xe8] sm:$0xff]
  %v166 = vld [vmem:[%s0 + $0xf0] sm:$0xff]
  %v167 = vld [vmem:[%s0 + $0xf8] sm:$0xff]
  %v168 = vld [vmem:[%s0 + $0x100] sm:$0xff]
  %v169 = vld [vmem:[%s0 + $0x108] sm:$0xff]
  %v170 = vld [vmem:[%s0 + $0x110] sm:$0xff]
  %v171 = vld [vmem:[%s0 + $0x118] sm:$0xff]
  %v172 = vld [vmem:[%s0 + $0x120] sm:$0xff]
  %v173 = vld [vmem:[%s0 + $0x128] sm:$0xff]
  %v174 = vld [vmem:[%s0 + $0x130] sm:$0xff]
  %v175 = vld [vmem:[%s0 + $0x138] sm:$0xff]
  %v176 = vld [vmem:[%s0 + $0x140] sm:$0xff]
  %v177 = vld [vmem:[%s0 + $0x148] sm:$0xff]
  %v178 = vld [vmem:[%s0 + $0x150] sm:$0xff]
  %v179 = vld [vmem:[%s0 + $0x158] sm:$0xff]
  %v180 = vld [vmem:[%s0 + $0x160] sm:$0xff]
  %v181 = vld [vmem:[%s0 + $0x168] sm:$0xff]
  %v182 = vld [vmem:[%s0 + $0x170] sm:$0xff]
  %v183 = vld [vmem:[%s0 + $0x178] sm:$0xff]
  %v184 = vld [vmem:[%s0 + $0x180] sm:$0xff]
  %v185 = vld [vmem:[%s0 + $0x188] sm:$0xff]
  %v186 = vld [vmem:[%s0 + $0x190] sm:$0xff]
  %v187 = vld [vmem:[%s0 + $0x198] sm:$0xff]
  %v188 = vld [vmem:[%s0 + $0x1a0] sm:$0xff]
  %v189 = vld [vmem:[%s0 + $0x1a8] sm:$0xff]
  %v190 = vld [vmem:[%s0 + $0x1b0] sm:$0xff]
  %v191 = vld [vmem:[%s0 + $0x1b8] sm:$0xff]
  %v192 = vld [vmem:[%s0 + $0x1c0] sm:$0xff]
  %v193 = vld [vmem:[%s0 + $0x1c8] sm:$0xff]
  %v194 = vld [vmem:[%s0 + $0x1d0] sm:$0xff]
  %v195 = vld [vmem:[%s0 + $0x1d8] sm:$0xff]
  %v196 = vld [vmem:[%s0 + $0x1e0] sm:$0xff]
  %v197 = vld [vmem:[%s0 + $0x1e8] sm:$0xff]
  %v198 = vld [vmem:[%s0 + $0x1f0] sm:$0xff]
  %v199 = vld [vmem:[%s0 + $0x1f8] sm:$0xff]
  %s200 = scalar_lea.vmem [#allocation2], 24
  %201 = vst.msk [vmem:[%s200 + $0x1] sm:$0xff] %vm26, %v136
  %202 = vst.msk [vmem:[%s200 + $0x9] sm:$0xff] %vm26, %v137
  %203 = vst.msk [vmem:[%s200 + $0x19] sm:$0xff] %vm26, %v138
  %204 = vst.msk [vmem:[%s200 + $0x21] sm:$0xff] %vm26, %v139
  %205 = vst.msk [vmem:[%s200 + $0x31] sm:$0xff] %vm26, %v140
  %206 = vst.msk [vmem:[%s200 + $0x39] sm:$0xff] %vm26, %v141
  %207 = vst.msk [vmem:[%s200 + $0x49] sm:$0xff] %vm26, %v142
  %208 = vst.msk [vmem:[%s200 + $0x51] sm:$0xff] %vm26, %v143
  %209 = vst.msk [vmem:[%s200 + $0x61] sm:$0xff] %vm26, %v144
  %210 = vst.msk [vmem:[%s200 + $0x69] sm:$0xff] %vm26, %v145
  %211 = vst.msk [vmem:[%s200 + $0x79] sm:$0xff] %vm26, %v146
  %212 = vst.msk [vmem:[%s200 + $0x81] sm:$0xff] %vm26, %v147
  %213 = vst.msk [vmem:[%s200 + $0x91] sm:$0xff] %vm26, %v148
  %214 = vst.msk [vmem:[%s200 + $0x99] sm:$0xff] %vm26, %v149
  %215 = vst.msk [vmem:[%s200 + $0xa9] sm:$0xff] %vm26, %v150
  %216 = vst.msk [vmem:[%s200 + $0xb1] sm:$0xff] %vm26, %v151
  %217 = vst.msk [vmem:[%s200 + $0xc1] sm:$0xff] %vm26, %v152
  %218 = vst.msk [vmem:[%s200 + $0xc9] sm:$0xff] %vm26, %v153
  %219 = vst.msk [vmem:[%s200 + $0xd9] sm:$0xff] %vm26, %v154
  %220 = vst.msk [vmem:[%s200 + $0xe1] sm:$0xff] %vm26, %v155
  %221 = vst.msk [vmem:[%s200 + $0xf1] sm:$0xff] %vm26, %v156
  %222 = vst.msk [vmem:[%s200 + $0xf9] sm:$0xff] %vm26, %v157
  %223 = vst.msk [vmem:[%s200 + $0x109] sm:$0xff] %vm26, %v158
  %224 = vst.msk [vmem:[%s200 + $0x111] sm:$0xff] %vm26, %v159
  %225 = vst.msk [vmem:[%s200 + $0x121] sm:$0xff] %vm26, %v160
  %226 = vst.msk [vmem:[%s200 + $0x129] sm:$0xff] %vm26, %v161
  %227 = vst.msk [vmem:[%s200 + $0x139] sm:$0xff] %vm26, %v162
  %228 = vst.msk [vmem:[%s200 + $0x141] sm:$0xff] %vm26, %v163
  %229 = vst.msk [vmem:[%s200 + $0x151] sm:$0xff] %vm26, %v164
  %230 = vst.msk [vmem:[%s200 + $0x159] sm:$0xff] %vm26, %v165
  %231 = vst.msk [vmem:[%s200 + $0x169] sm:$0xff] %vm26, %v166
  %232 = vst.msk [vmem:[%s200 + $0x171] sm:$0xff] %vm26, %v167
  %233 = vst.msk [vmem:[%s200 + $0x1b1] sm:$0xff] %vm26, %v168
  %234 = vst.msk [vmem:[%s200 + $0x1b9] sm:$0xff] %vm26, %v169
  %235 = vst.msk [vmem:[%s200 + $0x1c9] sm:$0xff] %vm26, %v170
  %236 = vst.msk [vmem:[%s200 + $0x1d1] sm:$0xff] %vm26, %v171
  %237 = vst.msk [vmem:[%s200 + $0x1e1] sm:$0xff] %vm26, %v172
  %238 = vst.msk [vmem:[%s200 + $0x1e9] sm:$0xff] %vm26, %v173
  %239 = vst.msk [vmem:[%s200 + $0x1f9] sm:$0xff] %vm26, %v174
  %240 = vst.msk [vmem:[%s200 + $0x201] sm:$0xff] %vm26, %v175
  %241 = vst.msk [vmem:[%s200 + $0x211] sm:$0xff] %vm26, %v176
  %242 = vst.msk [vmem:[%s200 + $0x219] sm:$0xff] %vm26, %v177
  %243 = vst.msk [vmem:[%s200 + $0x229] sm:$0xff] %vm26, %v178
  %244 = vst.msk [vmem:[%s200 + $0x231] sm:$0xff] %vm26, %v179
  %245 = vst.msk [vmem:[%s200 + $0x241] sm:$0xff] %vm26, %v180
  %246 = vst.msk [vmem:[%s200 + $0x249] sm:$0xff] %vm26, %v181
  %247 = vst.msk [vmem:[%s200 + $0x259] sm:$0xff] %vm26, %v182
  %248 = vst.msk [vmem:[%s200 + $0x261] sm:$0xff] %vm26, %v183
  %249 = vst.msk [vmem:[%s200 + $0x271] sm:$0xff] %vm26, %v184
  %250 = vst.msk [vmem:[%s200 + $0x279] sm:$0xff] %vm26, %v185
  %251 = vst.msk [vmem:[%s200 + $0x289] sm:$0xff] %vm26, %v186
  %252 = vst.msk [vmem:[%s200 + $0x291] sm:$0xff] %vm26, %v187
  %253 = vst.msk [vmem:[%s200 + $0x2a1] sm:$0xff] %vm26, %v188
  %254 = vst.msk [vmem:[%s200 + $0x2a9] sm:$0xff] %vm26, %v189
  %255 = vst.msk [vmem:[%s200 + $0x2b9] sm:$0xff] %vm26, %v190
  %256 = vst.msk [vmem:[%s200 + $0x2c1] sm:$0xff] %vm26, %v191
  %257 = vst.msk [vmem:[%s200 + $0x2d1] sm:$0xff] %vm26, %v192
  %258 = vst.msk [vmem:[%s200 + $0x2d9] sm:$0xff] %vm26, %v193
  %259 = vst.msk [vmem:[%s200 + $0x2e9] sm:$0xff] %vm26, %v194
  %260 = vst.msk [vmem:[%s200 + $0x2f1] sm:$0xff] %vm26, %v195
  %261 = vst.msk [vmem:[%s200 + $0x301] sm:$0xff] %vm26, %v196
  %262 = vst.msk [vmem:[%s200 + $0x309] sm:$0xff] %vm26, %v197
  %263 = vst.msk [vmem:[%s200 + $0x319] sm:$0xff] %vm26, %v198
  %264 = vst.msk [vmem:[%s200 + $0x321] sm:$0xff] %vm26, %v199
  %v265 = vld [vmem:[#allocation2] sm:$0xff]
  %v266 = vld [vmem:[#allocation2 + $0x8] sm:$0xff]
  %v267 = vld [vmem:[#allocation2 + $0x18] sm:$0xff]
  %v268 = vld [vmem:[#allocation2 + $0x20] sm:$0xff]
  %v269 = vld [vmem:[#allocation2 + $0x30] sm:$0xff]
  %v270 = vld [vmem:[#allocation2 + $0x38] sm:$0xff]
  %v271 = vld [vmem:[#allocation2 + $0x48] sm:$0xff]
  %v272 = vld [vmem:[#allocation2 + $0x50] sm:$0xff]
  %v273 = vld [vmem:[#allocation2 + $0x60] sm:$0xff]
  %v274 = vld [vmem:[#allocation2 + $0x68] sm:$0xff]
  %v275 = vld [vmem:[#allocation2 + $0x78] sm:$0xff]
  %v276 = vld [vmem:[#allocation2 + $0x80] sm:$0xff]
  %v277 = vld [vmem:[#allocation2 + $0x90] sm:$0xff]
  %v278 = vld [vmem:[#allocation2 + $0x98] sm:$0xff]
  %v279 = vld [vmem:[#allocation2 + $0xa8] sm:$0xff]
  %v280 = vld [vmem:[#allocation2 + $0xb0] sm:$0xff]
  %v281 = vld [vmem:[#allocation2 + $0xc0] sm:$0xff]
  %v282 = vld [vmem:[#allocation2 + $0xc8] sm:$0xff]
  %v283 = vld [vmem:[#allocation2 + $0xd8] sm:$0xff]
  %v284 = vld [vmem:[#allocation2 + $0xe0] sm:$0xff]
  %v285 = vld [vmem:[#allocation2 + $0xf0] sm:$0xff]
  %v286 = vld [vmem:[#allocation2 + $0xf8] sm:$0xff]
  %v287 = vld [vmem:[#allocation2 + $0x108] sm:$0xff]
  %v288 = vld [vmem:[#allocation2 + $0x110] sm:$0xff]
  %v289 = vld [vmem:[#allocation2 + $0x120] sm:$0xff]
  %v290 = vld [vmem:[#allocation2 + $0x128] sm:$0xff]
  %v291 = vld [vmem:[#allocation2 + $0x138] sm:$0xff]
  %v292 = vld [vmem:[#allocation2 + $0x140] sm:$0xff]
  %v293 = vld [vmem:[#allocation2 + $0x150] sm:$0xff]
  %v294 = vld [vmem:[#allocation2 + $0x158] sm:$0xff]
  %v295 = vld [vmem:[#allocation2 + $0x168] sm:$0xff]
  %v296 = vld [vmem:[#allocation2 + $0x170] sm:$0xff]
  %v297 = vld [vmem:[#allocation2 + $0x1b0] sm:$0xff]
  %v298 = vld [vmem:[#allocation2 + $0x1b8] sm:$0xff]
  %v299 = vld [vmem:[#allocation2 + $0x1c8] sm:$0xff]
  %v300 = vld [vmem:[#allocation2 + $0x1d0] sm:$0xff]
  %v301 = vld [vmem:[#allocation2 + $0x1e0] sm:$0xff]
  %v302 = vld [vmem:[#allocation2 + $0x1e8] sm:$0xff]
  %v303 = vld [vmem:[#allocation2 + $0x1f8] sm:$0xff]
  %v304 = vld [vmem:[#allocation2 + $0x200] sm:$0xff]
  %v305 = vld [vmem:[#allocation2 + $0x210] sm:$0xff]
  %v306 = vld [vmem:[#allocation2 + $0x218] sm:$0xff]
  %v307 = vld [vmem:[#allocation2 + $0x228] sm:$0xff]
  %v308 = vld [vmem:[#allocation2 + $0x230] sm:$0xff]
  %v309 = vld [vmem:[#allocation2 + $0x240] sm:$0xff]
  %v310 = vld [vmem:[#allocation2 + $0x248] sm:$0xff]
  %v311 = vld [vmem:[#allocation2 + $0x258] sm:$0xff]
  %v312 = vld [vmem:[#allocation2 + $0x260] sm:$0xff]
  %v313 = vld [vmem:[#allocation2 + $0x270] sm:$0xff]
  %v314 = vld [vmem:[#allocation2 + $0x278] sm:$0xff]
  %v315 = vld [vmem:[#allocation2 + $0x288] sm:$0xff]
  %v316 = vld [vmem:[#allocation2 + $0x290] sm:$0xff]
  %v317 = vld [vmem:[#allocation2 + $0x2a0] sm:$0xff]
  %v318 = vld [vmem:[#allocation2 + $0x2a8] sm:$0xff]
  %v319 = vld [vmem:[#allocation2 + $0x2b8] sm:$0xff]
  %v320 = vld [vmem:[#allocation2 + $0x2c0] sm:$0xff]
  %v321 = vld [vmem:[#allocation2 + $0x2d0] sm:$0xff]
  %v322 = vld [vmem:[#allocation2 + $0x2d8] sm:$0xff]
  %v323 = vld [vmem:[#allocation2 + $0x2e8] sm:$0xff]
  %v324 = vld [vmem:[#allocation2 + $0x2f0] sm:$0xff]
  %v325 = vld [vmem:[#allocation2 + $0x300] sm:$0xff]
  %v326 = vld [vmem:[#allocation2 + $0x308] sm:$0xff]
  %v327 = vld [vmem:[#allocation2 + $0x318] sm:$0xff]
  %v328 = vld [vmem:[#allocation2 + $0x320] sm:$0xff]
  %329 = vst.msk [vmem:[#allocation4] sm:$0xff] %vm26, %v265
  %330 = vst.msk [vmem:[#allocation4 + $0x8] sm:$0xff] %vm26, %v266
  %331 = vst.msk [vmem:[#allocation4 + $0x10] sm:$0xff] %vm26, %v267
  %332 = vst.msk [vmem:[#allocation4 + $0x18] sm:$0xff] %vm26, %v268
  %333 = vst.msk [vmem:[#allocation4 + $0x20] sm:$0xff] %vm26, %v269
  %334 = vst.msk [vmem:[#allocation4 + $0x28] sm:$0xff] %vm26, %v270
  %335 = vst.msk [vmem:[#allocation4 + $0x30] sm:$0xff] %vm26, %v271
  %336 = vst.msk [vmem:[#allocation4 + $0x38] sm:$0xff] %vm26, %v272
  %337 = vst.msk [vmem:[#allocation4 + $0x40] sm:$0xff] %vm26, %v273
  %338 = vst.msk [vmem:[#allocation4 + $0x48] sm:$0xff] %vm26, %v274
  %339 = vst.msk [vmem:[#allocation4 + $0x50] sm:$0xff] %vm26, %v275
  %340 = vst.msk [vmem:[#allocation4 + $0x58] sm:$0xff] %vm26, %v276
  %341 = vst.msk [vmem:[#allocation4 + $0x60] sm:$0xff] %vm26, %v277
  %342 = vst.msk [vmem:[#allocation4 + $0x68] sm:$0xff] %vm26, %v278
  %343 = vst.msk [vmem:[#allocation4 + $0x70] sm:$0xff] %vm26, %v279
  %344 = vst.msk [vmem:[#allocation4 + $0x78] sm:$0xff] %vm26, %v280
  %345 = vst.msk [vmem:[#allocation4 + $0x80] sm:$0xff] %vm26, %v281
  %346 = vst.msk [vmem:[#allocation4 + $0x88] sm:$0xff] %vm26, %v282
  %347 = vst.msk [vmem:[#allocation4 + $0x90] sm:$0xff] %vm26, %v283
  %348 = vst.msk [vmem:[#allocation4 + $0x98] sm:$0xff] %vm26, %v284
  %349 = vst.msk [vmem:[#allocation4 + $0xa0] sm:$0xff] %vm26, %v285
  %350 = vst.msk [vmem:[#allocation4 + $0xa8] sm:$0xff] %vm26, %v286
  %351 = vst.msk [vmem:[#allocation4 + $0xb0] sm:$0xff] %vm26, %v287
  %352 = vst.msk [vmem:[#allocation4 + $0xb8] sm:$0xff] %vm26, %v288
  %353 = vst.msk [vmem:[#allocation4 + $0xc0] sm:$0xff] %vm26, %v289
  %354 = vst.msk [vmem:[#allocation4 + $0xc8] sm:$0xff] %vm26, %v290
  %355 = vst.msk [vmem:[#allocation4 + $0xd0] sm:$0xff] %vm26, %v291
  %356 = vst.msk [vmem:[#allocation4 + $0xd8] sm:$0xff] %vm26, %v292
  %357 = vst.msk [vmem:[#allocation4 + $0xe0] sm:$0xff] %vm26, %v293
  %358 = vst.msk [vmem:[#allocation4 + $0xe8] sm:$0xff] %vm26, %v294
  %359 = vst.msk [vmem:[#allocation4 + $0xf0] sm:$0xff] %vm26, %v295
  %360 = vst.msk [vmem:[#allocation4 + $0xf8] sm:$0xff] %vm26, %v296
  %361 = vst.msk [vmem:[#allocation4 + $0x100] sm:$0xff] %vm26, %v297
  %362 = vst.msk [vmem:[#allocation4 + $0x108] sm:$0xff] %vm26, %v298
  %363 = vst.msk [vmem:[#allocation4 + $0x110] sm:$0xff] %vm26, %v299
  %364 = vst.msk [vmem:[#allocation4 + $0x118] sm:$0xff] %vm26, %v300
  %365 = vst.msk [vmem:[#allocation4 + $0x120] sm:$0xff] %vm26, %v301
  %366 = vst.msk [vmem:[#allocation4 + $0x128] sm:$0xff] %vm26, %v302
  %367 = vst.msk [vmem:[#allocation4 + $0x130] sm:$0xff] %vm26, %v303
  %368 = vst.msk [vmem:[#allocation4 + $0x138] sm:$0xff] %vm26, %v304
  %369 = vst.msk [vmem:[#allocation4 + $0x140] sm:$0xff] %vm26, %v305
  %370 = vst.msk [vmem:[#allocation4 + $0x148] sm:$0xff] %vm26, %v306
  %371 = vst.msk [vmem:[#allocation4 + $0x150] sm:$0xff] %vm26, %v307
  %372 = vst.msk [vmem:[#allocation4 + $0x158] sm:$0xff] %vm26, %v308
  %373 = vst.msk [vmem:[#allocation4 + $0x160] sm:$0xff] %vm26, %v309
  %374 = vst.msk [vmem:[#allocation4 + $0x168] sm:$0xff] %vm26, %v310
  %375 = vst.msk [vmem:[#allocation4 + $0x170] sm:$0xff] %vm26, %v311
  %376 = vst.msk [vmem:[#allocation4 + $0x178] sm:$0xff] %vm26, %v312
  %377 = vst.msk [vmem:[#allocation4 + $0x180] sm:$0xff] %vm26, %v313
  %378 = vst.msk [vmem:[#allocation4 + $0x188] sm:$0xff] %vm26, %v314
  %379 = vst.msk [vmem:[#allocation4 + $0x190] sm:$0xff] %vm26, %v315
  %380 = vst.msk [vmem:[#allocation4 + $0x198] sm:$0xff] %vm26, %v316
  %381 = vst.msk [vmem:[#allocation4 + $0x1a0] sm:$0xff] %vm26, %v317
  %382 = vst.msk [vmem:[#allocation4 + $0x1a8] sm:$0xff] %vm26, %v318
  %383 = vst.msk [vmem:[#allocation4 + $0x1b0] sm:$0xff] %vm26, %v319
  %384 = vst.msk [vmem:[#allocation4 + $0x1b8] sm:$0xff] %vm26, %v320
  %385 = vst.msk [vmem:[#allocation4 + $0x1c0] sm:$0xff] %vm26, %v321
  %386 = vst.msk [vmem:[#allocation4 + $0x1c8] sm:$0xff] %vm26, %v322
  %387 = vst.msk [vmem:[#allocation4 + $0x1d0] sm:$0xff] %vm26, %v323
  %388 = vst.msk [vmem:[#allocation4 + $0x1d8] sm:$0xff] %vm26, %v324
  %389 = vst.msk [vmem:[#allocation4 + $0x1e0] sm:$0xff] %vm26, %v325
  %390 = vst.msk [vmem:[#allocation4 + $0x1e8] sm:$0xff] %vm26, %v326
  %391 = vst.msk [vmem:[#allocation4 + $0x1f0] sm:$0xff] %vm26, %v327
  %392 = vst.msk [vmem:[#allocation4 + $0x1f8] sm:$0xff] %vm26, %v328
  %v393 = vld [vmem:[#allocation2 + $0x1] sm:$0xff]
  %v394 = vld [vmem:[#allocation2 + $0x9] sm:$0xff]
  %v395 = vld [vmem:[#allocation2 + $0x19] sm:$0xff]
  %v396 = vld [vmem:[#allocation2 + $0x21] sm:$0xff]
  %v397 = vld [vmem:[#allocation2 + $0x31] sm:$0xff]
  %v398 = vld [vmem:[#allocation2 + $0x39] sm:$0xff]
  %v399 = vld [vmem:[#allocation2 + $0x49] sm:$0xff]
  %v400 = vld [vmem:[#allocation2 + $0x51] sm:$0xff]
  %v401 = vld [vmem:[#allocation2 + $0x61] sm:$0xff]
  %v402 = vld [vmem:[#allocation2 + $0x69] sm:$0xff]
  %v403 = vld [vmem:[#allocation2 + $0x79] sm:$0xff]
  %v404 = vld [vmem:[#allocation2 + $0x81] sm:$0xff]
  %v405 = vld [vmem:[#allocation2 + $0x91] sm:$0xff]
  %v406 = vld [vmem:[#allocation2 + $0x99] sm:$0xff]
  %v407 = vld [vmem:[#allocation2 + $0xa9] sm:$0xff]
  %v408 = vld [vmem:[#allocation2 + $0xb1] sm:$0xff]
  %v409 = vld [vmem:[#allocation2 + $0xc1] sm:$0xff]
  %v410 = vld [vmem:[#allocation2 + $0xc9] sm:$0xff]
  %v411 = vld [vmem:[#allocation2 + $0xd9] sm:$0xff]
  %v412 = vld [vmem:[#allocation2 + $0xe1] sm:$0xff]
  %v413 = vld [vmem:[#allocation2 + $0xf1] sm:$0xff]
  %v414 = vld [vmem:[#allocation2 + $0xf9] sm:$0xff]
  %v415 = vld [vmem:[#allocation2 + $0x109] sm:$0xff]
  %v416 = vld [vmem:[#allocation2 + $0x111] sm:$0xff]
  %v417 = vld [vmem:[#allocation2 + $0x121] sm:$0xff]
  %v418 = vld [vmem:[#allocation2 + $0x129] sm:$0xff]
  %v419 = vld [vmem:[#allocation2 + $0x139] sm:$0xff]
  %v420 = vld [vmem:[#allocation2 + $0x141] sm:$0xff]
  %v421 = vld [vmem:[#allocation2 + $0x151] sm:$0xff]
  %v422 = vld [vmem:[#allocation2 + $0x159] sm:$0xff]
  %v423 = vld [vmem:[#allocation2 + $0x169] sm:$0xff]
  %v424 = vld [vmem:[#allocation2 + $0x171] sm:$0xff]
  %v425 = vld [vmem:[#allocation2 + $0x1b1] sm:$0xff]
  %v426 = vld [vmem:[#allocation2 + $0x1b9] sm:$0xff]
  %v427 = vld [vmem:[#allocation2 + $0x1c9] sm:$0xff]
  %v428 = vld [vmem:[#allocation2 + $0x1d1] sm:$0xff]
  %v429 = vld [vmem:[#allocation2 + $0x1e1] sm:$0xff]
  %v430 = vld [vmem:[#allocation2 + $0x1e9] sm:$0xff]
  %v431 = vld [vmem:[#allocation2 + $0x1f9] sm:$0xff]
  %v432 = vld [vmem:[#allocation2 + $0x201] sm:$0xff]
  %v433 = vld [vmem:[#allocation2 + $0x211] sm:$0xff]
  %v434 = vld [vmem:[#allocation2 + $0x219] sm:$0xff]
  %v435 = vld [vmem:[#allocation2 + $0x229] sm:$0xff]
  %v436 = vld [vmem:[#allocation2 + $0x231] sm:$0xff]
  %v437 = vld [vmem:[#allocation2 + $0x241] sm:$0xff]
  %v438 = vld [vmem:[#allocation2 + $0x249] sm:$0xff]
  %v439 = vld [vmem:[#allocation2 + $0x259] sm:$0xff]
  %v440 = vld [vmem:[#allocation2 + $0x261] sm:$0xff]
  %v441 = vld [vmem:[#allocation2 + $0x271] sm:$0xff]
  %v442 = vld [vmem:[#allocation2 + $0x279] sm:$0xff]
  %v443 = vld [vmem:[#allocation2 + $0x289] sm:$0xff]
  %v444 = vld [vmem:[#allocation2 + $0x291] sm:$0xff]
  %v445 = vld [vmem:[#allocation2 + $0x2a1] sm:$0xff]
  %v446 = vld [vmem:[#allocation2 + $0x2a9] sm:$0xff]
  %v447 = vld [vmem:[#allocation2 + $0x2b9] sm:$0xff]
  %v448 = vld [vmem:[#allocation2 + $0x2c1] sm:$0xff]
  %v449 = vld [vmem:[#allocation2 + $0x2d1] sm:$0xff]
  %v450 = vld [vmem:[#allocation2 + $0x2d9] sm:$0xff]
  %v451 = vld [vmem:[#allocation2 + $0x2e9] sm:$0xff]
  %v452 = vld [vmem:[#allocation2 + $0x2f1] sm:$0xff]
  %v453 = vld [vmem:[#allocation2 + $0x301] sm:$0xff]
  %v454 = vld [vmem:[#allocation2 + $0x309] sm:$0xff]
  %v455 = vld [vmem:[#allocation2 + $0x319] sm:$0xff]
  %v456 = vld [vmem:[#allocation2 + $0x321] sm:$0xff]
  %521 = vrot.lane.b32.xlu0 %v393, 4
  %v522 = vpop.permute.xlu0 %521
  %523 = vrot.lane.b32.xlu0 %v394, 4
  %v524 = vpop.permute.xlu0 %523
  %525 = vrot.lane.b32.xlu0 %v395, 4
  %v526 = vpop.permute.xlu0 %525
  %527 = vrot.lane.b32.xlu0 %v396, 4
  %v528 = vpop.permute.xlu0 %527
  %529 = vrot.lane.b32.xlu0 %v397, 4
  %v530 = vpop.permute.xlu0 %529
  %531 = vrot.lane.b32.xlu0 %v398, 4
  %v532 = vpop.permute.xlu0 %531
  %533 = vrot.lane.b32.xlu0 %v399, 4
  %v534 = vpop.permute.xlu0 %533
  %535 = vrot.lane.b32.xlu0 %v400, 4
  %v536 = vpop.permute.xlu0 %535
  %537 = vrot.lane.b32.xlu0 %v401, 4
  %v538 = vpop.permute.xlu0 %537
  %539 = vrot.lane.b32.xlu0 %v402, 4
  %v540 = vpop.permute.xlu0 %539
  %541 = vrot.lane.b32.xlu0 %v403, 4
  %v542 = vpop.permute.xlu0 %541
  %543 = vrot.lane.b32.xlu0 %v404, 4
  %v544 = vpop.permute.xlu0 %543
  %545 = vrot.lane.b32.xlu0 %v405, 4
  %v546 = vpop.permute.xlu0 %545
  %547 = vrot.lane.b32.xlu0 %v406, 4
  %v548 = vpop.permute.xlu0 %547
  %549 = vrot.lane.b32.xlu0 %v407, 4
  %v550 = vpop.permute.xlu0 %549
  %551 = vrot.lane.b32.xlu0 %v408, 4
  %v552 = vpop.permute.xlu0 %551
  %553 = vrot.lane.b32.xlu0 %v409, 4
  %v554 = vpop.permute.xlu0 %553
  %555 = vrot.lane.b32.xlu0 %v410, 4
  %v556 = vpop.permute.xlu0 %555
  %557 = vrot.lane.b32.xlu0 %v411, 4
  %v558 = vpop.permute.xlu0 %557
  %559 = vrot.lane.b32.xlu0 %v412, 4
  %v560 = vpop.permute.xlu0 %559
  %561 = vrot.lane.b32.xlu0 %v413, 4
  %v562 = vpop.permute.xlu0 %561
  %563 = vrot.lane.b32.xlu0 %v414, 4
  %v564 = vpop.permute.xlu0 %563
  %565 = vrot.lane.b32.xlu0 %v415, 4
  %v566 = vpop.permute.xlu0 %565
  %567 = vrot.lane.b32.xlu0 %v416, 4
  %v568 = vpop.permute.xlu0 %567
  %569 = vrot.lane.b32.xlu0 %v417, 4
  %v570 = vpop.permute.xlu0 %569
  %571 = vrot.lane.b32.xlu0 %v418, 4
  %v572 = vpop.permute.xlu0 %571
  %573 = vrot.lane.b32.xlu0 %v419, 4
  %v574 = vpop.permute.xlu0 %573
  %575 = vrot.lane.b32.xlu0 %v420, 4
  %v576 = vpop.permute.xlu0 %575
  %577 = vrot.lane.b32.xlu0 %v421, 4
  %v578 = vpop.permute.xlu0 %577
  %579 = vrot.lane.b32.xlu0 %v422, 4
  %v580 = vpop.permute.xlu0 %579
  %581 = vrot.lane.b32.xlu0 %v423, 4
  %v582 = vpop.permute.xlu0 %581
  %583 = vrot.lane.b32.xlu0 %v424, 4
  %v584 = vpop.permute.xlu0 %583
  %585 = vrot.lane.b32.xlu0 %v425, 4
  %v586 = vpop.permute.xlu0 %585
  %587 = vrot.lane.b32.xlu0 %v426, 4
  %v588 = vpop.permute.xlu0 %587
  %589 = vrot.lane.b32.xlu0 %v427, 4
  %v590 = vpop.permute.xlu0 %589
  %591 = vrot.lane.b32.xlu0 %v428, 4
  %v592 = vpop.permute.xlu0 %591
  %593 = vrot.lane.b32.xlu0 %v429, 4
  %v594 = vpop.permute.xlu0 %593
  %595 = vrot.lane.b32.xlu0 %v430, 4
  %v596 = vpop.permute.xlu0 %595
  %597 = vrot.lane.b32.xlu0 %v431, 4
  %v598 = vpop.permute.xlu0 %597
  %599 = vrot.lane.b32.xlu0 %v432, 4
  %v600 = vpop.permute.xlu0 %599
  %601 = vrot.lane.b32.xlu0 %v433, 4
  %v602 = vpop.permute.xlu0 %601
  %603 = vrot.lane.b32.xlu0 %v434, 4
  %v604 = vpop.permute.xlu0 %603
  %605 = vrot.lane.b32.xlu0 %v435, 4
  %v606 = vpop.permute.xlu0 %605
  %607 = vrot.lane.b32.xlu0 %v436, 4
  %v608 = vpop.permute.xlu0 %607
  %609 = vrot.lane.b32.xlu0 %v437, 4
  %v610 = vpop.permute.xlu0 %609
  %611 = vrot.lane.b32.xlu0 %v438, 4
  %v612 = vpop.permute.xlu0 %611
  %613 = vrot.lane.b32.xlu0 %v439, 4
  %v614 = vpop.permute.xlu0 %613
  %615 = vrot.lane.b32.xlu0 %v440, 4
  %v616 = vpop.permute.xlu0 %615
  %617 = vrot.lane.b32.xlu0 %v441, 4
  %v618 = vpop.permute.xlu0 %617
  %619 = vrot.lane.b32.xlu0 %v442, 4
  %v620 = vpop.permute.xlu0 %619
  %621 = vrot.lane.b32.xlu0 %v443, 4
  %v622 = vpop.permute.xlu0 %621
  %623 = vrot.lane.b32.xlu0 %v444, 4
  %v624 = vpop.permute.xlu0 %623
  %625 = vrot.lane.b32.xlu0 %v445, 4
  %v626 = vpop.permute.xlu0 %625
  %627 = vrot.lane.b32.xlu0 %v446, 4
  %v628 = vpop.permute.xlu0 %627
  %629 = vrot.lane.b32.xlu0 %v447, 4
  %v630 = vpop.permute.xlu0 %629
  %631 = vrot.lane.b32.xlu0 %v448, 4
  %v632 = vpop.permute.xlu0 %631
  %633 = vrot.lane.b32.xlu0 %v449, 4
  %v634 = vpop.permute.xlu0 %633
  %635 = vrot.lane.b32.xlu0 %v450, 4
  %v636 = vpop.permute.xlu0 %635
  %637 = vrot.lane.b32.xlu0 %v451, 4
  %v638 = vpop.permute.xlu0 %637
  %639 = vrot.lane.b32.xlu0 %v452, 4
  %v640 = vpop.permute.xlu0 %639
  %641 = vrot.lane.b32.xlu0 %v453, 4
  %v642 = vpop.permute.xlu0 %641
  %643 = vrot.lane.b32.xlu0 %v454, 4
  %v644 = vpop.permute.xlu0 %643
  %645 = vrot.lane.b32.xlu0 %v455, 4
  %v646 = vpop.permute.xlu0 %645
  %647 = vrot.lane.b32.xlu0 %v456, 4
  %v648 = vpop.permute.xlu0 %647
  %vm713 = vcmask 64544
  %714 = vst.msk [vmem:[#allocation4] sm:$0xff] %vm713, %v522
  %715 = vst.msk [vmem:[#allocation4 + $0x8] sm:$0xff] %vm713, %v524
  %716 = vst.msk [vmem:[#allocation4 + $0x10] sm:$0xff] %vm713, %v526
  %717 = vst.msk [vmem:[#allocation4 + $0x18] sm:$0xff] %vm713, %v528
  %718 = vst.msk [vmem:[#allocation4 + $0x20] sm:$0xff] %vm713, %v530
  %719 = vst.msk [vmem:[#allocation4 + $0x28] sm:$0xff] %vm713, %v532
  %720 = vst.msk [vmem:[#allocation4 + $0x30] sm:$0xff] %vm713, %v534
  %721 = vst.msk [vmem:[#allocation4 + $0x38] sm:$0xff] %vm713, %v536
  %722 = vst.msk [vmem:[#allocation4 + $0x40] sm:$0xff] %vm713, %v538
  %723 = vst.msk [vmem:[#allocation4 + $0x48] sm:$0xff] %vm713, %v540
  %724 = vst.msk [vmem:[#allocation4 + $0x50] sm:$0xff] %vm713, %v542
  %725 = vst.msk [vmem:[#allocation4 + $0x58] sm:$0xff] %vm713, %v544
  %726 = vst.msk [vmem:[#allocation4 + $0x60] sm:$0xff] %vm713, %v546
  %727 = vst.msk [vmem:[#allocation4 + $0x68] sm:$0xff] %vm713, %v548
  %728 = vst.msk [vmem:[#allocation4 + $0x70] sm:$0xff] %vm713, %v550
  %729 = vst.msk [vmem:[#allocation4 + $0x78] sm:$0xff] %vm713, %v552
  %730 = vst.msk [vmem:[#allocation4 + $0x80] sm:$0xff] %vm713, %v554
  %731 = vst.msk [vmem:[#allocation4 + $0x88] sm:$0xff] %vm713, %v556
  %732 = vst.msk [vmem:[#allocation4 + $0x90] sm:$0xff] %vm713, %v558
  %733 = vst.msk [vmem:[#allocation4 + $0x98] sm:$0xff] %vm713, %v560
  %734 = vst.msk [vmem:[#allocation4 + $0xa0] sm:$0xff] %vm713, %v562
  %735 = vst.msk [vmem:[#allocation4 + $0xa8] sm:$0xff] %vm713, %v564
  %736 = vst.msk [vmem:[#allocation4 + $0xb0] sm:$0xff] %vm713, %v566
  %737 = vst.msk [vmem:[#allocation4 + $0xb8] sm:$0xff] %vm713, %v568
  %738 = vst.msk [vmem:[#allocation4 + $0xc0] sm:$0xff] %vm713, %v570
  %739 = vst.msk [vmem:[#allocation4 + $0xc8] sm:$0xff] %vm713, %v572
  %740 = vst.msk [vmem:[#allocation4 + $0xd0] sm:$0xff] %vm713, %v574
  %741 = vst.msk [vmem:[#allocation4 + $0xd8] sm:$0xff] %vm713, %v576
  %742 = vst.msk [vmem:[#allocation4 + $0xe0] sm:$0xff] %vm713, %v578
  %743 = vst.msk [vmem:[#allocation4 + $0xe8] sm:$0xff] %vm713, %v580
  %744 = vst.msk [vmem:[#allocation4 + $0xf0] sm:$0xff] %vm713, %v582
  %745 = vst.msk [vmem:[#allocation4 + $0xf8] sm:$0xff] %vm713, %v584
  %746 = vst.msk [vmem:[#allocation4 + $0x100] sm:$0xff] %vm713, %v586
  %747 = vst.msk [vmem:[#allocation4 + $0x108] sm:$0xff] %vm713, %v588
  %748 = vst.msk [vmem:[#allocation4 + $0x110] sm:$0xff] %vm713, %v590
  %749 = vst.msk [vmem:[#allocation4 + $0x118] sm:$0xff] %vm713, %v592
  %750 = vst.msk [vmem:[#allocation4 + $0x120] sm:$0xff] %vm713, %v594
  %751 = vst.msk [vmem:[#allocation4 + $0x128] sm:$0xff] %vm713, %v596
  %752 = vst.msk [vmem:[#allocation4 + $0x130] sm:$0xff] %vm713, %v598
  %753 = vst.msk [vmem:[#allocation4 + $0x138] sm:$0xff] %vm713, %v600
  %754 = vst.msk [vmem:[#allocation4 + $0x140] sm:$0xff] %vm713, %v602
  %755 = vst.msk [vmem:[#allocation4 + $0x148] sm:$0xff] %vm713, %v604
  %756 = vst.msk [vmem:[#allocation4 + $0x150] sm:$0xff] %vm713, %v606
  %757 = vst.msk [vmem:[#allocation4 + $0x158] sm:$0xff] %vm713, %v608
  %758 = vst.msk [vmem:[#allocation4 + $0x160] sm:$0xff] %vm713, %v610
  %759 = vst.msk [vmem:[#allocation4 + $0x168] sm:$0xff] %vm713, %v612
  %760 = vst.msk [vmem:[#allocation4 + $0x170] sm:$0xff] %vm713, %v614
  %761 = vst.msk [vmem:[#allocation4 + $0x178] sm:$0xff] %vm713, %v616
  %762 = vst.msk [vmem:[#allocation4 + $0x180] sm:$0xff] %vm713, %v618
  %763 = vst.msk [vmem:[#allocation4 + $0x188] sm:$0xff] %vm713, %v620
  %764 = vst.msk [vmem:[#allocation4 + $0x190] sm:$0xff] %vm713, %v622
  %765 = vst.msk [vmem:[#allocation4 + $0x198] sm:$0xff] %vm713, %v624
  %766 = vst.msk [vmem:[#allocation4 + $0x1a0] sm:$0xff] %vm713, %v626
  %767 = vst.msk [vmem:[#allocation4 + $0x1a8] sm:$0xff] %vm713, %v628
  %768 = vst.msk [vmem:[#allocation4 + $0x1b0] sm:$0xff] %vm713, %v630
  %769 = vst.msk [vmem:[#allocation4 + $0x1b8] sm:$0xff] %vm713, %v632
  %770 = vst.msk [vmem:[#allocation4 + $0x1c0] sm:$0xff] %vm713, %v634
  %771 = vst.msk [vmem:[#allocation4 + $0x1c8] sm:$0xff] %vm713, %v636
  %772 = vst.msk [vmem:[#allocation4 + $0x1d0] sm:$0xff] %vm713, %v638
  %773 = vst.msk [vmem:[#allocation4 + $0x1d8] sm:$0xff] %vm713, %v640
  %774 = vst.msk [vmem:[#allocation4 + $0x1e0] sm:$0xff] %vm713, %v642
  %775 = vst.msk [vmem:[#allocation4 + $0x1e8] sm:$0xff] %vm713, %v644
  %776 = vst.msk [vmem:[#allocation4 + $0x1f0] sm:$0xff] %vm713, %v646
  %777 = vst.msk [vmem:[#allocation4 + $0x1f8] sm:$0xff] %vm713, %v648
  %v778 = vld [vmem:[#allocation2 + $0x2] sm:$0xff]
  %v779 = vld [vmem:[#allocation2 + $0xa] sm:$0xff]
  %v780 = vld [vmem:[#allocation2 + $0x1a] sm:$0xff]
  %v781 = vld [vmem:[#allocation2 + $0x22] sm:$0xff]
  %v782 = vld [vmem:[#allocation2 + $0x32] sm:$0xff]
  %v783 = vld [vmem:[#allocation2 + $0x3a] sm:$0xff]
  %v784 = vld [vmem:[#allocation2 + $0x4a] sm:$0xff]
  %v785 = vld [vmem:[#allocation2 + $0x52] sm:$0xff]
  %v786 = vld [vmem:[#allocation2 + $0x62] sm:$0xff]
  %v787 = vld [vmem:[#allocation2 + $0x6a] sm:$0xff]
  %v788 = vld [vmem:[#allocation2 + $0x7a] sm:$0xff]
  %v789 = vld [vmem:[#allocation2 + $0x82] sm:$0xff]
  %v790 = vld [vmem:[#allocation2 + $0x92] sm:$0xff]
  %v791 = vld [vmem:[#allocation2 + $0x9a] sm:$0xff]
  %v792 = vld [vmem:[#allocation2 + $0xaa] sm:$0xff]
  %v793 = vld [vmem:[#allocation2 + $0xb2] sm:$0xff]
  %v794 = vld [vmem:[#allocation2 + $0xc2] sm:$0xff]
  %v795 = vld [vmem:[#allocation2 + $0xca] sm:$0xff]
  %v796 = vld [vmem:[#allocation2 + $0xda] sm:$0xff]
  %v797 = vld [vmem:[#allocation2 + $0xe2] sm:$0xff]
  %v798 = vld [vmem:[#allocation2 + $0xf2] sm:$0xff]
  %v799 = vld [vmem:[#allocation2 + $0xfa] sm:$0xff]
  %v800 = vld [vmem:[#allocation2 + $0x10a] sm:$0xff]
  %v801 = vld [vmem:[#allocation2 + $0x112] sm:$0xff]
  %v802 = vld [vmem:[#allocation2 + $0x122] sm:$0xff]
  %v803 = vld [vmem:[#allocation2 + $0x12a] sm:$0xff]
  %v804 = vld [vmem:[#allocation2 + $0x13a] sm:$0xff]
  %v805 = vld [vmem:[#allocation2 + $0x142] sm:$0xff]
  %v806 = vld [vmem:[#allocation2 + $0x152] sm:$0xff]
  %v807 = vld [vmem:[#allocation2 + $0x15a] sm:$0xff]
  %v808 = vld [vmem:[#allocation2 + $0x16a] sm:$0xff]
  %v809 = vld [vmem:[#allocation2 + $0x172] sm:$0xff]
  %v810 = vld [vmem:[#allocation2 + $0x1b2] sm:$0xff]
  %v811 = vld [vmem:[#allocation2 + $0x1ba] sm:$0xff]
  %v812 = vld [vmem:[#allocation2 + $0x1ca] sm:$0xff]
  %v813 = vld [vmem:[#allocation2 + $0x1d2] sm:$0xff]
  %v814 = vld [vmem:[#allocation2 + $0x1e2] sm:$0xff]
  %v815 = vld [vmem:[#allocation2 + $0x1ea] sm:$0xff]
  %v816 = vld [vmem:[#allocation2 + $0x1fa] sm:$0xff]
  %v817 = vld [vmem:[#allocation2 + $0x202] sm:$0xff]
  %v818 = vld [vmem:[#allocation2 + $0x212] sm:$0xff]
  %v819 = vld [vmem:[#allocation2 + $0x21a] sm:$0xff]
  %v820 = vld [vmem:[#allocation2 + $0x22a] sm:$0xff]
  %v821 = vld [vmem:[#allocation2 + $0x232] sm:$0xff]
  %v822 = vld [vmem:[#allocation2 + $0x242] sm:$0xff]
  %v823 = vld [vmem:[#allocation2 + $0x24a] sm:$0xff]
  %v824 = vld [vmem:[#allocation2 + $0x25a] sm:$0xff]
  %v825 = vld [vmem:[#allocation2 + $0x262] sm:$0xff]
  %v826 = vld [vmem:[#allocation2 + $0x272] sm:$0xff]
  %v827 = vld [vmem:[#allocation2 + $0x27a] sm:$0xff]
  %v828 = vld [vmem:[#allocation2 + $0x28a] sm:$0xff]
  %v829 = vld [vmem:[#allocation2 + $0x292] sm:$0xff]
  %v830 = vld [vmem:[#allocation2 + $0x2a2] sm:$0xff]
  %v831 = vld [vmem:[#allocation2 + $0x2aa] sm:$0xff]
  %v832 = vld [vmem:[#allocation2 + $0x2ba] sm:$0xff]
  %v833 = vld [vmem:[#allocation2 + $0x2c2] sm:$0xff]
  %v834 = vld [vmem:[#allocation2 + $0x2d2] sm:$0xff]
  %v835 = vld [vmem:[#allocation2 + $0x2da] sm:$0xff]
  %v836 = vld [vmem:[#allocation2 + $0x2ea] sm:$0xff]
  %v837 = vld [vmem:[#allocation2 + $0x2f2] sm:$0xff]
  %v838 = vld [vmem:[#allocation2 + $0x302] sm:$0xff]
  %v839 = vld [vmem:[#allocation2 + $0x30a] sm:$0xff]
  %v840 = vld [vmem:[#allocation2 + $0x31a] sm:$0xff]
  %v841 = vld [vmem:[#allocation2 + $0x322] sm:$0xff]
  %906 = vrot.lane.b32.xlu0 %v778, 8
  %v907 = vpop.permute.xlu0 %906
  %908 = vrot.lane.b32.xlu0 %v779, 8
  %v909 = vpop.permute.xlu0 %908
  %910 = vrot.lane.b32.xlu0 %v780, 8
  %v911 = vpop.permute.xlu0 %910
  %912 = vrot.lane.b32.xlu0 %v781, 8
  %v913 = vpop.permute.xlu0 %912
  %914 = vrot.lane.b32.xlu0 %v782, 8
  %v915 = vpop.permute.xlu0 %914
  %916 = vrot.lane.b32.xlu0 %v783, 8
  %v917 = vpop.permute.xlu0 %916
  %918 = vrot.lane.b32.xlu0 %v784, 8
  %v919 = vpop.permute.xlu0 %918
  %920 = vrot.lane.b32.xlu0 %v785, 8
  %v921 = vpop.permute.xlu0 %920
  %922 = vrot.lane.b32.xlu0 %v786, 8
  %v923 = vpop.permute.xlu0 %922
  %924 = vrot.lane.b32.xlu0 %v787, 8
  %v925 = vpop.permute.xlu0 %924
  %926 = vrot.lane.b32.xlu0 %v788, 8
  %v927 = vpop.permute.xlu0 %926
  %928 = vrot.lane.b32.xlu0 %v789, 8
  %v929 = vpop.permute.xlu0 %928
  %930 = vrot.lane.b32.xlu0 %v790, 8
  %v931 = vpop.permute.xlu0 %930
  %932 = vrot.lane.b32.xlu0 %v791, 8
  %v933 = vpop.permute.xlu0 %932
  %934 = vrot.lane.b32.xlu0 %v792, 8
  %v935 = vpop.permute.xlu0 %934
  %936 = vrot.lane.b32.xlu0 %v793, 8
  %v937 = vpop.permute.xlu0 %936
  %938 = vrot.lane.b32.xlu0 %v794, 8
  %v939 = vpop.permute.xlu0 %938
  %940 = vrot.lane.b32.xlu0 %v795, 8
  %v941 = vpop.permute.xlu0 %940
  %942 = vrot.lane.b32.xlu0 %v796, 8
  %v943 = vpop.permute.xlu0 %942
  %944 = vrot.lane.b32.xlu0 %v797, 8
  %v945 = vpop.permute.xlu0 %944
  %946 = vrot.lane.b32.xlu0 %v798, 8
  %v947 = vpop.permute.xlu0 %946
  %948 = vrot.lane.b32.xlu0 %v799, 8
  %v949 = vpop.permute.xlu0 %948
  %950 = vrot.lane.b32.xlu0 %v800, 8
  %v951 = vpop.permute.xlu0 %950
  %952 = vrot.lane.b32.xlu0 %v801, 8
  %v953 = vpop.permute.xlu0 %952
  %954 = vrot.lane.b32.xlu0 %v802, 8
  %v955 = vpop.permute.xlu0 %954
  %956 = vrot.lane.b32.xlu0 %v803, 8
  %v957 = vpop.permute.xlu0 %956
  %958 = vrot.lane.b32.xlu0 %v804, 8
  %v959 = vpop.permute.xlu0 %958
  %960 = vrot.lane.b32.xlu0 %v805, 8
  %v961 = vpop.permute.xlu0 %960
  %962 = vrot.lane.b32.xlu0 %v806, 8
  %v963 = vpop.permute.xlu0 %962
  %964 = vrot.lane.b32.xlu0 %v807, 8
  %v965 = vpop.permute.xlu0 %964
  %966 = vrot.lane.b32.xlu0 %v808, 8
  %v967 = vpop.permute.xlu0 %966
  %968 = vrot.lane.b32.xlu0 %v809, 8
  %v969 = vpop.permute.xlu0 %968
  %970 = vrot.lane.b32.xlu0 %v810, 8
  %v971 = vpop.permute.xlu0 %970
  %972 = vrot.lane.b32.xlu0 %v811, 8
  %v973 = vpop.permute.xlu0 %972
  %974 = vrot.lane.b32.xlu0 %v812, 8
  %v975 = vpop.permute.xlu0 %974
  %976 = vrot.lane.b32.xlu0 %v813, 8
  %v977 = vpop.permute.xlu0 %976
  %978 = vrot.lane.b32.xlu0 %v814, 8
  %v979 = vpop.permute.xlu0 %978
  %980 = vrot.lane.b32.xlu0 %v815, 8
  %v981 = vpop.permute.xlu0 %980
  %982 = vrot.lane.b32.xlu0 %v816, 8
  %v983 = vpop.permute.xlu0 %982
  %984 = vrot.lane.b32.xlu0 %v817, 8
  %v985 = vpop.permute.xlu0 %984
  %986 = vrot.lane.b32.xlu0 %v818, 8
  %v987 = vpop.permute.xlu0 %986
  %988 = vrot.lane.b32.xlu0 %v819, 8
  %v989 = vpop.permute.xlu0 %988
  %990 = vrot.lane.b32.xlu0 %v820, 8
  %v991 = vpop.permute.xlu0 %990
  %992 = vrot.lane.b32.xlu0 %v821, 8
  %v993 = vpop.permute.xlu0 %992
  %994 = vrot.lane.b32.xlu0 %v822, 8
  %v995 = vpop.permute.xlu0 %994
  %996 = vrot.lane.b32.xlu0 %v823, 8
  %v997 = vpop.permute.xlu0 %996
  %998 = vrot.lane.b32.xlu0 %v824, 8
  %v999 = vpop.permute.xlu0 %998
  %1000 = vrot.lane.b32.xlu0 %v825, 8
  %v1001 = vpop.permute.xlu0 %1000
  %1002 = vrot.lane.b32.xlu0 %v826, 8
  %v1003 = vpop.permute.xlu0 %1002
  %1004 = vrot.lane.b32.xlu0 %v827, 8
  %v1005 = vpop.permute.xlu0 %1004
  %1006 = vrot.lane.b32.xlu0 %v828, 8
  %v1007 = vpop.permute.xlu0 %1006
  %1008 = vrot.lane.b32.xlu0 %v829, 8
  %v1009 = vpop.permute.xlu0 %1008
  %1010 = vrot.lane.b32.xlu0 %v830, 8
  %v1011 = vpop.permute.xlu0 %1010
  %1012 = vrot.lane.b32.xlu0 %v831, 8
  %v1013 = vpop.permute.xlu0 %1012
  %1014 = vrot.lane.b32.xlu0 %v832, 8
  %v1015 = vpop.permute.xlu0 %1014
  %1016 = vrot.lane.b32.xlu0 %v833, 8
  %v1017 = vpop.permute.xlu0 %1016
  %1018 = vrot.lane.b32.xlu0 %v834, 8
  %v1019 = vpop.permute.xlu0 %1018
  %1020 = vrot.lane.b32.xlu0 %v835, 8
  %v1021 = vpop.permute.xlu0 %1020
  %1022 = vrot.lane.b32.xlu0 %v836, 8
  %v1023 = vpop.permute.xlu0 %1022
  %1024 = vrot.lane.b32.xlu0 %v837, 8
  %v1025 = vpop.permute.xlu0 %1024
  %1026 = vrot.lane.b32.xlu0 %v838, 8
  %v1027 = vpop.permute.xlu0 %1026
  %1028 = vrot.lane.b32.xlu0 %v839, 8
  %v1029 = vpop.permute.xlu0 %1028
  %1030 = vrot.lane.b32.xlu0 %v840, 8
  %v1031 = vpop.permute.xlu0 %1030
  %1032 = vrot.lane.b32.xlu0 %v841, 8
  %v1033 = vpop.permute.xlu0 %1032
  %vm1098 = vcmask 97344
  %1099 = vst.msk [vmem:[#allocation4] sm:$0xff] %vm1098, %v907
  %1100 = vst.msk [vmem:[#allocation4 + $0x8] sm:$0xff] %vm1098, %v909
  %1101 = vst.msk [vmem:[#allocation4 + $0x10] sm:$0xff] %vm1098, %v911
  %1102 = vst.msk [vmem:[#allocation4 + $0x18] sm:$0xff] %vm1098, %v913
  %1103 = vst.msk [vmem:[#allocation4 + $0x20] sm:$0xff] %vm1098, %v915
  %1104 = vst.msk [vmem:[#allocation4 + $0x28] sm:$0xff] %vm1098, %v917
  %1105 = vst.msk [vmem:[#allocation4 + $0x30] sm:$0xff] %vm1098, %v919
  %1106 = vst.msk [vmem:[#allocation4 + $0x38] sm:$0xff] %vm1098, %v921
  %1107 = vst.msk [vmem:[#allocation4 + $0x40] sm:$0xff] %vm1098, %v923
  %1108 = vst.msk [vmem:[#allocation4 + $0x48] sm:$0xff] %vm1098, %v925
  %1109 = vst.msk [vmem:[#allocation4 + $0x50] sm:$0xff] %vm1098, %v927
  %1110 = vst.msk [vmem:[#allocation4 + $0x58] sm:$0xff] %vm1098, %v929
  %1111 = vst.msk [vmem:[#allocation4 + $0x60] sm:$0xff] %vm1098, %v931
  %1112 = vst.msk [vmem:[#allocation4 + $0x68] sm:$0xff] %vm1098, %v933
  %1113 = vst.msk [vmem:[#allocation4 + $0x70] sm:$0xff] %vm1098, %v935
  %1114 = vst.msk [vmem:[#allocation4 + $0x78] sm:$0xff] %vm1098, %v937
  %1115 = vst.msk [vmem:[#allocation4 + $0x80] sm:$0xff] %vm1098, %v939
  %1116 = vst.msk [vmem:[#allocation4 + $0x88] sm:$0xff] %vm1098, %v941
  %1117 = vst.msk [vmem:[#allocation4 + $0x90] sm:$0xff] %vm1098, %v943
  %1118 = vst.msk [vmem:[#allocation4 + $0x98] sm:$0xff] %vm1098, %v945
  %1119 = vst.msk [vmem:[#allocation4 + $0xa0] sm:$0xff] %vm1098, %v947
  %1120 = vst.msk [vmem:[#allocation4 + $0xa8] sm:$0xff] %vm1098, %v949
  %1121 = vst.msk [vmem:[#allocation4 + $0xb0] sm:$0xff] %vm1098, %v951
  %1122 = vst.msk [vmem:[#allocation4 + $0xb8] sm:$0xff] %vm1098, %v953
  %1123 = vst.msk [vmem:[#allocation4 + $0xc0] sm:$0xff] %vm1098, %v955
  %1124 = vst.msk [vmem:[#allocation4 + $0xc8] sm:$0xff] %vm1098, %v957
  %1125 = vst.msk [vmem:[#allocation4 + $0xd0] sm:$0xff] %vm1098, %v959
  %1126 = vst.msk [vmem:[#allocation4 + $0xd8] sm:$0xff] %vm1098, %v961
  %1127 = vst.msk [vmem:[#allocation4 + $0xe0] sm:$0xff] %vm1098, %v963
  %1128 = vst.msk [vmem:[#allocation4 + $0xe8] sm:$0xff] %vm1098, %v965
  %1129 = vst.msk [vmem:[#allocation4 + $0xf0] sm:$0xff] %vm1098, %v967
  %1130 = vst.msk [vmem:[#allocation4 + $0xf8] sm:$0xff] %vm1098, %v969
  %1131 = vst.msk [vmem:[#allocation4 + $0x100] sm:$0xff] %vm1098, %v971
  %1132 = vst.msk [vmem:[#allocation4 + $0x108] sm:$0xff] %vm1098, %v973
  %1133 = vst.msk [vmem:[#allocation4 + $0x110] sm:$0xff] %vm1098, %v975
  %1134 = vst.msk [vmem:[#allocation4 + $0x118] sm:$0xff] %vm1098, %v977
  %1135 = vst.msk [vmem:[#allocation4 + $0x120] sm:$0xff] %vm1098, %v979
  %1136 = vst.msk [vmem:[#allocation4 + $0x128] sm:$0xff] %vm1098, %v981
  %1137 = vst.msk [vmem:[#allocation4 + $0x130] sm:$0xff] %vm1098, %v983
  %1138 = vst.msk [vmem:[#allocation4 + $0x138] sm:$0xff] %vm1098, %v985
  %1139 = vst.msk [vmem:[#allocation4 + $0x140] sm:$0xff] %vm1098, %v987
  %1140 = vst.msk [vmem:[#allocation4 + $0x148] sm:$0xff] %vm1098, %v989
  %1141 = vst.msk [vmem:[#allocation4 + $0x150] sm:$0xff] %vm1098, %v991
  %1142 = vst.msk [vmem:[#allocation4 + $0x158] sm:$0xff] %vm1098, %v993
  %1143 = vst.msk [vmem:[#allocation4 + $0x160] sm:$0xff] %vm1098, %v995
  %1144 = vst.msk [vmem:[#allocation4 + $0x168] sm:$0xff] %vm1098, %v997
  %1145 = vst.msk [vmem:[#allocation4 + $0x170] sm:$0xff] %vm1098, %v999
  %1146 = vst.msk [vmem:[#allocation4 + $0x178] sm:$0xff] %vm1098, %v1001
  %1147 = vst.msk [vmem:[#allocation4 + $0x180] sm:$0xff] %vm1098, %v1003
  %1148 = vst.msk [vmem:[#allocation4 + $0x188] sm:$0xff] %vm1098, %v1005
  %1149 = vst.msk [vmem:[#allocation4 + $0x190] sm:$0xff] %vm1098, %v1007
  %1150 = vst.msk [vmem:[#allocation4 + $0x198] sm:$0xff] %vm1098, %v1009
  %1151 = vst.msk [vmem:[#allocation4 + $0x1a0] sm:$0xff] %vm1098, %v1011
  %1152 = vst.msk [vmem:[#allocation4 + $0x1a8] sm:$0xff] %vm1098, %v1013
  %1153 = vst.msk [vmem:[#allocation4 + $0x1b0] sm:$0xff] %vm1098, %v1015
  %1154 = vst.msk [vmem:[#allocation4 + $0x1b8] sm:$0xff] %vm1098, %v1017
  %1155 = vst.msk [vmem:[#allocation4 + $0x1c0] sm:$0xff] %vm1098, %v1019
  %1156 = vst.msk [vmem:[#allocation4 + $0x1c8] sm:$0xff] %vm1098, %v1021
  %1157 = vst.msk [vmem:[#allocation4 + $0x1d0] sm:$0xff] %vm1098, %v1023
  %1158 = vst.msk [vmem:[#allocation4 + $0x1d8] sm:$0xff] %vm1098, %v1025
  %1159 = vst.msk [vmem:[#allocation4 + $0x1e0] sm:$0xff] %vm1098, %v1027
  %1160 = vst.msk [vmem:[#allocation4 + $0x1e8] sm:$0xff] %vm1098, %v1029
  %1161 = vst.msk [vmem:[#allocation4 + $0x1f0] sm:$0xff] %vm1098, %v1031
  %1162 = vst.msk [vmem:[#allocation4 + $0x1f8] sm:$0xff] %vm1098, %v1033
  %v1163 = vld [vmem:[%s200] sm:$0xff]
  %v1164 = vld [vmem:[%s200 + $0x8] sm:$0xff]
  %v1165 = vld [vmem:[%s200 + $0x18] sm:$0xff]
  %v1166 = vld [vmem:[%s200 + $0x20] sm:$0xff]
  %v1167 = vld [vmem:[%s200 + $0x30] sm:$0xff]
  %v1168 = vld [vmem:[%s200 + $0x38] sm:$0xff]
  %v1169 = vld [vmem:[%s200 + $0x48] sm:$0xff]
  %v1170 = vld [vmem:[%s200 + $0x50] sm:$0xff]
  %v1171 = vld [vmem:[%s200 + $0x60] sm:$0xff]
  %v1172 = vld [vmem:[%s200 + $0x68] sm:$0xff]
  %v1173 = vld [vmem:[%s200 + $0x78] sm:$0xff]
  %v1174 = vld [vmem:[%s200 + $0x80] sm:$0xff]
  %v1175 = vld [vmem:[%s200 + $0x90] sm:$0xff]
  %v1176 = vld [vmem:[%s200 + $0x98] sm:$0xff]
  %v1177 = vld [vmem:[%s200 + $0xa8] sm:$0xff]
  %v1178 = vld [vmem:[%s200 + $0xb0] sm:$0xff]
  %v1179 = vld [vmem:[%s200 + $0xc0] sm:$0xff]
  %v1180 = vld [vmem:[%s200 + $0xc8] sm:$0xff]
  %v1181 = vld [vmem:[%s200 + $0xd8] sm:$0xff]
  %v1182 = vld [vmem:[%s200 + $0xe0] sm:$0xff]
  %v1183 = vld [vmem:[%s200 + $0xf0] sm:$0xff]
  %v1184 = vld [vmem:[%s200 + $0xf8] sm:$0xff]
  %v1185 = vld [vmem:[%s200 + $0x108] sm:$0xff]
  %v1186 = vld [vmem:[%s200 + $0x110] sm:$0xff]
  %v1187 = vld [vmem:[%s200 + $0x120] sm:$0xff]
  %v1188 = vld [vmem:[%s200 + $0x128] sm:$0xff]
  %v1189 = vld [vmem:[%s200 + $0x138] sm:$0xff]
  %v1190 = vld [vmem:[%s200 + $0x140] sm:$0xff]
  %v1191 = vld [vmem:[%s200 + $0x150] sm:$0xff]
  %v1192 = vld [vmem:[%s200 + $0x158] sm:$0xff]
  %v1193 = vld [vmem:[%s200 + $0x168] sm:$0xff]
  %v1194 = vld [vmem:[%s200 + $0x170] sm:$0xff]
  %v1195 = vld [vmem:[%s200 + $0x1b0] sm:$0xff]
  %v1196 = vld [vmem:[%s200 + $0x1b8] sm:$0xff]
  %v1197 = vld [vmem:[%s200 + $0x1c8] sm:$0xff]
  %v1198 = vld [vmem:[%s200 + $0x1d0] sm:$0xff]
  %v1199 = vld [vmem:[%s200 + $0x1e0] sm:$0xff]
  %v1200 = vld [vmem:[%s200 + $0x1e8] sm:$0xff]
  %v1201 = vld [vmem:[%s200 + $0x1f8] sm:$0xff]
  %v1202 = vld [vmem:[%s200 + $0x200] sm:$0xff]
  %v1203 = vld [vmem:[%s200 + $0x210] sm:$0xff]
  %v1204 = vld [vmem:[%s200 + $0x218] sm:$0xff]
  %v1205 = vld [vmem:[%s200 + $0x228] sm:$0xff]
  %v1206 = vld [vmem:[%s200 + $0x230] sm:$0xff]
  %v1207 = vld [vmem:[%s200 + $0x240] sm:$0xff]
  %v1208 = vld [vmem:[%s200 + $0x248] sm:$0xff]
  %v1209 = vld [vmem:[%s200 + $0x258] sm:$0xff]
  %v1210 = vld [vmem:[%s200 + $0x260] sm:$0xff]
  %v1211 = vld [vmem:[%s200 + $0x270] sm:$0xff]
  %v1212 = vld [vmem:[%s200 + $0x278] sm:$0xff]
  %v1213 = vld [vmem:[%s200 + $0x288] sm:$0xff]
  %v1214 = vld [vmem:[%s200 + $0x290] sm:$0xff]
  %v1215 = vld [vmem:[%s200 + $0x2a0] sm:$0xff]
  %v1216 = vld [vmem:[%s200 + $0x2a8] sm:$0xff]
  %v1217 = vld [vmem:[%s200 + $0x2b8] sm:$0xff]
  %v1218 = vld [vmem:[%s200 + $0x2c0] sm:$0xff]
  %v1219 = vld [vmem:[%s200 + $0x2d0] sm:$0xff]
  %v1220 = vld [vmem:[%s200 + $0x2d8] sm:$0xff]
  %v1221 = vld [vmem:[%s200 + $0x2e8] sm:$0xff]
  %v1222 = vld [vmem:[%s200 + $0x2f0] sm:$0xff]
  %v1223 = vld [vmem:[%s200 + $0x300] sm:$0xff]
  %v1224 = vld [vmem:[%s200 + $0x308] sm:$0xff]
  %v1225 = vld [vmem:[%s200 + $0x318] sm:$0xff]
  %v1226 = vld [vmem:[%s200 + $0x320] sm:$0xff]
  %1291 = vrot.lane.b32.xlu0 %v1163, 12
  %v1292 = vpop.permute.xlu0 %1291
  %1293 = vrot.lane.b32.xlu0 %v1164, 12
  %v1294 = vpop.permute.xlu0 %1293
  %1295 = vrot.lane.b32.xlu0 %v1165, 12
  %v1296 = vpop.permute.xlu0 %1295
  %1297 = vrot.lane.b32.xlu0 %v1166, 12
  %v1298 = vpop.permute.xlu0 %1297
  %1299 = vrot.lane.b32.xlu0 %v1167, 12
  %v1300 = vpop.permute.xlu0 %1299
  %1301 = vrot.lane.b32.xlu0 %v1168, 12
  %v1302 = vpop.permute.xlu0 %1301
  %1303 = vrot.lane.b32.xlu0 %v1169, 12
  %v1304 = vpop.permute.xlu0 %1303
  %1305 = vrot.lane.b32.xlu0 %v1170, 12
  %v1306 = vpop.permute.xlu0 %1305
  %1307 = vrot.lane.b32.xlu0 %v1171, 12
  %v1308 = vpop.permute.xlu0 %1307
  %1309 = vrot.lane.b32.xlu0 %v1172, 12
  %v1310 = vpop.permute.xlu0 %1309
  %1311 = vrot.lane.b32.xlu0 %v1173, 12
  %v1312 = vpop.permute.xlu0 %1311
  %1313 = vrot.lane.b32.xlu0 %v1174, 12
  %v1314 = vpop.permute.xlu0 %1313
  %1315 = vrot.lane.b32.xlu0 %v1175, 12
  %v1316 = vpop.permute.xlu0 %1315
  %1317 = vrot.lane.b32.xlu0 %v1176, 12
  %v1318 = vpop.permute.xlu0 %1317
  %1319 = vrot.lane.b32.xlu0 %v1177, 12
  %v1320 = vpop.permute.xlu0 %1319
  %1321 = vrot.lane.b32.xlu0 %v1178, 12
  %v1322 = vpop.permute.xlu0 %1321
  %1323 = vrot.lane.b32.xlu0 %v1179, 12
  %v1324 = vpop.permute.xlu0 %1323
  %1325 = vrot.lane.b32.xlu0 %v1180, 12
  %v1326 = vpop.permute.xlu0 %1325
  %1327 = vrot.lane.b32.xlu0 %v1181, 12
  %v1328 = vpop.permute.xlu0 %1327
  %1329 = vrot.lane.b32.xlu0 %v1182, 12
  %v1330 = vpop.permute.xlu0 %1329
  %1331 = vrot.lane.b32.xlu0 %v1183, 12
  %v1332 = vpop.permute.xlu0 %1331
  %1333 = vrot.lane.b32.xlu0 %v1184, 12
  %v1334 = vpop.permute.xlu0 %1333
  %1335 = vrot.lane.b32.xlu0 %v1185, 12
  %v1336 = vpop.permute.xlu0 %1335
  %1337 = vrot.lane.b32.xlu0 %v1186, 12
  %v1338 = vpop.permute.xlu0 %1337
  %1339 = vrot.lane.b32.xlu0 %v1187, 12
  %v1340 = vpop.permute.xlu0 %1339
  %1341 = vrot.lane.b32.xlu0 %v1188, 12
  %v1342 = vpop.permute.xlu0 %1341
  %1343 = vrot.lane.b32.xlu0 %v1189, 12
  %v1344 = vpop.permute.xlu0 %1343
  %1345 = vrot.lane.b32.xlu0 %v1190, 12
  %v1346 = vpop.permute.xlu0 %1345
  %1347 = vrot.lane.b32.xlu0 %v1191, 12
  %v1348 = vpop.permute.xlu0 %1347
  %1349 = vrot.lane.b32.xlu0 %v1192, 12
  %v1350 = vpop.permute.xlu0 %1349
  %1351 = vrot.lane.b32.xlu0 %v1193, 12
  %v1352 = vpop.permute.xlu0 %1351
  %1353 = vrot.lane.b32.xlu0 %v1194, 12
  %v1354 = vpop.permute.xlu0 %1353
  %1355 = vrot.lane.b32.xlu0 %v1195, 12
  %v1356 = vpop.permute.xlu0 %1355
  %1357 = vrot.lane.b32.xlu0 %v1196, 12
  %v1358 = vpop.permute.xlu0 %1357
  %1359 = vrot.lane.b32.xlu0 %v1197, 12
  %v1360 = vpop.permute.xlu0 %1359
  %1361 = vrot.lane.b32.xlu0 %v1198, 12
  %v1362 = vpop.permute.xlu0 %1361
  %1363 = vrot.lane.b32.xlu0 %v1199, 12
  %v1364 = vpop.permute.xlu0 %1363
  %1365 = vrot.lane.b32.xlu0 %v1200, 12
  %v1366 = vpop.permute.xlu0 %1365
  %1367 = vrot.lane.b32.xlu0 %v1201, 12
  %v1368 = vpop.permute.xlu0 %1367
  %1369 = vrot.lane.b32.xlu0 %v1202, 12
  %v1370 = vpop.permute.xlu0 %1369
  %1371 = vrot.lane.b32.xlu0 %v1203, 12
  %v1372 = vpop.permute.xlu0 %1371
  %1373 = vrot.lane.b32.xlu0 %v1204, 12
  %v1374 = vpop.permute.xlu0 %1373
  %1375 = vrot.lane.b32.xlu0 %v1205, 12
  %v1376 = vpop.permute.xlu0 %1375
  %1377 = vrot.lane.b32.xlu0 %v1206, 12
  %v1378 = vpop.permute.xlu0 %1377
  %1379 = vrot.lane.b32.xlu0 %v1207, 12
  %v1380 = vpop.permute.xlu0 %1379
  %1381 = vrot.lane.b32.xlu0 %v1208, 12
  %v1382 = vpop.permute.xlu0 %1381
  %1383 = vrot.lane.b32.xlu0 %v1209, 12
  %v1384 = vpop.permute.xlu0 %1383
  %1385 = vrot.lane.b32.xlu0 %v1210, 12
  %v1386 = vpop.permute.xlu0 %1385
  %1387 = vrot.lane.b32.xlu0 %v1211, 12
  %v1388 = vpop.permute.xlu0 %1387
  %1389 = vrot.lane.b32.xlu0 %v1212, 12
  %v1390 = vpop.permute.xlu0 %1389
  %1391 = vrot.lane.b32.xlu0 %v1213, 12
  %v1392 = vpop.permute.xlu0 %1391
  %1393 = vrot.lane.b32.xlu0 %v1214, 12
  %v1394 = vpop.permute.xlu0 %1393
  %1395 = vrot.lane.b32.xlu0 %v1215, 12
  %v1396 = vpop.permute.xlu0 %1395
  %1397 = vrot.lane.b32.xlu0 %v1216, 12
  %v1398 = vpop.permute.xlu0 %1397
  %1399 = vrot.lane.b32.xlu0 %v1217, 12
  %v1400 = vpop.permute.xlu0 %1399
  %1401 = vrot.lane.b32.xlu0 %v1218, 12
  %v1402 = vpop.permute.xlu0 %1401
  %1403 = vrot.lane.b32.xlu0 %v1219, 12
  %v1404 = vpop.permute.xlu0 %1403
  %1405 = vrot.lane.b32.xlu0 %v1220, 12
  %v1406 = vpop.permute.xlu0 %1405
  %1407 = vrot.lane.b32.xlu0 %v1221, 12
  %v1408 = vpop.permute.xlu0 %1407
  %1409 = vrot.lane.b32.xlu0 %v1222, 12
  %v1410 = vpop.permute.xlu0 %1409
  %1411 = vrot.lane.b32.xlu0 %v1223, 12
  %v1412 = vpop.permute.xlu0 %1411
  %1413 = vrot.lane.b32.xlu0 %v1224, 12
  %v1414 = vpop.permute.xlu0 %1413
  %1415 = vrot.lane.b32.xlu0 %v1225, 12
  %v1416 = vpop.permute.xlu0 %1415
  %1417 = vrot.lane.b32.xlu0 %v1226, 12
  %v1418 = vpop.permute.xlu0 %1417
  %vm1483 = vcmask 130144
  %1484 = vst.msk [vmem:[#allocation4] sm:$0xff] %vm1483, %v1292
  %1485 = vst.msk [vmem:[#allocation4 + $0x8] sm:$0xff] %vm1483, %v1294
  %1486 = vst.msk [vmem:[#allocation4 + $0x10] sm:$0xff] %vm1483, %v1296
  %1487 = vst.msk [vmem:[#allocation4 + $0x18] sm:$0xff] %vm1483, %v1298
  %1488 = vst.msk [vmem:[#allocation4 + $0x20] sm:$0xff] %vm1483, %v1300
  %1489 = vst.msk [vmem:[#allocation4 + $0x28] sm:$0xff] %vm1483, %v1302
  %1490 = vst.msk [vmem:[#allocation4 + $0x30] sm:$0xff] %vm1483, %v1304
  %1491 = vst.msk [vmem:[#allocation4 + $0x38] sm:$0xff] %vm1483, %v1306
  %1492 = vst.msk [vmem:[#allocation4 + $0x40] sm:$0xff] %vm1483, %v1308
  %1493 = vst.msk [vmem:[#allocation4 + $0x48] sm:$0xff] %vm1483, %v1310
  %1494 = vst.msk [vmem:[#allocation4 + $0x50] sm:$0xff] %vm1483, %v1312
  %1495 = vst.msk [vmem:[#allocation4 + $0x58] sm:$0xff] %vm1483, %v1314
  %1496 = vst.msk [vmem:[#allocation4 + $0x60] sm:$0xff] %vm1483, %v1316
  %1497 = vst.msk [vmem:[#allocation4 + $0x68] sm:$0xff] %vm1483, %v1318
  %1498 = vst.msk [vmem:[#allocation4 + $0x70] sm:$0xff] %vm1483, %v1320
  %1499 = vst.msk [vmem:[#allocation4 + $0x78] sm:$0xff] %vm1483, %v1322
  %1500 = vst.msk [vmem:[#allocation4 + $0x80] sm:$0xff] %vm1483, %v1324
  %1501 = vst.msk [vmem:[#allocation4 + $0x88] sm:$0xff] %vm1483, %v1326
  %1502 = vst.msk [vmem:[#allocation4 + $0x90] sm:$0xff] %vm1483, %v1328
  %1503 = vst.msk [vmem:[#allocation4 + $0x98] sm:$0xff] %vm1483, %v1330
  %1504 = vst.msk [vmem:[#allocation4 + $0xa0] sm:$0xff] %vm1483, %v1332
  %1505 = vst.msk [vmem:[#allocation4 + $0xa8] sm:$0xff] %vm1483, %v1334
  %1506 = vst.msk [vmem:[#allocation4 + $0xb0] sm:$0xff] %vm1483, %v1336
  %1507 = vst.msk [vmem:[#allocation4 + $0xb8] sm:$0xff] %vm1483, %v1338
  %1508 = vst.msk [vmem:[#allocation4 + $0xc0] sm:$0xff] %vm1483, %v1340
  %1509 = vst.msk [vmem:[#allocation4 + $0xc8] sm:$0xff] %vm1483, %v1342
  %1510 = vst.msk [vmem:[#allocation4 + $0xd0] sm:$0xff] %vm1483, %v1344
  %1511 = vst.msk [vmem:[#allocation4 + $0xd8] sm:$0xff] %vm1483, %v1346
  %1512 = vst.msk [vmem:[#allocation4 + $0xe0] sm:$0xff] %vm1483, %v1348
  %1513 = vst.msk [vmem:[#allocation4 + $0xe8] sm:$0xff] %vm1483, %v1350
  %1514 = vst.msk [vmem:[#allocation4 + $0xf0] sm:$0xff] %vm1483, %v1352
  %1515 = vst.msk [vmem:[#allocation4 + $0xf8] sm:$0xff] %vm1483, %v1354
  %1516 = vst.msk [vmem:[#allocation4 + $0x100] sm:$0xff] %vm1483, %v1356
  %1517 = vst.msk [vmem:[#allocation4 + $0x108] sm:$0xff] %vm1483, %v1358
  %1518 = vst.msk [vmem:[#allocation4 + $0x110] sm:$0xff] %vm1483, %v1360
  %1519 = vst.msk [vmem:[#allocation4 + $0x118] sm:$0xff] %vm1483, %v1362
  %1520 = vst.msk [vmem:[#allocation4 + $0x120] sm:$0xff] %vm1483, %v1364
  %1521 = vst.msk [vmem:[#allocation4 + $0x128] sm:$0xff] %vm1483, %v1366
  %1522 = vst.msk [vmem:[#allocation4 + $0x130] sm:$0xff] %vm1483, %v1368
  %1523 = vst.msk [vmem:[#allocation4 + $0x138] sm:$0xff] %vm1483, %v1370
  %1524 = vst.msk [vmem:[#allocation4 + $0x140] sm:$0xff] %vm1483, %v1372
  %1525 = vst.msk [vmem:[#allocation4 + $0x148] sm:$0xff] %vm1483, %v1374
  %1526 = vst.msk [vmem:[#allocation4 + $0x150] sm:$0xff] %vm1483, %v1376
  %1527 = vst.msk [vmem:[#allocation4 + $0x158] sm:$0xff] %vm1483, %v1378
  %1528 = vst.msk [vmem:[#allocation4 + $0x160] sm:$0xff] %vm1483, %v1380
  %1529 = vst.msk [vmem:[#allocation4 + $0x168] sm:$0xff] %vm1483, %v1382
  %1530 = vst.msk [vmem:[#allocation4 + $0x170] sm:$0xff] %vm1483, %v1384
  %1531 = vst.msk [vmem:[#allocation4 + $0x178] sm:$0xff] %vm1483, %v1386
  %1532 = vst.msk [vmem:[#allocation4 + $0x180] sm:$0xff] %vm1483, %v1388
  %1533 = vst.msk [vmem:[#allocation4 + $0x188] sm:$0xff] %vm1483, %v1390
  %1534 = vst.msk [vmem:[#allocation4 + $0x190] sm:$0xff] %vm1483, %v1392
  %1535 = vst.msk [vmem:[#allocation4 + $0x198] sm:$0xff] %vm1483, %v1394
  %1536 = vst.msk [vmem:[#allocation4 + $0x1a0] sm:$0xff] %vm1483, %v1396
  %1537 = vst.msk [vmem:[#allocation4 + $0x1a8] sm:$0xff] %vm1483, %v1398
  %1538 = vst.msk [vmem:[#allocation4 + $0x1b0] sm:$0xff] %vm1483, %v1400
  %1539 = vst.msk [vmem:[#allocation4 + $0x1b8] sm:$0xff] %vm1483, %v1402
  %1540 = vst.msk [vmem:[#allocation4 + $0x1c0] sm:$0xff] %vm1483, %v1404
  %1541 = vst.msk [vmem:[#allocation4 + $0x1c8] sm:$0xff] %vm1483, %v1406
  %1542 = vst.msk [vmem:[#allocation4 + $0x1d0] sm:$0xff] %vm1483, %v1408
  %1543 = vst.msk [vmem:[#allocation4 + $0x1d8] sm:$0xff] %vm1483, %v1410
  %1544 = vst.msk [vmem:[#allocation4 + $0x1e0] sm:$0xff] %vm1483, %v1412
  %1545 = vst.msk [vmem:[#allocation4 + $0x1e8] sm:$0xff] %vm1483, %v1414
  %1546 = vst.msk [vmem:[#allocation4 + $0x1f0] sm:$0xff] %vm1483, %v1416
  %1547 = vst.msk [vmem:[#allocation4 + $0x1f8] sm:$0xff] %vm1483, %v1418
  %v1548 = vld [vmem:[%s200 + $0x1] sm:$0xff]
  %v1549 = vld [vmem:[%s200 + $0x9] sm:$0xff]
  %v1550 = vld [vmem:[%s200 + $0x19] sm:$0xff]
  %v1551 = vld [vmem:[%s200 + $0x21] sm:$0xff]
  %v1552 = vld [vmem:[%s200 + $0x31] sm:$0xff]
  %v1553 = vld [vmem:[%s200 + $0x39] sm:$0xff]
  %v1554 = vld [vmem:[%s200 + $0x49] sm:$0xff]
  %v1555 = vld [vmem:[%s200 + $0x51] sm:$0xff]
  %v1556 = vld [vmem:[%s200 + $0x61] sm:$0xff]
  %v1557 = vld [vmem:[%s200 + $0x69] sm:$0xff]
  %v1558 = vld [vmem:[%s200 + $0x79] sm:$0xff]
  %v1559 = vld [vmem:[%s200 + $0x81] sm:$0xff]
  %v1560 = vld [vmem:[%s200 + $0x91] sm:$0xff]
  %v1561 = vld [vmem:[%s200 + $0x99] sm:$0xff]
  %v1562 = vld [vmem:[%s200 + $0xa9] sm:$0xff]
  %v1563 = vld [vmem:[%s200 + $0xb1] sm:$0xff]
  %v1564 = vld [vmem:[%s200 + $0xc1] sm:$0xff]
  %v1565 = vld [vmem:[%s200 + $0xc9] sm:$0xff]
  %v1566 = vld [vmem:[%s200 + $0xd9] sm:$0xff]
  %v1567 = vld [vmem:[%s200 + $0xe1] sm:$0xff]
  %v1568 = vld [vmem:[%s200 + $0xf1] sm:$0xff]
  %v1569 = vld [vmem:[%s200 + $0xf9] sm:$0xff]
  %v1570 = vld [vmem:[%s200 + $0x109] sm:$0xff]
  %v1571 = vld [vmem:[%s200 + $0x111] sm:$0xff]
  %v1572 = vld [vmem:[%s200 + $0x121] sm:$0xff]
  %v1573 = vld [vmem:[%s200 + $0x129] sm:$0xff]
  %v1574 = vld [vmem:[%s200 + $0x139] sm:$0xff]
  %v1575 = vld [vmem:[%s200 + $0x141] sm:$0xff]
  %v1576 = vld [vmem:[%s200 + $0x151] sm:$0xff]
  %v1577 = vld [vmem:[%s200 + $0x159] sm:$0xff]
  %v1578 = vld [vmem:[%s200 + $0x169] sm:$0xff]
  %v1579 = vld [vmem:[%s200 + $0x171] sm:$0xff]
  %v1580 = vld [vmem:[%s200 + $0x1b1] sm:$0xff]
  %v1581 = vld [vmem:[%s200 + $0x1b9] sm:$0xff]
  %v1582 = vld [vmem:[%s200 + $0x1c9] sm:$0xff]
  %v1583 = vld [vmem:[%s200 + $0x1d1] sm:$0xff]
  %v1584 = vld [vmem:[%s200 + $0x1e1] sm:$0xff]
  %v1585 = vld [vmem:[%s200 + $0x1e9] sm:$0xff]
  %v1586 = vld [vmem:[%s200 + $0x1f9] sm:$0xff]
  %v1587 = vld [vmem:[%s200 + $0x201] sm:$0xff]
  %v1588 = vld [vmem:[%s200 + $0x211] sm:$0xff]
  %v1589 = vld [vmem:[%s200 + $0x219] sm:$0xff]
  %v1590 = vld [vmem:[%s200 + $0x229] sm:$0xff]
  %v1591 = vld [vmem:[%s200 + $0x231] sm:$0xff]
  %v1592 = vld [vmem:[%s200 + $0x241] sm:$0xff]
  %v1593 = vld [vmem:[%s200 + $0x249] sm:$0xff]
  %v1594 = vld [vmem:[%s200 + $0x259] sm:$0xff]
  %v1595 = vld [vmem:[%s200 + $0x261] sm:$0xff]
  %v1596 = vld [vmem:[%s200 + $0x271] sm:$0xff]
  %v1597 = vld [vmem:[%s200 + $0x279] sm:$0xff]
  %v1598 = vld [vmem:[%s200 + $0x289] sm:$0xff]
  %v1599 = vld [vmem:[%s200 + $0x291] sm:$0xff]
  %v1600 = vld [vmem:[%s200 + $0x2a1] sm:$0xff]
  %v1601 = vld [vmem:[%s200 + $0x2a9] sm:$0xff]
  %v1602 = vld [vmem:[%s200 + $0x2b9] sm:$0xff]
  %v1603 = vld [vmem:[%s200 + $0x2c1] sm:$0xff]
  %v1604 = vld [vmem:[%s200 + $0x2d1] sm:$0xff]
  %v1605 = vld [vmem:[%s200 + $0x2d9] sm:$0xff]
  %v1606 = vld [vmem:[%s200 + $0x2e9] sm:$0xff]
  %v1607 = vld [vmem:[%s200 + $0x2f1] sm:$0xff]
  %v1608 = vld [vmem:[%s200 + $0x301] sm:$0xff]
  %v1609 = vld [vmem:[%s200 + $0x309] sm:$0xff]
  %v1610 = vld [vmem:[%s200 + $0x319] sm:$0xff]
  %v1611 = vld [vmem:[%s200 + $0x321] sm:$0xff]
  %1676 = vrot.lane.b32.xlu0 %v1548, 16
  %v1677 = vpop.permute.xlu0 %1676
  %1678 = vrot.lane.b32.xlu0 %v1549, 16
  %v1679 = vpop.permute.xlu0 %1678
  %1680 = vrot.lane.b32.xlu0 %v1550, 16
  %v1681 = vpop.permute.xlu0 %1680
  %1682 = vrot.lane.b32.xlu0 %v1551, 16
  %v1683 = vpop.permute.xlu0 %1682
  %1684 = vrot.lane.b32.xlu0 %v1552, 16
  %v1685 = vpop.permute.xlu0 %1684
  %1686 = vrot.lane.b32.xlu0 %v1553, 16
  %v1687 = vpop.permute.xlu0 %1686
  %1688 = vrot.lane.b32.xlu0 %v1554, 16
  %v1689 = vpop.permute.xlu0 %1688
  %1690 = vrot.lane.b32.xlu0 %v1555, 16
  %v1691 = vpop.permute.xlu0 %1690
  %1692 = vrot.lane.b32.xlu0 %v1556, 16
  %v1693 = vpop.permute.xlu0 %1692
  %1694 = vrot.lane.b32.xlu0 %v1557, 16
  %v1695 = vpop.permute.xlu0 %1694
  %1696 = vrot.lane.b32.xlu0 %v1558, 16
  %v1697 = vpop.permute.xlu0 %1696
  %1698 = vrot.lane.b32.xlu0 %v1559, 16
  %v1699 = vpop.permute.xlu0 %1698
  %1700 = vrot.lane.b32.xlu0 %v1560, 16
  %v1701 = vpop.permute.xlu0 %1700
  %1702 = vrot.lane.b32.xlu0 %v1561, 16
  %v1703 = vpop.permute.xlu0 %1702
  %1704 = vrot.lane.b32.xlu0 %v1562, 16
  %v1705 = vpop.permute.xlu0 %1704
  %1706 = vrot.lane.b32.xlu0 %v1563, 16
  %v1707 = vpop.permute.xlu0 %1706
  %1708 = vrot.lane.b32.xlu0 %v1564, 16
  %v1709 = vpop.permute.xlu0 %1708
  %1710 = vrot.lane.b32.xlu0 %v1565, 16
  %v1711 = vpop.permute.xlu0 %1710
  %1712 = vrot.lane.b32.xlu0 %v1566, 16
  %v1713 = vpop.permute.xlu0 %1712
  %1714 = vrot.lane.b32.xlu0 %v1567, 16
  %v1715 = vpop.permute.xlu0 %1714
  %1716 = vrot.lane.b32.xlu0 %v1568, 16
  %v1717 = vpop.permute.xlu0 %1716
  %1718 = vrot.lane.b32.xlu0 %v1569, 16
  %v1719 = vpop.permute.xlu0 %1718
  %1720 = vrot.lane.b32.xlu0 %v1570, 16
  %v1721 = vpop.permute.xlu0 %1720
  %1722 = vrot.lane.b32.xlu0 %v1571, 16
  %v1723 = vpop.permute.xlu0 %1722
  %1724 = vrot.lane.b32.xlu0 %v1572, 16
  %v1725 = vpop.permute.xlu0 %1724
  %1726 = vrot.lane.b32.xlu0 %v1573, 16
  %v1727 = vpop.permute.xlu0 %1726
  %1728 = vrot.lane.b32.xlu0 %v1574, 16
  %v1729 = vpop.permute.xlu0 %1728
  %1730 = vrot.lane.b32.xlu0 %v1575, 16
  %v1731 = vpop.permute.xlu0 %1730
  %1732 = vrot.lane.b32.xlu0 %v1576, 16
  %v1733 = vpop.permute.xlu0 %1732
  %1734 = vrot.lane.b32.xlu0 %v1577, 16
  %v1735 = vpop.permute.xlu0 %1734
  %1736 = vrot.lane.b32.xlu0 %v1578, 16
  %v1737 = vpop.permute.xlu0 %1736
  %1738 = vrot.lane.b32.xlu0 %v1579, 16
  %v1739 = vpop.permute.xlu0 %1738
  %1740 = vrot.lane.b32.xlu0 %v1580, 16
  %v1741 = vpop.permute.xlu0 %1740
  %1742 = vrot.lane.b32.xlu0 %v1581, 16
  %v1743 = vpop.permute.xlu0 %1742
  %1744 = vrot.lane.b32.xlu0 %v1582, 16
  %v1745 = vpop.permute.xlu0 %1744
  %1746 = vrot.lane.b32.xlu0 %v1583, 16
  %v1747 = vpop.permute.xlu0 %1746
  %1748 = vrot.lane.b32.xlu0 %v1584, 16
  %v1749 = vpop.permute.xlu0 %1748
  %1750 = vrot.lane.b32.xlu0 %v1585, 16
  %v1751 = vpop.permute.xlu0 %1750
  %1752 = vrot.lane.b32.xlu0 %v1586, 16
  %v1753 = vpop.permute.xlu0 %1752
  %1754 = vrot.lane.b32.xlu0 %v1587, 16
  %v1755 = vpop.permute.xlu0 %1754
  %1756 = vrot.lane.b32.xlu0 %v1588, 16
  %v1757 = vpop.permute.xlu0 %1756
  %1758 = vrot.lane.b32.xlu0 %v1589, 16
  %v1759 = vpop.permute.xlu0 %1758
  %1760 = vrot.lane.b32.xlu0 %v1590, 16
  %v1761 = vpop.permute.xlu0 %1760
  %1762 = vrot.lane.b32.xlu0 %v1591, 16
  %v1763 = vpop.permute.xlu0 %1762
  %1764 = vrot.lane.b32.xlu0 %v1592, 16
  %v1765 = vpop.permute.xlu0 %1764
  %1766 = vrot.lane.b32.xlu0 %v1593, 16
  %v1767 = vpop.permute.xlu0 %1766
  %1768 = vrot.lane.b32.xlu0 %v1594, 16
  %v1769 = vpop.permute.xlu0 %1768
  %1770 = vrot.lane.b32.xlu0 %v1595, 16
  %v1771 = vpop.permute.xlu0 %1770
  %1772 = vrot.lane.b32.xlu0 %v1596, 16
  %v1773 = vpop.permute.xlu0 %1772
  %1774 = vrot.lane.b32.xlu0 %v1597, 16
  %v1775 = vpop.permute.xlu0 %1774
  %1776 = vrot.lane.b32.xlu0 %v1598, 16
  %v1777 = vpop.permute.xlu0 %1776
  %1778 = vrot.lane.b32.xlu0 %v1599, 16
  %v1779 = vpop.permute.xlu0 %1778
  %1780 = vrot.lane.b32.xlu0 %v1600, 16
  %v1781 = vpop.permute.xlu0 %1780
  %1782 = vrot.lane.b32.xlu0 %v1601, 16
  %v1783 = vpop.permute.xlu0 %1782
  %1784 = vrot.lane.b32.xlu0 %v1602, 16
  %v1785 = vpop.permute.xlu0 %1784
  %1786 = vrot.lane.b32.xlu0 %v1603, 16
  %v1787 = vpop.permute.xlu0 %1786
  %1788 = vrot.lane.b32.xlu0 %v1604, 16
  %v1789 = vpop.permute.xlu0 %1788
  %1790 = vrot.lane.b32.xlu0 %v1605, 16
  %v1791 = vpop.permute.xlu0 %1790
  %1792 = vrot.lane.b32.xlu0 %v1606, 16
  %v1793 = vpop.permute.xlu0 %1792
  %1794 = vrot.lane.b32.xlu0 %v1607, 16
  %v1795 = vpop.permute.xlu0 %1794
  %1796 = vrot.lane.b32.xlu0 %v1608, 16
  %v1797 = vpop.permute.xlu0 %1796
  %1798 = vrot.lane.b32.xlu0 %v1609, 16
  %v1799 = vpop.permute.xlu0 %1798
  %1800 = vrot.lane.b32.xlu0 %v1610, 16
  %v1801 = vpop.permute.xlu0 %1800
  %1802 = vrot.lane.b32.xlu0 %v1611, 16
  %v1803 = vpop.permute.xlu0 %1802
  %vm1868 = vcmask 162944
  %1869 = vst.msk [vmem:[#allocation4] sm:$0xff] %vm1868, %v1677
  %1870 = vst.msk [vmem:[#allocation4 + $0x8] sm:$0xff] %vm1868, %v1679
  %1871 = vst.msk [vmem:[#allocation4 + $0x10] sm:$0xff] %vm1868, %v1681
  %1872 = vst.msk [vmem:[#allocation4 + $0x18] sm:$0xff] %vm1868, %v1683
  %1873 = vst.msk [vmem:[#allocation4 + $0x20] sm:$0xff] %vm1868, %v1685
  %1874 = vst.msk [vmem:[#allocation4 + $0x28] sm:$0xff] %vm1868, %v1687
  %1875 = vst.msk [vmem:[#allocation4 + $0x30] sm:$0xff] %vm1868, %v1689
  %1876 = vst.msk [vmem:[#allocation4 + $0x38] sm:$0xff] %vm1868, %v1691
  %1877 = vst.msk [vmem:[#allocation4 + $0x40] sm:$0xff] %vm1868, %v1693
  %1878 = vst.msk [vmem:[#allocation4 + $0x48] sm:$0xff] %vm1868, %v1695
  %1879 = vst.msk [vmem:[#allocation4 + $0x50] sm:$0xff] %vm1868, %v1697
  %1880 = vst.msk [vmem:[#allocation4 + $0x58] sm:$0xff] %vm1868, %v1699
  %1881 = vst.msk [vmem:[#allocation4 + $0x60] sm:$0xff] %vm1868, %v1701
  %1882 = vst.msk [vmem:[#allocation4 + $0x68] sm:$0xff] %vm1868, %v1703
  %1883 = vst.msk [vmem:[#allocation4 + $0x70] sm:$0xff] %vm1868, %v1705
  %1884 = vst.msk [vmem:[#allocation4 + $0x78] sm:$0xff] %vm1868, %v1707
  %1885 = vst.msk [vmem:[#allocation4 + $0x80] sm:$0xff] %vm1868, %v1709
  %1886 = vst.msk [vmem:[#allocation4 + $0x88] sm:$0xff] %vm1868, %v1711
  %1887 = vst.msk [vmem:[#allocation4 + $0x90] sm:$0xff] %vm1868, %v1713
  %1888 = vst.msk [vmem:[#allocation4 + $0x98] sm:$0xff] %vm1868, %v1715
  %1889 = vst.msk [vmem:[#allocation4 + $0xa0] sm:$0xff] %vm1868, %v1717
  %1890 = vst.msk [vmem:[#allocation4 + $0xa8] sm:$0xff] %vm1868, %v1719
  %1891 = vst.msk [vmem:[#allocation4 + $0xb0] sm:$0xff] %vm1868, %v1721
  %1892 = vst.msk [vmem:[#allocation4 + $0xb8] sm:$0xff] %vm1868, %v1723
  %1893 = vst.msk [vmem:[#allocation4 + $0xc0] sm:$0xff] %vm1868, %v1725
  %1894 = vst.msk [vmem:[#allocation4 + $0xc8] sm:$0xff] %vm1868, %v1727
  %1895 = vst.msk [vmem:[#allocation4 + $0xd0] sm:$0xff] %vm1868, %v1729
  %1896 = vst.msk [vmem:[#allocation4 + $0xd8] sm:$0xff] %vm1868, %v1731
  %1897 = vst.msk [vmem:[#allocation4 + $0xe0] sm:$0xff] %vm1868, %v1733
  %1898 = vst.msk [vmem:[#allocation4 + $0xe8] sm:$0xff] %vm1868, %v1735
  %1899 = vst.msk [vmem:[#allocation4 + $0xf0] sm:$0xff] %vm1868, %v1737
  %1900 = vst.msk [vmem:[#allocation4 + $0xf8] sm:$0xff] %vm1868, %v1739
  %1901 = vst.msk [vmem:[#allocation4 + $0x100] sm:$0xff] %vm1868, %v1741
  %1902 = vst.msk [vmem:[#allocation4 + $0x108] sm:$0xff] %vm1868, %v1743
  %1903 = vst.msk [vmem:[#allocation4 + $0x110] sm:$0xff] %vm1868, %v1745
  %1904 = vst.msk [vmem:[#allocation4 + $0x118] sm:$0xff] %vm1868, %v1747
  %1905 = vst.msk [vmem:[#allocation4 + $0x120] sm:$0xff] %vm1868, %v1749
  %1906 = vst.msk [vmem:[#allocation4 + $0x128] sm:$0xff] %vm1868, %v1751
  %1907 = vst.msk [vmem:[#allocation4 + $0x130] sm:$0xff] %vm1868, %v1753
  %1908 = vst.msk [vmem:[#allocation4 + $0x138] sm:$0xff] %vm1868, %v1755
  %1909 = vst.msk [vmem:[#allocation4 + $0x140] sm:$0xff] %vm1868, %v1757
  %1910 = vst.msk [vmem:[#allocation4 + $0x148] sm:$0xff] %vm1868, %v1759
  %1911 = vst.msk [vmem:[#allocation4 + $0x150] sm:$0xff] %vm1868, %v1761
  %1912 = vst.msk [vmem:[#allocation4 + $0x158] sm:$0xff] %vm1868, %v1763
  %1913 = vst.msk [vmem:[#allocation4 + $0x160] sm:$0xff] %vm1868, %v1765
  %1914 = vst.msk [vmem:[#allocation4 + $0x168] sm:$0xff] %vm1868, %v1767
  %1915 = vst.msk [vmem:[#allocation4 + $0x170] sm:$0xff] %vm1868, %v1769
  %1916 = vst.msk [vmem:[#allocation4 + $0x178] sm:$0xff] %vm1868, %v1771
  %1917 = vst.msk [vmem:[#allocation4 + $0x180] sm:$0xff] %vm1868, %v1773
  %1918 = vst.msk [vmem:[#allocation4 + $0x188] sm:$0xff] %vm1868, %v1775
  %1919 = vst.msk [vmem:[#allocation4 + $0x190] sm:$0xff] %vm1868, %v1777
  %1920 = vst.msk [vmem:[#allocation4 + $0x198] sm:$0xff] %vm1868, %v1779
  %1921 = vst.msk [vmem:[#allocation4 + $0x1a0] sm:$0xff] %vm1868, %v1781
  %1922 = vst.msk [vmem:[#allocation4 + $0x1a8] sm:$0xff] %vm1868, %v1783
  %1923 = vst.msk [vmem:[#allocation4 + $0x1b0] sm:$0xff] %vm1868, %v1785
  %1924 = vst.msk [vmem:[#allocation4 + $0x1b8] sm:$0xff] %vm1868, %v1787
  %1925 = vst.msk [vmem:[#allocation4 + $0x1c0] sm:$0xff] %vm1868, %v1789
  %1926 = vst.msk [vmem:[#allocation4 + $0x1c8] sm:$0xff] %vm1868, %v1791
  %1927 = vst.msk [vmem:[#allocation4 + $0x1d0] sm:$0xff] %vm1868, %v1793
  %1928 = vst.msk [vmem:[#allocation4 + $0x1d8] sm:$0xff] %vm1868, %v1795
  %1929 = vst.msk [vmem:[#allocation4 + $0x1e0] sm:$0xff] %vm1868, %v1797
  %1930 = vst.msk [vmem:[#allocation4 + $0x1e8] sm:$0xff] %vm1868, %v1799
  %1931 = vst.msk [vmem:[#allocation4 + $0x1f0] sm:$0xff] %vm1868, %v1801
  %1932 = vst.msk [vmem:[#allocation4 + $0x1f8] sm:$0xff] %vm1868, %v1803
  %v1933 = vld [vmem:[%s200 + $0x2] sm:$0xff]
  %v1934 = vld [vmem:[%s200 + $0xa] sm:$0xff]
  %v1935 = vld [vmem:[%s200 + $0x1a] sm:$0xff]
  %v1936 = vld [vmem:[%s200 + $0x22] sm:$0xff]
  %v1937 = vld [vmem:[%s200 + $0x32] sm:$0xff]
  %v1938 = vld [vmem:[%s200 + $0x3a] sm:$0xff]
  %v1939 = vld [vmem:[%s200 + $0x4a] sm:$0xff]
  %v1940 = vld [vmem:[%s200 + $0x52] sm:$0xff]
  %v1941 = vld [vmem:[%s200 + $0x62] sm:$0xff]
  %v1942 = vld [vmem:[%s200 + $0x6a] sm:$0xff]
  %v1943 = vld [vmem:[%s200 + $0x7a] sm:$0xff]
  %v1944 = vld [vmem:[%s200 + $0x82] sm:$0xff]
  %v1945 = vld [vmem:[%s200 + $0x92] sm:$0xff]
  %v1946 = vld [vmem:[%s200 + $0x9a] sm:$0xff]
  %v1947 = vld [vmem:[%s200 + $0xaa] sm:$0xff]
  %v1948 = vld [vmem:[%s200 + $0xb2] sm:$0xff]
  %v1949 = vld [vmem:[%s200 + $0xc2] sm:$0xff]
  %v1950 = vld [vmem:[%s200 + $0xca] sm:$0xff]
  %v1951 = vld [vmem:[%s200 + $0xda] sm:$0xff]
  %v1952 = vld [vmem:[%s200 + $0xe2] sm:$0xff]
  %v1953 = vld [vmem:[%s200 + $0xf2] sm:$0xff]
  %v1954 = vld [vmem:[%s200 + $0xfa] sm:$0xff]
  %v1955 = vld [vmem:[%s200 + $0x10a] sm:$0xff]
  %v1956 = vld [vmem:[%s200 + $0x112] sm:$0xff]
  %v1957 = vld [vmem:[%s200 + $0x122] sm:$0xff]
  %v1958 = vld [vmem:[%s200 + $0x12a] sm:$0xff]
  %v1959 = vld [vmem:[%s200 + $0x13a] sm:$0xff]
  %v1960 = vld [vmem:[%s200 + $0x142] sm:$0xff]
  %v1961 = vld [vmem:[%s200 + $0x152] sm:$0xff]
  %v1962 = vld [vmem:[%s200 + $0x15a] sm:$0xff]
  %v1963 = vld [vmem:[%s200 + $0x16a] sm:$0xff]
  %v1964 = vld [vmem:[%s200 + $0x172] sm:$0xff]
  %v1965 = vld [vmem:[%s200 + $0x1b2] sm:$0xff]
  %v1966 = vld [vmem:[%s200 + $0x1ba] sm:$0xff]
  %v1967 = vld [vmem:[%s200 + $0x1ca] sm:$0xff]
  %v1968 = vld [vmem:[%s200 + $0x1d2] sm:$0xff]
  %v1969 = vld [vmem:[%s200 + $0x1e2] sm:$0xff]
  %v1970 = vld [vmem:[%s200 + $0x1ea] sm:$0xff]
  %v1971 = vld [vmem:[%s200 + $0x1fa] sm:$0xff]
  %v1972 = vld [vmem:[%s200 + $0x202] sm:$0xff]
  %v1973 = vld [vmem:[%s200 + $0x212] sm:$0xff]
  %v1974 = vld [vmem:[%s200 + $0x21a] sm:$0xff]
  %v1975 = vld [vmem:[%s200 + $0x22a] sm:$0xff]
  %v1976 = vld [vmem:[%s200 + $0x232] sm:$0xff]
  %v1977 = vld [vmem:[%s200 + $0x242] sm:$0xff]
  %v1978 = vld [vmem:[%s200 + $0x24a] sm:$0xff]
  %v1979 = vld [vmem:[%s200 + $0x25a] sm:$0xff]
  %v1980 = vld [vmem:[%s200 + $0x262] sm:$0xff]
  %v1981 = vld [vmem:[%s200 + $0x272] sm:$0xff]
  %v1982 = vld [vmem:[%s200 + $0x27a] sm:$0xff]
  %v1983 = vld [vmem:[%s200 + $0x28a] sm:$0xff]
  %v1984 = vld [vmem:[%s200 + $0x292] sm:$0xff]
  %v1985 = vld [vmem:[%s200 + $0x2a2] sm:$0xff]
  %v1986 = vld [vmem:[%s200 + $0x2aa] sm:$0xff]
  %v1987 = vld [vmem:[%s200 + $0x2ba] sm:$0xff]
  %v1988 = vld [vmem:[%s200 + $0x2c2] sm:$0xff]
  %v1989 = vld [vmem:[%s200 + $0x2d2] sm:$0xff]
  %v1990 = vld [vmem:[%s200 + $0x2da] sm:$0xff]
  %v1991 = vld [vmem:[%s200 + $0x2ea] sm:$0xff]
  %v1992 = vld [vmem:[%s200 + $0x2f2] sm:$0xff]
  %v1993 = vld [vmem:[%s200 + $0x302] sm:$0xff]
  %v1994 = vld [vmem:[%s200 + $0x30a] sm:$0xff]
  %v1995 = vld [vmem:[%s200 + $0x31a] sm:$0xff]
  %v1996 = vld [vmem:[%s200 + $0x322] sm:$0xff]
  %2061 = vrot.lane.b32.xlu0 %v1933, 20
  %v2062 = vpop.permute.xlu0 %2061
  %2063 = vrot.lane.b32.xlu0 %v1934, 20
  %v2064 = vpop.permute.xlu0 %2063
  %2065 = vrot.lane.b32.xlu0 %v1935, 20
  %v2066 = vpop.permute.xlu0 %2065
  %2067 = vrot.lane.b32.xlu0 %v1936, 20
  %v2068 = vpop.permute.xlu0 %2067
  %2069 = vrot.lane.b32.xlu0 %v1937, 20
  %v2070 = vpop.permute.xlu0 %2069
  %2071 = vrot.lane.b32.xlu0 %v1938, 20
  %v2072 = vpop.permute.xlu0 %2071
  %2073 = vrot.lane.b32.xlu0 %v1939, 20
  %v2074 = vpop.permute.xlu0 %2073
  %2075 = vrot.lane.b32.xlu0 %v1940, 20
  %v2076 = vpop.permute.xlu0 %2075
  %2077 = vrot.lane.b32.xlu0 %v1941, 20
  %v2078 = vpop.permute.xlu0 %2077
  %2079 = vrot.lane.b32.xlu0 %v1942, 20
  %v2080 = vpop.permute.xlu0 %2079
  %2081 = vrot.lane.b32.xlu0 %v1943, 20
  %v2082 = vpop.permute.xlu0 %2081
  %2083 = vrot.lane.b32.xlu0 %v1944, 20
  %v2084 = vpop.permute.xlu0 %2083
  %2085 = vrot.lane.b32.xlu0 %v1945, 20
  %v2086 = vpop.permute.xlu0 %2085
  %2087 = vrot.lane.b32.xlu0 %v1946, 20
  %v2088 = vpop.permute.xlu0 %2087
  %2089 = vrot.lane.b32.xlu0 %v1947, 20
  %v2090 = vpop.permute.xlu0 %2089
  %2091 = vrot.lane.b32.xlu0 %v1948, 20
  %v2092 = vpop.permute.xlu0 %2091
  %2093 = vrot.lane.b32.xlu0 %v1949, 20
  %v2094 = vpop.permute.xlu0 %2093
  %2095 = vrot.lane.b32.xlu0 %v1950, 20
  %v2096 = vpop.permute.xlu0 %2095
  %2097 = vrot.lane.b32.xlu0 %v1951, 20
  %v2098 = vpop.permute.xlu0 %2097
  %2099 = vrot.lane.b32.xlu0 %v1952, 20
  %v2100 = vpop.permute.xlu0 %2099
  %2101 = vrot.lane.b32.xlu0 %v1953, 20
  %v2102 = vpop.permute.xlu0 %2101
  %2103 = vrot.lane.b32.xlu0 %v1954, 20
  %v2104 = vpop.permute.xlu0 %2103
  %2105 = vrot.lane.b32.xlu0 %v1955, 20
  %v2106 = vpop.permute.xlu0 %2105
  %2107 = vrot.lane.b32.xlu0 %v1956, 20
  %v2108 = vpop.permute.xlu0 %2107
  %2109 = vrot.lane.b32.xlu0 %v1957, 20
  %v2110 = vpop.permute.xlu0 %2109
  %2111 = vrot.lane.b32.xlu0 %v1958, 20
  %v2112 = vpop.permute.xlu0 %2111
  %2113 = vrot.lane.b32.xlu0 %v1959, 20
  %v2114 = vpop.permute.xlu0 %2113
  %2115 = vrot.lane.b32.xlu0 %v1960, 20
  %v2116 = vpop.permute.xlu0 %2115
  %2117 = vrot.lane.b32.xlu0 %v1961, 20
  %v2118 = vpop.permute.xlu0 %2117
  %2119 = vrot.lane.b32.xlu0 %v1962, 20
  %v2120 = vpop.permute.xlu0 %2119
  %2121 = vrot.lane.b32.xlu0 %v1963, 20
  %v2122 = vpop.permute.xlu0 %2121
  %2123 = vrot.lane.b32.xlu0 %v1964, 20
  %v2124 = vpop.permute.xlu0 %2123
  %2125 = vrot.lane.b32.xlu0 %v1965, 20
  %v2126 = vpop.permute.xlu0 %2125
  %2127 = vrot.lane.b32.xlu0 %v1966, 20
  %v2128 = vpop.permute.xlu0 %2127
  %2129 = vrot.lane.b32.xlu0 %v1967, 20
  %v2130 = vpop.permute.xlu0 %2129
  %2131 = vrot.lane.b32.xlu0 %v1968, 20
  %v2132 = vpop.permute.xlu0 %2131
  %2133 = vrot.lane.b32.xlu0 %v1969, 20
  %v2134 = vpop.permute.xlu0 %2133
  %2135 = vrot.lane.b32.xlu0 %v1970, 20
  %v2136 = vpop.permute.xlu0 %2135
  %2137 = vrot.lane.b32.xlu0 %v1971, 20
  %v2138 = vpop.permute.xlu0 %2137
  %2139 = vrot.lane.b32.xlu0 %v1972, 20
  %v2140 = vpop.permute.xlu0 %2139
  %2141 = vrot.lane.b32.xlu0 %v1973, 20
  %v2142 = vpop.permute.xlu0 %2141
  %2143 = vrot.lane.b32.xlu0 %v1974, 20
  %v2144 = vpop.permute.xlu0 %2143
  %2145 = vrot.lane.b32.xlu0 %v1975, 20
  %v2146 = vpop.permute.xlu0 %2145
  %2147 = vrot.lane.b32.xlu0 %v1976, 20
  %v2148 = vpop.permute.xlu0 %2147
  %2149 = vrot.lane.b32.xlu0 %v1977, 20
  %v2150 = vpop.permute.xlu0 %2149
  %2151 = vrot.lane.b32.xlu0 %v1978, 20
  %v2152 = vpop.permute.xlu0 %2151
  %2153 = vrot.lane.b32.xlu0 %v1979, 20
  %v2154 = vpop.permute.xlu0 %2153
  %2155 = vrot.lane.b32.xlu0 %v1980, 20
  %v2156 = vpop.permute.xlu0 %2155
  %2157 = vrot.lane.b32.xlu0 %v1981, 20
  %v2158 = vpop.permute.xlu0 %2157
  %2159 = vrot.lane.b32.xlu0 %v1982, 20
  %v2160 = vpop.permute.xlu0 %2159
  %2161 = vrot.lane.b32.xlu0 %v1983, 20
  %v2162 = vpop.permute.xlu0 %2161
  %2163 = vrot.lane.b32.xlu0 %v1984, 20
  %v2164 = vpop.permute.xlu0 %2163
  %2165 = vrot.lane.b32.xlu0 %v1985, 20
  %v2166 = vpop.permute.xlu0 %2165
  %2167 = vrot.lane.b32.xlu0 %v1986, 20
  %v2168 = vpop.permute.xlu0 %2167
  %2169 = vrot.lane.b32.xlu0 %v1987, 20
  %v2170 = vpop.permute.xlu0 %2169
  %2171 = vrot.lane.b32.xlu0 %v1988, 20
  %v2172 = vpop.permute.xlu0 %2171
  %2173 = vrot.lane.b32.xlu0 %v1989, 20
  %v2174 = vpop.permute.xlu0 %2173
  %2175 = vrot.lane.b32.xlu0 %v1990, 20
  %v2176 = vpop.permute.xlu0 %2175
  %2177 = vrot.lane.b32.xlu0 %v1991, 20
  %v2178 = vpop.permute.xlu0 %2177
  %2179 = vrot.lane.b32.xlu0 %v1992, 20
  %v2180 = vpop.permute.xlu0 %2179
  %2181 = vrot.lane.b32.xlu0 %v1993, 20
  %v2182 = vpop.permute.xlu0 %2181
  %2183 = vrot.lane.b32.xlu0 %v1994, 20
  %v2184 = vpop.permute.xlu0 %2183
  %2185 = vrot.lane.b32.xlu0 %v1995, 20
  %v2186 = vpop.permute.xlu0 %2185
  %2187 = vrot.lane.b32.xlu0 %v1996, 20
  %v2188 = vpop.permute.xlu0 %2187
  %vm2253 = vcmask 195744
  %2254 = vst.msk [vmem:[#allocation4] sm:$0xff] %vm2253, %v2062
  %2255 = vst.msk [vmem:[#allocation4 + $0x8] sm:$0xff] %vm2253, %v2064
  %2256 = vst.msk [vmem:[#allocation4 + $0x10] sm:$0xff] %vm2253, %v2066
  %2257 = vst.msk [vmem:[#allocation4 + $0x18] sm:$0xff] %vm2253, %v2068
  %2258 = vst.msk [vmem:[#allocation4 + $0x20] sm:$0xff] %vm2253, %v2070
  %2259 = vst.msk [vmem:[#allocation4 + $0x28] sm:$0xff] %vm2253, %v2072
  %2260 = vst.msk [vmem:[#allocation4 + $0x30] sm:$0xff] %vm2253, %v2074
  %2261 = vst.msk [vmem:[#allocation4 + $0x38] sm:$0xff] %vm2253, %v2076
  %2262 = vst.msk [vmem:[#allocation4 + $0x40] sm:$0xff] %vm2253, %v2078
  %2263 = vst.msk [vmem:[#allocation4 + $0x48] sm:$0xff] %vm2253, %v2080
  %2264 = vst.msk [vmem:[#allocation4 + $0x50] sm:$0xff] %vm2253, %v2082
  %2265 = vst.msk [vmem:[#allocation4 + $0x58] sm:$0xff] %vm2253, %v2084
  %2266 = vst.msk [vmem:[#allocation4 + $0x60] sm:$0xff] %vm2253, %v2086
  %2267 = vst.msk [vmem:[#allocation4 + $0x68] sm:$0xff] %vm2253, %v2088
  %2268 = vst.msk [vmem:[#allocation4 + $0x70] sm:$0xff] %vm2253, %v2090
  %2269 = vst.msk [vmem:[#allocation4 + $0x78] sm:$0xff] %vm2253, %v2092
  %2270 = vst.msk [vmem:[#allocation4 + $0x80] sm:$0xff] %vm2253, %v2094
  %2271 = vst.msk [vmem:[#allocation4 + $0x88] sm:$0xff] %vm2253, %v2096
  %2272 = vst.msk [vmem:[#allocation4 + $0x90] sm:$0xff] %vm2253, %v2098
  %2273 = vst.msk [vmem:[#allocation4 + $0x98] sm:$0xff] %vm2253, %v2100
  %2274 = vst.msk [vmem:[#allocation4 + $0xa0] sm:$0xff] %vm2253, %v2102
  %2275 = vst.msk [vmem:[#allocation4 + $0xa8] sm:$0xff] %vm2253, %v2104
  %2276 = vst.msk [vmem:[#allocation4 + $0xb0] sm:$0xff] %vm2253, %v2106
  %2277 = vst.msk [vmem:[#allocation4 + $0xb8] sm:$0xff] %vm2253, %v2108
  %2278 = vst.msk [vmem:[#allocation4 + $0xc0] sm:$0xff] %vm2253, %v2110
  %2279 = vst.msk [vmem:[#allocation4 + $0xc8] sm:$0xff] %vm2253, %v2112
  %2280 = vst.msk [vmem:[#allocation4 + $0xd0] sm:$0xff] %vm2253, %v2114
  %2281 = vst.msk [vmem:[#allocation4 + $0xd8] sm:$0xff] %vm2253, %v2116
  %2282 = vst.msk [vmem:[#allocation4 + $0xe0] sm:$0xff] %vm2253, %v2118
  %2283 = vst.msk [vmem:[#allocation4 + $0xe8] sm:$0xff] %vm2253, %v2120
  %2284 = vst.msk [vmem:[#allocation4 + $0xf0] sm:$0xff] %vm2253, %v2122
  %2285 = vst.msk [vmem:[#allocation4 + $0xf8] sm:$0xff] %vm2253, %v2124
  %2286 = vst.msk [vmem:[#allocation4 + $0x100] sm:$0xff] %vm2253, %v2126
  %2287 = vst.msk [vmem:[#allocation4 + $0x108] sm:$0xff] %vm2253, %v2128
  %2288 = vst.msk [vmem:[#allocation4 + $0x110] sm:$0xff] %vm2253, %v2130
  %2289 = vst.msk [vmem:[#allocation4 + $0x118] sm:$0xff] %vm2253, %v2132
  %2290 = vst.msk [vmem:[#allocation4 + $0x120] sm:$0xff] %vm2253, %v2134
  %2291 = vst.msk [vmem:[#allocation4 + $0x128] sm:$0xff] %vm2253, %v2136
  %2292 = vst.msk [vmem:[#allocation4 + $0x130] sm:$0xff] %vm2253, %v2138
  %2293 = vst.msk [vmem:[#allocation4 + $0x138] sm:$0xff] %vm2253, %v2140
  %2294 = vst.msk [vmem:[#allocation4 + $0x140] sm:$0xff] %vm2253, %v2142
  %2295 = vst.msk [vmem:[#allocation4 + $0x148] sm:$0xff] %vm2253, %v2144
  %2296 = vst.msk [vmem:[#allocation4 + $0x150] sm:$0xff] %vm2253, %v2146
  %2297 = vst.msk [vmem:[#allocation4 + $0x158] sm:$0xff] %vm2253, %v2148
  %2298 = vst.msk [vmem:[#allocation4 + $0x160] sm:$0xff] %vm2253, %v2150
  %2299 = vst.msk [vmem:[#allocation4 + $0x168] sm:$0xff] %vm2253, %v2152
  %2300 = vst.msk [vmem:[#allocation4 + $0x170] sm:$0xff] %vm2253, %v2154
  %2301 = vst.msk [vmem:[#allocation4 + $0x178] sm:$0xff] %vm2253, %v2156
  %2302 = vst.msk [vmem:[#allocation4 + $0x180] sm:$0xff] %vm2253, %v2158
  %2303 = vst.msk [vmem:[#allocation4 + $0x188] sm:$0xff] %vm2253, %v2160
  %2304 = vst.msk [vmem:[#allocation4 + $0x190] sm:$0xff] %vm2253, %v2162
  %2305 = vst.msk [vmem:[#allocation4 + $0x198] sm:$0xff] %vm2253, %v2164
  %2306 = vst.msk [vmem:[#allocation4 + $0x1a0] sm:$0xff] %vm2253, %v2166
  %2307 = vst.msk [vmem:[#allocation4 + $0x1a8] sm:$0xff] %vm2253, %v2168
  %2308 = vst.msk [vmem:[#allocation4 + $0x1b0] sm:$0xff] %vm2253, %v2170
  %2309 = vst.msk [vmem:[#allocation4 + $0x1b8] sm:$0xff] %vm2253, %v2172
  %2310 = vst.msk [vmem:[#allocation4 + $0x1c0] sm:$0xff] %vm2253, %v2174
  %2311 = vst.msk [vmem:[#allocation4 + $0x1c8] sm:$0xff] %vm2253, %v2176
  %2312 = vst.msk [vmem:[#allocation4 + $0x1d0] sm:$0xff] %vm2253, %v2178
  %2313 = vst.msk [vmem:[#allocation4 + $0x1d8] sm:$0xff] %vm2253, %v2180
  %2314 = vst.msk [vmem:[#allocation4 + $0x1e0] sm:$0xff] %vm2253, %v2182
  %2315 = vst.msk [vmem:[#allocation4 + $0x1e8] sm:$0xff] %vm2253, %v2184
  %2316 = vst.msk [vmem:[#allocation4 + $0x1f0] sm:$0xff] %vm2253, %v2186
  %2317 = vst.msk [vmem:[#allocation4 + $0x1f8] sm:$0xff] %vm2253, %v2188
  %s2318 = scalar_lea.vmem [#allocation2], 48
  %v2319 = vld [vmem:[%s2318] sm:$0xff]
  %v2320 = vld [vmem:[%s2318 + $0x8] sm:$0xff]
  %v2321 = vld [vmem:[%s2318 + $0x18] sm:$0xff]
  %v2322 = vld [vmem:[%s2318 + $0x20] sm:$0xff]
  %v2323 = vld [vmem:[%s2318 + $0x30] sm:$0xff]
  %v2324 = vld [vmem:[%s2318 + $0x38] sm:$0xff]
  %v2325 = vld [vmem:[%s2318 + $0x48] sm:$0xff]
  %v2326 = vld [vmem:[%s2318 + $0x50] sm:$0xff]
  %v2327 = vld [vmem:[%s2318 + $0x60] sm:$0xff]
  %v2328 = vld [vmem:[%s2318 + $0x68] sm:$0xff]
  %v2329 = vld [vmem:[%s2318 + $0x78] sm:$0xff]
  %v2330 = vld [vmem:[%s2318 + $0x80] sm:$0xff]
  %v2331 = vld [vmem:[%s2318 + $0x90] sm:$0xff]
  %v2332 = vld [vmem:[%s2318 + $0x98] sm:$0xff]
  %v2333 = vld [vmem:[%s2318 + $0xa8] sm:$0xff]
  %v2334 = vld [vmem:[%s2318 + $0xb0] sm:$0xff]
  %v2335 = vld [vmem:[%s2318 + $0xc0] sm:$0xff]
  %v2336 = vld [vmem:[%s2318 + $0xc8] sm:$0xff]
  %v2337 = vld [vmem:[%s2318 + $0xd8] sm:$0xff]
  %v2338 = vld [vmem:[%s2318 + $0xe0] sm:$0xff]
  %v2339 = vld [vmem:[%s2318 + $0xf0] sm:$0xff]
  %v2340 = vld [vmem:[%s2318 + $0xf8] sm:$0xff]
  %v2341 = vld [vmem:[%s2318 + $0x108] sm:$0xff]
  %v2342 = vld [vmem:[%s2318 + $0x110] sm:$0xff]
  %v2343 = vld [vmem:[%s2318 + $0x120] sm:$0xff]
  %v2344 = vld [vmem:[%s2318 + $0x128] sm:$0xff]
  %v2345 = vld [vmem:[%s2318 + $0x138] sm:$0xff]
  %v2346 = vld [vmem:[%s2318 + $0x140] sm:$0xff]
  %v2347 = vld [vmem:[%s2318 + $0x150] sm:$0xff]
  %v2348 = vld [vmem:[%s2318 + $0x158] sm:$0xff]
  %v2349 = vld [vmem:[%s2318 + $0x168] sm:$0xff]
  %v2350 = vld [vmem:[%s2318 + $0x170] sm:$0xff]
  %v2351 = vld [vmem:[%s2318 + $0x1b0] sm:$0xff]
  %v2352 = vld [vmem:[%s2318 + $0x1b8] sm:$0xff]
  %v2353 = vld [vmem:[%s2318 + $0x1c8] sm:$0xff]
  %v2354 = vld [vmem:[%s2318 + $0x1d0] sm:$0xff]
  %v2355 = vld [vmem:[%s2318 + $0x1e0] sm:$0xff]
  %v2356 = vld [vmem:[%s2318 + $0x1e8] sm:$0xff]
  %v2357 = vld [vmem:[%s2318 + $0x1f8] sm:$0xff]
  %v2358 = vld [vmem:[%s2318 + $0x200] sm:$0xff]
  %v2359 = vld [vmem:[%s2318 + $0x210] sm:$0xff]
  %v2360 = vld [vmem:[%s2318 + $0x218] sm:$0xff]
  %v2361 = vld [vmem:[%s2318 + $0x228] sm:$0xff]
  %v2362 = vld [vmem:[%s2318 + $0x230] sm:$0xff]
  %v2363 = vld [vmem:[%s2318 + $0x240] sm:$0xff]
  %v2364 = vld [vmem:[%s2318 + $0x248] sm:$0xff]
  %v2365 = vld [vmem:[%s2318 + $0x258] sm:$0xff]
  %v2366 = vld [vmem:[%s2318 + $0x260] sm:$0xff]
  %v2367 = vld [vmem:[%s2318 + $0x270] sm:$0xff]
  %v2368 = vld [vmem:[%s2318 + $0x278] sm:$0xff]
  %v2369 = vld [vmem:[%s2318 + $0x288] sm:$0xff]
  %v2370 = vld [vmem:[%s2318 + $0x290] sm:$0xff]
  %v2371 = vld [vmem:[%s2318 + $0x2a0] sm:$0xff]
  %v2372 = vld [vmem:[%s2318 + $0x2a8] sm:$0xff]
  %v2373 = vld [vmem:[%s2318 + $0x2b8] sm:$0xff]
  %v2374 = vld [vmem:[%s2318 + $0x2c0] sm:$0xff]
  %v2375 = vld [vmem:[%s2318 + $0x2d0] sm:$0xff]
  %v2376 = vld [vmem:[%s2318 + $0x2d8] sm:$0xff]
  %v2377 = vld [vmem:[%s2318 + $0x2e8] sm:$0xff]
  %v2378 = vld [vmem:[%s2318 + $0x2f0] sm:$0xff]
  %v2379 = vld [vmem:[%s2318 + $0x300] sm:$0xff]
  %v2380 = vld [vmem:[%s2318 + $0x308] sm:$0xff]
  %v2381 = vld [vmem:[%s2318 + $0x318] sm:$0xff]
  %v2382 = vld [vmem:[%s2318 + $0x320] sm:$0xff]
  %2447 = vrot.lane.b32.xlu0 %v2319, 24
  %v2448 = vpop.permute.xlu0 %2447
  %2449 = vrot.lane.b32.xlu0 %v2320, 24
  %v2450 = vpop.permute.xlu0 %2449
  %2451 = vrot.lane.b32.xlu0 %v2321, 24
  %v2452 = vpop.permute.xlu0 %2451
  %2453 = vrot.lane.b32.xlu0 %v2322, 24
  %v2454 = vpop.permute.xlu0 %2453
  %2455 = vrot.lane.b32.xlu0 %v2323, 24
  %v2456 = vpop.permute.xlu0 %2455
  %2457 = vrot.lane.b32.xlu0 %v2324, 24
  %v2458 = vpop.permute.xlu0 %2457
  %2459 = vrot.lane.b32.xlu0 %v2325, 24
  %v2460 = vpop.permute.xlu0 %2459
  %2461 = vrot.lane.b32.xlu0 %v2326, 24
  %v2462 = vpop.permute.xlu0 %2461
  %2463 = vrot.lane.b32.xlu0 %v2327, 24
  %v2464 = vpop.permute.xlu0 %2463
  %2465 = vrot.lane.b32.xlu0 %v2328, 24
  %v2466 = vpop.permute.xlu0 %2465
  %2467 = vrot.lane.b32.xlu0 %v2329, 24
  %v2468 = vpop.permute.xlu0 %2467
  %2469 = vrot.lane.b32.xlu0 %v2330, 24
  %v2470 = vpop.permute.xlu0 %2469
  %2471 = vrot.lane.b32.xlu0 %v2331, 24
  %v2472 = vpop.permute.xlu0 %2471
  %2473 = vrot.lane.b32.xlu0 %v2332, 24
  %v2474 = vpop.permute.xlu0 %2473
  %2475 = vrot.lane.b32.xlu0 %v2333, 24
  %v2476 = vpop.permute.xlu0 %2475
  %2477 = vrot.lane.b32.xlu0 %v2334, 24
  %v2478 = vpop.permute.xlu0 %2477
  %2479 = vrot.lane.b32.xlu0 %v2335, 24
  %v2480 = vpop.permute.xlu0 %2479
  %2481 = vrot.lane.b32.xlu0 %v2336, 24
  %v2482 = vpop.permute.xlu0 %2481
  %2483 = vrot.lane.b32.xlu0 %v2337, 24
  %v2484 = vpop.permute.xlu0 %2483
  %2485 = vrot.lane.b32.xlu0 %v2338, 24
  %v2486 = vpop.permute.xlu0 %2485
  %2487 = vrot.lane.b32.xlu0 %v2339, 24
  %v2488 = vpop.permute.xlu0 %2487
  %2489 = vrot.lane.b32.xlu0 %v2340, 24
  %v2490 = vpop.permute.xlu0 %2489
  %2491 = vrot.lane.b32.xlu0 %v2341, 24
  %v2492 = vpop.permute.xlu0 %2491
  %2493 = vrot.lane.b32.xlu0 %v2342, 24
  %v2494 = vpop.permute.xlu0 %2493
  %2495 = vrot.lane.b32.xlu0 %v2343, 24
  %v2496 = vpop.permute.xlu0 %2495
  %2497 = vrot.lane.b32.xlu0 %v2344, 24
  %v2498 = vpop.permute.xlu0 %2497
  %2499 = vrot.lane.b32.xlu0 %v2345, 24
  %v2500 = vpop.permute.xlu0 %2499
  %2501 = vrot.lane.b32.xlu0 %v2346, 24
  %v2502 = vpop.permute.xlu0 %2501
  %2503 = vrot.lane.b32.xlu0 %v2347, 24
  %v2504 = vpop.permute.xlu0 %2503
  %2505 = vrot.lane.b32.xlu0 %v2348, 24
  %v2506 = vpop.permute.xlu0 %2505
  %2507 = vrot.lane.b32.xlu0 %v2349, 24
  %v2508 = vpop.permute.xlu0 %2507
  %2509 = vrot.lane.b32.xlu0 %v2350, 24
  %v2510 = vpop.permute.xlu0 %2509
  %2511 = vrot.lane.b32.xlu0 %v2351, 24
  %v2512 = vpop.permute.xlu0 %2511
  %2513 = vrot.lane.b32.xlu0 %v2352, 24
  %v2514 = vpop.permute.xlu0 %2513
  %2515 = vrot.lane.b32.xlu0 %v2353, 24
  %v2516 = vpop.permute.xlu0 %2515
  %2517 = vrot.lane.b32.xlu0 %v2354, 24
  %v2518 = vpop.permute.xlu0 %2517
  %2519 = vrot.lane.b32.xlu0 %v2355, 24
  %v2520 = vpop.permute.xlu0 %2519
  %2521 = vrot.lane.b32.xlu0 %v2356, 24
  %v2522 = vpop.permute.xlu0 %2521
  %2523 = vrot.lane.b32.xlu0 %v2357, 24
  %v2524 = vpop.permute.xlu0 %2523
  %2525 = vrot.lane.b32.xlu0 %v2358, 24
  %v2526 = vpop.permute.xlu0 %2525
  %2527 = vrot.lane.b32.xlu0 %v2359, 24
  %v2528 = vpop.permute.xlu0 %2527
  %2529 = vrot.lane.b32.xlu0 %v2360, 24
  %v2530 = vpop.permute.xlu0 %2529
  %2531 = vrot.lane.b32.xlu0 %v2361, 24
  %v2532 = vpop.permute.xlu0 %2531
  %2533 = vrot.lane.b32.xlu0 %v2362, 24
  %v2534 = vpop.permute.xlu0 %2533
  %2535 = vrot.lane.b32.xlu0 %v2363, 24
  %v2536 = vpop.permute.xlu0 %2535
  %2537 = vrot.lane.b32.xlu0 %v2364, 24
  %v2538 = vpop.permute.xlu0 %2537
  %2539 = vrot.lane.b32.xlu0 %v2365, 24
  %v2540 = vpop.permute.xlu0 %2539
  %2541 = vrot.lane.b32.xlu0 %v2366, 24
  %v2542 = vpop.permute.xlu0 %2541
  %2543 = vrot.lane.b32.xlu0 %v2367, 24
  %v2544 = vpop.permute.xlu0 %2543
  %2545 = vrot.lane.b32.xlu0 %v2368, 24
  %v2546 = vpop.permute.xlu0 %2545
  %2547 = vrot.lane.b32.xlu0 %v2369, 24
  %v2548 = vpop.permute.xlu0 %2547
  %2549 = vrot.lane.b32.xlu0 %v2370, 24
  %v2550 = vpop.permute.xlu0 %2549
  %2551 = vrot.lane.b32.xlu0 %v2371, 24
  %v2552 = vpop.permute.xlu0 %2551
  %2553 = vrot.lane.b32.xlu0 %v2372, 24
  %v2554 = vpop.permute.xlu0 %2553
  %2555 = vrot.lane.b32.xlu0 %v2373, 24
  %v2556 = vpop.permute.xlu0 %2555
  %2557 = vrot.lane.b32.xlu0 %v2374, 24
  %v2558 = vpop.permute.xlu0 %2557
  %2559 = vrot.lane.b32.xlu0 %v2375, 24
  %v2560 = vpop.permute.xlu0 %2559
  %2561 = vrot.lane.b32.xlu0 %v2376, 24
  %v2562 = vpop.permute.xlu0 %2561
  %2563 = vrot.lane.b32.xlu0 %v2377, 24
  %v2564 = vpop.permute.xlu0 %2563
  %2565 = vrot.lane.b32.xlu0 %v2378, 24
  %v2566 = vpop.permute.xlu0 %2565
  %2567 = vrot.lane.b32.xlu0 %v2379, 24
  %v2568 = vpop.permute.xlu0 %2567
  %2569 = vrot.lane.b32.xlu0 %v2380, 24
  %v2570 = vpop.permute.xlu0 %2569
  %2571 = vrot.lane.b32.xlu0 %v2381, 24
  %v2572 = vpop.permute.xlu0 %2571
  %2573 = vrot.lane.b32.xlu0 %v2382, 24
  %v2574 = vpop.permute.xlu0 %2573
  %vm2639 = vcmask 228544
  %2640 = vst.msk [vmem:[#allocation4] sm:$0xff] %vm2639, %v2448
  %2641 = vst.msk [vmem:[#allocation4 + $0x8] sm:$0xff] %vm2639, %v2450
  %2642 = vst.msk [vmem:[#allocation4 + $0x10] sm:$0xff] %vm2639, %v2452
  %2643 = vst.msk [vmem:[#allocation4 + $0x18] sm:$0xff] %vm2639, %v2454
  %2644 = vst.msk [vmem:[#allocation4 + $0x20] sm:$0xff] %vm2639, %v2456
  %2645 = vst.msk [vmem:[#allocation4 + $0x28] sm:$0xff] %vm2639, %v2458
  %2646 = vst.msk [vmem:[#allocation4 + $0x30] sm:$0xff] %vm2639, %v2460
  %2647 = vst.msk [vmem:[#allocation4 + $0x38] sm:$0xff] %vm2639, %v2462
  %2648 = vst.msk [vmem:[#allocation4 + $0x40] sm:$0xff] %vm2639, %v2464
  %2649 = vst.msk [vmem:[#allocation4 + $0x48] sm:$0xff] %vm2639, %v2466
  %2650 = vst.msk [vmem:[#allocation4 + $0x50] sm:$0xff] %vm2639, %v2468
  %2651 = vst.msk [vmem:[#allocation4 + $0x58] sm:$0xff] %vm2639, %v2470
  %2652 = vst.msk [vmem:[#allocation4 + $0x60] sm:$0xff] %vm2639, %v2472
  %2653 = vst.msk [vmem:[#allocation4 + $0x68] sm:$0xff] %vm2639, %v2474
  %2654 = vst.msk [vmem:[#allocation4 + $0x70] sm:$0xff] %vm2639, %v2476
  %2655 = vst.msk [vmem:[#allocation4 + $0x78] sm:$0xff] %vm2639, %v2478
  %2656 = vst.msk [vmem:[#allocation4 + $0x80] sm:$0xff] %vm2639, %v2480
  %2657 = vst.msk [vmem:[#allocation4 + $0x88] sm:$0xff] %vm2639, %v2482
  %2658 = vst.msk [vmem:[#allocation4 + $0x90] sm:$0xff] %vm2639, %v2484
  %2659 = vst.msk [vmem:[#allocation4 + $0x98] sm:$0xff] %vm2639, %v2486
  %2660 = vst.msk [vmem:[#allocation4 + $0xa0] sm:$0xff] %vm2639, %v2488
  %2661 = vst.msk [vmem:[#allocation4 + $0xa8] sm:$0xff] %vm2639, %v2490
  %2662 = vst.msk [vmem:[#allocation4 + $0xb0] sm:$0xff] %vm2639, %v2492
  %2663 = vst.msk [vmem:[#allocation4 + $0xb8] sm:$0xff] %vm2639, %v2494
  %2664 = vst.msk [vmem:[#allocation4 + $0xc0] sm:$0xff] %vm2639, %v2496
  %2665 = vst.msk [vmem:[#allocation4 + $0xc8] sm:$0xff] %vm2639, %v2498
  %2666 = vst.msk [vmem:[#allocation4 + $0xd0] sm:$0xff] %vm2639, %v2500
  %2667 = vst.msk [vmem:[#allocation4 + $0xd8] sm:$0xff] %vm2639, %v2502
  %2668 = vst.msk [vmem:[#allocation4 + $0xe0] sm:$0xff] %vm2639, %v2504
  %2669 = vst.msk [vmem:[#allocation4 + $0xe8] sm:$0xff] %vm2639, %v2506
  %2670 = vst.msk [vmem:[#allocation4 + $0xf0] sm:$0xff] %vm2639, %v2508
  %2671 = vst.msk [vmem:[#allocation4 + $0xf8] sm:$0xff] %vm2639, %v2510
  %2672 = vst.msk [vmem:[#allocation4 + $0x100] sm:$0xff] %vm2639, %v2512
  %2673 = vst.msk [vmem:[#allocation4 + $0x108] sm:$0xff] %vm2639, %v2514
  %2674 = vst.msk [vmem:[#allocation4 + $0x110] sm:$0xff] %vm2639, %v2516
  %2675 = vst.msk [vmem:[#allocation4 + $0x118] sm:$0xff] %vm2639, %v2518
  %2676 = vst.msk [vmem:[#allocation4 + $0x120] sm:$0xff] %vm2639, %v2520
  %2677 = vst.msk [vmem:[#allocation4 + $0x128] sm:$0xff] %vm2639, %v2522
  %2678 = vst.msk [vmem:[#allocation4 + $0x130] sm:$0xff] %vm2639, %v2524
  %2679 = vst.msk [vmem:[#allocation4 + $0x138] sm:$0xff] %vm2639, %v2526
  %2680 = vst.msk [vmem:[#allocation4 + $0x140] sm:$0xff] %vm2639, %v2528
  %2681 = vst.msk [vmem:[#allocation4 + $0x148] sm:$0xff] %vm2639, %v2530
  %2682 = vst.msk [vmem:[#allocation4 + $0x150] sm:$0xff] %vm2639, %v2532
  %2683 = vst.msk [vmem:[#allocation4 + $0x158] sm:$0xff] %vm2639, %v2534
  %2684 = vst.msk [vmem:[#allocation4 + $0x160] sm:$0xff] %vm2639, %v2536
  %2685 = vst.msk [vmem:[#allocation4 + $0x168] sm:$0xff] %vm2639, %v2538
  %2686 = vst.msk [vmem:[#allocation4 + $0x170] sm:$0xff] %vm2639, %v2540
  %2687 = vst.msk [vmem:[#allocation4 + $0x178] sm:$0xff] %vm2639, %v2542
  %2688 = vst.msk [vmem:[#allocation4 + $0x180] sm:$0xff] %vm2639, %v2544
  %2689 = vst.msk [vmem:[#allocation4 + $0x188] sm:$0xff] %vm2639, %v2546
  %2690 = vst.msk [vmem:[#allocation4 + $0x190] sm:$0xff] %vm2639, %v2548
  %2691 = vst.msk [vmem:[#allocation4 + $0x198] sm:$0xff] %vm2639, %v2550
  %2692 = vst.msk [vmem:[#allocation4 + $0x1a0] sm:$0xff] %vm2639, %v2552
  %2693 = vst.msk [vmem:[#allocation4 + $0x1a8] sm:$0xff] %vm2639, %v2554
  %2694 = vst.msk [vmem:[#allocation4 + $0x1b0] sm:$0xff] %vm2639, %v2556
  %2695 = vst.msk [vmem:[#allocation4 + $0x1b8] sm:$0xff] %vm2639, %v2558
  %2696 = vst.msk [vmem:[#allocation4 + $0x1c0] sm:$0xff] %vm2639, %v2560
  %2697 = vst.msk [vmem:[#allocation4 + $0x1c8] sm:$0xff] %vm2639, %v2562
  %2698 = vst.msk [vmem:[#allocation4 + $0x1d0] sm:$0xff] %vm2639, %v2564
  %2699 = vst.msk [vmem:[#allocation4 + $0x1d8] sm:$0xff] %vm2639, %v2566
  %2700 = vst.msk [vmem:[#allocation4 + $0x1e0] sm:$0xff] %vm2639, %v2568
  %2701 = vst.msk [vmem:[#allocation4 + $0x1e8] sm:$0xff] %vm2639, %v2570
  %2702 = vst.msk [vmem:[#allocation4 + $0x1f0] sm:$0xff] %vm2639, %v2572
  %2703 = vst.msk [vmem:[#allocation4 + $0x1f8] sm:$0xff] %vm2639, %v2574
  %v2704 = vld [vmem:[%s2318 + $0x1] sm:$0xff]
  %v2705 = vld [vmem:[%s2318 + $0x9] sm:$0xff]
  %v2706 = vld [vmem:[%s2318 + $0x19] sm:$0xff]
  %v2707 = vld [vmem:[%s2318 + $0x21] sm:$0xff]
  %v2708 = vld [vmem:[%s2318 + $0x31] sm:$0xff]
  %v2709 = vld [vmem:[%s2318 + $0x39] sm:$0xff]
  %v2710 = vld [vmem:[%s2318 + $0x49] sm:$0xff]
  %v2711 = vld [vmem:[%s2318 + $0x51] sm:$0xff]
  %v2712 = vld [vmem:[%s2318 + $0x61] sm:$0xff]
  %v2713 = vld [vmem:[%s2318 + $0x69] sm:$0xff]
  %v2714 = vld [vmem:[%s2318 + $0x79] sm:$0xff]
  %v2715 = vld [vmem:[%s2318 + $0x81] sm:$0xff]
  %v2716 = vld [vmem:[%s2318 + $0x91] sm:$0xff]
  %v2717 = vld [vmem:[%s2318 + $0x99] sm:$0xff]
  %v2718 = vld [vmem:[%s2318 + $0xa9] sm:$0xff]
  %v2719 = vld [vmem:[%s2318 + $0xb1] sm:$0xff]
  %v2720 = vld [vmem:[%s2318 + $0xc1] sm:$0xff]
  %v2721 = vld [vmem:[%s2318 + $0xc9] sm:$0xff]
  %v2722 = vld [vmem:[%s2318 + $0xd9] sm:$0xff]
  %v2723 = vld [vmem:[%s2318 + $0xe1] sm:$0xff]
  %v2724 = vld [vmem:[%s2318 + $0xf1] sm:$0xff]
  %v2725 = vld [vmem:[%s2318 + $0xf9] sm:$0xff]
  %v2726 = vld [vmem:[%s2318 + $0x109] sm:$0xff]
  %v2727 = vld [vmem:[%s2318 + $0x111] sm:$0xff]
  %v2728 = vld [vmem:[%s2318 + $0x121] sm:$0xff]
  %v2729 = vld [vmem:[%s2318 + $0x129] sm:$0xff]
  %v2730 = vld [vmem:[%s2318 + $0x139] sm:$0xff]
  %v2731 = vld [vmem:[%s2318 + $0x141] sm:$0xff]
  %v2732 = vld [vmem:[%s2318 + $0x151] sm:$0xff]
  %v2733 = vld [vmem:[%s2318 + $0x159] sm:$0xff]
  %v2734 = vld [vmem:[%s2318 + $0x169] sm:$0xff]
  %v2735 = vld [vmem:[%s2318 + $0x171] sm:$0xff]
  %v2736 = vld [vmem:[%s2318 + $0x1b1] sm:$0xff]
  %v2737 = vld [vmem:[%s2318 + $0x1b9] sm:$0xff]
  %v2738 = vld [vmem:[%s2318 + $0x1c9] sm:$0xff]
  %v2739 = vld [vmem:[%s2318 + $0x1d1] sm:$0xff]
  %v2740 = vld [vmem:[%s2318 + $0x1e1] sm:$0xff]
  %v2741 = vld [vmem:[%s2318 + $0x1e9] sm:$0xff]
  %v2742 = vld [vmem:[%s2318 + $0x1f9] sm:$0xff]
  %v2743 = vld [vmem:[%s2318 + $0x201] sm:$0xff]
  %v2744 = vld [vmem:[%s2318 + $0x211] sm:$0xff]
  %v2745 = vld [vmem:[%s2318 + $0x219] sm:$0xff]
  %v2746 = vld [vmem:[%s2318 + $0x229] sm:$0xff]
  %v2747 = vld [vmem:[%s2318 + $0x231] sm:$0xff]
  %v2748 = vld [vmem:[%s2318 + $0x241] sm:$0xff]
  %v2749 = vld [vmem:[%s2318 + $0x249] sm:$0xff]
  %v2750 = vld [vmem:[%s2318 + $0x259] sm:$0xff]
  %v2751 = vld [vmem:[%s2318 + $0x261] sm:$0xff]
  %v2752 = vld [vmem:[%s2318 + $0x271] sm:$0xff]
  %v2753 = vld [vmem:[%s2318 + $0x279] sm:$0xff]
  %v2754 = vld [vmem:[%s2318 + $0x289] sm:$0xff]
  %v2755 = vld [vmem:[%s2318 + $0x291] sm:$0xff]
  %v2756 = vld [vmem:[%s2318 + $0x2a1] sm:$0xff]
  %v2757 = vld [vmem:[%s2318 + $0x2a9] sm:$0xff]
  %v2758 = vld [vmem:[%s2318 + $0x2b9] sm:$0xff]
  %v2759 = vld [vmem:[%s2318 + $0x2c1] sm:$0xff]
  %v2760 = vld [vmem:[%s2318 + $0x2d1] sm:$0xff]
  %v2761 = vld [vmem:[%s2318 + $0x2d9] sm:$0xff]
  %v2762 = vld [vmem:[%s2318 + $0x2e9] sm:$0xff]
  %v2763 = vld [vmem:[%s2318 + $0x2f1] sm:$0xff]
  %v2764 = vld [vmem:[%s2318 + $0x301] sm:$0xff]
  %v2765 = vld [vmem:[%s2318 + $0x309] sm:$0xff]
  %v2766 = vld [vmem:[%s2318 + $0x319] sm:$0xff]
  %v2767 = vld [vmem:[%s2318 + $0x321] sm:$0xff]
  %2832 = vrot.lane.b32.xlu0 %v2704, 28
  %v2833 = vpop.permute.xlu0 %2832
  %2834 = vrot.lane.b32.xlu0 %v2705, 28
  %v2835 = vpop.permute.xlu0 %2834
  %2836 = vrot.lane.b32.xlu0 %v2706, 28
  %v2837 = vpop.permute.xlu0 %2836
  %2838 = vrot.lane.b32.xlu0 %v2707, 28
  %v2839 = vpop.permute.xlu0 %2838
  %2840 = vrot.lane.b32.xlu0 %v2708, 28
  %v2841 = vpop.permute.xlu0 %2840
  %2842 = vrot.lane.b32.xlu0 %v2709, 28
  %v2843 = vpop.permute.xlu0 %2842
  %2844 = vrot.lane.b32.xlu0 %v2710, 28
  %v2845 = vpop.permute.xlu0 %2844
  %2846 = vrot.lane.b32.xlu0 %v2711, 28
  %v2847 = vpop.permute.xlu0 %2846
  %2848 = vrot.lane.b32.xlu0 %v2712, 28
  %v2849 = vpop.permute.xlu0 %2848
  %2850 = vrot.lane.b32.xlu0 %v2713, 28
  %v2851 = vpop.permute.xlu0 %2850
  %2852 = vrot.lane.b32.xlu0 %v2714, 28
  %v2853 = vpop.permute.xlu0 %2852
  %2854 = vrot.lane.b32.xlu0 %v2715, 28
  %v2855 = vpop.permute.xlu0 %2854
  %2856 = vrot.lane.b32.xlu0 %v2716, 28
  %v2857 = vpop.permute.xlu0 %2856
  %2858 = vrot.lane.b32.xlu0 %v2717, 28
  %v2859 = vpop.permute.xlu0 %2858
  %2860 = vrot.lane.b32.xlu0 %v2718, 28
  %v2861 = vpop.permute.xlu0 %2860
  %2862 = vrot.lane.b32.xlu0 %v2719, 28
  %v2863 = vpop.permute.xlu0 %2862
  %2864 = vrot.lane.b32.xlu0 %v2720, 28
  %v2865 = vpop.permute.xlu0 %2864
  %2866 = vrot.lane.b32.xlu0 %v2721, 28
  %v2867 = vpop.permute.xlu0 %2866
  %2868 = vrot.lane.b32.xlu0 %v2722, 28
  %v2869 = vpop.permute.xlu0 %2868
  %2870 = vrot.lane.b32.xlu0 %v2723, 28
  %v2871 = vpop.permute.xlu0 %2870
  %2872 = vrot.lane.b32.xlu0 %v2724, 28
  %v2873 = vpop.permute.xlu0 %2872
  %2874 = vrot.lane.b32.xlu0 %v2725, 28
  %v2875 = vpop.permute.xlu0 %2874
  %2876 = vrot.lane.b32.xlu0 %v2726, 28
  %v2877 = vpop.permute.xlu0 %2876
  %2878 = vrot.lane.b32.xlu0 %v2727, 28
  %v2879 = vpop.permute.xlu0 %2878
  %2880 = vrot.lane.b32.xlu0 %v2728, 28
  %v2881 = vpop.permute.xlu0 %2880
  %2882 = vrot.lane.b32.xlu0 %v2729, 28
  %v2883 = vpop.permute.xlu0 %2882
  %2884 = vrot.lane.b32.xlu0 %v2730, 28
  %v2885 = vpop.permute.xlu0 %2884
  %2886 = vrot.lane.b32.xlu0 %v2731, 28
  %v2887 = vpop.permute.xlu0 %2886
  %2888 = vrot.lane.b32.xlu0 %v2732, 28
  %v2889 = vpop.permute.xlu0 %2888
  %2890 = vrot.lane.b32.xlu0 %v2733, 28
  %v2891 = vpop.permute.xlu0 %2890
  %2892 = vrot.lane.b32.xlu0 %v2734, 28
  %v2893 = vpop.permute.xlu0 %2892
  %2894 = vrot.lane.b32.xlu0 %v2735, 28
  %v2895 = vpop.permute.xlu0 %2894
  %2896 = vrot.lane.b32.xlu0 %v2736, 28
  %v2897 = vpop.permute.xlu0 %2896
  %2898 = vrot.lane.b32.xlu0 %v2737, 28
  %v2899 = vpop.permute.xlu0 %2898
  %2900 = vrot.lane.b32.xlu0 %v2738, 28
  %v2901 = vpop.permute.xlu0 %2900
  %2902 = vrot.lane.b32.xlu0 %v2739, 28
  %v2903 = vpop.permute.xlu0 %2902
  %2904 = vrot.lane.b32.xlu0 %v2740, 28
  %v2905 = vpop.permute.xlu0 %2904
  %2906 = vrot.lane.b32.xlu0 %v2741, 28
  %v2907 = vpop.permute.xlu0 %2906
  %2908 = vrot.lane.b32.xlu0 %v2742, 28
  %v2909 = vpop.permute.xlu0 %2908
  %2910 = vrot.lane.b32.xlu0 %v2743, 28
  %v2911 = vpop.permute.xlu0 %2910
  %2912 = vrot.lane.b32.xlu0 %v2744, 28
  %v2913 = vpop.permute.xlu0 %2912
  %2914 = vrot.lane.b32.xlu0 %v2745, 28
  %v2915 = vpop.permute.xlu0 %2914
  %2916 = vrot.lane.b32.xlu0 %v2746, 28
  %v2917 = vpop.permute.xlu0 %2916
  %2918 = vrot.lane.b32.xlu0 %v2747, 28
  %v2919 = vpop.permute.xlu0 %2918
  %2920 = vrot.lane.b32.xlu0 %v2748, 28
  %v2921 = vpop.permute.xlu0 %2920
  %2922 = vrot.lane.b32.xlu0 %v2749, 28
  %v2923 = vpop.permute.xlu0 %2922
  %2924 = vrot.lane.b32.xlu0 %v2750, 28
  %v2925 = vpop.permute.xlu0 %2924
  %2926 = vrot.lane.b32.xlu0 %v2751, 28
  %v2927 = vpop.permute.xlu0 %2926
  %2928 = vrot.lane.b32.xlu0 %v2752, 28
  %v2929 = vpop.permute.xlu0 %2928
  %2930 = vrot.lane.b32.xlu0 %v2753, 28
  %v2931 = vpop.permute.xlu0 %2930
  %2932 = vrot.lane.b32.xlu0 %v2754, 28
  %v2933 = vpop.permute.xlu0 %2932
  %2934 = vrot.lane.b32.xlu0 %v2755, 28
  %v2935 = vpop.permute.xlu0 %2934
  %2936 = vrot.lane.b32.xlu0 %v2756, 28
  %v2937 = vpop.permute.xlu0 %2936
  %2938 = vrot.lane.b32.xlu0 %v2757, 28
  %v2939 = vpop.permute.xlu0 %2938
  %2940 = vrot.lane.b32.xlu0 %v2758, 28
  %v2941 = vpop.permute.xlu0 %2940
  %2942 = vrot.lane.b32.xlu0 %v2759, 28
  %v2943 = vpop.permute.xlu0 %2942
  %2944 = vrot.lane.b32.xlu0 %v2760, 28
  %v2945 = vpop.permute.xlu0 %2944
  %2946 = vrot.lane.b32.xlu0 %v2761, 28
  %v2947 = vpop.permute.xlu0 %2946
  %2948 = vrot.lane.b32.xlu0 %v2762, 28
  %v2949 = vpop.permute.xlu0 %2948
  %2950 = vrot.lane.b32.xlu0 %v2763, 28
  %v2951 = vpop.permute.xlu0 %2950
  %2952 = vrot.lane.b32.xlu0 %v2764, 28
  %v2953 = vpop.permute.xlu0 %2952
  %2954 = vrot.lane.b32.xlu0 %v2765, 28
  %v2955 = vpop.permute.xlu0 %2954
  %2956 = vrot.lane.b32.xlu0 %v2766, 28
  %v2957 = vpop.permute.xlu0 %2956
  %2958 = vrot.lane.b32.xlu0 %v2767, 28
  %v2959 = vpop.permute.xlu0 %2958
  %vm3024 = vcmask 261344
  %3025 = vst.msk [vmem:[#allocation4] sm:$0xff] %vm3024, %v2833
  %3026 = vst.msk [vmem:[#allocation4 + $0x8] sm:$0xff] %vm3024, %v2835
  %3027 = vst.msk [vmem:[#allocation4 + $0x10] sm:$0xff] %vm3024, %v2837
  %3028 = vst.msk [vmem:[#allocation4 + $0x18] sm:$0xff] %vm3024, %v2839
  %3029 = vst.msk [vmem:[#allocation4 + $0x20] sm:$0xff] %vm3024, %v2841
  %3030 = vst.msk [vmem:[#allocation4 + $0x28] sm:$0xff] %vm3024, %v2843
  %3031 = vst.msk [vmem:[#allocation4 + $0x30] sm:$0xff] %vm3024, %v2845
  %3032 = vst.msk [vmem:[#allocation4 + $0x38] sm:$0xff] %vm3024, %v2847
  %3033 = vst.msk [vmem:[#allocation4 + $0x40] sm:$0xff] %vm3024, %v2849
  %3034 = vst.msk [vmem:[#allocation4 + $0x48] sm:$0xff] %vm3024, %v2851
  %3035 = vst.msk [vmem:[#allocation4 + $0x50] sm:$0xff] %vm3024, %v2853
  %3036 = vst.msk [vmem:[#allocation4 + $0x58] sm:$0xff] %vm3024, %v2855
  %3037 = vst.msk [vmem:[#allocation4 + $0x60] sm:$0xff] %vm3024, %v2857
  %3038 = vst.msk [vmem:[#allocation4 + $0x68] sm:$0xff] %vm3024, %v2859
  %3039 = vst.msk [vmem:[#allocation4 + $0x70] sm:$0xff] %vm3024, %v2861
  %3040 = vst.msk [vmem:[#allocation4 + $0x78] sm:$0xff] %vm3024, %v2863
  %3041 = vst.msk [vmem:[#allocation4 + $0x80] sm:$0xff] %vm3024, %v2865
  %3042 = vst.msk [vmem:[#allocation4 + $0x88] sm:$0xff] %vm3024, %v2867
  %3043 = vst.msk [vmem:[#allocation4 + $0x90] sm:$0xff] %vm3024, %v2869
  %3044 = vst.msk [vmem:[#allocation4 + $0x98] sm:$0xff] %vm3024, %v2871
  %3045 = vst.msk [vmem:[#allocation4 + $0xa0] sm:$0xff] %vm3024, %v2873
  %3046 = vst.msk [vmem:[#allocation4 + $0xa8] sm:$0xff] %vm3024, %v2875
  %3047 = vst.msk [vmem:[#allocation4 + $0xb0] sm:$0xff] %vm3024, %v2877
  %3048 = vst.msk [vmem:[#allocation4 + $0xb8] sm:$0xff] %vm3024, %v2879
  %3049 = vst.msk [vmem:[#allocation4 + $0xc0] sm:$0xff] %vm3024, %v2881
  %3050 = vst.msk [vmem:[#allocation4 + $0xc8] sm:$0xff] %vm3024, %v2883
  %3051 = vst.msk [vmem:[#allocation4 + $0xd0] sm:$0xff] %vm3024, %v2885
  %3052 = vst.msk [vmem:[#allocation4 + $0xd8] sm:$0xff] %vm3024, %v2887
  %3053 = vst.msk [vmem:[#allocation4 + $0xe0] sm:$0xff] %vm3024, %v2889
  %3054 = vst.msk [vmem:[#allocation4 + $0xe8] sm:$0xff] %vm3024, %v2891
  %3055 = vst.msk [vmem:[#allocation4 + $0xf0] sm:$0xff] %vm3024, %v2893
  %3056 = vst.msk [vmem:[#allocation4 + $0xf8] sm:$0xff] %vm3024, %v2895
  %3057 = vst.msk [vmem:[#allocation4 + $0x100] sm:$0xff] %vm3024, %v2897
  %3058 = vst.msk [vmem:[#allocation4 + $0x108] sm:$0xff] %vm3024, %v2899
  %3059 = vst.msk [vmem:[#allocation4 + $0x110] sm:$0xff] %vm3024, %v2901
  %3060 = vst.msk [vmem:[#allocation4 + $0x118] sm:$0xff] %vm3024, %v2903
  %3061 = vst.msk [vmem:[#allocation4 + $0x120] sm:$0xff] %vm3024, %v2905
  %3062 = vst.msk [vmem:[#allocation4 + $0x128] sm:$0xff] %vm3024, %v2907
  %3063 = vst.msk [vmem:[#allocation4 + $0x130] sm:$0xff] %vm3024, %v2909
  %3064 = vst.msk [vmem:[#allocation4 + $0x138] sm:$0xff] %vm3024, %v2911
  %3065 = vst.msk [vmem:[#allocation4 + $0x140] sm:$0xff] %vm3024, %v2913
  %3066 = vst.msk [vmem:[#allocation4 + $0x148] sm:$0xff] %vm3024, %v2915
  %3067 = vst.msk [vmem:[#allocation4 + $0x150] sm:$0xff] %vm3024, %v2917
  %3068 = vst.msk [vmem:[#allocation4 + $0x158] sm:$0xff] %vm3024, %v2919
  %3069 = vst.msk [vmem:[#allocation4 + $0x160] sm:$0xff] %vm3024, %v2921
  %3070 = vst.msk [vmem:[#allocation4 + $0x168] sm:$0xff] %vm3024, %v2923
  %3071 = vst.msk [vmem:[#allocation4 + $0x170] sm:$0xff] %vm3024, %v2925
  %3072 = vst.msk [vmem:[#allocation4 + $0x178] sm:$0xff] %vm3024, %v2927
  %3073 = vst.msk [vmem:[#allocation4 + $0x180] sm:$0xff] %vm3024, %v2929
  %3074 = vst.msk [vmem:[#allocation4 + $0x188] sm:$0xff] %vm3024, %v2931
  %3075 = vst.msk [vmem:[#allocation4 + $0x190] sm:$0xff] %vm3024, %v2933
  %3076 = vst.msk [vmem:[#allocation4 + $0x198] sm:$0xff] %vm3024, %v2935
  %3077 = vst.msk [vmem:[#allocation4 + $0x1a0] sm:$0xff] %vm3024, %v2937
  %3078 = vst.msk [vmem:[#allocation4 + $0x1a8] sm:$0xff] %vm3024, %v2939
  %3079 = vst.msk [vmem:[#allocation4 + $0x1b0] sm:$0xff] %vm3024, %v2941
  %3080 = vst.msk [vmem:[#allocation4 + $0x1b8] sm:$0xff] %vm3024, %v2943
  %3081 = vst.msk [vmem:[#allocation4 + $0x1c0] sm:$0xff] %vm3024, %v2945
  %3082 = vst.msk [vmem:[#allocation4 + $0x1c8] sm:$0xff] %vm3024, %v2947
  %3083 = vst.msk [vmem:[#allocation4 + $0x1d0] sm:$0xff] %vm3024, %v2949
  %3084 = vst.msk [vmem:[#allocation4 + $0x1d8] sm:$0xff] %vm3024, %v2951
  %3085 = vst.msk [vmem:[#allocation4 + $0x1e0] sm:$0xff] %vm3024, %v2953
  %3086 = vst.msk [vmem:[#allocation4 + $0x1e8] sm:$0xff] %vm3024, %v2955
  %3087 = vst.msk [vmem:[#allocation4 + $0x1f0] sm:$0xff] %vm3024, %v2957
  %3088 = vst.msk [vmem:[#allocation4 + $0x1f8] sm:$0xff] %vm3024, %v2959
  %v3089 = vld [vmem:[%s2318 + $0x2] sm:$0xff]
  %v3090 = vld [vmem:[%s2318 + $0xa] sm:$0xff]
  %v3091 = vld [vmem:[%s2318 + $0x1a] sm:$0xff]
  %v3092 = vld [vmem:[%s2318 + $0x22] sm:$0xff]
  %v3093 = vld [vmem:[%s2318 + $0x32] sm:$0xff]
  %v3094 = vld [vmem:[%s2318 + $0x3a] sm:$0xff]
  %v3095 = vld [vmem:[%s2318 + $0x4a] sm:$0xff]
  %v3096 = vld [vmem:[%s2318 + $0x52] sm:$0xff]
  %v3097 = vld [vmem:[%s2318 + $0x62] sm:$0xff]
  %v3098 = vld [vmem:[%s2318 + $0x6a] sm:$0xff]
  %v3099 = vld [vmem:[%s2318 + $0x7a] sm:$0xff]
  %v3100 = vld [vmem:[%s2318 + $0x82] sm:$0xff]
  %v3101 = vld [vmem:[%s2318 + $0x92] sm:$0xff]
  %v3102 = vld [vmem:[%s2318 + $0x9a] sm:$0xff]
  %v3103 = vld [vmem:[%s2318 + $0xaa] sm:$0xff]
  %v3104 = vld [vmem:[%s2318 + $0xb2] sm:$0xff]
  %v3105 = vld [vmem:[%s2318 + $0xc2] sm:$0xff]
  %v3106 = vld [vmem:[%s2318 + $0xca] sm:$0xff]
  %v3107 = vld [vmem:[%s2318 + $0xda] sm:$0xff]
  %v3108 = vld [vmem:[%s2318 + $0xe2] sm:$0xff]
  %v3109 = vld [vmem:[%s2318 + $0xf2] sm:$0xff]
  %v3110 = vld [vmem:[%s2318 + $0xfa] sm:$0xff]
  %v3111 = vld [vmem:[%s2318 + $0x10a] sm:$0xff]
  %v3112 = vld [vmem:[%s2318 + $0x112] sm:$0xff]
  %v3113 = vld [vmem:[%s2318 + $0x122] sm:$0xff]
  %v3114 = vld [vmem:[%s2318 + $0x12a] sm:$0xff]
  %v3115 = vld [vmem:[%s2318 + $0x13a] sm:$0xff]
  %v3116 = vld [vmem:[%s2318 + $0x142] sm:$0xff]
  %v3117 = vld [vmem:[%s2318 + $0x152] sm:$0xff]
  %v3118 = vld [vmem:[%s2318 + $0x15a] sm:$0xff]
  %v3119 = vld [vmem:[%s2318 + $0x16a] sm:$0xff]
  %v3120 = vld [vmem:[%s2318 + $0x172] sm:$0xff]
  %v3121 = vld [vmem:[%s2318 + $0x1b2] sm:$0xff]
  %v3122 = vld [vmem:[%s2318 + $0x1ba] sm:$0xff]
  %v3123 = vld [vmem:[%s2318 + $0x1ca] sm:$0xff]
  %v3124 = vld [vmem:[%s2318 + $0x1d2] sm:$0xff]
  %v3125 = vld [vmem:[%s2318 + $0x1e2] sm:$0xff]
  %v3126 = vld [vmem:[%s2318 + $0x1ea] sm:$0xff]
  %v3127 = vld [vmem:[%s2318 + $0x1fa] sm:$0xff]
  %v3128 = vld [vmem:[%s2318 + $0x202] sm:$0xff]
  %v3129 = vld [vmem:[%s2318 + $0x212] sm:$0xff]
  %v3130 = vld [vmem:[%s2318 + $0x21a] sm:$0xff]
  %v3131 = vld [vmem:[%s2318 + $0x22a] sm:$0xff]
  %v3132 = vld [vmem:[%s2318 + $0x232] sm:$0xff]
  %v3133 = vld [vmem:[%s2318 + $0x242] sm:$0xff]
  %v3134 = vld [vmem:[%s2318 + $0x24a] sm:$0xff]
  %v3135 = vld [vmem:[%s2318 + $0x25a] sm:$0xff]
  %v3136 = vld [vmem:[%s2318 + $0x262] sm:$0xff]
  %v3137 = vld [vmem:[%s2318 + $0x272] sm:$0xff]
  %v3138 = vld [vmem:[%s2318 + $0x27a] sm:$0xff]
  %v3139 = vld [vmem:[%s2318 + $0x28a] sm:$0xff]
  %v3140 = vld [vmem:[%s2318 + $0x292] sm:$0xff]
  %v3141 = vld [vmem:[%s2318 + $0x2a2] sm:$0xff]
  %v3142 = vld [vmem:[%s2318 + $0x2aa] sm:$0xff]
  %v3143 = vld [vmem:[%s2318 + $0x2ba] sm:$0xff]
  %v3144 = vld [vmem:[%s2318 + $0x2c2] sm:$0xff]
  %v3145 = vld [vmem:[%s2318 + $0x2d2] sm:$0xff]
  %v3146 = vld [vmem:[%s2318 + $0x2da] sm:$0xff]
  %v3147 = vld [vmem:[%s2318 + $0x2ea] sm:$0xff]
  %v3148 = vld [vmem:[%s2318 + $0x2f2] sm:$0xff]
  %v3149 = vld [vmem:[%s2318 + $0x302] sm:$0xff]
  %v3150 = vld [vmem:[%s2318 + $0x30a] sm:$0xff]
  %v3151 = vld [vmem:[%s2318 + $0x31a] sm:$0xff]
  %v3152 = vld [vmem:[%s2318 + $0x322] sm:$0xff]
  %3217 = vrot.lane.b32.xlu0 %v3089, 32
  %v3218 = vpop.permute.xlu0 %3217
  %3219 = vrot.lane.b32.xlu0 %v3090, 32
  %v3220 = vpop.permute.xlu0 %3219
  %3221 = vrot.lane.b32.xlu0 %v3091, 32
  %v3222 = vpop.permute.xlu0 %3221
  %3223 = vrot.lane.b32.xlu0 %v3092, 32
  %v3224 = vpop.permute.xlu0 %3223
  %3225 = vrot.lane.b32.xlu0 %v3093, 32
  %v3226 = vpop.permute.xlu0 %3225
  %3227 = vrot.lane.b32.xlu0 %v3094, 32
  %v3228 = vpop.permute.xlu0 %3227
  %3229 = vrot.lane.b32.xlu0 %v3095, 32
  %v3230 = vpop.permute.xlu0 %3229
  %3231 = vrot.lane.b32.xlu0 %v3096, 32
  %v3232 = vpop.permute.xlu0 %3231
  %3233 = vrot.lane.b32.xlu0 %v3097, 32
  %v3234 = vpop.permute.xlu0 %3233
  %3235 = vrot.lane.b32.xlu0 %v3098, 32
  %v3236 = vpop.permute.xlu0 %3235
  %3237 = vrot.lane.b32.xlu0 %v3099, 32
  %v3238 = vpop.permute.xlu0 %3237
  %3239 = vrot.lane.b32.xlu0 %v3100, 32
  %v3240 = vpop.permute.xlu0 %3239
  %3241 = vrot.lane.b32.xlu0 %v3101, 32
  %v3242 = vpop.permute.xlu0 %3241
  %3243 = vrot.lane.b32.xlu0 %v3102, 32
  %v3244 = vpop.permute.xlu0 %3243
  %3245 = vrot.lane.b32.xlu0 %v3103, 32
  %v3246 = vpop.permute.xlu0 %3245
  %3247 = vrot.lane.b32.xlu0 %v3104, 32
  %v3248 = vpop.permute.xlu0 %3247
  %3249 = vrot.lane.b32.xlu0 %v3105, 32
  %v3250 = vpop.permute.xlu0 %3249
  %3251 = vrot.lane.b32.xlu0 %v3106, 32
  %v3252 = vpop.permute.xlu0 %3251
  %3253 = vrot.lane.b32.xlu0 %v3107, 32
  %v3254 = vpop.permute.xlu0 %3253
  %3255 = vrot.lane.b32.xlu0 %v3108, 32
  %v3256 = vpop.permute.xlu0 %3255
  %3257 = vrot.lane.b32.xlu0 %v3109, 32
  %v3258 = vpop.permute.xlu0 %3257
  %3259 = vrot.lane.b32.xlu0 %v3110, 32
  %v3260 = vpop.permute.xlu0 %3259
  %3261 = vrot.lane.b32.xlu0 %v3111, 32
  %v3262 = vpop.permute.xlu0 %3261
  %3263 = vrot.lane.b32.xlu0 %v3112, 32
  %v3264 = vpop.permute.xlu0 %3263
  %3265 = vrot.lane.b32.xlu0 %v3113, 32
  %v3266 = vpop.permute.xlu0 %3265
  %3267 = vrot.lane.b32.xlu0 %v3114, 32
  %v3268 = vpop.permute.xlu0 %3267
  %3269 = vrot.lane.b32.xlu0 %v3115, 32
  %v3270 = vpop.permute.xlu0 %3269
  %3271 = vrot.lane.b32.xlu0 %v3116, 32
  %v3272 = vpop.permute.xlu0 %3271
  %3273 = vrot.lane.b32.xlu0 %v3117, 32
  %v3274 = vpop.permute.xlu0 %3273
  %3275 = vrot.lane.b32.xlu0 %v3118, 32
  %v3276 = vpop.permute.xlu0 %3275
  %3277 = vrot.lane.b32.xlu0 %v3119, 32
  %v3278 = vpop.permute.xlu0 %3277
  %3279 = vrot.lane.b32.xlu0 %v3120, 32
  %v3280 = vpop.permute.xlu0 %3279
  %3281 = vrot.lane.b32.xlu0 %v3121, 32
  %v3282 = vpop.permute.xlu0 %3281
  %3283 = vrot.lane.b32.xlu0 %v3122, 32
  %v3284 = vpop.permute.xlu0 %3283
  %3285 = vrot.lane.b32.xlu0 %v3123, 32
  %v3286 = vpop.permute.xlu0 %3285
  %3287 = vrot.lane.b32.xlu0 %v3124, 32
  %v3288 = vpop.permute.xlu0 %3287
  %3289 = vrot.lane.b32.xlu0 %v3125, 32
  %v3290 = vpop.permute.xlu0 %3289
  %3291 = vrot.lane.b32.xlu0 %v3126, 32
  %v3292 = vpop.permute.xlu0 %3291
  %3293 = vrot.lane.b32.xlu0 %v3127, 32
  %v3294 = vpop.permute.xlu0 %3293
  %3295 = vrot.lane.b32.xlu0 %v3128, 32
  %v3296 = vpop.permute.xlu0 %3295
  %3297 = vrot.lane.b32.xlu0 %v3129, 32
  %v3298 = vpop.permute.xlu0 %3297
  %3299 = vrot.lane.b32.xlu0 %v3130, 32
  %v3300 = vpop.permute.xlu0 %3299
  %3301 = vrot.lane.b32.xlu0 %v3131, 32
  %v3302 = vpop.permute.xlu0 %3301
  %3303 = vrot.lane.b32.xlu0 %v3132, 32
  %v3304 = vpop.permute.xlu0 %3303
  %3305 = vrot.lane.b32.xlu0 %v3133, 32
  %v3306 = vpop.permute.xlu0 %3305
  %3307 = vrot.lane.b32.xlu0 %v3134, 32
  %v3308 = vpop.permute.xlu0 %3307
  %3309 = vrot.lane.b32.xlu0 %v3135, 32
  %v3310 = vpop.permute.xlu0 %3309
  %3311 = vrot.lane.b32.xlu0 %v3136, 32
  %v3312 = vpop.permute.xlu0 %3311
  %3313 = vrot.lane.b32.xlu0 %v3137, 32
  %v3314 = vpop.permute.xlu0 %3313
  %3315 = vrot.lane.b32.xlu0 %v3138, 32
  %v3316 = vpop.permute.xlu0 %3315
  %3317 = vrot.lane.b32.xlu0 %v3139, 32
  %v3318 = vpop.permute.xlu0 %3317
  %3319 = vrot.lane.b32.xlu0 %v3140, 32
  %v3320 = vpop.permute.xlu0 %3319
  %3321 = vrot.lane.b32.xlu0 %v3141, 32
  %v3322 = vpop.permute.xlu0 %3321
  %3323 = vrot.lane.b32.xlu0 %v3142, 32
  %v3324 = vpop.permute.xlu0 %3323
  %3325 = vrot.lane.b32.xlu0 %v3143, 32
  %v3326 = vpop.permute.xlu0 %3325
  %3327 = vrot.lane.b32.xlu0 %v3144, 32
  %v3328 = vpop.permute.xlu0 %3327
  %3329 = vrot.lane.b32.xlu0 %v3145, 32
  %v3330 = vpop.permute.xlu0 %3329
  %3331 = vrot.lane.b32.xlu0 %v3146, 32
  %v3332 = vpop.permute.xlu0 %3331
  %3333 = vrot.lane.b32.xlu0 %v3147, 32
  %v3334 = vpop.permute.xlu0 %3333
  %3335 = vrot.lane.b32.xlu0 %v3148, 32
  %v3336 = vpop.permute.xlu0 %3335
  %3337 = vrot.lane.b32.xlu0 %v3149, 32
  %v3338 = vpop.permute.xlu0 %3337
  %3339 = vrot.lane.b32.xlu0 %v3150, 32
  %v3340 = vpop.permute.xlu0 %3339
  %3341 = vrot.lane.b32.xlu0 %v3151, 32
  %v3342 = vpop.permute.xlu0 %3341
  %3343 = vrot.lane.b32.xlu0 %v3152, 32
  %v3344 = vpop.permute.xlu0 %3343
  %vm3409 = vcmask 294144
  %3410 = vst.msk [vmem:[#allocation4] sm:$0xff] %vm3409, %v3218
  %3411 = vst.msk [vmem:[#allocation4 + $0x8] sm:$0xff] %vm3409, %v3220
  %3412 = vst.msk [vmem:[#allocation4 + $0x10] sm:$0xff] %vm3409, %v3222
  %3413 = vst.msk [vmem:[#allocation4 + $0x18] sm:$0xff] %vm3409, %v3224
  %3414 = vst.msk [vmem:[#allocation4 + $0x20] sm:$0xff] %vm3409, %v3226
  %3415 = vst.msk [vmem:[#allocation4 + $0x28] sm:$0xff] %vm3409, %v3228
  %3416 = vst.msk [vmem:[#allocation4 + $0x30] sm:$0xff] %vm3409, %v3230
  %3417 = vst.msk [vmem:[#allocation4 + $0x38] sm:$0xff] %vm3409, %v3232
  %3418 = vst.msk [vmem:[#allocation4 + $0x40] sm:$0xff] %vm3409, %v3234
  %3419 = vst.msk [vmem:[#allocation4 + $0x48] sm:$0xff] %vm3409, %v3236
  %3420 = vst.msk [vmem:[#allocation4 + $0x50] sm:$0xff] %vm3409, %v3238
  %3421 = vst.msk [vmem:[#allocation4 + $0x58] sm:$0xff] %vm3409, %v3240
  %3422 = vst.msk [vmem:[#allocation4 + $0x60] sm:$0xff] %vm3409, %v3242
  %3423 = vst.msk [vmem:[#allocation4 + $0x68] sm:$0xff] %vm3409, %v3244
  %3424 = vst.msk [vmem:[#allocation4 + $0x70] sm:$0xff] %vm3409, %v3246
  %3425 = vst.msk [vmem:[#allocation4 + $0x78] sm:$0xff] %vm3409, %v3248
  %3426 = vst.msk [vmem:[#allocation4 + $0x80] sm:$0xff] %vm3409, %v3250
  %3427 = vst.msk [vmem:[#allocation4 + $0x88] sm:$0xff] %vm3409, %v3252
  %3428 = vst.msk [vmem:[#allocation4 + $0x90] sm:$0xff] %vm3409, %v3254
  %3429 = vst.msk [vmem:[#allocation4 + $0x98] sm:$0xff] %vm3409, %v3256
  %3430 = vst.msk [vmem:[#allocation4 + $0xa0] sm:$0xff] %vm3409, %v3258
  %3431 = vst.msk [vmem:[#allocation4 + $0xa8] sm:$0xff] %vm3409, %v3260
  %3432 = vst.msk [vmem:[#allocation4 + $0xb0] sm:$0xff] %vm3409, %v3262
  %3433 = vst.msk [vmem:[#allocation4 + $0xb8] sm:$0xff] %vm3409, %v3264
  %3434 = vst.msk [vmem:[#allocation4 + $0xc0] sm:$0xff] %vm3409, %v3266
  %3435 = vst.msk [vmem:[#allocation4 + $0xc8] sm:$0xff] %vm3409, %v3268
  %3436 = vst.msk [vmem:[#allocation4 + $0xd0] sm:$0xff] %vm3409, %v3270
  %3437 = vst.msk [vmem:[#allocation4 + $0xd8] sm:$0xff] %vm3409, %v3272
  %3438 = vst.msk [vmem:[#allocation4 + $0xe0] sm:$0xff] %vm3409, %v3274
  %3439 = vst.msk [vmem:[#allocation4 + $0xe8] sm:$0xff] %vm3409, %v3276
  %3440 = vst.msk [vmem:[#allocation4 + $0xf0] sm:$0xff] %vm3409, %v3278
  %3441 = vst.msk [vmem:[#allocation4 + $0xf8] sm:$0xff] %vm3409, %v3280
  %3442 = vst.msk [vmem:[#allocation4 + $0x100] sm:$0xff] %vm3409, %v3282
  %3443 = vst.msk [vmem:[#allocation4 + $0x108] sm:$0xff] %vm3409, %v3284
  %3444 = vst.msk [vmem:[#allocation4 + $0x110] sm:$0xff] %vm3409, %v3286
  %3445 = vst.msk [vmem:[#allocation4 + $0x118] sm:$0xff] %vm3409, %v3288
  %3446 = vst.msk [vmem:[#allocation4 + $0x120] sm:$0xff] %vm3409, %v3290
  %3447 = vst.msk [vmem:[#allocation4 + $0x128] sm:$0xff] %vm3409, %v3292
  %3448 = vst.msk [vmem:[#allocation4 + $0x130] sm:$0xff] %vm3409, %v3294
  %3449 = vst.msk [vmem:[#allocation4 + $0x138] sm:$0xff] %vm3409, %v3296
  %3450 = vst.msk [vmem:[#allocation4 + $0x140] sm:$0xff] %vm3409, %v3298
  %3451 = vst.msk [vmem:[#allocation4 + $0x148] sm:$0xff] %vm3409, %v3300
  %3452 = vst.msk [vmem:[#allocation4 + $0x150] sm:$0xff] %vm3409, %v3302
  %3453 = vst.msk [vmem:[#allocation4 + $0x158] sm:$0xff] %vm3409, %v3304
  %3454 = vst.msk [vmem:[#allocation4 + $0x160] sm:$0xff] %vm3409, %v3306
  %3455 = vst.msk [vmem:[#allocation4 + $0x168] sm:$0xff] %vm3409, %v3308
  %3456 = vst.msk [vmem:[#allocation4 + $0x170] sm:$0xff] %vm3409, %v3310
  %3457 = vst.msk [vmem:[#allocation4 + $0x178] sm:$0xff] %vm3409, %v3312
  %3458 = vst.msk [vmem:[#allocation4 + $0x180] sm:$0xff] %vm3409, %v3314
  %3459 = vst.msk [vmem:[#allocation4 + $0x188] sm:$0xff] %vm3409, %v3316
  %3460 = vst.msk [vmem:[#allocation4 + $0x190] sm:$0xff] %vm3409, %v3318
  %3461 = vst.msk [vmem:[#allocation4 + $0x198] sm:$0xff] %vm3409, %v3320
  %3462 = vst.msk [vmem:[#allocation4 + $0x1a0] sm:$0xff] %vm3409, %v3322
  %3463 = vst.msk [vmem:[#allocation4 + $0x1a8] sm:$0xff] %vm3409, %v3324
  %3464 = vst.msk [vmem:[#allocation4 + $0x1b0] sm:$0xff] %vm3409, %v3326
  %3465 = vst.msk [vmem:[#allocation4 + $0x1b8] sm:$0xff] %vm3409, %v3328
  %3466 = vst.msk [vmem:[#allocation4 + $0x1c0] sm:$0xff] %vm3409, %v3330
  %3467 = vst.msk [vmem:[#allocation4 + $0x1c8] sm:$0xff] %vm3409, %v3332
  %3468 = vst.msk [vmem:[#allocation4 + $0x1d0] sm:$0xff] %vm3409, %v3334
  %3469 = vst.msk [vmem:[#allocation4 + $0x1d8] sm:$0xff] %vm3409, %v3336
  %3470 = vst.msk [vmem:[#allocation4 + $0x1e0] sm:$0xff] %vm3409, %v3338
  %3471 = vst.msk [vmem:[#allocation4 + $0x1e8] sm:$0xff] %vm3409, %v3340
  %3472 = vst.msk [vmem:[#allocation4 + $0x1f0] sm:$0xff] %vm3409, %v3342
  %3473 = vst.msk [vmem:[#allocation4 + $0x1f8] sm:$0xff] %vm3409, %v3344
  %v3474 = vld [vmem:[#allocation4] sm:$0xff]
  %v3475 = vld [vmem:[#allocation4 + $0x8] sm:$0xff]
  %v3476 = vld [vmem:[#allocation4 + $0x10] sm:$0xff]
  %v3477 = vld [vmem:[#allocation4 + $0x18] sm:$0xff]
  %v3478 = vld [vmem:[#allocation4 + $0x20] sm:$0xff]
  %v3479 = vld [vmem:[#allocation4 + $0x28] sm:$0xff]
  %v3480 = vld [vmem:[#allocation4 + $0x30] sm:$0xff]
  %v3481 = vld [vmem:[#allocation4 + $0x38] sm:$0xff]
  %v3482 = vld [vmem:[#allocation4 + $0x40] sm:$0xff]
  %v3483 = vld [vmem:[#allocation4 + $0x48] sm:$0xff]
  %v3484 = vld [vmem:[#allocation4 + $0x50] sm:$0xff]
  %v3485 = vld [vmem:[#allocation4 + $0x58] sm:$0xff]
  %v3486 = vld [vmem:[#allocation4 + $0x60] sm:$0xff]
  %v3487 = vld [vmem:[#allocation4 + $0x68] sm:$0xff]
  %v3488 = vld [vmem:[#allocation4 + $0x70] sm:$0xff]
  %v3489 = vld [vmem:[#allocation4 + $0x78] sm:$0xff]
  %v3490 = vld [vmem:[#allocation4 + $0x80] sm:$0xff]
  %v3491 = vld [vmem:[#allocation4 + $0x88] sm:$0xff]
  %v3492 = vld [vmem:[#allocation4 + $0x90] sm:$0xff]
  %v3493 = vld [vmem:[#allocation4 + $0x98] sm:$0xff]
  %v3494 = vld [vmem:[#allocation4 + $0xa0] sm:$0xff]
  %v3495 = vld [vmem:[#allocation4 + $0xa8] sm:$0xff]
  %v3496 = vld [vmem:[#allocation4 + $0xb0] sm:$0xff]
  %v3497 = vld [vmem:[#allocation4 + $0xb8] sm:$0xff]
  %v3498 = vld [vmem:[#allocation4 + $0xc0] sm:$0xff]
  %v3499 = vld [vmem:[#allocation4 + $0xc8] sm:$0xff]
  %v3500 = vld [vmem:[#allocation4 + $0xd0] sm:$0xff]
  %v3501 = vld [vmem:[#allocation4 + $0xd8] sm:$0xff]
  %v3502 = vld [vmem:[#allocation4 + $0xe0] sm:$0xff]
  %v3503 = vld [vmem:[#allocation4 + $0xe8] sm:$0xff]
  %v3504 = vld [vmem:[#allocation4 + $0xf0] sm:$0xff]
  %v3505 = vld [vmem:[#allocation4 + $0xf8] sm:$0xff]
  %v3506 = vld [vmem:[#allocation4 + $0x100] sm:$0xff]
  %v3507 = vld [vmem:[#allocation4 + $0x108] sm:$0xff]
  %v3508 = vld [vmem:[#allocation4 + $0x110] sm:$0xff]
  %v3509 = vld [vmem:[#allocation4 + $0x118] sm:$0xff]
  %v3510 = vld [vmem:[#allocation4 + $0x120] sm:$0xff]
  %v3511 = vld [vmem:[#allocation4 + $0x128] sm:$0xff]
  %v3512 = vld [vmem:[#allocation4 + $0x130] sm:$0xff]
  %v3513 = vld [vmem:[#allocation4 + $0x138] sm:$0xff]
  %v3514 = vld [vmem:[#allocation4 + $0x140] sm:$0xff]
  %v3515 = vld [vmem:[#allocation4 + $0x148] sm:$0xff]
  %v3516 = vld [vmem:[#allocation4 + $0x150] sm:$0xff]
  %v3517 = vld [vmem:[#allocation4 + $0x158] sm:$0xff]
  %v3518 = vld [vmem:[#allocation4 + $0x160] sm:$0xff]
  %v3519 = vld [vmem:[#allocation4 + $0x168] sm:$0xff]
  %v3520 = vld [vmem:[#allocation4 + $0x170] sm:$0xff]
  %v3521 = vld [vmem:[#allocation4 + $0x178] sm:$0xff]
  %v3522 = vld [vmem:[#allocation4 + $0x180] sm:$0xff]
  %v3523 = vld [vmem:[#allocation4 + $0x188] sm:$0xff]
  %v3524 = vld [vmem:[#allocation4 + $0x190] sm:$0xff]
  %v3525 = vld [vmem:[#allocation4 + $0x198] sm:$0xff]
  %v3526 = vld [vmem:[#allocation4 + $0x1a0] sm:$0xff]
  %v3527 = vld [vmem:[#allocation4 + $0x1a8] sm:$0xff]
  %v3528 = vld [vmem:[#allocation4 + $0x1b0] sm:$0xff]
  %v3529 = vld [vmem:[#allocation4 + $0x1b8] sm:$0xff]
  %v3530 = vld [vmem:[#allocation4 + $0x1c0] sm:$0xff]
  %v3531 = vld [vmem:[#allocation4 + $0x1c8] sm:$0xff]
  %v3532 = vld [vmem:[#allocation4 + $0x1d0] sm:$0xff]
  %v3533 = vld [vmem:[#allocation4 + $0x1d8] sm:$0xff]
  %v3534 = vld [vmem:[#allocation4 + $0x1e0] sm:$0xff]
  %v3535 = vld [vmem:[#allocation4 + $0x1e8] sm:$0xff]
  %v3536 = vld [vmem:[#allocation4 + $0x1f0] sm:$0xff]
  %v3537 = vld [vmem:[#allocation4 + $0x1f8] sm:$0xff]
  %v3538 = vld [vmem:[%s1] sm:$0xff]
  %v3539 = vld [vmem:[%s1 + $0x8] sm:$0xff]
  %v3540 = vld [vmem:[%s1 + $0x10] sm:$0xff]
  %v3541 = vld [vmem:[%s1 + $0x18] sm:$0xff]
  %v3542 = vld [vmem:[%s1 + $0x20] sm:$0xf]
  %v3543 = vld [vmem:[%s2] sm:$0x1]
  %v3545 = vlaneseq
  %v3546 = vshrl.u32 %v3545, 7
  %v3547 = vsub.s32 0, %v3546
  %v3548 = vrot.slane %v3543, %v3547
  %vm3550 = vcmask 293888
  %v3552 = vsel %vm3550, %v3474, 0
  %v3555 = vsel %vm3550, %v3475, 0
  %v3558 = vsel %vm3550, %v3476, 0
  %v3561 = vsel %vm3550, %v3477, 0
  %v3564 = vsel %vm3550, %v3478, 0
  %v3567 = vsel %vm3550, %v3479, 0
  %v3570 = vsel %vm3550, %v3480, 0
  %v3573 = vsel %vm3550, %v3481, 0
  %v3576 = vsel %vm3550, %v3482, 0
  %v3579 = vsel %vm3550, %v3483, 0
  %v3582 = vsel %vm3550, %v3484, 0
  %v3585 = vsel %vm3550, %v3485, 0
  %v3588 = vsel %vm3550, %v3486, 0
  %v3591 = vsel %vm3550, %v3487, 0
  %v3594 = vsel %vm3550, %v3488, 0
  %v3597 = vsel %vm3550, %v3489, 0
  %v3600 = vsel %vm3550, %v3490, 0
  %v3603 = vsel %vm3550, %v3491, 0
  %v3606 = vsel %vm3550, %v3492, 0
  %v3609 = vsel %vm3550, %v3493, 0
  %v3612 = vsel %vm3550, %v3494, 0
  %v3615 = vsel %vm3550, %v3495, 0
  %v3618 = vsel %vm3550, %v3496, 0
  %v3621 = vsel %vm3550, %v3497, 0
  %v3624 = vsel %vm3550, %v3498, 0
  %v3627 = vsel %vm3550, %v3499, 0
  %v3630 = vsel %vm3550, %v3500, 0
  %v3633 = vsel %vm3550, %v3501, 0
  %v3636 = vsel %vm3550, %v3502, 0
  %v3639 = vsel %vm3550, %v3503, 0
  %v3642 = vsel %vm3550, %v3504, 0
  %v3645 = vsel %vm3550, %v3505, 0
  %v3648 = vsel %vm3550, %v3506, 0
  %v3651 = vsel %vm3550, %v3507, 0
  %v3654 = vsel %vm3550, %v3508, 0
  %v3657 = vsel %vm3550, %v3509, 0
  %v3660 = vsel %vm3550, %v3510, 0
  %v3663 = vsel %vm3550, %v3511, 0
  %v3666 = vsel %vm3550, %v3512, 0
  %v3669 = vsel %vm3550, %v3513, 0
  %v3672 = vsel %vm3550, %v3514, 0
  %v3675 = vsel %vm3550, %v3515, 0
  %v3678 = vsel %vm3550, %v3516, 0
  %v3681 = vsel %vm3550, %v3517, 0
  %v3684 = vsel %vm3550, %v3518, 0
  %v3687 = vsel %vm3550, %v3519, 0
  %v3690 = vsel %vm3550, %v3520, 0
  %v3693 = vsel %vm3550, %v3521, 0
  %v3696 = vsel %vm3550, %v3522, 0
  %v3699 = vsel %vm3550, %v3523, 0
  %v3702 = vsel %vm3550, %v3524, 0
  %v3705 = vsel %vm3550, %v3525, 0
  %v3708 = vsel %vm3550, %v3526, 0
  %v3711 = vsel %vm3550, %v3527, 0
  %v3714 = vsel %vm3550, %v3528, 0
  %v3717 = vsel %vm3550, %v3529, 0
  %v3720 = vsel %vm3550, %v3530, 0
  %v3723 = vsel %vm3550, %v3531, 0
  %v3726 = vsel %vm3550, %v3532, 0
  %v3729 = vsel %vm3550, %v3533, 0
  %v3732 = vsel %vm3550, %v3534, 0
  %v3735 = vsel %vm3550, %v3535, 0
  %v3738 = vsel %vm3550, %v3536, 0
  %v3741 = vsel %vm3550, %v3537, 0
  %vm3743 = vcmask 1043456
  %v3745 = vsel %vm3743, %v3542, 0
  %3747 = vmatprep.subr.mxu0 0.0
  %3748 = vmatpush1.msra.mxu0 0.0
  %3749 = vmatprep.subr.mxu0 0.0
  %3750 = vmatpush1.msra.mxu0 0.0
  %3751 = vmatprep.subr.mxu0 0.0
  %3752 = vmatpush1.msra.mxu0 0.0
  %3753 = vmatprep.subr.mxu0 0.0
  %3754 = vmatpush1.msra.mxu0 0.0
  %3755 = vmatprep.subr.mxu0 0.0
  %3756 = vmatpush1.msra.mxu0 0.0
  %3757 = vmatprep.subr.mxu0 0.0
  %3758 = vmatpush1.msra.mxu0 0.0
  %3759 = vmatprep.subr.mxu0 0.0
  %3760 = vmatpush1.msra.mxu0 0.0
  %3761 = vmatprep.subr.mxu0 0.0
  %3762 = vmatpush1.msra.mxu0 0.0
  %3763 = vmatprep.subr.mxu0 0.0
  %3764 = vmatpush1.msra.mxu0 0.0
  %3765 = vmatprep.subr.mxu0 0.0
  %3766 = vmatpush1.msra.mxu0 0.0
  %3767 = vmatprep.subr.mxu0 0.0
  %3768 = vmatpush1.msra.mxu0 0.0
  %3769 = vmatprep.subr.mxu0 0.0
  %3770 = vmatpush1.msra.mxu0 %v3745
  %3771 = vmatprep.subr.mxu0 0.0
  %3772 = vmatpush1.msra.mxu0 %v3541
  %3773 = vmatprep.subr.mxu0 0.0
  %3774 = vmatpush1.msra.mxu0 %v3540
  %3775 = vmatprep.subr.mxu0 0.0
  %3776 = vmatpush1.msra.mxu0 %v3539
  %3777 = vmatprep.subr.mxu0 0.0
  %3778 = vmatpush1.msra.mxu0 %v3538
  %3779 = vmatprep.subr.mxu0 0.0
  %3780 = vmatpush2.msra.mxu0 0.0
  %3781 = vmatprep.subr.mxu0 0.0
  %3782 = vmatpush2.msra.mxu0 0.0
  %3783 = vmatprep.subr.mxu0 0.0
  %3784 = vmatpush2.msra.mxu0 0.0
  %3785 = vmatprep.subr.mxu0 0.0
  %3786 = vmatpush2.msra.mxu0 0.0
  %3787 = vmatprep.subr.mxu0 0.0
  %3788 = vmatpush2.msra.mxu0 0.0
  %3789 = vmatprep.subr.mxu0 0.0
  %3790 = vmatpush2.msra.mxu0 0.0
  %3791 = vmatprep.subr.mxu0 0.0
  %3792 = vmatpush2.msra.mxu0 0.0
  %3793 = vmatprep.subr.mxu0 0.0
  %3794 = vmatpush2.msra.mxu0 0.0
  %3795 = vmatprep.subr.mxu0 0.0
  %3796 = vmatpush2.msra.mxu0 0.0
  %3797 = vmatprep.subr.mxu0 0.0
  %3798 = vmatpush2.msra.mxu0 0.0
  %3799 = vmatprep.subr.mxu0 0.0
  %3800 = vmatpush2.msra.mxu0 0.0
  %3801 = vmatprep.subr.mxu0 0.0
  %3802 = vmatpush2.msra.mxu0 0.0
  %3803 = vmatprep.subr.mxu0 0.0
  %3804 = vmatpush2.msra.mxu0 0.0
  %3805 = vmatprep.subr.mxu0 0.0
  %3806 = vmatpush2.msra.mxu0 0.0
  %3807 = vmatprep.subr.mxu0 0.0
  %3808 = vmatpush2.msra.mxu0 0.0
  %3809 = vmatprep.subr.mxu0 0.0
  %3810 = vmatpush2.msra.mxu0 0.0
  %3811 = vmatprep.mubr.f32.mxu0 0.0
  %3812 = vmatmul.mubr.f32.gmra.mxu0 %v3552
  %v3813 = vpop.f32.mrf.mxu0
  %v3814 = vadd.f32 %v3548, %v3813
  %v3815 = vpop.f32.mrf.mxu0
  %3816 = vmatprep.mubr.f32.mxu0 0.0
  %3817 = vmatmul.mubr.f32.gmra.mxu0 %v3555
  %v3818 = vpop.f32.mrf.mxu0
  %v3819 = vadd.f32 %v3548, %v3818
  %v3820 = vpop.f32.mrf.mxu0
  %3821 = vmatprep.mubr.f32.mxu0 0.0
  %3822 = vmatmul.mubr.f32.gmra.mxu0 %v3558
  %v3823 = vpop.f32.mrf.mxu0
  %v3824 = vadd.f32 %v3548, %v3823
  %v3825 = vpop.f32.mrf.mxu0
  %3826 = vmatprep.mubr.f32.mxu0 0.0
  %3827 = vmatmul.mubr.f32.gmra.mxu0 %v3561
  %v3828 = vpop.f32.mrf.mxu0
  %v3829 = vadd.f32 %v3548, %v3828
  %v3830 = vpop.f32.mrf.mxu0
  %3831 = vmatprep.mubr.f32.mxu0 0.0
  %3832 = vmatmul.mubr.f32.gmra.mxu0 %v3564
  %v3833 = vpop.f32.mrf.mxu0
  %v3834 = vadd.f32 %v3548, %v3833
  %v3835 = vpop.f32.mrf.mxu0
  %3836 = vmatprep.mubr.f32.mxu0 0.0
  %3837 = vmatmul.mubr.f32.gmra.mxu0 %v3567
  %v3838 = vpop.f32.mrf.mxu0
  %v3839 = vadd.f32 %v3548, %v3838
  %v3840 = vpop.f32.mrf.mxu0
  %3841 = vmatprep.mubr.f32.mxu0 0.0
  %3842 = vmatmul.mubr.f32.gmra.mxu0 %v3570
  %v3843 = vpop.f32.mrf.mxu0
  %v3844 = vadd.f32 %v3548, %v3843
  %v3845 = vpop.f32.mrf.mxu0
  %3846 = vmatprep.mubr.f32.mxu0 0.0
  %3847 = vmatmul.mubr.f32.gmra.mxu0 %v3573
  %v3848 = vpop.f32.mrf.mxu0
  %v3849 = vadd.f32 %v3548, %v3848
  %v3850 = vpop.f32.mrf.mxu0
  %3851 = vmatprep.mubr.f32.mxu0 0.0
  %3852 = vmatmul.mubr.f32.gmra.mxu0 %v3576
  %v3853 = vpop.f32.mrf.mxu0
  %v3854 = vadd.f32 %v3548, %v3853
  %v3855 = vpop.f32.mrf.mxu0
  %3856 = vmatprep.mubr.f32.mxu0 0.0
  %3857 = vmatmul.mubr.f32.gmra.mxu0 %v3579
  %v3858 = vpop.f32.mrf.mxu0
  %v3859 = vadd.f32 %v3548, %v3858
  %v3860 = vpop.f32.mrf.mxu0
  %3861 = vmatprep.mubr.f32.mxu0 0.0
  %3862 = vmatmul.mubr.f32.gmra.mxu0 %v3582
  %v3863 = vpop.f32.mrf.mxu0
  %v3864 = vadd.f32 %v3548, %v3863
  %v3865 = vpop.f32.mrf.mxu0
  %3866 = vmatprep.mubr.f32.mxu0 0.0
  %3867 = vmatmul.mubr.f32.gmra.mxu0 %v3585
  %v3868 = vpop.f32.mrf.mxu0
  %v3869 = vadd.f32 %v3548, %v3868
  %v3870 = vpop.f32.mrf.mxu0
  %3871 = vmatprep.mubr.f32.mxu0 0.0
  %3872 = vmatmul.mubr.f32.gmra.mxu0 %v3588
  %v3873 = vpop.f32.mrf.mxu0
  %v3874 = vadd.f32 %v3548, %v3873
  %v3875 = vpop.f32.mrf.mxu0
  %3876 = vmatprep.mubr.f32.mxu0 0.0
  %3877 = vmatmul.mubr.f32.gmra.mxu0 %v3591
  %v3878 = vpop.f32.mrf.mxu0
  %v3879 = vadd.f32 %v3548, %v3878
  %v3880 = vpop.f32.mrf.mxu0
  %3881 = vmatprep.mubr.f32.mxu0 0.0
  %3882 = vmatmul.mubr.f32.gmra.mxu0 %v3594
  %v3883 = vpop.f32.mrf.mxu0
  %v3884 = vadd.f32 %v3548, %v3883
  %v3885 = vpop.f32.mrf.mxu0
  %3886 = vmatprep.mubr.f32.mxu0 0.0
  %3887 = vmatmul.mubr.f32.gmra.mxu0 %v3597
  %v3888 = vpop.f32.mrf.mxu0
  %v3889 = vadd.f32 %v3548, %v3888
  %v3890 = vpop.f32.mrf.mxu0
  %3891 = vmatprep.mubr.f32.mxu0 0.0
  %3892 = vmatmul.mubr.f32.gmra.mxu0 %v3600
  %v3893 = vpop.f32.mrf.mxu0
  %v3894 = vadd.f32 %v3548, %v3893
  %v3895 = vpop.f32.mrf.mxu0
  %3896 = vmatprep.mubr.f32.mxu0 0.0
  %3897 = vmatmul.mubr.f32.gmra.mxu0 %v3603
  %v3898 = vpop.f32.mrf.mxu0
  %v3899 = vadd.f32 %v3548, %v3898
  %v3900 = vpop.f32.mrf.mxu0
  %3901 = vmatprep.mubr.f32.mxu0 0.0
  %3902 = vmatmul.mubr.f32.gmra.mxu0 %v3606
  %v3903 = vpop.f32.mrf.mxu0
  %v3904 = vadd.f32 %v3548, %v3903
  %v3905 = vpop.f32.mrf.mxu0
  %3906 = vmatprep.mubr.f32.mxu0 0.0
  %3907 = vmatmul.mubr.f32.gmra.mxu0 %v3609
  %v3908 = vpop.f32.mrf.mxu0
  %v3909 = vadd.f32 %v3548, %v3908
  %v3910 = vpop.f32.mrf.mxu0
  %3911 = vmatprep.mubr.f32.mxu0 0.0
  %3912 = vmatmul.mubr.f32.gmra.mxu0 %v3612
  %v3913 = vpop.f32.mrf.mxu0
  %v3914 = vadd.f32 %v3548, %v3913
  %v3915 = vpop.f32.mrf.mxu0
  %3916 = vmatprep.mubr.f32.mxu0 0.0
  %3917 = vmatmul.mubr.f32.gmra.mxu0 %v3615
  %v3918 = vpop.f32.mrf.mxu0
  %v3919 = vadd.f32 %v3548, %v3918
  %v3920 = vpop.f32.mrf.mxu0
  %3921 = vmatprep.mubr.f32.mxu0 0.0
  %3922 = vmatmul.mubr.f32.gmra.mxu0 %v3618
  %v3923 = vpop.f32.mrf.mxu0
  %v3924 = vadd.f32 %v3548, %v3923
  %v3925 = vpop.f32.mrf.mxu0
  %3926 = vmatprep.mubr.f32.mxu0 0.0
  %3927 = vmatmul.mubr.f32.gmra.mxu0 %v3621
  %v3928 = vpop.f32.mrf.mxu0
  %v3929 = vadd.f32 %v3548, %v3928
  %v3930 = vpop.f32.mrf.mxu0
  %3931 = vmatprep.mubr.f32.mxu0 0.0
  %3932 = vmatmul.mubr.f32.gmra.mxu0 %v3624
  %v3933 = vpop.f32.mrf.mxu0
  %v3934 = vadd.f32 %v3548, %v3933
  %v3935 = vpop.f32.mrf.mxu0
  %3936 = vmatprep.mubr.f32.mxu0 0.0
  %3937 = vmatmul.mubr.f32.gmra.mxu0 %v3627
  %v3938 = vpop.f32.mrf.mxu0
  %v3939 = vadd.f32 %v3548, %v3938
  %v3940 = vpop.f32.mrf.mxu0
  %3941 = vmatprep.mubr.f32.mxu0 0.0
  %3942 = vmatmul.mubr.f32.gmra.mxu0 %v3630
  %v3943 = vpop.f32.mrf.mxu0
  %v3944 = vadd.f32 %v3548, %v3943
  %v3945 = vpop.f32.mrf.mxu0
  %3946 = vmatprep.mubr.f32.mxu0 0.0
  %3947 = vmatmul.mubr.f32.gmra.mxu0 %v3633
  %v3948 = vpop.f32.mrf.mxu0
  %v3949 = vadd.f32 %v3548, %v3948
  %v3950 = vpop.f32.mrf.mxu0
  %3951 = vmatprep.mubr.f32.mxu0 0.0
  %3952 = vmatmul.mubr.f32.gmra.mxu0 %v3636
  %v3953 = vpop.f32.mrf.mxu0
  %v3954 = vadd.f32 %v3548, %v3953
  %v3955 = vpop.f32.mrf.mxu0
  %3956 = vmatprep.mubr.f32.mxu0 0.0
  %3957 = vmatmul.mubr.f32.gmra.mxu0 %v3639
  %v3958 = vpop.f32.mrf.mxu0
  %v3959 = vadd.f32 %v3548, %v3958
  %v3960 = vpop.f32.mrf.mxu0
  %3961 = vmatprep.mubr.f32.mxu0 0.0
  %3962 = vmatmul.mubr.f32.gmra.mxu0 %v3642
  %v3963 = vpop.f32.mrf.mxu0
  %v3964 = vadd.f32 %v3548, %v3963
  %v3965 = vpop.f32.mrf.mxu0
  %3966 = vmatprep.mubr.f32.mxu0 0.0
  %3967 = vmatmul.mubr.f32.gmra.mxu0 %v3645
  %v3968 = vpop.f32.mrf.mxu0
  %v3969 = vadd.f32 %v3548, %v3968
  %v3970 = vpop.f32.mrf.mxu0
  %3971 = vmatprep.mubr.f32.mxu0 0.0
  %3972 = vmatmul.mubr.f32.gmra.mxu0 %v3648
  %v3973 = vpop.f32.mrf.mxu0
  %v3974 = vadd.f32 %v3548, %v3973
  %v3975 = vpop.f32.mrf.mxu0
  %3976 = vmatprep.mubr.f32.mxu0 0.0
  %3977 = vmatmul.mubr.f32.gmra.mxu0 %v3651
  %v3978 = vpop.f32.mrf.mxu0
  %v3979 = vadd.f32 %v3548, %v3978
  %v3980 = vpop.f32.mrf.mxu0
  %3981 = vmatprep.mubr.f32.mxu0 0.0
  %3982 = vmatmul.mubr.f32.gmra.mxu0 %v3654
  %v3983 = vpop.f32.mrf.mxu0
  %v3984 = vadd.f32 %v3548, %v3983
  %v3985 = vpop.f32.mrf.mxu0
  %3986 = vmatprep.mubr.f32.mxu0 0.0
  %3987 = vmatmul.mubr.f32.gmra.mxu0 %v3657
  %v3988 = vpop.f32.mrf.mxu0
  %v3989 = vadd.f32 %v3548, %v3988
  %v3990 = vpop.f32.mrf.mxu0
  %3991 = vmatprep.mubr.f32.mxu0 0.0
  %3992 = vmatmul.mubr.f32.gmra.mxu0 %v3660
  %v3993 = vpop.f32.mrf.mxu0
  %v3994 = vadd.f32 %v3548, %v3993
  %v3995 = vpop.f32.mrf.mxu0
  %3996 = vmatprep.mubr.f32.mxu0 0.0
  %3997 = vmatmul.mubr.f32.gmra.mxu0 %v3663
  %v3998 = vpop.f32.mrf.mxu0
  %v3999 = vadd.f32 %v3548, %v3998
  %v4000 = vpop.f32.mrf.mxu0
  %4001 = vmatprep.mubr.f32.mxu0 0.0
  %4002 = vmatmul.mubr.f32.gmra.mxu0 %v3666
  %v4003 = vpop.f32.mrf.mxu0
  %v4004 = vadd.f32 %v3548, %v4003
  %v4005 = vpop.f32.mrf.mxu0
  %4006 = vmatprep.mubr.f32.mxu0 0.0
  %4007 = vmatmul.mubr.f32.gmra.mxu0 %v3669
  %v4008 = vpop.f32.mrf.mxu0
  %v4009 = vadd.f32 %v3548, %v4008
  %v4010 = vpop.f32.mrf.mxu0
  %4011 = vmatprep.mubr.f32.mxu0 0.0
  %4012 = vmatmul.mubr.f32.gmra.mxu0 %v3672
  %v4013 = vpop.f32.mrf.mxu0
  %v4014 = vadd.f32 %v3548, %v4013
  %v4015 = vpop.f32.mrf.mxu0
  %4016 = vmatprep.mubr.f32.mxu0 0.0
  %4017 = vmatmul.mubr.f32.gmra.mxu0 %v3675
  %v4018 = vpop.f32.mrf.mxu0
  %v4019 = vadd.f32 %v3548, %v4018
  %v4020 = vpop.f32.mrf.mxu0
  %4021 = vmatprep.mubr.f32.mxu0 0.0
  %4022 = vmatmul.mubr.f32.gmra.mxu0 %v3678
  %v4023 = vpop.f32.mrf.mxu0
  %v4024 = vadd.f32 %v3548, %v4023
  %v4025 = vpop.f32.mrf.mxu0
  %4026 = vmatprep.mubr.f32.mxu0 0.0
  %4027 = vmatmul.mubr.f32.gmra.mxu0 %v3681
  %v4028 = vpop.f32.mrf.mxu0
  %v4029 = vadd.f32 %v3548, %v4028
  %v4030 = vpop.f32.mrf.mxu0
  %4031 = vmatprep.mubr.f32.mxu0 0.0
  %4032 = vmatmul.mubr.f32.gmra.mxu0 %v3684
  %v4033 = vpop.f32.mrf.mxu0
  %v4034 = vadd.f32 %v3548, %v4033
  %v4035 = vpop.f32.mrf.mxu0
  %4036 = vmatprep.mubr.f32.mxu0 0.0
  %4037 = vmatmul.mubr.f32.gmra.mxu0 %v3687
  %v4038 = vpop.f32.mrf.mxu0
  %v4039 = vadd.f32 %v3548, %v4038
  %v4040 = vpop.f32.mrf.mxu0
  %4041 = vmatprep.mubr.f32.mxu0 0.0
  %4042 = vmatmul.mubr.f32.gmra.mxu0 %v3690
  %v4043 = vpop.f32.mrf.mxu0
  %v4044 = vadd.f32 %v3548, %v4043
  %v4045 = vpop.f32.mrf.mxu0
  %4046 = vmatprep.mubr.f32.mxu0 0.0
  %4047 = vmatmul.mubr.f32.gmra.mxu0 %v3693
  %v4048 = vpop.f32.mrf.mxu0
  %v4049 = vadd.f32 %v3548, %v4048
  %v4050 = vpop.f32.mrf.mxu0
  %4051 = vmatprep.mubr.f32.mxu0 0.0
  %4052 = vmatmul.mubr.f32.gmra.mxu0 %v3696
  %v4053 = vpop.f32.mrf.mxu0
  %v4054 = vadd.f32 %v3548, %v4053
  %v4055 = vpop.f32.mrf.mxu0
  %4056 = vmatprep.mubr.f32.mxu0 0.0
  %4057 = vmatmul.mubr.f32.gmra.mxu0 %v3699
  %v4058 = vpop.f32.mrf.mxu0
  %v4059 = vadd.f32 %v3548, %v4058
  %v4060 = vpop.f32.mrf.mxu0
  %4061 = vmatprep.mubr.f32.mxu0 0.0
  %4062 = vmatmul.mubr.f32.gmra.mxu0 %v3702
  %v4063 = vpop.f32.mrf.mxu0
  %v4064 = vadd.f32 %v3548, %v4063
  %v4065 = vpop.f32.mrf.mxu0
  %4066 = vmatprep.mubr.f32.mxu0 0.0
  %4067 = vmatmul.mubr.f32.gmra.mxu0 %v3705
  %v4068 = vpop.f32.mrf.mxu0
  %v4069 = vadd.f32 %v3548, %v4068
  %v4070 = vpop.f32.mrf.mxu0
  %4071 = vmatprep.mubr.f32.mxu0 0.0
  %4072 = vmatmul.mubr.f32.gmra.mxu0 %v3708
  %v4073 = vpop.f32.mrf.mxu0
  %v4074 = vadd.f32 %v3548, %v4073
  %v4075 = vpop.f32.mrf.mxu0
  %4076 = vmatprep.mubr.f32.mxu0 0.0
  %4077 = vmatmul.mubr.f32.gmra.mxu0 %v3711
  %v4078 = vpop.f32.mrf.mxu0
  %v4079 = vadd.f32 %v3548, %v4078
  %v4080 = vpop.f32.mrf.mxu0
  %4081 = vmatprep.mubr.f32.mxu0 0.0
  %4082 = vmatmul.mubr.f32.gmra.mxu0 %v3714
  %v4083 = vpop.f32.mrf.mxu0
  %v4084 = vadd.f32 %v3548, %v4083
  %v4085 = vpop.f32.mrf.mxu0
  %4086 = vmatprep.mubr.f32.mxu0 0.0
  %4087 = vmatmul.mubr.f32.gmra.mxu0 %v3717
  %v4088 = vpop.f32.mrf.mxu0
  %v4089 = vadd.f32 %v3548, %v4088
  %v4090 = vpop.f32.mrf.mxu0
  %4091 = vmatprep.mubr.f32.mxu0 0.0
  %4092 = vmatmul.mubr.f32.gmra.mxu0 %v3720
  %v4093 = vpop.f32.mrf.mxu0
  %v4094 = vadd.f32 %v3548, %v4093
  %v4095 = vpop.f32.mrf.mxu0
  %4096 = vmatprep.mubr.f32.mxu0 0.0
  %4097 = vmatmul.mubr.f32.gmra.mxu0 %v3723
  %v4098 = vpop.f32.mrf.mxu0
  %v4099 = vadd.f32 %v3548, %v4098
  %v4100 = vpop.f32.mrf.mxu0
  %4101 = vmatprep.mubr.f32.mxu0 0.0
  %4102 = vmatmul.mubr.f32.gmra.mxu0 %v3726
  %v4103 = vpop.f32.mrf.mxu0
  %v4104 = vadd.f32 %v3548, %v4103
  %v4105 = vpop.f32.mrf.mxu0
  %4106 = vmatprep.mubr.f32.mxu0 0.0
  %4107 = vmatmul.mubr.f32.gmra.mxu0 %v3729
  %v4108 = vpop.f32.mrf.mxu0
  %v4109 = vadd.f32 %v3548, %v4108
  %v4110 = vpop.f32.mrf.mxu0
  %4111 = vmatprep.mubr.f32.mxu0 0.0
  %4112 = vmatmul.mubr.f32.gmra.mxu0 %v3732
  %v4113 = vpop.f32.mrf.mxu0
  %v4114 = vadd.f32 %v3548, %v4113
  %v4115 = vpop.f32.mrf.mxu0
  %4116 = vmatprep.mubr.f32.mxu0 0.0
  %4117 = vmatmul.mubr.f32.gmra.mxu0 %v3735
  %v4118 = vpop.f32.mrf.mxu0
  %v4119 = vadd.f32 %v3548, %v4118
  %v4120 = vpop.f32.mrf.mxu0
  %4121 = vmatprep.mubr.f32.mxu0 0.0
  %4122 = vmatmul.mubr.f32.gmra.mxu0 %v3738
  %v4123 = vpop.f32.mrf.mxu0
  %v4124 = vadd.f32 %v3548, %v4123
  %v4125 = vpop.f32.mrf.mxu0
  %4126 = vmatprep.mubr.f32.mxu0 0.0
  %4127 = vmatmul.mubr.f32.gmra.mxu0 %v3741
  %v4128 = vpop.f32.mrf.mxu0
  %v4129 = vadd.f32 %v3548, %v4128
  %v4130 = vpop.f32.mrf.mxu0
  %4131 = vdwg.mxu0
  %vm4132 = vcmask 64512
  %v4133 = vsel %vm4132, %v3814, 0.0
  %v4134 = vsel %vm4132, %v3819, 0.0
  %v4135 = vadd.f32 %v4133, %v4134
  %v4136 = vsel %vm4132, %v3824, 0.0
  %v4137 = vadd.f32 %v4135, %v4136
  %v4138 = vsel %vm4132, %v3829, 0.0
  %v4139 = vadd.f32 %v4137, %v4138
  %v4140 = vsel %vm4132, %v3834, 0.0
  %v4141 = vadd.f32 %v4139, %v4140
  %v4142 = vsel %vm4132, %v3839, 0.0
  %v4143 = vadd.f32 %v4141, %v4142
  %v4144 = vsel %vm4132, %v3844, 0.0
  %v4145 = vadd.f32 %v4143, %v4144
  %v4146 = vsel %vm4132, %v3849, 0.0
  %v4147 = vadd.f32 %v4145, %v4146
  %v4148 = vsel %vm4132, %v3854, 0.0
  %v4149 = vadd.f32 %v4147, %v4148
  %v4150 = vsel %vm4132, %v3859, 0.0
  %v4151 = vadd.f32 %v4149, %v4150
  %v4152 = vsel %vm4132, %v3864, 0.0
  %v4153 = vadd.f32 %v4151, %v4152
  %v4154 = vsel %vm4132, %v3869, 0.0
  %v4155 = vadd.f32 %v4153, %v4154
  %v4156 = vsel %vm4132, %v3874, 0.0
  %v4157 = vadd.f32 %v4155, %v4156
  %v4158 = vsel %vm4132, %v3879, 0.0
  %v4159 = vadd.f32 %v4157, %v4158
  %v4160 = vsel %vm4132, %v3884, 0.0
  %v4161 = vadd.f32 %v4159, %v4160
  %v4162 = vsel %vm4132, %v3889, 0.0
  %v4163 = vadd.f32 %v4161, %v4162
  %v4164 = vsel %vm4132, %v3894, 0.0
  %v4165 = vadd.f32 %v4163, %v4164
  %v4166 = vsel %vm4132, %v3899, 0.0
  %v4167 = vadd.f32 %v4165, %v4166
  %v4168 = vsel %vm4132, %v3904, 0.0
  %v4169 = vadd.f32 %v4167, %v4168
  %v4170 = vsel %vm4132, %v3909, 0.0
  %v4171 = vadd.f32 %v4169, %v4170
  %v4172 = vsel %vm4132, %v3914, 0.0
  %v4173 = vadd.f32 %v4171, %v4172
  %v4174 = vsel %vm4132, %v3919, 0.0
  %v4175 = vadd.f32 %v4173, %v4174
  %v4176 = vsel %vm4132, %v3924, 0.0
  %v4177 = vadd.f32 %v4175, %v4176
  %v4178 = vsel %vm4132, %v3929, 0.0
  %v4179 = vadd.f32 %v4177, %v4178
  %v4180 = vsel %vm4132, %v3934, 0.0
  %v4181 = vadd.f32 %v4179, %v4180
  %v4182 = vsel %vm4132, %v3939, 0.0
  %v4183 = vadd.f32 %v4181, %v4182
  %v4184 = vsel %vm4132, %v3944, 0.0
  %v4185 = vadd.f32 %v4183, %v4184
  %v4186 = vsel %vm4132, %v3949, 0.0
  %v4187 = vadd.f32 %v4185, %v4186
  %v4188 = vsel %vm4132, %v3954, 0.0
  %v4189 = vadd.f32 %v4187, %v4188
  %v4190 = vsel %vm4132, %v3959, 0.0
  %v4191 = vadd.f32 %v4189, %v4190
  %v4192 = vsel %vm4132, %v3964, 0.0
  %v4193 = vadd.f32 %v4191, %v4192
  %v4194 = vsel %vm4132, %v3969, 0.0
  %v4195 = vadd.f32 %v4193, %v4194
  %v4196 = vsel %vm4132, %v3974, 0.0
  %v4197 = vadd.f32 %v4195, %v4196
  %v4198 = vsel %vm4132, %v3979, 0.0
  %v4199 = vadd.f32 %v4197, %v4198
  %v4200 = vsel %vm4132, %v3984, 0.0
  %v4201 = vadd.f32 %v4199, %v4200
  %v4202 = vsel %vm4132, %v3989, 0.0
  %v4203 = vadd.f32 %v4201, %v4202
  %v4204 = vsel %vm4132, %v3994, 0.0
  %v4205 = vadd.f32 %v4203, %v4204
  %v4206 = vsel %vm4132, %v3999, 0.0
  %v4207 = vadd.f32 %v4205, %v4206
  %v4208 = vsel %vm4132, %v4004, 0.0
  %v4209 = vadd.f32 %v4207, %v4208
  %v4210 = vsel %vm4132, %v4009, 0.0
  %v4211 = vadd.f32 %v4209, %v4210
  %v4212 = vsel %vm4132, %v4014, 0.0
  %v4213 = vadd.f32 %v4211, %v4212
  %v4214 = vsel %vm4132, %v4019, 0.0
  %v4215 = vadd.f32 %v4213, %v4214
  %v4216 = vsel %vm4132, %v4024, 0.0
  %v4217 = vadd.f32 %v4215, %v4216
  %v4218 = vsel %vm4132, %v4029, 0.0
  %v4219 = vadd.f32 %v4217, %v4218
  %v4220 = vsel %vm4132, %v4034, 0.0
  %v4221 = vadd.f32 %v4219, %v4220
  %v4222 = vsel %vm4132, %v4039, 0.0
  %v4223 = vadd.f32 %v4221, %v4222
  %v4224 = vsel %vm4132, %v4044, 0.0
  %v4225 = vadd.f32 %v4223, %v4224
  %v4226 = vsel %vm4132, %v4049, 0.0
  %v4227 = vadd.f32 %v4225, %v4226
  %v4228 = vsel %vm4132, %v4054, 0.0
  %v4229 = vadd.f32 %v4227, %v4228
  %v4230 = vsel %vm4132, %v4059, 0.0
  %v4231 = vadd.f32 %v4229, %v4230
  %v4232 = vsel %vm4132, %v4064, 0.0
  %v4233 = vadd.f32 %v4231, %v4232
  %v4234 = vsel %vm4132, %v4069, 0.0
  %v4235 = vadd.f32 %v4233, %v4234
  %v4236 = vsel %vm4132, %v4074, 0.0
  %v4237 = vadd.f32 %v4235, %v4236
  %v4238 = vsel %vm4132, %v4079, 0.0
  %v4239 = vadd.f32 %v4237, %v4238
  %v4240 = vsel %vm4132, %v4084, 0.0
  %v4241 = vadd.f32 %v4239, %v4240
  %v4242 = vsel %vm4132, %v4089, 0.0
  %v4243 = vadd.f32 %v4241, %v4242
  %v4244 = vsel %vm4132, %v4094, 0.0
  %v4245 = vadd.f32 %v4243, %v4244
  %v4246 = vsel %vm4132, %v4099, 0.0
  %v4247 = vadd.f32 %v4245, %v4246
  %v4248 = vsel %vm4132, %v4104, 0.0
  %v4249 = vadd.f32 %v4247, %v4248
  %v4250 = vsel %vm4132, %v4109, 0.0
  %v4251 = vadd.f32 %v4249, %v4250
  %v4252 = vsel %vm4132, %v4114, 0.0
  %v4253 = vadd.f32 %v4251, %v4252
  %v4254 = vsel %vm4132, %v4119, 0.0
  %v4255 = vadd.f32 %v4253, %v4254
  %v4256 = vsel %vm4132, %v4124, 0.0
  %v4257 = vadd.f32 %v4255, %v4256
  %v4258 = vsel %vm4132, %v4129, 0.0
  %v4259 = vadd.f32 %v4257, %v4258
  %v4260 = vrot.slane %v4259, 4
  %v4261 = vadd.f32 %v4259, %v4260
  %v4262 = vrot.slane %v4261, 2
  %v4263 = vadd.f32 %v4261, %v4262
  %v4264 = vrot.slane %v4263, 1
  %v4265 = vadd.f32 %v4263, %v4264
  %v4266 = vmul.f32 %v4265, 0.001953125
  %v4267 = vsub.f32 %v3814, %v4266
  %v4268 = vsub.f32 %v3819, %v4266
  %v4269 = vsub.f32 %v3824, %v4266
  %v4270 = vsub.f32 %v3829, %v4266
  %v4271 = vsub.f32 %v3834, %v4266
  %v4272 = vsub.f32 %v3839, %v4266
  %v4273 = vsub.f32 %v3844, %v4266
  %v4274 = vsub.f32 %v3849, %v4266
  %v4275 = vsub.f32 %v3854, %v4266
  %v4276 = vsub.f32 %v3859, %v4266
  %v4277 = vsub.f32 %v3864, %v4266
  %v4278 = vsub.f32 %v3869, %v4266
  %v4279 = vsub.f32 %v3874, %v4266
  %v4280 = vsub.f32 %v3879, %v4266
  %v4281 = vsub.f32 %v3884, %v4266
  %v4282 = vsub.f32 %v3889, %v4266
  %v4283 = vsub.f32 %v3894, %v4266
  %v4284 = vsub.f32 %v3899, %v4266
  %v4285 = vsub.f32 %v3904, %v4266
  %v4286 = vsub.f32 %v3909, %v4266
  %v4287 = vsub.f32 %v3914, %v4266
  %v4288 = vsub.f32 %v3919, %v4266
  %v4289 = vsub.f32 %v3924, %v4266
  %v4290 = vsub.f32 %v3929, %v4266
  %v4291 = vsub.f32 %v3934, %v4266
  %v4292 = vsub.f32 %v3939, %v4266
  %v4293 = vsub.f32 %v3944, %v4266
  %v4294 = vsub.f32 %v3949, %v4266
  %v4295 = vsub.f32 %v3954, %v4266
  %v4296 = vsub.f32 %v3959, %v4266
  %v4297 = vsub.f32 %v3964, %v4266
  %v4298 = vsub.f32 %v3969, %v4266
  %v4299 = vsub.f32 %v3974, %v4266
  %v4300 = vsub.f32 %v3979, %v4266
  %v4301 = vsub.f32 %v3984, %v4266
  %v4302 = vsub.f32 %v3989, %v4266
  %v4303 = vsub.f32 %v3994, %v4266
  %v4304 = vsub.f32 %v3999, %v4266
  %v4305 = vsub.f32 %v4004, %v4266
  %v4306 = vsub.f32 %v4009, %v4266
  %v4307 = vsub.f32 %v4014, %v4266
  %v4308 = vsub.f32 %v4019, %v4266
  %v4309 = vsub.f32 %v4024, %v4266
  %v4310 = vsub.f32 %v4029, %v4266
  %v4311 = vsub.f32 %v4034, %v4266
  %v4312 = vsub.f32 %v4039, %v4266
  %v4313 = vsub.f32 %v4044, %v4266
  %v4314 = vsub.f32 %v4049, %v4266
  %v4315 = vsub.f32 %v4054, %v4266
  %v4316 = vsub.f32 %v4059, %v4266
  %v4317 = vsub.f32 %v4064, %v4266
  %v4318 = vsub.f32 %v4069, %v4266
  %v4319 = vsub.f32 %v4074, %v4266
  %v4320 = vsub.f32 %v4079, %v4266
  %v4321 = vsub.f32 %v4084, %v4266
  %v4322 = vsub.f32 %v4089, %v4266
  %v4323 = vsub.f32 %v4094, %v4266
  %v4324 = vsub.f32 %v4099, %v4266
  %v4325 = vsub.f32 %v4104, %v4266
  %v4326 = vsub.f32 %v4109, %v4266
  %v4327 = vsub.f32 %v4114, %v4266
  %v4328 = vsub.f32 %v4119, %v4266
  %v4329 = vsub.f32 %v4124, %v4266
  %v4330 = vsub.f32 %v4129, %v4266
  %v4331 = vmul.f32 %v4267, %v4267
  %v4332 = vmul.f32 %v4268, %v4268
  %v4333 = vmul.f32 %v4269, %v4269
  %v4334 = vmul.f32 %v4270, %v4270
  %v4335 = vmul.f32 %v4271, %v4271
  %v4336 = vmul.f32 %v4272, %v4272
  %v4337 = vmul.f32 %v4273, %v4273
  %v4338 = vmul.f32 %v4274, %v4274
  %v4339 = vmul.f32 %v4275, %v4275
  %v4340 = vmul.f32 %v4276, %v4276
  %v4341 = vmul.f32 %v4277, %v4277
  %v4342 = vmul.f32 %v4278, %v4278
  %v4343 = vmul.f32 %v4279, %v4279
  %v4344 = vmul.f32 %v4280, %v4280
  %v4345 = vmul.f32 %v4281, %v4281
  %v4346 = vmul.f32 %v4282, %v4282
  %v4347 = vmul.f32 %v4283, %v4283
  %v4348 = vmul.f32 %v4284, %v4284
  %v4349 = vmul.f32 %v4285, %v4285
  %v4350 = vmul.f32 %v4286, %v4286
  %v4351 = vmul.f32 %v4287, %v4287
  %v4352 = vmul.f32 %v4288, %v4288
  %v4353 = vmul.f32 %v4289, %v4289
  %v4354 = vmul.f32 %v4290, %v4290
  %v4355 = vmul.f32 %v4291, %v4291
  %v4356 = vmul.f32 %v4292, %v4292
  %v4357 = vmul.f32 %v4293, %v4293
  %v4358 = vmul.f32 %v4294, %v4294
  %v4359 = vmul.f32 %v4295, %v4295
  %v4360 = vmul.f32 %v4296, %v4296
  %v4361 = vmul.f32 %v4297, %v4297
  %v4362 = vmul.f32 %v4298, %v4298
  %v4363 = vmul.f32 %v4299, %v4299
  %v4364 = vmul.f32 %v4300, %v4300
  %v4365 = vmul.f32 %v4301, %v4301
  %v4366 = vmul.f32 %v4302, %v4302
  %v4367 = vmul.f32 %v4303, %v4303
  %v4368 = vmul.f32 %v4304, %v4304
  %v4369 = vmul.f32 %v4305, %v4305
  %v4370 = vmul.f32 %v4306, %v4306
  %v4371 = vmul.f32 %v4307, %v4307
  %v4372 = vmul.f32 %v4308, %v4308
  %v4373 = vmul.f32 %v4309, %v4309
  %v4374 = vmul.f32 %v4310, %v4310
  %v4375 = vmul.f32 %v4311, %v4311
  %v4376 = vmul.f32 %v4312, %v4312
  %v4377 = vmul.f32 %v4313, %v4313
  %v4378 = vmul.f32 %v4314, %v4314
  %v4379 = vmul.f32 %v4315, %v4315
  %v4380 = vmul.f32 %v4316, %v4316
  %v4381 = vmul.f32 %v4317, %v4317
  %v4382 = vmul.f32 %v4318, %v4318
  %v4383 = vmul.f32 %v4319, %v4319
  %v4384 = vmul.f32 %v4320, %v4320
  %v4385 = vmul.f32 %v4321, %v4321
  %v4386 = vmul.f32 %v4322, %v4322
  %v4387 = vmul.f32 %v4323, %v4323
  %v4388 = vmul.f32 %v4324, %v4324
  %v4389 = vmul.f32 %v4325, %v4325
  %v4390 = vmul.f32 %v4326, %v4326
  %v4391 = vmul.f32 %v4327, %v4327
  %v4392 = vmul.f32 %v4328, %v4328
  %v4393 = vmul.f32 %v4329, %v4329
  %v4394 = vmul.f32 %v4330, %v4330
  %v4395 = vsel %vm4132, %v4331, 0.0
  %v4396 = vsel %vm4132, %v4332, 0.0
  %v4397 = vadd.f32 %v4395, %v4396
  %v4398 = vsel %vm4132, %v4333, 0.0
  %v4399 = vadd.f32 %v4397, %v4398
  %v4400 = vsel %vm4132, %v4334, 0.0
  %v4401 = vadd.f32 %v4399, %v4400
  %v4402 = vsel %vm4132, %v4335, 0.0
  %v4403 = vadd.f32 %v4401, %v4402
  %v4404 = vsel %vm4132, %v4336, 0.0
  %v4405 = vadd.f32 %v4403, %v4404
  %v4406 = vsel %vm4132, %v4337, 0.0
  %v4407 = vadd.f32 %v4405, %v4406
  %v4408 = vsel %vm4132, %v4338, 0.0
  %v4409 = vadd.f32 %v4407, %v4408
  %v4410 = vsel %vm4132, %v4339, 0.0
  %v4411 = vadd.f32 %v4409, %v4410
  %v4412 = vsel %vm4132, %v4340, 0.0
  %v4413 = vadd.f32 %v4411, %v4412
  %v4414 = vsel %vm4132, %v4341, 0.0
  %v4415 = vadd.f32 %v4413, %v4414
  %v4416 = vsel %vm4132, %v4342, 0.0
  %v4417 = vadd.f32 %v4415, %v4416
  %v4418 = vsel %vm4132, %v4343, 0.0
  %v4419 = vadd.f32 %v4417, %v4418
  %v4420 = vsel %vm4132, %v4344, 0.0
  %v4421 = vadd.f32 %v4419, %v4420
  %v4422 = vsel %vm4132, %v4345, 0.0
  %v4423 = vadd.f32 %v4421, %v4422
  %v4424 = vsel %vm4132, %v4346, 0.0
  %v4425 = vadd.f32 %v4423, %v4424
  %v4426 = vsel %vm4132, %v4347, 0.0
  %v4427 = vadd.f32 %v4425, %v4426
  %v4428 = vsel %vm4132, %v4348, 0.0
  %v4429 = vadd.f32 %v4427, %v4428
  %v4430 = vsel %vm4132, %v4349, 0.0
  %v4431 = vadd.f32 %v4429, %v4430
  %v4432 = vsel %vm4132, %v4350, 0.0
  %v4433 = vadd.f32 %v4431, %v4432
  %v4434 = vsel %vm4132, %v4351, 0.0
  %v4435 = vadd.f32 %v4433, %v4434
  %v4436 = vsel %vm4132, %v4352, 0.0
  %v4437 = vadd.f32 %v4435, %v4436
  %v4438 = vsel %vm4132, %v4353, 0.0
  %v4439 = vadd.f32 %v4437, %v4438
  %v4440 = vsel %vm4132, %v4354, 0.0
  %v4441 = vadd.f32 %v4439, %v4440
  %v4442 = vsel %vm4132, %v4355, 0.0
  %v4443 = vadd.f32 %v4441, %v4442
  %v4444 = vsel %vm4132, %v4356, 0.0
  %v4445 = vadd.f32 %v4443, %v4444
  %v4446 = vsel %vm4132, %v4357, 0.0
  %v4447 = vadd.f32 %v4445, %v4446
  %v4448 = vsel %vm4132, %v4358, 0.0
  %v4449 = vadd.f32 %v4447, %v4448
  %v4450 = vsel %vm4132, %v4359, 0.0
  %v4451 = vadd.f32 %v4449, %v4450
  %v4452 = vsel %vm4132, %v4360, 0.0
  %v4453 = vadd.f32 %v4451, %v4452
  %v4454 = vsel %vm4132, %v4361, 0.0
  %v4455 = vadd.f32 %v4453, %v4454
  %v4456 = vsel %vm4132, %v4362, 0.0
  %v4457 = vadd.f32 %v4455, %v4456
  %v4458 = vsel %vm4132, %v4363, 0.0
  %v4459 = vadd.f32 %v4457, %v4458
  %v4460 = vsel %vm4132, %v4364, 0.0
  %v4461 = vadd.f32 %v4459, %v4460
  %v4462 = vsel %vm4132, %v4365, 0.0
  %v4463 = vadd.f32 %v4461, %v4462
  %v4464 = vsel %vm4132, %v4366, 0.0
  %v4465 = vadd.f32 %v4463, %v4464
  %v4466 = vsel %vm4132, %v4367, 0.0
  %v4467 = vadd.f32 %v4465, %v4466
  %v4468 = vsel %vm4132, %v4368, 0.0
  %v4469 = vadd.f32 %v4467, %v4468
  %v4470 = vsel %vm4132, %v4369, 0.0
  %v4471 = vadd.f32 %v4469, %v4470
  %v4472 = vsel %vm4132, %v4370, 0.0
  %v4473 = vadd.f32 %v4471, %v4472
  %v4474 = vsel %vm4132, %v4371, 0.0
  %v4475 = vadd.f32 %v4473, %v4474
  %v4476 = vsel %vm4132, %v4372, 0.0
  %v4477 = vadd.f32 %v4475, %v4476
  %v4478 = vsel %vm4132, %v4373, 0.0
  %v4479 = vadd.f32 %v4477, %v4478
  %v4480 = vsel %vm4132, %v4374, 0.0
  %v4481 = vadd.f32 %v4479, %v4480
  %v4482 = vsel %vm4132, %v4375, 0.0
  %v4483 = vadd.f32 %v4481, %v4482
  %v4484 = vsel %vm4132, %v4376, 0.0
  %v4485 = vadd.f32 %v4483, %v4484
  %v4486 = vsel %vm4132, %v4377, 0.0
  %v4487 = vadd.f32 %v4485, %v4486
  %v4488 = vsel %vm4132, %v4378, 0.0
  %v4489 = vadd.f32 %v4487, %v4488
  %v4490 = vsel %vm4132, %v4379, 0.0
  %v4491 = vadd.f32 %v4489, %v4490
  %v4492 = vsel %vm4132, %v4380, 0.0
  %v4493 = vadd.f32 %v4491, %v4492
  %v4494 = vsel %vm4132, %v4381, 0.0
  %v4495 = vadd.f32 %v4493, %v4494
  %v4496 = vsel %vm4132, %v4382, 0.0
  %v4497 = vadd.f32 %v4495, %v4496
  %v4498 = vsel %vm4132, %v4383, 0.0
  %v4499 = vadd.f32 %v4497, %v4498
  %v4500 = vsel %vm4132, %v4384, 0.0
  %v4501 = vadd.f32 %v4499, %v4500
  %v4502 = vsel %vm4132, %v4385, 0.0
  %v4503 = vadd.f32 %v4501, %v4502
  %v4504 = vsel %vm4132, %v4386, 0.0
  %v4505 = vadd.f32 %v4503, %v4504
  %v4506 = vsel %vm4132, %v4387, 0.0
  %v4507 = vadd.f32 %v4505, %v4506
  %v4508 = vsel %vm4132, %v4388, 0.0
  %v4509 = vadd.f32 %v4507, %v4508
  %v4510 = vsel %vm4132, %v4389, 0.0
  %v4511 = vadd.f32 %v4509, %v4510
  %v4512 = vsel %vm4132, %v4390, 0.0
  %v4513 = vadd.f32 %v4511, %v4512
  %v4514 = vsel %vm4132, %v4391, 0.0
  %v4515 = vadd.f32 %v4513, %v4514
  %v4516 = vsel %vm4132, %v4392, 0.0
  %v4517 = vadd.f32 %v4515, %v4516
  %v4518 = vsel %vm4132, %v4393, 0.0
  %v4519 = vadd.f32 %v4517, %v4518
  %v4520 = vsel %vm4132, %v4394, 0.0
  %v4521 = vadd.f32 %v4519, %v4520
  %v4522 = vrot.slane %v4521, 4
  %v4523 = vadd.f32 %v4521, %v4522
  %v4524 = vrot.slane %v4523, 2
  %v4525 = vadd.f32 %v4523, %v4524
  %v4526 = vrot.slane %v4525, 1
  %v4527 = vadd.f32 %v4525, %v4526
  %v4528 = vmul.f32 %v4527, 0.001953125
  %v4529 = vadd.f32 %v4528, 1e-05
  %v4530 = vrsqrt.pop %v4529
  %v4531 = vmul.f32 %v4267, %v4530
  %v4532 = vmul.f32 %v4268, %v4530
  %v4533 = vmul.f32 %v4269, %v4530
  %v4534 = vmul.f32 %v4270, %v4530
  %v4535 = vmul.f32 %v4271, %v4530
  %v4536 = vmul.f32 %v4272, %v4530
  %v4537 = vmul.f32 %v4273, %v4530
  %v4538 = vmul.f32 %v4274, %v4530
  %v4539 = vmul.f32 %v4275, %v4530
  %v4540 = vmul.f32 %v4276, %v4530
  %v4541 = vmul.f32 %v4277, %v4530
  %v4542 = vmul.f32 %v4278, %v4530
  %v4543 = vmul.f32 %v4279, %v4530
  %v4544 = vmul.f32 %v4280, %v4530
  %v4545 = vmul.f32 %v4281, %v4530
  %v4546 = vmul.f32 %v4282, %v4530
  %v4547 = vmul.f32 %v4283, %v4530
  %v4548 = vmul.f32 %v4284, %v4530
  %v4549 = vmul.f32 %v4285, %v4530
  %v4550 = vmul.f32 %v4286, %v4530
  %v4551 = vmul.f32 %v4287, %v4530
  %v4552 = vmul.f32 %v4288, %v4530
  %v4553 = vmul.f32 %v4289, %v4530
  %v4554 = vmul.f32 %v4290, %v4530
  %v4555 = vmul.f32 %v4291, %v4530
  %v4556 = vmul.f32 %v4292, %v4530
  %v4557 = vmul.f32 %v4293, %v4530
  %v4558 = vmul.f32 %v4294, %v4530
  %v4559 = vmul.f32 %v4295, %v4530
  %v4560 = vmul.f32 %v4296, %v4530
  %v4561 = vmul.f32 %v4297, %v4530
  %v4562 = vmul.f32 %v4298, %v4530
  %v4563 = vmul.f32 %v4299, %v4530
  %v4564 = vmul.f32 %v4300, %v4530
  %v4565 = vmul.f32 %v4301, %v4530
  %v4566 = vmul.f32 %v4302, %v4530
  %v4567 = vmul.f32 %v4303, %v4530
  %v4568 = vmul.f32 %v4304, %v4530
  %v4569 = vmul.f32 %v4305, %v4530
  %v4570 = vmul.f32 %v4306, %v4530
  %v4571 = vmul.f32 %v4307, %v4530
  %v4572 = vmul.f32 %v4308, %v4530
  %v4573 = vmul.f32 %v4309, %v4530
  %v4574 = vmul.f32 %v4310, %v4530
  %v4575 = vmul.f32 %v4311, %v4530
  %v4576 = vmul.f32 %v4312, %v4530
  %v4577 = vmul.f32 %v4313, %v4530
  %v4578 = vmul.f32 %v4314, %v4530
  %v4579 = vmul.f32 %v4315, %v4530
  %v4580 = vmul.f32 %v4316, %v4530
  %v4581 = vmul.f32 %v4317, %v4530
  %v4582 = vmul.f32 %v4318, %v4530
  %v4583 = vmul.f32 %v4319, %v4530
  %v4584 = vmul.f32 %v4320, %v4530
  %v4585 = vmul.f32 %v4321, %v4530
  %v4586 = vmul.f32 %v4322, %v4530
  %v4587 = vmul.f32 %v4323, %v4530
  %v4588 = vmul.f32 %v4324, %v4530
  %v4589 = vmul.f32 %v4325, %v4530
  %v4590 = vmul.f32 %v4326, %v4530
  %v4591 = vmul.f32 %v4327, %v4530
  %v4592 = vmul.f32 %v4328, %v4530
  %v4593 = vmul.f32 %v4329, %v4530
  %v4594 = vmul.f32 %v4330, %v4530
  %v4595 = vld [vmem:[%s5] sm:$0x1]
  %v4597 = vlaneseq
  %v4598 = vshrl.u32 %v4597, 7
  %v4599 = vsub.s32 0, %v4598
  %v4600 = vrot.slane %v4595, %v4599
  %v4602 = vmul.f32 %v4531, %v4600
  %v4603 = vmul.f32 %v4532, %v4600
  %v4604 = vmul.f32 %v4533, %v4600
  %v4605 = vmul.f32 %v4534, %v4600
  %v4606 = vmul.f32 %v4535, %v4600
  %v4607 = vmul.f32 %v4536, %v4600
  %v4608 = vmul.f32 %v4537, %v4600
  %v4609 = vmul.f32 %v4538, %v4600
  %v4610 = vmul.f32 %v4539, %v4600
  %v4611 = vmul.f32 %v4540, %v4600
  %v4612 = vmul.f32 %v4541, %v4600
  %v4613 = vmul.f32 %v4542, %v4600
  %v4614 = vmul.f32 %v4543, %v4600
  %v4615 = vmul.f32 %v4544, %v4600
  %v4616 = vmul.f32 %v4545, %v4600
  %v4617 = vmul.f32 %v4546, %v4600
  %v4618 = vmul.f32 %v4547, %v4600
  %v4619 = vmul.f32 %v4548, %v4600
  %v4620 = vmul.f32 %v4549, %v4600
  %v4621 = vmul.f32 %v4550, %v4600
  %v4622 = vmul.f32 %v4551, %v4600
  %v4623 = vmul.f32 %v4552, %v4600
  %v4624 = vmul.f32 %v4553, %v4600
  %v4625 = vmul.f32 %v4554, %v4600
  %v4626 = vmul.f32 %v4555, %v4600
  %v4627 = vmul.f32 %v4556, %v4600
  %v4628 = vmul.f32 %v4557, %v4600
  %v4629 = vmul.f32 %v4558, %v4600
  %v4630 = vmul.f32 %v4559, %v4600
  %v4631 = vmul.f32 %v4560, %v4600
  %v4632 = vmul.f32 %v4561, %v4600
  %v4633 = vmul.f32 %v4562, %v4600
  %v4634 = vmul.f32 %v4563, %v4600
  %v4635 = vmul.f32 %v4564, %v4600
  %v4636 = vmul.f32 %v4565, %v4600
  %v4637 = vmul.f32 %v4566, %v4600
  %v4638 = vmul.f32 %v4567, %v4600
  %v4639 = vmul.f32 %v4568, %v4600
  %v4640 = vmul.f32 %v4569, %v4600
  %v4641 = vmul.f32 %v4570, %v4600
  %v4642 = vmul.f32 %v4571, %v4600
  %v4643 = vmul.f32 %v4572, %v4600
  %v4644 = vmul.f32 %v4573, %v4600
  %v4645 = vmul.f32 %v4574, %v4600
  %v4646 = vmul.f32 %v4575, %v4600
  %v4647 = vmul.f32 %v4576, %v4600
  %v4648 = vmul.f32 %v4577, %v4600
  %v4649 = vmul.f32 %v4578, %v4600
  %v4650 = vmul.f32 %v4579, %v4600
  %v4651 = vmul.f32 %v4580, %v4600
  %v4652 = vmul.f32 %v4581, %v4600
  %v4653 = vmul.f32 %v4582, %v4600
  %v4654 = vmul.f32 %v4583, %v4600
  %v4655 = vmul.f32 %v4584, %v4600
  %v4656 = vmul.f32 %v4585, %v4600
  %v4657 = vmul.f32 %v4586, %v4600
  %v4658 = vmul.f32 %v4587, %v4600
  %v4659 = vmul.f32 %v4588, %v4600
  %v4660 = vmul.f32 %v4589, %v4600
  %v4661 = vmul.f32 %v4590, %v4600
  %v4662 = vmul.f32 %v4591, %v4600
  %v4663 = vmul.f32 %v4592, %v4600
  %v4664 = vmul.f32 %v4593, %v4600
  %v4665 = vmul.f32 %v4594, %v4600
  %v4666 = vld [vmem:[%s6] sm:$0x1]
  %v4668 = vlaneseq
  %v4669 = vshrl.u32 %v4668, 7
  %v4670 = vsub.s32 0, %v4669
  %v4671 = vrot.slane %v4666, %v4670
  %v4673 = vadd.f32 %v4602, %v4671
  %v4674 = vadd.f32 %v4603, %v4671
  %v4675 = vadd.f32 %v4604, %v4671
  %v4676 = vadd.f32 %v4605, %v4671
  %v4677 = vadd.f32 %v4606, %v4671
  %v4678 = vadd.f32 %v4607, %v4671
  %v4679 = vadd.f32 %v4608, %v4671
  %v4680 = vadd.f32 %v4609, %v4671
  %v4681 = vadd.f32 %v4610, %v4671
  %v4682 = vadd.f32 %v4611, %v4671
  %v4683 = vadd.f32 %v4612, %v4671
  %v4684 = vadd.f32 %v4613, %v4671
  %v4685 = vadd.f32 %v4614, %v4671
  %v4686 = vadd.f32 %v4615, %v4671
  %v4687 = vadd.f32 %v4616, %v4671
  %v4688 = vadd.f32 %v4617, %v4671
  %v4689 = vadd.f32 %v4618, %v4671
  %v4690 = vadd.f32 %v4619, %v4671
  %v4691 = vadd.f32 %v4620, %v4671
  %v4692 = vadd.f32 %v4621, %v4671
  %v4693 = vadd.f32 %v4622, %v4671
  %v4694 = vadd.f32 %v4623, %v4671
  %v4695 = vadd.f32 %v4624, %v4671
  %v4696 = vadd.f32 %v4625, %v4671
  %v4697 = vadd.f32 %v4626, %v4671
  %v4698 = vadd.f32 %v4627, %v4671
  %v4699 = vadd.f32 %v4628, %v4671
  %v4700 = vadd.f32 %v4629, %v4671
  %v4701 = vadd.f32 %v4630, %v4671
  %v4702 = vadd.f32 %v4631, %v4671
  %v4703 = vadd.f32 %v4632, %v4671
  %v4704 = vadd.f32 %v4633, %v4671
  %v4705 = vadd.f32 %v4634, %v4671
  %v4706 = vadd.f32 %v4635, %v4671
  %v4707 = vadd.f32 %v4636, %v4671
  %v4708 = vadd.f32 %v4637, %v4671
  %v4709 = vadd.f32 %v4638, %v4671
  %v4710 = vadd.f32 %v4639, %v4671
  %v4711 = vadd.f32 %v4640, %v4671
  %v4712 = vadd.f32 %v4641, %v4671
  %v4713 = vadd.f32 %v4642, %v4671
  %v4714 = vadd.f32 %v4643, %v4671
  %v4715 = vadd.f32 %v4644, %v4671
  %v4716 = vadd.f32 %v4645, %v4671
  %v4717 = vadd.f32 %v4646, %v4671
  %v4718 = vadd.f32 %v4647, %v4671
  %v4719 = vadd.f32 %v4648, %v4671
  %v4720 = vadd.f32 %v4649, %v4671
  %v4721 = vadd.f32 %v4650, %v4671
  %v4722 = vadd.f32 %v4651, %v4671
  %v4723 = vadd.f32 %v4652, %v4671
  %v4724 = vadd.f32 %v4653, %v4671
  %v4725 = vadd.f32 %v4654, %v4671
  %v4726 = vadd.f32 %v4655, %v4671
  %v4727 = vadd.f32 %v4656, %v4671
  %v4728 = vadd.f32 %v4657, %v4671
  %v4729 = vadd.f32 %v4658, %v4671
  %v4730 = vadd.f32 %v4659, %v4671
  %v4731 = vadd.f32 %v4660, %v4671
  %v4732 = vadd.f32 %v4661, %v4671
  %v4733 = vadd.f32 %v4662, %v4671
  %v4734 = vadd.f32 %v4663, %v4671
  %v4735 = vadd.f32 %v4664, %v4671
  %v4736 = vadd.f32 %v4665, %v4671
  %v4737 = vmax.f32 %v4673, 0.0
  %v4738 = vmax.f32 %v4674, 0.0
  %v4739 = vmax.f32 %v4675, 0.0
  %v4740 = vmax.f32 %v4676, 0.0
  %v4741 = vmax.f32 %v4677, 0.0
  %v4742 = vmax.f32 %v4678, 0.0
  %v4743 = vmax.f32 %v4679, 0.0
  %v4744 = vmax.f32 %v4680, 0.0
  %v4745 = vmax.f32 %v4681, 0.0
  %v4746 = vmax.f32 %v4682, 0.0
  %v4747 = vmax.f32 %v4683, 0.0
  %v4748 = vmax.f32 %v4684, 0.0
  %v4749 = vmax.f32 %v4685, 0.0
  %v4750 = vmax.f32 %v4686, 0.0
  %v4751 = vmax.f32 %v4687, 0.0
  %v4752 = vmax.f32 %v4688, 0.0
  %v4753 = vmax.f32 %v4689, 0.0
  %v4754 = vmax.f32 %v4690, 0.0
  %v4755 = vmax.f32 %v4691, 0.0
  %v4756 = vmax.f32 %v4692, 0.0
  %v4757 = vmax.f32 %v4693, 0.0
  %v4758 = vmax.f32 %v4694, 0.0
  %v4759 = vmax.f32 %v4695, 0.0
  %v4760 = vmax.f32 %v4696, 0.0
  %v4761 = vmax.f32 %v4697, 0.0
  %v4762 = vmax.f32 %v4698, 0.0
  %v4763 = vmax.f32 %v4699, 0.0
  %v4764 = vmax.f32 %v4700, 0.0
  %v4765 = vmax.f32 %v4701, 0.0
  %v4766 = vmax.f32 %v4702, 0.0
  %v4767 = vmax.f32 %v4703, 0.0
  %v4768 = vmax.f32 %v4704, 0.0
  %v4769 = vmax.f32 %v4705, 0.0
  %v4770 = vmax.f32 %v4706, 0.0
  %v4771 = vmax.f32 %v4707, 0.0
  %v4772 = vmax.f32 %v4708, 0.0
  %v4773 = vmax.f32 %v4709, 0.0
  %v4774 = vmax.f32 %v4710, 0.0
  %v4775 = vmax.f32 %v4711, 0.0
  %v4776 = vmax.f32 %v4712, 0.0
  %v4777 = vmax.f32 %v4713, 0.0
  %v4778 = vmax.f32 %v4714, 0.0
  %v4779 = vmax.f32 %v4715, 0.0
  %v4780 = vmax.f32 %v4716, 0.0
  %v4781 = vmax.f32 %v4717, 0.0
  %v4782 = vmax.f32 %v4718, 0.0
  %v4783 = vmax.f32 %v4719, 0.0
  %v4784 = vmax.f32 %v4720, 0.0
  %v4785 = vmax.f32 %v4721, 0.0
  %v4786 = vmax.f32 %v4722, 0.0
  %v4787 = vmax.f32 %v4723, 0.0
  %v4788 = vmax.f32 %v4724, 0.0
  %v4789 = vmax.f32 %v4725, 0.0
  %v4790 = vmax.f32 %v4726, 0.0
  %v4791 = vmax.f32 %v4727, 0.0
  %v4792 = vmax.f32 %v4728, 0.0
  %v4793 = vmax.f32 %v4729, 0.0
  %v4794 = vmax.f32 %v4730, 0.0
  %v4795 = vmax.f32 %v4731, 0.0
  %v4796 = vmax.f32 %v4732, 0.0
  %v4797 = vmax.f32 %v4733, 0.0
  %v4798 = vmax.f32 %v4734, 0.0
  %v4799 = vmax.f32 %v4735, 0.0
  %v4800 = vmax.f32 %v4736, 0.0
  %4801 = vst.msk [vmem:[#allocation3] sm:$0xff] %vm4132, 0.0
  %4802 = vst.msk [vmem:[#allocation3 + $0x8] sm:$0xff] %vm4132, 0.0
  %vm4803 = vcmask 58368
  %4804 = vst.msk [vmem:[#allocation3 + $0x10] sm:$0x3] %vm4803, 0.0
  %4805 = vst.msk [vmem:[#allocation3 + $0x18] sm:$0xff] %vm4132, 0.0
  %4806 = vst.msk [vmem:[#allocation3 + $0x20] sm:$0xff] %vm4132, 0.0
  %4807 = vst.msk [vmem:[#allocation3 + $0x28] sm:$0x3] %vm4803, 0.0
  %4808 = vst.msk [vmem:[#allocation3 + $0x30] sm:$0xff] %vm4132, 0.0
  %4809 = vst.msk [vmem:[#allocation3 + $0x38] sm:$0xff] %vm4132, 0.0
  %4810 = vst.msk [vmem:[#allocation3 + $0x40] sm:$0x3] %vm4803, 0.0
  %4811 = vst.msk [vmem:[#allocation3 + $0x48] sm:$0xff] %vm4132, 0.0
  %4812 = vst.msk [vmem:[#allocation3 + $0x50] sm:$0xff] %vm4132, 0.0
  %4813 = vst.msk [vmem:[#allocation3 + $0x58] sm:$0x3] %vm4803, 0.0
  %4814 = vst.msk [vmem:[#allocation3 + $0x60] sm:$0xff] %vm4132, 0.0
  %4815 = vst.msk [vmem:[#allocation3 + $0x68] sm:$0xff] %vm4132, 0.0
  %4816 = vst.msk [vmem:[#allocation3 + $0x70] sm:$0x3] %vm4803, 0.0
  %4817 = vst.msk [vmem:[#allocation3 + $0x78] sm:$0xff] %vm4132, 0.0
  %4818 = vst.msk [vmem:[#allocation3 + $0x80] sm:$0xff] %vm4132, 0.0
  %4819 = vst.msk [vmem:[#allocation3 + $0x88] sm:$0x3] %vm4803, 0.0
  %4820 = vst.msk [vmem:[#allocation3 + $0x90] sm:$0xff] %vm4132, 0.0
  %4821 = vst.msk [vmem:[#allocation3 + $0x98] sm:$0xff] %vm4132, 0.0
  %4822 = vst.msk [vmem:[#allocation3 + $0xa0] sm:$0x3] %vm4803, 0.0
  %4823 = vst.msk [vmem:[#allocation3 + $0xa8] sm:$0xff] %vm4132, 0.0
  %4824 = vst.msk [vmem:[#allocation3 + $0xb0] sm:$0xff] %vm4132, 0.0
  %4825 = vst.msk [vmem:[#allocation3 + $0xb8] sm:$0x3] %vm4803, 0.0
  %4826 = vst.msk [vmem:[#allocation3 + $0xc0] sm:$0xff] %vm4132, 0.0
  %4827 = vst.msk [vmem:[#allocation3 + $0xc8] sm:$0xff] %vm4132, 0.0
  %4828 = vst.msk [vmem:[#allocation3 + $0xd0] sm:$0x3] %vm4803, 0.0
  %4829 = vst.msk [vmem:[#allocation3 + $0xd8] sm:$0xff] %vm4132, 0.0
  %4830 = vst.msk [vmem:[#allocation3 + $0xe0] sm:$0xff] %vm4132, 0.0
  %4831 = vst.msk [vmem:[#allocation3 + $0xe8] sm:$0x3] %vm4803, 0.0
  %4832 = vst.msk [vmem:[#allocation3 + $0xf0] sm:$0xff] %vm4132, 0.0
  %4833 = vst.msk [vmem:[#allocation3 + $0xf8] sm:$0xff] %vm4132, 0.0
  %4834 = vst.msk [vmem:[#allocation3 + $0x100] sm:$0x3] %vm4803, 0.0
  %4835 = vst.msk [vmem:[#allocation3 + $0x108] sm:$0xff] %vm4132, 0.0
  %4836 = vst.msk [vmem:[#allocation3 + $0x110] sm:$0xff] %vm4132, 0.0
  %4837 = vst.msk [vmem:[#allocation3 + $0x118] sm:$0x3] %vm4803, 0.0
  %4838 = vst.msk [vmem:[#allocation3 + $0x120] sm:$0xff] %vm4132, 0.0
  %4839 = vst.msk [vmem:[#allocation3 + $0x128] sm:$0xff] %vm4132, 0.0
  %4840 = vst.msk [vmem:[#allocation3 + $0x130] sm:$0x3] %vm4803, 0.0
  %4841 = vst.msk [vmem:[#allocation3 + $0x138] sm:$0xff] %vm4132, 0.0
  %4842 = vst.msk [vmem:[#allocation3 + $0x140] sm:$0xff] %vm4132, 0.0
  %4843 = vst.msk [vmem:[#allocation3 + $0x148] sm:$0x3] %vm4803, 0.0
  %4844 = vst.msk [vmem:[#allocation3 + $0x150] sm:$0xff] %vm4132, 0.0
  %4845 = vst.msk [vmem:[#allocation3 + $0x158] sm:$0xff] %vm4132, 0.0
  %4846 = vst.msk [vmem:[#allocation3 + $0x160] sm:$0x3] %vm4803, 0.0
  %4847 = vst.msk [vmem:[#allocation3 + $0x168] sm:$0xff] %vm4132, 0.0
  %4848 = vst.msk [vmem:[#allocation3 + $0x170] sm:$0xff] %vm4132, 0.0
  %4849 = vst.msk [vmem:[#allocation3 + $0x178] sm:$0x3] %vm4803, 0.0
  %4850 = vst.msk [vmem:[#allocation3 + $0x180] sm:$0xff] %vm4132, 0.0
  %4851 = vst.msk [vmem:[#allocation3 + $0x188] sm:$0xff] %vm4132, 0.0
  %4852 = vst.msk [vmem:[#allocation3 + $0x190] sm:$0x3] %vm4803, 0.0
  %4853 = vst.msk [vmem:[#allocation3 + $0x198] sm:$0xff] %vm4132, 0.0
  %4854 = vst.msk [vmem:[#allocation3 + $0x1a0] sm:$0xff] %vm4132, 0.0
  %4855 = vst.msk [vmem:[#allocation3 + $0x1a8] sm:$0x3] %vm4803, 0.0
  %4856 = vst.msk [vmem:[#allocation3 + $0x1b0] sm:$0xff] %vm4132, 0.0
  %4857 = vst.msk [vmem:[#allocation3 + $0x1b8] sm:$0xff] %vm4132, 0.0
  %4858 = vst.msk [vmem:[#allocation3 + $0x1c0] sm:$0x3] %vm4803, 0.0
  %4859 = vst.msk [vmem:[#allocation3 + $0x1c8] sm:$0xff] %vm4132, 0.0
  %4860 = vst.msk [vmem:[#allocation3 + $0x1d0] sm:$0xff] %vm4132, 0.0
  %4861 = vst.msk [vmem:[#allocation3 + $0x1d8] sm:$0x3] %vm4803, 0.0
  %4862 = vst.msk [vmem:[#allocation3 + $0x1e0] sm:$0xff] %vm4132, 0.0
  %4863 = vst.msk [vmem:[#allocation3 + $0x1e8] sm:$0xff] %vm4132, 0.0
  %4864 = vst.msk [vmem:[#allocation3 + $0x1f0] sm:$0x3] %vm4803, 0.0
  %4865 = vst.msk [vmem:[#allocation3 + $0x1f8] sm:$0xff] %vm4132, 0.0
  %4866 = vst.msk [vmem:[#allocation3 + $0x200] sm:$0xff] %vm4132, 0.0
  %4867 = vst.msk [vmem:[#allocation3 + $0x208] sm:$0x3] %vm4803, 0.0
  %4868 = vst.msk [vmem:[#allocation3 + $0x210] sm:$0xff] %vm4132, 0.0
  %4869 = vst.msk [vmem:[#allocation3 + $0x218] sm:$0xff] %vm4132, 0.0
  %4870 = vst.msk [vmem:[#allocation3 + $0x220] sm:$0x3] %vm4803, 0.0
  %4871 = vst.msk [vmem:[#allocation3 + $0x228] sm:$0xff] %vm4132, 0.0
  %4872 = vst.msk [vmem:[#allocation3 + $0x230] sm:$0xff] %vm4132, 0.0
  %4873 = vst.msk [vmem:[#allocation3 + $0x238] sm:$0x3] %vm4803, 0.0
  %4874 = vst.msk [vmem:[#allocation3 + $0x240] sm:$0xff] %vm4132, 0.0
  %4875 = vst.msk [vmem:[#allocation3 + $0x248] sm:$0xff] %vm4132, 0.0
  %4876 = vst.msk [vmem:[#allocation3 + $0x250] sm:$0x3] %vm4803, 0.0
  %4877 = vst.msk [vmem:[#allocation3 + $0x258] sm:$0xff] %vm4132, 0.0
  %4878 = vst.msk [vmem:[#allocation3 + $0x260] sm:$0xff] %vm4132, 0.0
  %4879 = vst.msk [vmem:[#allocation3 + $0x268] sm:$0x3] %vm4803, 0.0
  %4880 = vst.msk [vmem:[#allocation3 + $0x270] sm:$0xff] %vm4132, 0.0
  %4881 = vst.msk [vmem:[#allocation3 + $0x278] sm:$0xff] %vm4132, 0.0
  %4882 = vst.msk [vmem:[#allocation3 + $0x280] sm:$0x3] %vm4803, 0.0
  %4883 = vst.msk [vmem:[#allocation3 + $0x288] sm:$0xff] %vm4132, 0.0
  %4884 = vst.msk [vmem:[#allocation3 + $0x290] sm:$0xff] %vm4132, 0.0
  %4885 = vst.msk [vmem:[#allocation3 + $0x298] sm:$0x3] %vm4803, 0.0
  %4886 = vst.msk [vmem:[#allocation3 + $0x2a0] sm:$0xff] %vm4132, 0.0
  %4887 = vst.msk [vmem:[#allocation3 + $0x2a8] sm:$0xff] %vm4132, 0.0
  %4888 = vst.msk [vmem:[#allocation3 + $0x2b0] sm:$0x3] %vm4803, 0.0
  %4889 = vst.msk [vmem:[#allocation3 + $0x2b8] sm:$0xff] %vm4132, 0.0
  %4890 = vst.msk [vmem:[#allocation3 + $0x2c0] sm:$0xff] %vm4132, 0.0
  %4891 = vst.msk [vmem:[#allocation3 + $0x2c8] sm:$0x3] %vm4803, 0.0
  %4892 = vst.msk [vmem:[#allocation3 + $0x2d0] sm:$0xff] %vm4132, 0.0
  %4893 = vst.msk [vmem:[#allocation3 + $0x2d8] sm:$0xff] %vm4132, 0.0
  %4894 = vst.msk [vmem:[#allocation3 + $0x2e0] sm:$0x3] %vm4803, 0.0
  %4895 = vst.msk [vmem:[#allocation3 + $0x2e8] sm:$0xff] %vm4132, 0.0
  %4896 = vst.msk [vmem:[#allocation3 + $0x2f0] sm:$0xff] %vm4132, 0.0
  %4897 = vst.msk [vmem:[#allocation3 + $0x2f8] sm:$0x3] %vm4803, 0.0
  %4898 = vst.msk [vmem:[#allocation3 + $0x300] sm:$0xff] %vm4132, 0.0
  %4899 = vst.msk [vmem:[#allocation3 + $0x308] sm:$0xff] %vm4132, 0.0
  %4900 = vst.msk [vmem:[#allocation3 + $0x310] sm:$0x3] %vm4803, 0.0
  %4901 = vst.msk [vmem:[#allocation3 + $0x318] sm:$0xff] %vm4132, 0.0
  %4902 = vst.msk [vmem:[#allocation3 + $0x320] sm:$0xff] %vm4132, 0.0
  %4903 = vst.msk [vmem:[#allocation3 + $0x328] sm:$0x3] %vm4803, 0.0
  %4904 = vst.msk [vmem:[#allocation3 + $0x330] sm:$0xff] %vm4132, 0.0
  %4905 = vst.msk [vmem:[#allocation3 + $0x338] sm:$0xff] %vm4132, 0.0
  %4906 = vst.msk [vmem:[#allocation3 + $0x340] sm:$0x3] %vm4803, 0.0
  %4907 = vst.msk [vmem:[#allocation3 + $0x348] sm:$0xff] %vm4132, 0.0
  %4908 = vst.msk [vmem:[#allocation3 + $0x350] sm:$0xff] %vm4132, 0.0
  %4909 = vst.msk [vmem:[#allocation3 + $0x358] sm:$0x3] %vm4803, 0.0
  %s4910 = scalar_lea.vmem [#allocation3], 24
  %4911 = vst.msk [vmem:[%s4910 + $0x1] sm:$0xff] %vm4132, %v4737
  %4912 = vst.msk [vmem:[%s4910 + $0x9] sm:$0xff] %vm4132, %v4738
  %4913 = vst.msk [vmem:[%s4910 + $0x19] sm:$0xff] %vm4132, %v4739
  %4914 = vst.msk [vmem:[%s4910 + $0x21] sm:$0xff] %vm4132, %v4740
  %4915 = vst.msk [vmem:[%s4910 + $0x31] sm:$0xff] %vm4132, %v4741
  %4916 = vst.msk [vmem:[%s4910 + $0x39] sm:$0xff] %vm4132, %v4742
  %4917 = vst.msk [vmem:[%s4910 + $0x49] sm:$0xff] %vm4132, %v4743
  %4918 = vst.msk [vmem:[%s4910 + $0x51] sm:$0xff] %vm4132, %v4744
  %4919 = vst.msk [vmem:[%s4910 + $0x61] sm:$0xff] %vm4132, %v4745
  %4920 = vst.msk [vmem:[%s4910 + $0x69] sm:$0xff] %vm4132, %v4746
  %4921 = vst.msk [vmem:[%s4910 + $0x79] sm:$0xff] %vm4132, %v4747
  %4922 = vst.msk [vmem:[%s4910 + $0x81] sm:$0xff] %vm4132, %v4748
  %4923 = vst.msk [vmem:[%s4910 + $0x91] sm:$0xff] %vm4132, %v4749
  %4924 = vst.msk [vmem:[%s4910 + $0x99] sm:$0xff] %vm4132, %v4750
  %4925 = vst.msk [vmem:[%s4910 + $0xa9] sm:$0xff] %vm4132, %v4751
  %4926 = vst.msk [vmem:[%s4910 + $0xb1] sm:$0xff] %vm4132, %v4752
  %4927 = vst.msk [vmem:[%s4910 + $0xc1] sm:$0xff] %vm4132, %v4753
  %4928 = vst.msk [vmem:[%s4910 + $0xc9] sm:$0xff] %vm4132, %v4754
  %4929 = vst.msk [vmem:[%s4910 + $0xd9] sm:$0xff] %vm4132, %v4755
  %4930 = vst.msk [vmem:[%s4910 + $0xe1] sm:$0xff] %vm4132, %v4756
  %4931 = vst.msk [vmem:[%s4910 + $0xf1] sm:$0xff] %vm4132, %v4757
  %4932 = vst.msk [vmem:[%s4910 + $0xf9] sm:$0xff] %vm4132, %v4758
  %4933 = vst.msk [vmem:[%s4910 + $0x109] sm:$0xff] %vm4132, %v4759
  %4934 = vst.msk [vmem:[%s4910 + $0x111] sm:$0xff] %vm4132, %v4760
  %4935 = vst.msk [vmem:[%s4910 + $0x121] sm:$0xff] %vm4132, %v4761
  %4936 = vst.msk [vmem:[%s4910 + $0x129] sm:$0xff] %vm4132, %v4762
  %4937 = vst.msk [vmem:[%s4910 + $0x139] sm:$0xff] %vm4132, %v4763
  %4938 = vst.msk [vmem:[%s4910 + $0x141] sm:$0xff] %vm4132, %v4764
  %4939 = vst.msk [vmem:[%s4910 + $0x151] sm:$0xff] %vm4132, %v4765
  %4940 = vst.msk [vmem:[%s4910 + $0x159] sm:$0xff] %vm4132, %v4766
  %4941 = vst.msk [vmem:[%s4910 + $0x169] sm:$0xff] %vm4132, %v4767
  %4942 = vst.msk [vmem:[%s4910 + $0x171] sm:$0xff] %vm4132, %v4768
  %4943 = vst.msk [vmem:[%s4910 + $0x1b1] sm:$0xff] %vm4132, %v4769
  %4944 = vst.msk [vmem:[%s4910 + $0x1b9] sm:$0xff] %vm4132, %v4770
  %4945 = vst.msk [vmem:[%s4910 + $0x1c9] sm:$0xff] %vm4132, %v4771
  %4946 = vst.msk [vmem:[%s4910 + $0x1d1] sm:$0xff] %vm4132, %v4772
  %4947 = vst.msk [vmem:[%s4910 + $0x1e1] sm:$0xff] %vm4132, %v4773
  %4948 = vst.msk [vmem:[%s4910 + $0x1e9] sm:$0xff] %vm4132, %v4774
  %4949 = vst.msk [vmem:[%s4910 + $0x1f9] sm:$0xff] %vm4132, %v4775
  %4950 = vst.msk [vmem:[%s4910 + $0x201] sm:$0xff] %vm4132, %v4776
  %4951 = vst.msk [vmem:[%s4910 + $0x211] sm:$0xff] %vm4132, %v4777
  %4952 = vst.msk [vmem:[%s4910 + $0x219] sm:$0xff] %vm4132, %v4778
  %4953 = vst.msk [vmem:[%s4910 + $0x229] sm:$0xff] %vm4132, %v4779
  %4954 = vst.msk [vmem:[%s4910 + $0x231] sm:$0xff] %vm4132, %v4780
  %4955 = vst.msk [vmem:[%s4910 + $0x241] sm:$0xff] %vm4132, %v4781
  %4956 = vst.msk [vmem:[%s4910 + $0x249] sm:$0xff] %vm4132, %v4782
  %4957 = vst.msk [vmem:[%s4910 + $0x259] sm:$0xff] %vm4132, %v4783
  %4958 = vst.msk [vmem:[%s4910 + $0x261] sm:$0xff] %vm4132, %v4784
  %4959 = vst.msk [vmem:[%s4910 + $0x271] sm:$0xff] %vm4132, %v4785
  %4960 = vst.msk [vmem:[%s4910 + $0x279] sm:$0xff] %vm4132, %v4786
  %4961 = vst.msk [vmem:[%s4910 + $0x289] sm:$0xff] %vm4132, %v4787
  %4962 = vst.msk [vmem:[%s4910 + $0x291] sm:$0xff] %vm4132, %v4788
  %4963 = vst.msk [vmem:[%s4910 + $0x2a1] sm:$0xff] %vm4132, %v4789
  %4964 = vst.msk [vmem:[%s4910 + $0x2a9] sm:$0xff] %vm4132, %v4790
  %4965 = vst.msk [vmem:[%s4910 + $0x2b9] sm:$0xff] %vm4132, %v4791
  %4966 = vst.msk [vmem:[%s4910 + $0x2c1] sm:$0xff] %vm4132, %v4792
  %4967 = vst.msk [vmem:[%s4910 + $0x2d1] sm:$0xff] %vm4132, %v4793
  %4968 = vst.msk [vmem:[%s4910 + $0x2d9] sm:$0xff] %vm4132, %v4794
  %4969 = vst.msk [vmem:[%s4910 + $0x2e9] sm:$0xff] %vm4132, %v4795
  %4970 = vst.msk [vmem:[%s4910 + $0x2f1] sm:$0xff] %vm4132, %v4796
  %4971 = vst.msk [vmem:[%s4910 + $0x301] sm:$0xff] %vm4132, %v4797
  %4972 = vst.msk [vmem:[%s4910 + $0x309] sm:$0xff] %vm4132, %v4798
  %4973 = vst.msk [vmem:[%s4910 + $0x319] sm:$0xff] %vm4132, %v4799
  %4974 = vst.msk [vmem:[%s4910 + $0x321] sm:$0xff] %vm4132, %v4800
  %v4975 = vld [vmem:[#allocation3] sm:$0xff]
  %v4976 = vld [vmem:[#allocation3 + $0x8] sm:$0xff]
  %v4977 = vld [vmem:[#allocation3 + $0x18] sm:$0xff]
  %v4978 = vld [vmem:[#allocation3 + $0x20] sm:$0xff]
  %v4979 = vld [vmem:[#allocation3 + $0x30] sm:$0xff]
  %v4980 = vld [vmem:[#allocation3 + $0x38] sm:$0xff]
  %v4981 = vld [vmem:[#allocation3 + $0x48] sm:$0xff]
  %v4982 = vld [vmem:[#allocation3 + $0x50] sm:$0xff]
  %v4983 = vld [vmem:[#allocation3 + $0x60] sm:$0xff]
  %v4984 = vld [vmem:[#allocation3 + $0x68] sm:$0xff]
  %v4985 = vld [vmem:[#allocation3 + $0x78] sm:$0xff]
  %v4986 = vld [vmem:[#allocation3 + $0x80] sm:$0xff]
  %v4987 = vld [vmem:[#allocation3 + $0x90] sm:$0xff]
  %v4988 = vld [vmem:[#allocation3 + $0x98] sm:$0xff]
  %v4989 = vld [vmem:[#allocation3 + $0xa8] sm:$0xff]
  %v4990 = vld [vmem:[#allocation3 + $0xb0] sm:$0xff]
  %v4991 = vld [vmem:[#allocation3 + $0xc0] sm:$0xff]
  %v4992 = vld [vmem:[#allocation3 + $0xc8] sm:$0xff]
  %v4993 = vld [vmem:[#allocation3 + $0xd8] sm:$0xff]
  %v4994 = vld [vmem:[#allocation3 + $0xe0] sm:$0xff]
  %v4995 = vld [vmem:[#allocation3 + $0xf0] sm:$0xff]
  %v4996 = vld [vmem:[#allocation3 + $0xf8] sm:$0xff]
  %v4997 = vld [vmem:[#allocation3 + $0x108] sm:$0xff]
  %v4998 = vld [vmem:[#allocation3 + $0x110] sm:$0xff]
  %v4999 = vld [vmem:[#allocation3 + $0x120] sm:$0xff]
  %v5000 = vld [vmem:[#allocation3 + $0x128] sm:$0xff]
  %v5001 = vld [vmem:[#allocation3 + $0x138] sm:$0xff]
  %v5002 = vld [vmem:[#allocation3 + $0x140] sm:$0xff]
  %v5003 = vld [vmem:[#allocation3 + $0x150] sm:$0xff]
  %v5004 = vld [vmem:[#allocation3 + $0x158] sm:$0xff]
  %v5005 = vld [vmem:[#allocation3 + $0x168] sm:$0xff]
  %v5006 = vld [vmem:[#allocation3 + $0x170] sm:$0xff]
  %v5007 = vld [vmem:[#allocation3 + $0x1b0] sm:$0xff]
  %v5008 = vld [vmem:[#allocation3 + $0x1b8] sm:$0xff]
  %v5009 = vld [vmem:[#allocation3 + $0x1c8] sm:$0xff]
  %v5010 = vld [vmem:[#allocation3 + $0x1d0] sm:$0xff]
  %v5011 = vld [vmem:[#allocation3 + $0x1e0] sm:$0xff]
  %v5012 = vld [vmem:[#allocation3 + $0x1e8] sm:$0xff]
  %v5013 = vld [vmem:[#allocation3 + $0x1f8] sm:$0xff]
  %v5014 = vld [vmem:[#allocation3 + $0x200] sm:$0xff]
  %v5015 = vld [vmem:[#allocation3 + $0x210] sm:$0xff]
  %v5016 = vld [vmem:[#allocation3 + $0x218] sm:$0xff]
  %v5017 = vld [vmem:[#allocation3 + $0x228] sm:$0xff]
  %v5018 = vld [vmem:[#allocation3 + $0x230] sm:$0xff]
  %v5019 = vld [vmem:[#allocation3 + $0x240] sm:$0xff]
  %v5020 = vld [vmem:[#allocation3 + $0x248] sm:$0xff]
  %v5021 = vld [vmem:[#allocation3 + $0x258] sm:$0xff]
  %v5022 = vld [vmem:[#allocation3 + $0x260] sm:$0xff]
  %v5023 = vld [vmem:[#allocation3 + $0x270] sm:$0xff]
  %v5024 = vld [vmem:[#allocation3 + $0x278] sm:$0xff]
  %v5025 = vld [vmem:[#allocation3 + $0x288] sm:$0xff]
  %v5026 = vld [vmem:[#allocation3 + $0x290] sm:$0xff]
  %v5027 = vld [vmem:[#allocation3 + $0x2a0] sm:$0xff]
  %v5028 = vld [vmem:[#allocation3 + $0x2a8] sm:$0xff]
  %v5029 = vld [vmem:[#allocation3 + $0x2b8] sm:$0xff]
  %v5030 = vld [vmem:[#allocation3 + $0x2c0] sm:$0xff]
  %v5031 = vld [vmem:[#allocation3 + $0x2d0] sm:$0xff]
  %v5032 = vld [vmem:[#allocation3 + $0x2d8] sm:$0xff]
  %v5033 = vld [vmem:[#allocation3 + $0x2e8] sm:$0xff]
  %v5034 = vld [vmem:[#allocation3 + $0x2f0] sm:$0xff]
  %v5035 = vld [vmem:[#allocation3 + $0x300] sm:$0xff]
  %v5036 = vld [vmem:[#allocation3 + $0x308] sm:$0xff]
  %v5037 = vld [vmem:[#allocation3 + $0x318] sm:$0xff]
  %v5038 = vld [vmem:[#allocation3 + $0x320] sm:$0xff]
  %5039 = vst.msk [vmem:[#allocation5] sm:$0xff] %vm4132, %v4975
  %5040 = vst.msk [vmem:[#allocation5 + $0x8] sm:$0xff] %vm4132, %v4976
  %5041 = vst.msk [vmem:[#allocation5 + $0x10] sm:$0xff] %vm4132, %v4977
  %5042 = vst.msk [vmem:[#allocation5 + $0x18] sm:$0xff] %vm4132, %v4978
  %5043 = vst.msk [vmem:[#allocation5 + $0x20] sm:$0xff] %vm4132, %v4979
  %5044 = vst.msk [vmem:[#allocation5 + $0x28] sm:$0xff] %vm4132, %v4980
  %5045 = vst.msk [vmem:[#allocation5 + $0x30] sm:$0xff] %vm4132, %v4981
  %5046 = vst.msk [vmem:[#allocation5 + $0x38] sm:$0xff] %vm4132, %v4982
  %5047 = vst.msk [vmem:[#allocation5 + $0x40] sm:$0xff] %vm4132, %v4983
  %5048 = vst.msk [vmem:[#allocation5 + $0x48] sm:$0xff] %vm4132, %v4984
  %5049 = vst.msk [vmem:[#allocation5 + $0x50] sm:$0xff] %vm4132, %v4985
  %5050 = vst.msk [vmem:[#allocation5 + $0x58] sm:$0xff] %vm4132, %v4986
  %5051 = vst.msk [vmem:[#allocation5 + $0x60] sm:$0xff] %vm4132, %v4987
  %5052 = vst.msk [vmem:[#allocation5 + $0x68] sm:$0xff] %vm4132, %v4988
  %5053 = vst.msk [vmem:[#allocation5 + $0x70] sm:$0xff] %vm4132, %v4989
  %5054 = vst.msk [vmem:[#allocation5 + $0x78] sm:$0xff] %vm4132, %v4990
  %5055 = vst.msk [vmem:[#allocation5 + $0x80] sm:$0xff] %vm4132, %v4991
  %5056 = vst.msk [vmem:[#allocation5 + $0x88] sm:$0xff] %vm4132, %v4992
  %5057 = vst.msk [vmem:[#allocation5 + $0x90] sm:$0xff] %vm4132, %v4993
  %5058 = vst.msk [vmem:[#allocation5 + $0x98] sm:$0xff] %vm4132, %v4994
  %5059 = vst.msk [vmem:[#allocation5 + $0xa0] sm:$0xff] %vm4132, %v4995
  %5060 = vst.msk [vmem:[#allocation5 + $0xa8] sm:$0xff] %vm4132, %v4996
  %5061 = vst.msk [vmem:[#allocation5 + $0xb0] sm:$0xff] %vm4132, %v4997
  %5062 = vst.msk [vmem:[#allocation5 + $0xb8] sm:$0xff] %vm4132, %v4998
  %5063 = vst.msk [vmem:[#allocation5 + $0xc0] sm:$0xff] %vm4132, %v4999
  %5064 = vst.msk [vmem:[#allocation5 + $0xc8] sm:$0xff] %vm4132, %v5000
  %5065 = vst.msk [vmem:[#allocation5 + $0xd0] sm:$0xff] %vm4132, %v5001
  %5066 = vst.msk [vmem:[#allocation5 + $0xd8] sm:$0xff] %vm4132, %v5002
  %5067 = vst.msk [vmem:[#allocation5 + $0xe0] sm:$0xff] %vm4132, %v5003
  %5068 = vst.msk [vmem:[#allocation5 + $0xe8] sm:$0xff] %vm4132, %v5004
  %5069 = vst.msk [vmem:[#allocation5 + $0xf0] sm:$0xff] %vm4132, %v5005
  %5070 = vst.msk [vmem:[#allocation5 + $0xf8] sm:$0xff] %vm4132, %v5006
  %5071 = vst.msk [vmem:[#allocation5 + $0x100] sm:$0xff] %vm4132, %v5007
  %5072 = vst.msk [vmem:[#allocation5 + $0x108] sm:$0xff] %vm4132, %v5008
  %5073 = vst.msk [vmem:[#allocation5 + $0x110] sm:$0xff] %vm4132, %v5009
  %5074 = vst.msk [vmem:[#allocation5 + $0x118] sm:$0xff] %vm4132, %v5010
  %5075 = vst.msk [vmem:[#allocation5 + $0x120] sm:$0xff] %vm4132, %v5011
  %5076 = vst.msk [vmem:[#allocation5 + $0x128] sm:$0xff] %vm4132, %v5012
  %5077 = vst.msk [vmem:[#allocation5 + $0x130] sm:$0xff] %vm4132, %v5013
  %5078 = vst.msk [vmem:[#allocation5 + $0x138] sm:$0xff] %vm4132, %v5014
  %5079 = vst.msk [vmem:[#allocation5 + $0x140] sm:$0xff] %vm4132, %v5015
  %5080 = vst.msk [vmem:[#allocation5 + $0x148] sm:$0xff] %vm4132, %v5016
  %5081 = vst.msk [vmem:[#allocation5 + $0x150] sm:$0xff] %vm4132, %v5017
  %5082 = vst.msk [vmem:[#allocation5 + $0x158] sm:$0xff] %vm4132, %v5018
  %5083 = vst.msk [vmem:[#allocation5 + $0x160] sm:$0xff] %vm4132, %v5019
  %5084 = vst.msk [vmem:[#allocation5 + $0x168] sm:$0xff] %vm4132, %v5020
  %5085 = vst.msk [vmem:[#allocation5 + $0x170] sm:$0xff] %vm4132, %v5021
  %5086 = vst.msk [vmem:[#allocation5 + $0x178] sm:$0xff] %vm4132, %v5022
  %5087 = vst.msk [vmem:[#allocation5 + $0x180] sm:$0xff] %vm4132, %v5023
  %5088 = vst.msk [vmem:[#allocation5 + $0x188] sm:$0xff] %vm4132, %v5024
  %5089 = vst.msk [vmem:[#allocation5 + $0x190] sm:$0xff] %vm4132, %v5025
  %5090 = vst.msk [vmem:[#allocation5 + $0x198] sm:$0xff] %vm4132, %v5026
  %5091 = vst.msk [vmem:[#allocation5 + $0x1a0] sm:$0xff] %vm4132, %v5027
  %5092 = vst.msk [vmem:[#allocation5 + $0x1a8] sm:$0xff] %vm4132, %v5028
  %5093 = vst.msk [vmem:[#allocation5 + $0x1b0] sm:$0xff] %vm4132, %v5029
  %5094 = vst.msk [vmem:[#allocation5 + $0x1b8] sm:$0xff] %vm4132, %v5030
  %5095 = vst.msk [vmem:[#allocation5 + $0x1c0] sm:$0xff] %vm4132, %v5031
  %5096 = vst.msk [vmem:[#allocation5 + $0x1c8] sm:$0xff] %vm4132, %v5032
  %5097 = vst.msk [vmem:[#allocation5 + $0x1d0] sm:$0xff] %vm4132, %v5033
  %5098 = vst.msk [vmem:[#allocation5 + $0x1d8] sm:$0xff] %vm4132, %v5034
  %5099 = vst.msk [vmem:[#allocation5 + $0x1e0] sm:$0xff] %vm4132, %v5035
  %5100 = vst.msk [vmem:[#allocation5 + $0x1e8] sm:$0xff] %vm4132, %v5036
  %5101 = vst.msk [vmem:[#allocation5 + $0x1f0] sm:$0xff] %vm4132, %v5037
  %5102 = vst.msk [vmem:[#allocation5 + $0x1f8] sm:$0xff] %vm4132, %v5038
  %v5103 = vld [vmem:[#allocation3 + $0x1] sm:$0xff]
  %v5104 = vld [vmem:[#allocation3 + $0x9] sm:$0xff]
  %v5105 = vld [vmem:[#allocation3 + $0x19] sm:$0xff]
  %v5106 = vld [vmem:[#allocation3 + $0x21] sm:$0xff]
  %v5107 = vld [vmem:[#allocation3 + $0x31] sm:$0xff]
  %v5108 = vld [vmem:[#allocation3 + $0x39] sm:$0xff]
  %v5109 = vld [vmem:[#allocation3 + $0x49] sm:$0xff]
  %v5110 = vld [vmem:[#allocation3 + $0x51] sm:$0xff]
  %v5111 = vld [vmem:[#allocation3 + $0x61] sm:$0xff]
  %v5112 = vld [vmem:[#allocation3 + $0x69] sm:$0xff]
  %v5113 = vld [vmem:[#allocation3 + $0x79] sm:$0xff]
  %v5114 = vld [vmem:[#allocation3 + $0x81] sm:$0xff]
  %v5115 = vld [vmem:[#allocation3 + $0x91] sm:$0xff]
  %v5116 = vld [vmem:[#allocation3 + $0x99] sm:$0xff]
  %v5117 = vld [vmem:[#allocation3 + $0xa9] sm:$0xff]
  %v5118 = vld [vmem:[#allocation3 + $0xb1] sm:$0xff]
  %v5119 = vld [vmem:[#allocation3 + $0xc1] sm:$0xff]
  %v5120 = vld [vmem:[#allocation3 + $0xc9] sm:$0xff]
  %v5121 = vld [vmem:[#allocation3 + $0xd9] sm:$0xff]
  %v5122 = vld [vmem:[#allocation3 + $0xe1] sm:$0xff]
  %v5123 = vld [vmem:[#allocation3 + $0xf1] sm:$0xff]
  %v5124 = vld [vmem:[#allocation3 + $0xf9] sm:$0xff]
  %v5125 = vld [vmem:[#allocation3 + $0x109] sm:$0xff]
  %v5126 = vld [vmem:[#allocation3 + $0x111] sm:$0xff]
  %v5127 = vld [vmem:[#allocation3 + $0x121] sm:$0xff]
  %v5128 = vld [vmem:[#allocation3 + $0x129] sm:$0xff]
  %v5129 = vld [vmem:[#allocation3 + $0x139] sm:$0xff]
  %v5130 = vld [vmem:[#allocation3 + $0x141] sm:$0xff]
  %v5131 = vld [vmem:[#allocation3 + $0x151] sm:$0xff]
  %v5132 = vld [vmem:[#allocation3 + $0x159] sm:$0xff]
  %v5133 = vld [vmem:[#allocation3 + $0x169] sm:$0xff]
  %v5134 = vld [vmem:[#allocation3 + $0x171] sm:$0xff]
  %v5135 = vld [vmem:[#allocation3 + $0x1b1] sm:$0xff]
  %v5136 = vld [vmem:[#allocation3 + $0x1b9] sm:$0xff]
  %v5137 = vld [vmem:[#allocation3 + $0x1c9] sm:$0xff]
  %v5138 = vld [vmem:[#allocation3 + $0x1d1] sm:$0xff]
  %v5139 = vld [vmem:[#allocation3 + $0x1e1] sm:$0xff]
  %v5140 = vld [vmem:[#allocation3 + $0x1e9] sm:$0xff]
  %v5141 = vld [vmem:[#allocation3 + $0x1f9] sm:$0xff]
  %v5142 = vld [vmem:[#allocation3 + $0x201] sm:$0xff]
  %v5143 = vld [vmem:[#allocation3 + $0x211] sm:$0xff]
  %v5144 = vld [vmem:[#allocation3 + $0x219] sm:$0xff]
  %v5145 = vld [vmem:[#allocation3 + $0x229] sm:$0xff]
  %v5146 = vld [vmem:[#allocation3 + $0x231] sm:$0xff]
  %v5147 = vld [vmem:[#allocation3 + $0x241] sm:$0xff]
  %v5148 = vld [vmem:[#allocation3 + $0x249] sm:$0xff]
  %v5149 = vld [vmem:[#allocation3 + $0x259] sm:$0xff]
  %v5150 = vld [vmem:[#allocation3 + $0x261] sm:$0xff]
  %v5151 = vld [vmem:[#allocation3 + $0x271] sm:$0xff]
  %v5152 = vld [vmem:[#allocation3 + $0x279] sm:$0xff]
  %v5153 = vld [vmem:[#allocation3 + $0x289] sm:$0xff]
  %v5154 = vld [vmem:[#allocation3 + $0x291] sm:$0xff]
  %v5155 = vld [vmem:[#allocation3 + $0x2a1] sm:$0xff]
  %v5156 = vld [vmem:[#allocation3 + $0x2a9] sm:$0xff]
  %v5157 = vld [vmem:[#allocation3 + $0x2b9] sm:$0xff]
  %v5158 = vld [vmem:[#allocation3 + $0x2c1] sm:$0xff]
  %v5159 = vld [vmem:[#allocation3 + $0x2d1] sm:$0xff]
  %v5160 = vld [vmem:[#allocation3 + $0x2d9] sm:$0xff]
  %v5161 = vld [vmem:[#allocation3 + $0x2e9] sm:$0xff]
  %v5162 = vld [vmem:[#allocation3 + $0x2f1] sm:$0xff]
  %v5163 = vld [vmem:[#allocation3 + $0x301] sm:$0xff]
  %v5164 = vld [vmem:[#allocation3 + $0x309] sm:$0xff]
  %v5165 = vld [vmem:[#allocation3 + $0x319] sm:$0xff]
  %v5166 = vld [vmem:[#allocation3 + $0x321] sm:$0xff]
  %5231 = vrot.lane.b32.xlu0 %v5103, 8
  %v5232 = vpop.permute.xlu0 %5231
  %5233 = vrot.lane.b32.xlu0 %v5104, 8
  %v5234 = vpop.permute.xlu0 %5233
  %5235 = vrot.lane.b32.xlu0 %v5105, 8
  %v5236 = vpop.permute.xlu0 %5235
  %5237 = vrot.lane.b32.xlu0 %v5106, 8
  %v5238 = vpop.permute.xlu0 %5237
  %5239 = vrot.lane.b32.xlu0 %v5107, 8
  %v5240 = vpop.permute.xlu0 %5239
  %5241 = vrot.lane.b32.xlu0 %v5108, 8
  %v5242 = vpop.permute.xlu0 %5241
  %5243 = vrot.lane.b32.xlu0 %v5109, 8
  %v5244 = vpop.permute.xlu0 %5243
  %5245 = vrot.lane.b32.xlu0 %v5110, 8
  %v5246 = vpop.permute.xlu0 %5245
  %5247 = vrot.lane.b32.xlu0 %v5111, 8
  %v5248 = vpop.permute.xlu0 %5247
  %5249 = vrot.lane.b32.xlu0 %v5112, 8
  %v5250 = vpop.permute.xlu0 %5249
  %5251 = vrot.lane.b32.xlu0 %v5113, 8
  %v5252 = vpop.permute.xlu0 %5251
  %5253 = vrot.lane.b32.xlu0 %v5114, 8
  %v5254 = vpop.permute.xlu0 %5253
  %5255 = vrot.lane.b32.xlu0 %v5115, 8
  %v5256 = vpop.permute.xlu0 %5255
  %5257 = vrot.lane.b32.xlu0 %v5116, 8
  %v5258 = vpop.permute.xlu0 %5257
  %5259 = vrot.lane.b32.xlu0 %v5117, 8
  %v5260 = vpop.permute.xlu0 %5259
  %5261 = vrot.lane.b32.xlu0 %v5118, 8
  %v5262 = vpop.permute.xlu0 %5261
  %5263 = vrot.lane.b32.xlu0 %v5119, 8
  %v5264 = vpop.permute.xlu0 %5263
  %5265 = vrot.lane.b32.xlu0 %v5120, 8
  %v5266 = vpop.permute.xlu0 %5265
  %5267 = vrot.lane.b32.xlu0 %v5121, 8
  %v5268 = vpop.permute.xlu0 %5267
  %5269 = vrot.lane.b32.xlu0 %v5122, 8
  %v5270 = vpop.permute.xlu0 %5269
  %5271 = vrot.lane.b32.xlu0 %v5123, 8
  %v5272 = vpop.permute.xlu0 %5271
  %5273 = vrot.lane.b32.xlu0 %v5124, 8
  %v5274 = vpop.permute.xlu0 %5273
  %5275 = vrot.lane.b32.xlu0 %v5125, 8
  %v5276 = vpop.permute.xlu0 %5275
  %5277 = vrot.lane.b32.xlu0 %v5126, 8
  %v5278 = vpop.permute.xlu0 %5277
  %5279 = vrot.lane.b32.xlu0 %v5127, 8
  %v5280 = vpop.permute.xlu0 %5279
  %5281 = vrot.lane.b32.xlu0 %v5128, 8
  %v5282 = vpop.permute.xlu0 %5281
  %5283 = vrot.lane.b32.xlu0 %v5129, 8
  %v5284 = vpop.permute.xlu0 %5283
  %5285 = vrot.lane.b32.xlu0 %v5130, 8
  %v5286 = vpop.permute.xlu0 %5285
  %5287 = vrot.lane.b32.xlu0 %v5131, 8
  %v5288 = vpop.permute.xlu0 %5287
  %5289 = vrot.lane.b32.xlu0 %v5132, 8
  %v5290 = vpop.permute.xlu0 %5289
  %5291 = vrot.lane.b32.xlu0 %v5133, 8
  %v5292 = vpop.permute.xlu0 %5291
  %5293 = vrot.lane.b32.xlu0 %v5134, 8
  %v5294 = vpop.permute.xlu0 %5293
  %5295 = vrot.lane.b32.xlu0 %v5135, 8
  %v5296 = vpop.permute.xlu0 %5295
  %5297 = vrot.lane.b32.xlu0 %v5136, 8
  %v5298 = vpop.permute.xlu0 %5297
  %5299 = vrot.lane.b32.xlu0 %v5137, 8
  %v5300 = vpop.permute.xlu0 %5299
  %5301 = vrot.lane.b32.xlu0 %v5138, 8
  %v5302 = vpop.permute.xlu0 %5301
  %5303 = vrot.lane.b32.xlu0 %v5139, 8
  %v5304 = vpop.permute.xlu0 %5303
  %5305 = vrot.lane.b32.xlu0 %v5140, 8
  %v5306 = vpop.permute.xlu0 %5305
  %5307 = vrot.lane.b32.xlu0 %v5141, 8
  %v5308 = vpop.permute.xlu0 %5307
  %5309 = vrot.lane.b32.xlu0 %v5142, 8
  %v5310 = vpop.permute.xlu0 %5309
  %5311 = vrot.lane.b32.xlu0 %v5143, 8
  %v5312 = vpop.permute.xlu0 %5311
  %5313 = vrot.lane.b32.xlu0 %v5144, 8
  %v5314 = vpop.permute.xlu0 %5313
  %5315 = vrot.lane.b32.xlu0 %v5145, 8
  %v5316 = vpop.permute.xlu0 %5315
  %5317 = vrot.lane.b32.xlu0 %v5146, 8
  %v5318 = vpop.permute.xlu0 %5317
  %5319 = vrot.lane.b32.xlu0 %v5147, 8
  %v5320 = vpop.permute.xlu0 %5319
  %5321 = vrot.lane.b32.xlu0 %v5148, 8
  %v5322 = vpop.permute.xlu0 %5321
  %5323 = vrot.lane.b32.xlu0 %v5149, 8
  %v5324 = vpop.permute.xlu0 %5323
  %5325 = vrot.lane.b32.xlu0 %v5150, 8
  %v5326 = vpop.permute.xlu0 %5325
  %5327 = vrot.lane.b32.xlu0 %v5151, 8
  %v5328 = vpop.permute.xlu0 %5327
  %5329 = vrot.lane.b32.xlu0 %v5152, 8
  %v5330 = vpop.permute.xlu0 %5329
  %5331 = vrot.lane.b32.xlu0 %v5153, 8
  %v5332 = vpop.permute.xlu0 %5331
  %5333 = vrot.lane.b32.xlu0 %v5154, 8
  %v5334 = vpop.permute.xlu0 %5333
  %5335 = vrot.lane.b32.xlu0 %v5155, 8
  %v5336 = vpop.permute.xlu0 %5335
  %5337 = vrot.lane.b32.xlu0 %v5156, 8
  %v5338 = vpop.permute.xlu0 %5337
  %5339 = vrot.lane.b32.xlu0 %v5157, 8
  %v5340 = vpop.permute.xlu0 %5339
  %5341 = vrot.lane.b32.xlu0 %v5158, 8
  %v5342 = vpop.permute.xlu0 %5341
  %5343 = vrot.lane.b32.xlu0 %v5159, 8
  %v5344 = vpop.permute.xlu0 %5343
  %5345 = vrot.lane.b32.xlu0 %v5160, 8
  %v5346 = vpop.permute.xlu0 %5345
  %5347 = vrot.lane.b32.xlu0 %v5161, 8
  %v5348 = vpop.permute.xlu0 %5347
  %5349 = vrot.lane.b32.xlu0 %v5162, 8
  %v5350 = vpop.permute.xlu0 %5349
  %5351 = vrot.lane.b32.xlu0 %v5163, 8
  %v5352 = vpop.permute.xlu0 %5351
  %5353 = vrot.lane.b32.xlu0 %v5164, 8
  %v5354 = vpop.permute.xlu0 %5353
  %5355 = vrot.lane.b32.xlu0 %v5165, 8
  %v5356 = vpop.permute.xlu0 %5355
  %5357 = vrot.lane.b32.xlu0 %v5166, 8
  %v5358 = vpop.permute.xlu0 %5357
  %vm5423 = vcmask 130112
  %5424 = vst.msk [vmem:[#allocation5] sm:$0xff] %vm5423, %v5232
  %5425 = vst.msk [vmem:[#allocation5 + $0x8] sm:$0xff] %vm5423, %v5234
  %5426 = vst.msk [vmem:[#allocation5 + $0x10] sm:$0xff] %vm5423, %v5236
  %5427 = vst.msk [vmem:[#allocation5 + $0x18] sm:$0xff] %vm5423, %v5238
  %5428 = vst.msk [vmem:[#allocation5 + $0x20] sm:$0xff] %vm5423, %v5240
  %5429 = vst.msk [vmem:[#allocation5 + $0x28] sm:$0xff] %vm5423, %v5242
  %5430 = vst.msk [vmem:[#allocation5 + $0x30] sm:$0xff] %vm5423, %v5244
  %5431 = vst.msk [vmem:[#allocation5 + $0x38] sm:$0xff] %vm5423, %v5246
  %5432 = vst.msk [vmem:[#allocation5 + $0x40] sm:$0xff] %vm5423, %v5248
  %5433 = vst.msk [vmem:[#allocation5 + $0x48] sm:$0xff] %vm5423, %v5250
  %5434 = vst.msk [vmem:[#allocation5 + $0x50] sm:$0xff] %vm5423, %v5252
  %5435 = vst.msk [vmem:[#allocation5 + $0x58] sm:$0xff] %vm5423, %v5254
  %5436 = vst.msk [vmem:[#allocation5 + $0x60] sm:$0xff] %vm5423, %v5256
  %5437 = vst.msk [vmem:[#allocation5 + $0x68] sm:$0xff] %vm5423, %v5258
  %5438 = vst.msk [vmem:[#allocation5 + $0x70] sm:$0xff] %vm5423, %v5260
  %5439 = vst.msk [vmem:[#allocation5 + $0x78] sm:$0xff] %vm5423, %v5262
  %5440 = vst.msk [vmem:[#allocation5 + $0x80] sm:$0xff] %vm5423, %v5264
  %5441 = vst.msk [vmem:[#allocation5 + $0x88] sm:$0xff] %vm5423, %v5266
  %5442 = vst.msk [vmem:[#allocation5 + $0x90] sm:$0xff] %vm5423, %v5268
  %5443 = vst.msk [vmem:[#allocation5 + $0x98] sm:$0xff] %vm5423, %v5270
  %5444 = vst.msk [vmem:[#allocation5 + $0xa0] sm:$0xff] %vm5423, %v5272
  %5445 = vst.msk [vmem:[#allocation5 + $0xa8] sm:$0xff] %vm5423, %v5274
  %5446 = vst.msk [vmem:[#allocation5 + $0xb0] sm:$0xff] %vm5423, %v5276
  %5447 = vst.msk [vmem:[#allocation5 + $0xb8] sm:$0xff] %vm5423, %v5278
  %5448 = vst.msk [vmem:[#allocation5 + $0xc0] sm:$0xff] %vm5423, %v5280
  %5449 = vst.msk [vmem:[#allocation5 + $0xc8] sm:$0xff] %vm5423, %v5282
  %5450 = vst.msk [vmem:[#allocation5 + $0xd0] sm:$0xff] %vm5423, %v5284
  %5451 = vst.msk [vmem:[#allocation5 + $0xd8] sm:$0xff] %vm5423, %v5286
  %5452 = vst.msk [vmem:[#allocation5 + $0xe0] sm:$0xff] %vm5423, %v5288
  %5453 = vst.msk [vmem:[#allocation5 + $0xe8] sm:$0xff] %vm5423, %v5290
  %5454 = vst.msk [vmem:[#allocation5 + $0xf0] sm:$0xff] %vm5423, %v5292
  %5455 = vst.msk [vmem:[#allocation5 + $0xf8] sm:$0xff] %vm5423, %v5294
  %5456 = vst.msk [vmem:[#allocation5 + $0x100] sm:$0xff] %vm5423, %v5296
  %5457 = vst.msk [vmem:[#allocation5 + $0x108] sm:$0xff] %vm5423, %v5298
  %5458 = vst.msk [vmem:[#allocation5 + $0x110] sm:$0xff] %vm5423, %v5300
  %5459 = vst.msk [vmem:[#allocation5 + $0x118] sm:$0xff] %vm5423, %v5302
  %5460 = vst.msk [vmem:[#allocation5 + $0x120] sm:$0xff] %vm5423, %v5304
  %5461 = vst.msk [vmem:[#allocation5 + $0x128] sm:$0xff] %vm5423, %v5306
  %5462 = vst.msk [vmem:[#allocation5 + $0x130] sm:$0xff] %vm5423, %v5308
  %5463 = vst.msk [vmem:[#allocation5 + $0x138] sm:$0xff] %vm5423, %v5310
  %5464 = vst.msk [vmem:[#allocation5 + $0x140] sm:$0xff] %vm5423, %v5312
  %5465 = vst.msk [vmem:[#allocation5 + $0x148] sm:$0xff] %vm5423, %v5314
  %5466 = vst.msk [vmem:[#allocation5 + $0x150] sm:$0xff] %vm5423, %v5316
  %5467 = vst.msk [vmem:[#allocation5 + $0x158] sm:$0xff] %vm5423, %v5318
  %5468 = vst.msk [vmem:[#allocation5 + $0x160] sm:$0xff] %vm5423, %v5320
  %5469 = vst.msk [vmem:[#allocation5 + $0x168] sm:$0xff] %vm5423, %v5322
  %5470 = vst.msk [vmem:[#allocation5 + $0x170] sm:$0xff] %vm5423, %v5324
  %5471 = vst.msk [vmem:[#allocation5 + $0x178] sm:$0xff] %vm5423, %v5326
  %5472 = vst.msk [vmem:[#allocation5 + $0x180] sm:$0xff] %vm5423, %v5328
  %5473 = vst.msk [vmem:[#allocation5 + $0x188] sm:$0xff] %vm5423, %v5330
  %5474 = vst.msk [vmem:[#allocation5 + $0x190] sm:$0xff] %vm5423, %v5332
  %5475 = vst.msk [vmem:[#allocation5 + $0x198] sm:$0xff] %vm5423, %v5334
  %5476 = vst.msk [vmem:[#allocation5 + $0x1a0] sm:$0xff] %vm5423, %v5336
  %5477 = vst.msk [vmem:[#allocation5 + $0x1a8] sm:$0xff] %vm5423, %v5338
  %5478 = vst.msk [vmem:[#allocation5 + $0x1b0] sm:$0xff] %vm5423, %v5340
  %5479 = vst.msk [vmem:[#allocation5 + $0x1b8] sm:$0xff] %vm5423, %v5342
  %5480 = vst.msk [vmem:[#allocation5 + $0x1c0] sm:$0xff] %vm5423, %v5344
  %5481 = vst.msk [vmem:[#allocation5 + $0x1c8] sm:$0xff] %vm5423, %v5346
  %5482 = vst.msk [vmem:[#allocation5 + $0x1d0] sm:$0xff] %vm5423, %v5348
  %5483 = vst.msk [vmem:[#allocation5 + $0x1d8] sm:$0xff] %vm5423, %v5350
  %5484 = vst.msk [vmem:[#allocation5 + $0x1e0] sm:$0xff] %vm5423, %v5352
  %5485 = vst.msk [vmem:[#allocation5 + $0x1e8] sm:$0xff] %vm5423, %v5354
  %5486 = vst.msk [vmem:[#allocation5 + $0x1f0] sm:$0xff] %vm5423, %v5356
  %5487 = vst.msk [vmem:[#allocation5 + $0x1f8] sm:$0xff] %vm5423, %v5358
  %v5488 = vld [vmem:[#allocation3 + $0x2] sm:$0xff]
  %v5489 = vld [vmem:[#allocation3 + $0xa] sm:$0xff]
  %v5490 = vld [vmem:[#allocation3 + $0x1a] sm:$0xff]
  %v5491 = vld [vmem:[#allocation3 + $0x22] sm:$0xff]
  %v5492 = vld [vmem:[#allocation3 + $0x32] sm:$0xff]
  %v5493 = vld [vmem:[#allocation3 + $0x3a] sm:$0xff]
  %v5494 = vld [vmem:[#allocation3 + $0x4a] sm:$0xff]
  %v5495 = vld [vmem:[#allocation3 + $0x52] sm:$0xff]
  %v5496 = vld [vmem:[#allocation3 + $0x62] sm:$0xff]
  %v5497 = vld [vmem:[#allocation3 + $0x6a] sm:$0xff]
  %v5498 = vld [vmem:[#allocation3 + $0x7a] sm:$0xff]
  %v5499 = vld [vmem:[#allocation3 + $0x82] sm:$0xff]
  %v5500 = vld [vmem:[#allocation3 + $0x92] sm:$0xff]
  %v5501 = vld [vmem:[#allocation3 + $0x9a] sm:$0xff]
  %v5502 = vld [vmem:[#allocation3 + $0xaa] sm:$0xff]
  %v5503 = vld [vmem:[#allocation3 + $0xb2] sm:$0xff]
  %v5504 = vld [vmem:[#allocation3 + $0xc2] sm:$0xff]
  %v5505 = vld [vmem:[#allocation3 + $0xca] sm:$0xff]
  %v5506 = vld [vmem:[#allocation3 + $0xda] sm:$0xff]
  %v5507 = vld [vmem:[#allocation3 + $0xe2] sm:$0xff]
  %v5508 = vld [vmem:[#allocation3 + $0xf2] sm:$0xff]
  %v5509 = vld [vmem:[#allocation3 + $0xfa] sm:$0xff]
  %v5510 = vld [vmem:[#allocation3 + $0x10a] sm:$0xff]
  %v5511 = vld [vmem:[#allocation3 + $0x112] sm:$0xff]
  %v5512 = vld [vmem:[#allocation3 + $0x122] sm:$0xff]
  %v5513 = vld [vmem:[#allocation3 + $0x12a] sm:$0xff]
  %v5514 = vld [vmem:[#allocation3 + $0x13a] sm:$0xff]
  %v5515 = vld [vmem:[#allocation3 + $0x142] sm:$0xff]
  %v5516 = vld [vmem:[#allocation3 + $0x152] sm:$0xff]
  %v5517 = vld [vmem:[#allocation3 + $0x15a] sm:$0xff]
  %v5518 = vld [vmem:[#allocation3 + $0x16a] sm:$0xff]
  %v5519 = vld [vmem:[#allocation3 + $0x172] sm:$0xff]
  %v5520 = vld [vmem:[#allocation3 + $0x1b2] sm:$0xff]
  %v5521 = vld [vmem:[#allocation3 + $0x1ba] sm:$0xff]
  %v5522 = vld [vmem:[#allocation3 + $0x1ca] sm:$0xff]
  %v5523 = vld [vmem:[#allocation3 + $0x1d2] sm:$0xff]
  %v5524 = vld [vmem:[#allocation3 + $0x1e2] sm:$0xff]
  %v5525 = vld [vmem:[#allocation3 + $0x1ea] sm:$0xff]
  %v5526 = vld [vmem:[#allocation3 + $0x1fa] sm:$0xff]
  %v5527 = vld [vmem:[#allocation3 + $0x202] sm:$0xff]
  %v5528 = vld [vmem:[#allocation3 + $0x212] sm:$0xff]
  %v5529 = vld [vmem:[#allocation3 + $0x21a] sm:$0xff]
  %v5530 = vld [vmem:[#allocation3 + $0x22a] sm:$0xff]
  %v5531 = vld [vmem:[#allocation3 + $0x232] sm:$0xff]
  %v5532 = vld [vmem:[#allocation3 + $0x242] sm:$0xff]
  %v5533 = vld [vmem:[#allocation3 + $0x24a] sm:$0xff]
  %v5534 = vld [vmem:[#allocation3 + $0x25a] sm:$0xff]
  %v5535 = vld [vmem:[#allocation3 + $0x262] sm:$0xff]
  %v5536 = vld [vmem:[#allocation3 + $0x272] sm:$0xff]
  %v5537 = vld [vmem:[#allocation3 + $0x27a] sm:$0xff]
  %v5538 = vld [vmem:[#allocation3 + $0x28a] sm:$0xff]
  %v5539 = vld [vmem:[#allocation3 + $0x292] sm:$0xff]
  %v5540 = vld [vmem:[#allocation3 + $0x2a2] sm:$0xff]
  %v5541 = vld [vmem:[#allocation3 + $0x2aa] sm:$0xff]
  %v5542 = vld [vmem:[#allocation3 + $0x2ba] sm:$0xff]
  %v5543 = vld [vmem:[#allocation3 + $0x2c2] sm:$0xff]
  %v5544 = vld [vmem:[#allocation3 + $0x2d2] sm:$0xff]
  %v5545 = vld [vmem:[#allocation3 + $0x2da] sm:$0xff]
  %v5546 = vld [vmem:[#allocation3 + $0x2ea] sm:$0xff]
  %v5547 = vld [vmem:[#allocation3 + $0x2f2] sm:$0xff]
  %v5548 = vld [vmem:[#allocation3 + $0x302] sm:$0xff]
  %v5549 = vld [vmem:[#allocation3 + $0x30a] sm:$0xff]
  %v5550 = vld [vmem:[#allocation3 + $0x31a] sm:$0xff]
  %v5551 = vld [vmem:[#allocation3 + $0x322] sm:$0xff]
  %5616 = vrot.lane.b32.xlu0 %v5488, 16
  %v5617 = vpop.permute.xlu0 %5616
  %5618 = vrot.lane.b32.xlu0 %v5489, 16
  %v5619 = vpop.permute.xlu0 %5618
  %5620 = vrot.lane.b32.xlu0 %v5490, 16
  %v5621 = vpop.permute.xlu0 %5620
  %5622 = vrot.lane.b32.xlu0 %v5491, 16
  %v5623 = vpop.permute.xlu0 %5622
  %5624 = vrot.lane.b32.xlu0 %v5492, 16
  %v5625 = vpop.permute.xlu0 %5624
  %5626 = vrot.lane.b32.xlu0 %v5493, 16
  %v5627 = vpop.permute.xlu0 %5626
  %5628 = vrot.lane.b32.xlu0 %v5494, 16
  %v5629 = vpop.permute.xlu0 %5628
  %5630 = vrot.lane.b32.xlu0 %v5495, 16
  %v5631 = vpop.permute.xlu0 %5630
  %5632 = vrot.lane.b32.xlu0 %v5496, 16
  %v5633 = vpop.permute.xlu0 %5632
  %5634 = vrot.lane.b32.xlu0 %v5497, 16
  %v5635 = vpop.permute.xlu0 %5634
  %5636 = vrot.lane.b32.xlu0 %v5498, 16
  %v5637 = vpop.permute.xlu0 %5636
  %5638 = vrot.lane.b32.xlu0 %v5499, 16
  %v5639 = vpop.permute.xlu0 %5638
  %5640 = vrot.lane.b32.xlu0 %v5500, 16
  %v5641 = vpop.permute.xlu0 %5640
  %5642 = vrot.lane.b32.xlu0 %v5501, 16
  %v5643 = vpop.permute.xlu0 %5642
  %5644 = vrot.lane.b32.xlu0 %v5502, 16
  %v5645 = vpop.permute.xlu0 %5644
  %5646 = vrot.lane.b32.xlu0 %v5503, 16
  %v5647 = vpop.permute.xlu0 %5646
  %5648 = vrot.lane.b32.xlu0 %v5504, 16
  %v5649 = vpop.permute.xlu0 %5648
  %5650 = vrot.lane.b32.xlu0 %v5505, 16
  %v5651 = vpop.permute.xlu0 %5650
  %5652 = vrot.lane.b32.xlu0 %v5506, 16
  %v5653 = vpop.permute.xlu0 %5652
  %5654 = vrot.lane.b32.xlu0 %v5507, 16
  %v5655 = vpop.permute.xlu0 %5654
  %5656 = vrot.lane.b32.xlu0 %v5508, 16
  %v5657 = vpop.permute.xlu0 %5656
  %5658 = vrot.lane.b32.xlu0 %v5509, 16
  %v5659 = vpop.permute.xlu0 %5658
  %5660 = vrot.lane.b32.xlu0 %v5510, 16
  %v5661 = vpop.permute.xlu0 %5660
  %5662 = vrot.lane.b32.xlu0 %v5511, 16
  %v5663 = vpop.permute.xlu0 %5662
  %5664 = vrot.lane.b32.xlu0 %v5512, 16
  %v5665 = vpop.permute.xlu0 %5664
  %5666 = vrot.lane.b32.xlu0 %v5513, 16
  %v5667 = vpop.permute.xlu0 %5666
  %5668 = vrot.lane.b32.xlu0 %v5514, 16
  %v5669 = vpop.permute.xlu0 %5668
  %5670 = vrot.lane.b32.xlu0 %v5515, 16
  %v5671 = vpop.permute.xlu0 %5670
  %5672 = vrot.lane.b32.xlu0 %v5516, 16
  %v5673 = vpop.permute.xlu0 %5672
  %5674 = vrot.lane.b32.xlu0 %v5517, 16
  %v5675 = vpop.permute.xlu0 %5674
  %5676 = vrot.lane.b32.xlu0 %v5518, 16
  %v5677 = vpop.permute.xlu0 %5676
  %5678 = vrot.lane.b32.xlu0 %v5519, 16
  %v5679 = vpop.permute.xlu0 %5678
  %5680 = vrot.lane.b32.xlu0 %v5520, 16
  %v5681 = vpop.permute.xlu0 %5680
  %5682 = vrot.lane.b32.xlu0 %v5521, 16
  %v5683 = vpop.permute.xlu0 %5682
  %5684 = vrot.lane.b32.xlu0 %v5522, 16
  %v5685 = vpop.permute.xlu0 %5684
  %5686 = vrot.lane.b32.xlu0 %v5523, 16
  %v5687 = vpop.permute.xlu0 %5686
  %5688 = vrot.lane.b32.xlu0 %v5524, 16
  %v5689 = vpop.permute.xlu0 %5688
  %5690 = vrot.lane.b32.xlu0 %v5525, 16
  %v5691 = vpop.permute.xlu0 %5690
  %5692 = vrot.lane.b32.xlu0 %v5526, 16
  %v5693 = vpop.permute.xlu0 %5692
  %5694 = vrot.lane.b32.xlu0 %v5527, 16
  %v5695 = vpop.permute.xlu0 %5694
  %5696 = vrot.lane.b32.xlu0 %v5528, 16
  %v5697 = vpop.permute.xlu0 %5696
  %5698 = vrot.lane.b32.xlu0 %v5529, 16
  %v5699 = vpop.permute.xlu0 %5698
  %5700 = vrot.lane.b32.xlu0 %v5530, 16
  %v5701 = vpop.permute.xlu0 %5700
  %5702 = vrot.lane.b32.xlu0 %v5531, 16
  %v5703 = vpop.permute.xlu0 %5702
  %5704 = vrot.lane.b32.xlu0 %v5532, 16
  %v5705 = vpop.permute.xlu0 %5704
  %5706 = vrot.lane.b32.xlu0 %v5533, 16
  %v5707 = vpop.permute.xlu0 %5706
  %5708 = vrot.lane.b32.xlu0 %v5534, 16
  %v5709 = vpop.permute.xlu0 %5708
  %5710 = vrot.lane.b32.xlu0 %v5535, 16
  %v5711 = vpop.permute.xlu0 %5710
  %5712 = vrot.lane.b32.xlu0 %v5536, 16
  %v5713 = vpop.permute.xlu0 %5712
  %5714 = vrot.lane.b32.xlu0 %v5537, 16
  %v5715 = vpop.permute.xlu0 %5714
  %5716 = vrot.lane.b32.xlu0 %v5538, 16
  %v5717 = vpop.permute.xlu0 %5716
  %5718 = vrot.lane.b32.xlu0 %v5539, 16
  %v5719 = vpop.permute.xlu0 %5718
  %5720 = vrot.lane.b32.xlu0 %v5540, 16
  %v5721 = vpop.permute.xlu0 %5720
  %5722 = vrot.lane.b32.xlu0 %v5541, 16
  %v5723 = vpop.permute.xlu0 %5722
  %5724 = vrot.lane.b32.xlu0 %v5542, 16
  %v5725 = vpop.permute.xlu0 %5724
  %5726 = vrot.lane.b32.xlu0 %v5543, 16
  %v5727 = vpop.permute.xlu0 %5726
  %5728 = vrot.lane.b32.xlu0 %v5544, 16
  %v5729 = vpop.permute.xlu0 %5728
  %5730 = vrot.lane.b32.xlu0 %v5545, 16
  %v5731 = vpop.permute.xlu0 %5730
  %5732 = vrot.lane.b32.xlu0 %v5546, 16
  %v5733 = vpop.permute.xlu0 %5732
  %5734 = vrot.lane.b32.xlu0 %v5547, 16
  %v5735 = vpop.permute.xlu0 %5734
  %5736 = vrot.lane.b32.xlu0 %v5548, 16
  %v5737 = vpop.permute.xlu0 %5736
  %5738 = vrot.lane.b32.xlu0 %v5549, 16
  %v5739 = vpop.permute.xlu0 %5738
  %5740 = vrot.lane.b32.xlu0 %v5550, 16
  %v5741 = vpop.permute.xlu0 %5740
  %5742 = vrot.lane.b32.xlu0 %v5551, 16
  %v5743 = vpop.permute.xlu0 %5742
  %vm5808 = vcmask 195712
  %5809 = vst.msk [vmem:[#allocation5] sm:$0xff] %vm5808, %v5617
  %5810 = vst.msk [vmem:[#allocation5 + $0x8] sm:$0xff] %vm5808, %v5619
  %5811 = vst.msk [vmem:[#allocation5 + $0x10] sm:$0xff] %vm5808, %v5621
  %5812 = vst.msk [vmem:[#allocation5 + $0x18] sm:$0xff] %vm5808, %v5623
  %5813 = vst.msk [vmem:[#allocation5 + $0x20] sm:$0xff] %vm5808, %v5625
  %5814 = vst.msk [vmem:[#allocation5 + $0x28] sm:$0xff] %vm5808, %v5627
  %5815 = vst.msk [vmem:[#allocation5 + $0x30] sm:$0xff] %vm5808, %v5629
  %5816 = vst.msk [vmem:[#allocation5 + $0x38] sm:$0xff] %vm5808, %v5631
  %5817 = vst.msk [vmem:[#allocation5 + $0x40] sm:$0xff] %vm5808, %v5633
  %5818 = vst.msk [vmem:[#allocation5 + $0x48] sm:$0xff] %vm5808, %v5635
  %5819 = vst.msk [vmem:[#allocation5 + $0x50] sm:$0xff] %vm5808, %v5637
  %5820 = vst.msk [vmem:[#allocation5 + $0x58] sm:$0xff] %vm5808, %v5639
  %5821 = vst.msk [vmem:[#allocation5 + $0x60] sm:$0xff] %vm5808, %v5641
  %5822 = vst.msk [vmem:[#allocation5 + $0x68] sm:$0xff] %vm5808, %v5643
  %5823 = vst.msk [vmem:[#allocation5 + $0x70] sm:$0xff] %vm5808, %v5645
  %5824 = vst.msk [vmem:[#allocation5 + $0x78] sm:$0xff] %vm5808, %v5647
  %5825 = vst.msk [vmem:[#allocation5 + $0x80] sm:$0xff] %vm5808, %v5649
  %5826 = vst.msk [vmem:[#allocation5 + $0x88] sm:$0xff] %vm5808, %v5651
  %5827 = vst.msk [vmem:[#allocation5 + $0x90] sm:$0xff] %vm5808, %v5653
  %5828 = vst.msk [vmem:[#allocation5 + $0x98] sm:$0xff] %vm5808, %v5655
  %5829 = vst.msk [vmem:[#allocation5 + $0xa0] sm:$0xff] %vm5808, %v5657
  %5830 = vst.msk [vmem:[#allocation5 + $0xa8] sm:$0xff] %vm5808, %v5659
  %5831 = vst.msk [vmem:[#allocation5 + $0xb0] sm:$0xff] %vm5808, %v5661
  %5832 = vst.msk [vmem:[#allocation5 + $0xb8] sm:$0xff] %vm5808, %v5663
  %5833 = vst.msk [vmem:[#allocation5 + $0xc0] sm:$0xff] %vm5808, %v5665
  %5834 = vst.msk [vmem:[#allocation5 + $0xc8] sm:$0xff] %vm5808, %v5667
  %5835 = vst.msk [vmem:[#allocation5 + $0xd0] sm:$0xff] %vm5808, %v5669
  %5836 = vst.msk [vmem:[#allocation5 + $0xd8] sm:$0xff] %vm5808, %v5671
  %5837 = vst.msk [vmem:[#allocation5 + $0xe0] sm:$0xff] %vm5808, %v5673
  %5838 = vst.msk [vmem:[#allocation5 + $0xe8] sm:$0xff] %vm5808, %v5675
  %5839 = vst.msk [vmem:[#allocation5 + $0xf0] sm:$0xff] %vm5808, %v5677
  %5840 = vst.msk [vmem:[#allocation5 + $0xf8] sm:$0xff] %vm5808, %v5679
  %5841 = vst.msk [vmem:[#allocation5 + $0x100] sm:$0xff] %vm5808, %v5681
  %5842 = vst.msk [vmem:[#allocation5 + $0x108] sm:$0xff] %vm5808, %v5683
  %5843 = vst.msk [vmem:[#allocation5 + $0x110] sm:$0xff] %vm5808, %v5685
  %5844 = vst.msk [vmem:[#allocation5 + $0x118] sm:$0xff] %vm5808, %v5687
  %5845 = vst.msk [vmem:[#allocation5 + $0x120] sm:$0xff] %vm5808, %v5689
  %5846 = vst.msk [vmem:[#allocation5 + $0x128] sm:$0xff] %vm5808, %v5691
  %5847 = vst.msk [vmem:[#allocation5 + $0x130] sm:$0xff] %vm5808, %v5693
  %5848 = vst.msk [vmem:[#allocation5 + $0x138] sm:$0xff] %vm5808, %v5695
  %5849 = vst.msk [vmem:[#allocation5 + $0x140] sm:$0xff] %vm5808, %v5697
  %5850 = vst.msk [vmem:[#allocation5 + $0x148] sm:$0xff] %vm5808, %v5699
  %5851 = vst.msk [vmem:[#allocation5 + $0x150] sm:$0xff] %vm5808, %v5701
  %5852 = vst.msk [vmem:[#allocation5 + $0x158] sm:$0xff] %vm5808, %v5703
  %5853 = vst.msk [vmem:[#allocation5 + $0x160] sm:$0xff] %vm5808, %v5705
  %5854 = vst.msk [vmem:[#allocation5 + $0x168] sm:$0xff] %vm5808, %v5707
  %5855 = vst.msk [vmem:[#allocation5 + $0x170] sm:$0xff] %vm5808, %v5709
  %5856 = vst.msk [vmem:[#allocation5 + $0x178] sm:$0xff] %vm5808, %v5711
  %5857 = vst.msk [vmem:[#allocation5 + $0x180] sm:$0xff] %vm5808, %v5713
  %5858 = vst.msk [vmem:[#allocation5 + $0x188] sm:$0xff] %vm5808, %v5715
  %5859 = vst.msk [vmem:[#allocation5 + $0x190] sm:$0xff] %vm5808, %v5717
  %5860 = vst.msk [vmem:[#allocation5 + $0x198] sm:$0xff] %vm5808, %v5719
  %5861 = vst.msk [vmem:[#allocation5 + $0x1a0] sm:$0xff] %vm5808, %v5721
  %5862 = vst.msk [vmem:[#allocation5 + $0x1a8] sm:$0xff] %vm5808, %v5723
  %5863 = vst.msk [vmem:[#allocation5 + $0x1b0] sm:$0xff] %vm5808, %v5725
  %5864 = vst.msk [vmem:[#allocation5 + $0x1b8] sm:$0xff] %vm5808, %v5727
  %5865 = vst.msk [vmem:[#allocation5 + $0x1c0] sm:$0xff] %vm5808, %v5729
  %5866 = vst.msk [vmem:[#allocation5 + $0x1c8] sm:$0xff] %vm5808, %v5731
  %5867 = vst.msk [vmem:[#allocation5 + $0x1d0] sm:$0xff] %vm5808, %v5733
  %5868 = vst.msk [vmem:[#allocation5 + $0x1d8] sm:$0xff] %vm5808, %v5735
  %5869 = vst.msk [vmem:[#allocation5 + $0x1e0] sm:$0xff] %vm5808, %v5737
  %5870 = vst.msk [vmem:[#allocation5 + $0x1e8] sm:$0xff] %vm5808, %v5739
  %5871 = vst.msk [vmem:[#allocation5 + $0x1f0] sm:$0xff] %vm5808, %v5741
  %5872 = vst.msk [vmem:[#allocation5 + $0x1f8] sm:$0xff] %vm5808, %v5743
  %v5873 = vld [vmem:[%s4910] sm:$0xff]
  %v5874 = vld [vmem:[%s4910 + $0x8] sm:$0xff]
  %v5875 = vld [vmem:[%s4910 + $0x18] sm:$0xff]
  %v5876 = vld [vmem:[%s4910 + $0x20] sm:$0xff]
  %v5877 = vld [vmem:[%s4910 + $0x30] sm:$0xff]
  %v5878 = vld [vmem:[%s4910 + $0x38] sm:$0xff]
  %v5879 = vld [vmem:[%s4910 + $0x48] sm:$0xff]
  %v5880 = vld [vmem:[%s4910 + $0x50] sm:$0xff]
  %v5881 = vld [vmem:[%s4910 + $0x60] sm:$0xff]
  %v5882 = vld [vmem:[%s4910 + $0x68] sm:$0xff]
  %v5883 = vld [vmem:[%s4910 + $0x78] sm:$0xff]
  %v5884 = vld [vmem:[%s4910 + $0x80] sm:$0xff]
  %v5885 = vld [vmem:[%s4910 + $0x90] sm:$0xff]
  %v5886 = vld [vmem:[%s4910 + $0x98] sm:$0xff]
  %v5887 = vld [vmem:[%s4910 + $0xa8] sm:$0xff]
  %v5888 = vld [vmem:[%s4910 + $0xb0] sm:$0xff]
  %v5889 = vld [vmem:[%s4910 + $0xc0] sm:$0xff]
  %v5890 = vld [vmem:[%s4910 + $0xc8] sm:$0xff]
  %v5891 = vld [vmem:[%s4910 + $0xd8] sm:$0xff]
  %v5892 = vld [vmem:[%s4910 + $0xe0] sm:$0xff]
  %v5893 = vld [vmem:[%s4910 + $0xf0] sm:$0xff]
  %v5894 = vld [vmem:[%s4910 + $0xf8] sm:$0xff]
  %v5895 = vld [vmem:[%s4910 + $0x108] sm:$0xff]
  %v5896 = vld [vmem:[%s4910 + $0x110] sm:$0xff]
  %v5897 = vld [vmem:[%s4910 + $0x120] sm:$0xff]
  %v5898 = vld [vmem:[%s4910 + $0x128] sm:$0xff]
  %v5899 = vld [vmem:[%s4910 + $0x138] sm:$0xff]
  %v5900 = vld [vmem:[%s4910 + $0x140] sm:$0xff]
  %v5901 = vld [vmem:[%s4910 + $0x150] sm:$0xff]
  %v5902 = vld [vmem:[%s4910 + $0x158] sm:$0xff]
  %v5903 = vld [vmem:[%s4910 + $0x168] sm:$0xff]
  %v5904 = vld [vmem:[%s4910 + $0x170] sm:$0xff]
  %v5905 = vld [vmem:[%s4910 + $0x1b0] sm:$0xff]
  %v5906 = vld [vmem:[%s4910 + $0x1b8] sm:$0xff]
  %v5907 = vld [vmem:[%s4910 + $0x1c8] sm:$0xff]
  %v5908 = vld [vmem:[%s4910 + $0x1d0] sm:$0xff]
  %v5909 = vld [vmem:[%s4910 + $0x1e0] sm:$0xff]
  %v5910 = vld [vmem:[%s4910 + $0x1e8] sm:$0xff]
  %v5911 = vld [vmem:[%s4910 + $0x1f8] sm:$0xff]
  %v5912 = vld [vmem:[%s4910 + $0x200] sm:$0xff]
  %v5913 = vld [vmem:[%s4910 + $0x210] sm:$0xff]
  %v5914 = vld [vmem:[%s4910 + $0x218] sm:$0xff]
  %v5915 = vld [vmem:[%s4910 + $0x228] sm:$0xff]
  %v5916 = vld [vmem:[%s4910 + $0x230] sm:$0xff]
  %v5917 = vld [vmem:[%s4910 + $0x240] sm:$0xff]
  %v5918 = vld [vmem:[%s4910 + $0x248] sm:$0xff]
  %v5919 = vld [vmem:[%s4910 + $0x258] sm:$0xff]
  %v5920 = vld [vmem:[%s4910 + $0x260] sm:$0xff]
  %v5921 = vld [vmem:[%s4910 + $0x270] sm:$0xff]
  %v5922 = vld [vmem:[%s4910 + $0x278] sm:$0xff]
  %v5923 = vld [vmem:[%s4910 + $0x288] sm:$0xff]
  %v5924 = vld [vmem:[%s4910 + $0x290] sm:$0xff]
  %v5925 = vld [vmem:[%s4910 + $0x2a0] sm:$0xff]
  %v5926 = vld [vmem:[%s4910 + $0x2a8] sm:$0xff]
  %v5927 = vld [vmem:[%s4910 + $0x2b8] sm:$0xff]
  %v5928 = vld [vmem:[%s4910 + $0x2c0] sm:$0xff]
  %v5929 = vld [vmem:[%s4910 + $0x2d0] sm:$0xff]
  %v5930 = vld [vmem:[%s4910 + $0x2d8] sm:$0xff]
  %v5931 = vld [vmem:[%s4910 + $0x2e8] sm:$0xff]
  %v5932 = vld [vmem:[%s4910 + $0x2f0] sm:$0xff]
  %v5933 = vld [vmem:[%s4910 + $0x300] sm:$0xff]
  %v5934 = vld [vmem:[%s4910 + $0x308] sm:$0xff]
  %v5935 = vld [vmem:[%s4910 + $0x318] sm:$0xff]
  %v5936 = vld [vmem:[%s4910 + $0x320] sm:$0xff]
  %6001 = vrot.lane.b32.xlu0 %v5873, 24
  %v6002 = vpop.permute.xlu0 %6001
  %6003 = vrot.lane.b32.xlu0 %v5874, 24
  %v6004 = vpop.permute.xlu0 %6003
  %6005 = vrot.lane.b32.xlu0 %v5875, 24
  %v6006 = vpop.permute.xlu0 %6005
  %6007 = vrot.lane.b32.xlu0 %v5876, 24
  %v6008 = vpop.permute.xlu0 %6007
  %6009 = vrot.lane.b32.xlu0 %v5877, 24
  %v6010 = vpop.permute.xlu0 %6009
  %6011 = vrot.lane.b32.xlu0 %v5878, 24
  %v6012 = vpop.permute.xlu0 %6011
  %6013 = vrot.lane.b32.xlu0 %v5879, 24
  %v6014 = vpop.permute.xlu0 %6013
  %6015 = vrot.lane.b32.xlu0 %v5880, 24
  %v6016 = vpop.permute.xlu0 %6015
  %6017 = vrot.lane.b32.xlu0 %v5881, 24
  %v6018 = vpop.permute.xlu0 %6017
  %6019 = vrot.lane.b32.xlu0 %v5882, 24
  %v6020 = vpop.permute.xlu0 %6019
  %6021 = vrot.lane.b32.xlu0 %v5883, 24
  %v6022 = vpop.permute.xlu0 %6021
  %6023 = vrot.lane.b32.xlu0 %v5884, 24
  %v6024 = vpop.permute.xlu0 %6023
  %6025 = vrot.lane.b32.xlu0 %v5885, 24
  %v6026 = vpop.permute.xlu0 %6025
  %6027 = vrot.lane.b32.xlu0 %v5886, 24
  %v6028 = vpop.permute.xlu0 %6027
  %6029 = vrot.lane.b32.xlu0 %v5887, 24
  %v6030 = vpop.permute.xlu0 %6029
  %6031 = vrot.lane.b32.xlu0 %v5888, 24
  %v6032 = vpop.permute.xlu0 %6031
  %6033 = vrot.lane.b32.xlu0 %v5889, 24
  %v6034 = vpop.permute.xlu0 %6033
  %6035 = vrot.lane.b32.xlu0 %v5890, 24
  %v6036 = vpop.permute.xlu0 %6035
  %6037 = vrot.lane.b32.xlu0 %v5891, 24
  %v6038 = vpop.permute.xlu0 %6037
  %6039 = vrot.lane.b32.xlu0 %v5892, 24
  %v6040 = vpop.permute.xlu0 %6039
  %6041 = vrot.lane.b32.xlu0 %v5893, 24
  %v6042 = vpop.permute.xlu0 %6041
  %6043 = vrot.lane.b32.xlu0 %v5894, 24
  %v6044 = vpop.permute.xlu0 %6043
  %6045 = vrot.lane.b32.xlu0 %v5895, 24
  %v6046 = vpop.permute.xlu0 %6045
  %6047 = vrot.lane.b32.xlu0 %v5896, 24
  %v6048 = vpop.permute.xlu0 %6047
  %6049 = vrot.lane.b32.xlu0 %v5897, 24
  %v6050 = vpop.permute.xlu0 %6049
  %6051 = vrot.lane.b32.xlu0 %v5898, 24
  %v6052 = vpop.permute.xlu0 %6051
  %6053 = vrot.lane.b32.xlu0 %v5899, 24
  %v6054 = vpop.permute.xlu0 %6053
  %6055 = vrot.lane.b32.xlu0 %v5900, 24
  %v6056 = vpop.permute.xlu0 %6055
  %6057 = vrot.lane.b32.xlu0 %v5901, 24
  %v6058 = vpop.permute.xlu0 %6057
  %6059 = vrot.lane.b32.xlu0 %v5902, 24
  %v6060 = vpop.permute.xlu0 %6059
  %6061 = vrot.lane.b32.xlu0 %v5903, 24
  %v6062 = vpop.permute.xlu0 %6061
  %6063 = vrot.lane.b32.xlu0 %v5904, 24
  %v6064 = vpop.permute.xlu0 %6063
  %6065 = vrot.lane.b32.xlu0 %v5905, 24
  %v6066 = vpop.permute.xlu0 %6065
  %6067 = vrot.lane.b32.xlu0 %v5906, 24
  %v6068 = vpop.permute.xlu0 %6067
  %6069 = vrot.lane.b32.xlu0 %v5907, 24
  %v6070 = vpop.permute.xlu0 %6069
  %6071 = vrot.lane.b32.xlu0 %v5908, 24
  %v6072 = vpop.permute.xlu0 %6071
  %6073 = vrot.lane.b32.xlu0 %v5909, 24
  %v6074 = vpop.permute.xlu0 %6073
  %6075 = vrot.lane.b32.xlu0 %v5910, 24
  %v6076 = vpop.permute.xlu0 %6075
  %6077 = vrot.lane.b32.xlu0 %v5911, 24
  %v6078 = vpop.permute.xlu0 %6077
  %6079 = vrot.lane.b32.xlu0 %v5912, 24
  %v6080 = vpop.permute.xlu0 %6079
  %6081 = vrot.lane.b32.xlu0 %v5913, 24
  %v6082 = vpop.permute.xlu0 %6081
  %6083 = vrot.lane.b32.xlu0 %v5914, 24
  %v6084 = vpop.permute.xlu0 %6083
  %6085 = vrot.lane.b32.xlu0 %v5915, 24
  %v6086 = vpop.permute.xlu0 %6085
  %6087 = vrot.lane.b32.xlu0 %v5916, 24
  %v6088 = vpop.permute.xlu0 %6087
  %6089 = vrot.lane.b32.xlu0 %v5917, 24
  %v6090 = vpop.permute.xlu0 %6089
  %6091 = vrot.lane.b32.xlu0 %v5918, 24
  %v6092 = vpop.permute.xlu0 %6091
  %6093 = vrot.lane.b32.xlu0 %v5919, 24
  %v6094 = vpop.permute.xlu0 %6093
  %6095 = vrot.lane.b32.xlu0 %v5920, 24
  %v6096 = vpop.permute.xlu0 %6095
  %6097 = vrot.lane.b32.xlu0 %v5921, 24
  %v6098 = vpop.permute.xlu0 %6097
  %6099 = vrot.lane.b32.xlu0 %v5922, 24
  %v6100 = vpop.permute.xlu0 %6099
  %6101 = vrot.lane.b32.xlu0 %v5923, 24
  %v6102 = vpop.permute.xlu0 %6101
  %6103 = vrot.lane.b32.xlu0 %v5924, 24
  %v6104 = vpop.permute.xlu0 %6103
  %6105 = vrot.lane.b32.xlu0 %v5925, 24
  %v6106 = vpop.permute.xlu0 %6105
  %6107 = vrot.lane.b32.xlu0 %v5926, 24
  %v6108 = vpop.permute.xlu0 %6107
  %6109 = vrot.lane.b32.xlu0 %v5927, 24
  %v6110 = vpop.permute.xlu0 %6109
  %6111 = vrot.lane.b32.xlu0 %v5928, 24
  %v6112 = vpop.permute.xlu0 %6111
  %6113 = vrot.lane.b32.xlu0 %v5929, 24
  %v6114 = vpop.permute.xlu0 %6113
  %6115 = vrot.lane.b32.xlu0 %v5930, 24
  %v6116 = vpop.permute.xlu0 %6115
  %6117 = vrot.lane.b32.xlu0 %v5931, 24
  %v6118 = vpop.permute.xlu0 %6117
  %6119 = vrot.lane.b32.xlu0 %v5932, 24
  %v6120 = vpop.permute.xlu0 %6119
  %6121 = vrot.lane.b32.xlu0 %v5933, 24
  %v6122 = vpop.permute.xlu0 %6121
  %6123 = vrot.lane.b32.xlu0 %v5934, 24
  %v6124 = vpop.permute.xlu0 %6123
  %6125 = vrot.lane.b32.xlu0 %v5935, 24
  %v6126 = vpop.permute.xlu0 %6125
  %6127 = vrot.lane.b32.xlu0 %v5936, 24
  %v6128 = vpop.permute.xlu0 %6127
  %vm6193 = vcmask 261312
  %6194 = vst.msk [vmem:[#allocation5] sm:$0xff] %vm6193, %v6002
  %6195 = vst.msk [vmem:[#allocation5 + $0x8] sm:$0xff] %vm6193, %v6004
  %6196 = vst.msk [vmem:[#allocation5 + $0x10] sm:$0xff] %vm6193, %v6006
  %6197 = vst.msk [vmem:[#allocation5 + $0x18] sm:$0xff] %vm6193, %v6008
  %6198 = vst.msk [vmem:[#allocation5 + $0x20] sm:$0xff] %vm6193, %v6010
  %6199 = vst.msk [vmem:[#allocation5 + $0x28] sm:$0xff] %vm6193, %v6012
  %6200 = vst.msk [vmem:[#allocation5 + $0x30] sm:$0xff] %vm6193, %v6014
  %6201 = vst.msk [vmem:[#allocation5 + $0x38] sm:$0xff] %vm6193, %v6016
  %6202 = vst.msk [vmem:[#allocation5 + $0x40] sm:$0xff] %vm6193, %v6018
  %6203 = vst.msk [vmem:[#allocation5 + $0x48] sm:$0xff] %vm6193, %v6020
  %6204 = vst.msk [vmem:[#allocation5 + $0x50] sm:$0xff] %vm6193, %v6022
  %6205 = vst.msk [vmem:[#allocation5 + $0x58] sm:$0xff] %vm6193, %v6024
  %6206 = vst.msk [vmem:[#allocation5 + $0x60] sm:$0xff] %vm6193, %v6026
  %6207 = vst.msk [vmem:[#allocation5 + $0x68] sm:$0xff] %vm6193, %v6028
  %6208 = vst.msk [vmem:[#allocation5 + $0x70] sm:$0xff] %vm6193, %v6030
  %6209 = vst.msk [vmem:[#allocation5 + $0x78] sm:$0xff] %vm6193, %v6032
  %6210 = vst.msk [vmem:[#allocation5 + $0x80] sm:$0xff] %vm6193, %v6034
  %6211 = vst.msk [vmem:[#allocation5 + $0x88] sm:$0xff] %vm6193, %v6036
  %6212 = vst.msk [vmem:[#allocation5 + $0x90] sm:$0xff] %vm6193, %v6038
  %6213 = vst.msk [vmem:[#allocation5 + $0x98] sm:$0xff] %vm6193, %v6040
  %6214 = vst.msk [vmem:[#allocation5 + $0xa0] sm:$0xff] %vm6193, %v6042
  %6215 = vst.msk [vmem:[#allocation5 + $0xa8] sm:$0xff] %vm6193, %v6044
  %6216 = vst.msk [vmem:[#allocation5 + $0xb0] sm:$0xff] %vm6193, %v6046
  %6217 = vst.msk [vmem:[#allocation5 + $0xb8] sm:$0xff] %vm6193, %v6048
  %6218 = vst.msk [vmem:[#allocation5 + $0xc0] sm:$0xff] %vm6193, %v6050
  %6219 = vst.msk [vmem:[#allocation5 + $0xc8] sm:$0xff] %vm6193, %v6052
  %6220 = vst.msk [vmem:[#allocation5 + $0xd0] sm:$0xff] %vm6193, %v6054
  %6221 = vst.msk [vmem:[#allocation5 + $0xd8] sm:$0xff] %vm6193, %v6056
  %6222 = vst.msk [vmem:[#allocation5 + $0xe0] sm:$0xff] %vm6193, %v6058
  %6223 = vst.msk [vmem:[#allocation5 + $0xe8] sm:$0xff] %vm6193, %v6060
  %6224 = vst.msk [vmem:[#allocation5 + $0xf0] sm:$0xff] %vm6193, %v6062
  %6225 = vst.msk [vmem:[#allocation5 + $0xf8] sm:$0xff] %vm6193, %v6064
  %6226 = vst.msk [vmem:[#allocation5 + $0x100] sm:$0xff] %vm6193, %v6066
  %6227 = vst.msk [vmem:[#allocation5 + $0x108] sm:$0xff] %vm6193, %v6068
  %6228 = vst.msk [vmem:[#allocation5 + $0x110] sm:$0xff] %vm6193, %v6070
  %6229 = vst.msk [vmem:[#allocation5 + $0x118] sm:$0xff] %vm6193, %v6072
  %6230 = vst.msk [vmem:[#allocation5 + $0x120] sm:$0xff] %vm6193, %v6074
  %6231 = vst.msk [vmem:[#allocation5 + $0x128] sm:$0xff] %vm6193, %v6076
  %6232 = vst.msk [vmem:[#allocation5 + $0x130] sm:$0xff] %vm6193, %v6078
  %6233 = vst.msk [vmem:[#allocation5 + $0x138] sm:$0xff] %vm6193, %v6080
  %6234 = vst.msk [vmem:[#allocation5 + $0x140] sm:$0xff] %vm6193, %v6082
  %6235 = vst.msk [vmem:[#allocation5 + $0x148] sm:$0xff] %vm6193, %v6084
  %6236 = vst.msk [vmem:[#allocation5 + $0x150] sm:$0xff] %vm6193, %v6086
  %6237 = vst.msk [vmem:[#allocation5 + $0x158] sm:$0xff] %vm6193, %v6088
  %6238 = vst.msk [vmem:[#allocation5 + $0x160] sm:$0xff] %vm6193, %v6090
  %6239 = vst.msk [vmem:[#allocation5 + $0x168] sm:$0xff] %vm6193, %v6092
  %6240 = vst.msk [vmem:[#allocation5 + $0x170] sm:$0xff] %vm6193, %v6094
  %6241 = vst.msk [vmem:[#allocation5 + $0x178] sm:$0xff] %vm6193, %v6096
  %6242 = vst.msk [vmem:[#allocation5 + $0x180] sm:$0xff] %vm6193, %v6098
  %6243 = vst.msk [vmem:[#allocation5 + $0x188] sm:$0xff] %vm6193, %v6100
  %6244 = vst.msk [vmem:[#allocation5 + $0x190] sm:$0xff] %vm6193, %v6102
  %6245 = vst.msk [vmem:[#allocation5 + $0x198] sm:$0xff] %vm6193, %v6104
  %6246 = vst.msk [vmem:[#allocation5 + $0x1a0] sm:$0xff] %vm6193, %v6106
  %6247 = vst.msk [vmem:[#allocation5 + $0x1a8] sm:$0xff] %vm6193, %v6108
  %6248 = vst.msk [vmem:[#allocation5 + $0x1b0] sm:$0xff] %vm6193, %v6110
  %6249 = vst.msk [vmem:[#allocation5 + $0x1b8] sm:$0xff] %vm6193, %v6112
  %6250 = vst.msk [vmem:[#allocation5 + $0x1c0] sm:$0xff] %vm6193, %v6114
  %6251 = vst.msk [vmem:[#allocation5 + $0x1c8] sm:$0xff] %vm6193, %v6116
  %6252 = vst.msk [vmem:[#allocation5 + $0x1d0] sm:$0xff] %vm6193, %v6118
  %6253 = vst.msk [vmem:[#allocation5 + $0x1d8] sm:$0xff] %vm6193, %v6120
  %6254 = vst.msk [vmem:[#allocation5 + $0x1e0] sm:$0xff] %vm6193, %v6122
  %6255 = vst.msk [vmem:[#allocation5 + $0x1e8] sm:$0xff] %vm6193, %v6124
  %6256 = vst.msk [vmem:[#allocation5 + $0x1f0] sm:$0xff] %vm6193, %v6126
  %6257 = vst.msk [vmem:[#allocation5 + $0x1f8] sm:$0xff] %vm6193, %v6128
  %v6258 = vld [vmem:[%s4910 + $0x1] sm:$0xff]
  %v6259 = vld [vmem:[%s4910 + $0x9] sm:$0xff]
  %v6260 = vld [vmem:[%s4910 + $0x19] sm:$0xff]
  %v6261 = vld [vmem:[%s4910 + $0x21] sm:$0xff]
  %v6262 = vld [vmem:[%s4910 + $0x31] sm:$0xff]
  %v6263 = vld [vmem:[%s4910 + $0x39] sm:$0xff]
  %v6264 = vld [vmem:[%s4910 + $0x49] sm:$0xff]
  %v6265 = vld [vmem:[%s4910 + $0x51] sm:$0xff]
  %v6266 = vld [vmem:[%s4910 + $0x61] sm:$0xff]
  %v6267 = vld [vmem:[%s4910 + $0x69] sm:$0xff]
  %v6268 = vld [vmem:[%s4910 + $0x79] sm:$0xff]
  %v6269 = vld [vmem:[%s4910 + $0x81] sm:$0xff]
  %v6270 = vld [vmem:[%s4910 + $0x91] sm:$0xff]
  %v6271 = vld [vmem:[%s4910 + $0x99] sm:$0xff]
  %v6272 = vld [vmem:[%s4910 + $0xa9] sm:$0xff]
  %v6273 = vld [vmem:[%s4910 + $0xb1] sm:$0xff]
  %v6274 = vld [vmem:[%s4910 + $0xc1] sm:$0xff]
  %v6275 = vld [vmem:[%s4910 + $0xc9] sm:$0xff]
  %v6276 = vld [vmem:[%s4910 + $0xd9] sm:$0xff]
  %v6277 = vld [vmem:[%s4910 + $0xe1] sm:$0xff]
  %v6278 = vld [vmem:[%s4910 + $0xf1] sm:$0xff]
  %v6279 = vld [vmem:[%s4910 + $0xf9] sm:$0xff]
  %v6280 = vld [vmem:[%s4910 + $0x109] sm:$0xff]
  %v6281 = vld [vmem:[%s4910 + $0x111] sm:$0xff]
  %v6282 = vld [vmem:[%s4910 + $0x121] sm:$0xff]
  %v6283 = vld [vmem:[%s4910 + $0x129] sm:$0xff]
  %v6284 = vld [vmem:[%s4910 + $0x139] sm:$0xff]
  %v6285 = vld [vmem:[%s4910 + $0x141] sm:$0xff]
  %v6286 = vld [vmem:[%s4910 + $0x151] sm:$0xff]
  %v6287 = vld [vmem:[%s4910 + $0x159] sm:$0xff]
  %v6288 = vld [vmem:[%s4910 + $0x169] sm:$0xff]
  %v6289 = vld [vmem:[%s4910 + $0x171] sm:$0xff]
  %v6290 = vld [vmem:[%s4910 + $0x1b1] sm:$0xff]
  %v6291 = vld [vmem:[%s4910 + $0x1b9] sm:$0xff]
  %v6292 = vld [vmem:[%s4910 + $0x1c9] sm:$0xff]
  %v6293 = vld [vmem:[%s4910 + $0x1d1] sm:$0xff]
  %v6294 = vld [vmem:[%s4910 + $0x1e1] sm:$0xff]
  %v6295 = vld [vmem:[%s4910 + $0x1e9] sm:$0xff]
  %v6296 = vld [vmem:[%s4910 + $0x1f9] sm:$0xff]
  %v6297 = vld [vmem:[%s4910 + $0x201] sm:$0xff]
  %v6298 = vld [vmem:[%s4910 + $0x211] sm:$0xff]
  %v6299 = vld [vmem:[%s4910 + $0x219] sm:$0xff]
  %v6300 = vld [vmem:[%s4910 + $0x229] sm:$0xff]
  %v6301 = vld [vmem:[%s4910 + $0x231] sm:$0xff]
  %v6302 = vld [vmem:[%s4910 + $0x241] sm:$0xff]
  %v6303 = vld [vmem:[%s4910 + $0x249] sm:$0xff]
  %v6304 = vld [vmem:[%s4910 + $0x259] sm:$0xff]
  %v6305 = vld [vmem:[%s4910 + $0x261] sm:$0xff]
  %v6306 = vld [vmem:[%s4910 + $0x271] sm:$0xff]
  %v6307 = vld [vmem:[%s4910 + $0x279] sm:$0xff]
  %v6308 = vld [vmem:[%s4910 + $0x289] sm:$0xff]
  %v6309 = vld [vmem:[%s4910 + $0x291] sm:$0xff]
  %v6310 = vld [vmem:[%s4910 + $0x2a1] sm:$0xff]
  %v6311 = vld [vmem:[%s4910 + $0x2a9] sm:$0xff]
  %v6312 = vld [vmem:[%s4910 + $0x2b9] sm:$0xff]
  %v6313 = vld [vmem:[%s4910 + $0x2c1] sm:$0xff]
  %v6314 = vld [vmem:[%s4910 + $0x2d1] sm:$0xff]
  %v6315 = vld [vmem:[%s4910 + $0x2d9] sm:$0xff]
  %v6316 = vld [vmem:[%s4910 + $0x2e9] sm:$0xff]
  %v6317 = vld [vmem:[%s4910 + $0x2f1] sm:$0xff]
  %v6318 = vld [vmem:[%s4910 + $0x301] sm:$0xff]
  %v6319 = vld [vmem:[%s4910 + $0x309] sm:$0xff]
  %v6320 = vld [vmem:[%s4910 + $0x319] sm:$0xff]
  %v6321 = vld [vmem:[%s4910 + $0x321] sm:$0xff]
  %6386 = vrot.lane.b32.xlu0 %v6258, 32
  %v6387 = vpop.permute.xlu0 %6386
  %6388 = vrot.lane.b32.xlu0 %v6259, 32
  %v6389 = vpop.permute.xlu0 %6388
  %6390 = vrot.lane.b32.xlu0 %v6260, 32
  %v6391 = vpop.permute.xlu0 %6390
  %6392 = vrot.lane.b32.xlu0 %v6261, 32
  %v6393 = vpop.permute.xlu0 %6392
  %6394 = vrot.lane.b32.xlu0 %v6262, 32
  %v6395 = vpop.permute.xlu0 %6394
  %6396 = vrot.lane.b32.xlu0 %v6263, 32
  %v6397 = vpop.permute.xlu0 %6396
  %6398 = vrot.lane.b32.xlu0 %v6264, 32
  %v6399 = vpop.permute.xlu0 %6398
  %6400 = vrot.lane.b32.xlu0 %v6265, 32
  %v6401 = vpop.permute.xlu0 %6400
  %6402 = vrot.lane.b32.xlu0 %v6266, 32
  %v6403 = vpop.permute.xlu0 %6402
  %6404 = vrot.lane.b32.xlu0 %v6267, 32
  %v6405 = vpop.permute.xlu0 %6404
  %6406 = vrot.lane.b32.xlu0 %v6268, 32
  %v6407 = vpop.permute.xlu0 %6406
  %6408 = vrot.lane.b32.xlu0 %v6269, 32
  %v6409 = vpop.permute.xlu0 %6408
  %6410 = vrot.lane.b32.xlu0 %v6270, 32
  %v6411 = vpop.permute.xlu0 %6410
  %6412 = vrot.lane.b32.xlu0 %v6271, 32
  %v6413 = vpop.permute.xlu0 %6412
  %6414 = vrot.lane.b32.xlu0 %v6272, 32
  %v6415 = vpop.permute.xlu0 %6414
  %6416 = vrot.lane.b32.xlu0 %v6273, 32
  %v6417 = vpop.permute.xlu0 %6416
  %6418 = vrot.lane.b32.xlu0 %v6274, 32
  %v6419 = vpop.permute.xlu0 %6418
  %6420 = vrot.lane.b32.xlu0 %v6275, 32
  %v6421 = vpop.permute.xlu0 %6420
  %6422 = vrot.lane.b32.xlu0 %v6276, 32
  %v6423 = vpop.permute.xlu0 %6422
  %6424 = vrot.lane.b32.xlu0 %v6277, 32
  %v6425 = vpop.permute.xlu0 %6424
  %6426 = vrot.lane.b32.xlu0 %v6278, 32
  %v6427 = vpop.permute.xlu0 %6426
  %6428 = vrot.lane.b32.xlu0 %v6279, 32
  %v6429 = vpop.permute.xlu0 %6428
  %6430 = vrot.lane.b32.xlu0 %v6280, 32
  %v6431 = vpop.permute.xlu0 %6430
  %6432 = vrot.lane.b32.xlu0 %v6281, 32
  %v6433 = vpop.permute.xlu0 %6432
  %6434 = vrot.lane.b32.xlu0 %v6282, 32
  %v6435 = vpop.permute.xlu0 %6434
  %6436 = vrot.lane.b32.xlu0 %v6283, 32
  %v6437 = vpop.permute.xlu0 %6436
  %6438 = vrot.lane.b32.xlu0 %v6284, 32
  %v6439 = vpop.permute.xlu0 %6438
  %6440 = vrot.lane.b32.xlu0 %v6285, 32
  %v6441 = vpop.permute.xlu0 %6440
  %6442 = vrot.lane.b32.xlu0 %v6286, 32
  %v6443 = vpop.permute.xlu0 %6442
  %6444 = vrot.lane.b32.xlu0 %v6287, 32
  %v6445 = vpop.permute.xlu0 %6444
  %6446 = vrot.lane.b32.xlu0 %v6288, 32
  %v6447 = vpop.permute.xlu0 %6446
  %6448 = vrot.lane.b32.xlu0 %v6289, 32
  %v6449 = vpop.permute.xlu0 %6448
  %6450 = vrot.lane.b32.xlu0 %v6290, 32
  %v6451 = vpop.permute.xlu0 %6450
  %6452 = vrot.lane.b32.xlu0 %v6291, 32
  %v6453 = vpop.permute.xlu0 %6452
  %6454 = vrot.lane.b32.xlu0 %v6292, 32
  %v6455 = vpop.permute.xlu0 %6454
  %6456 = vrot.lane.b32.xlu0 %v6293, 32
  %v6457 = vpop.permute.xlu0 %6456
  %6458 = vrot.lane.b32.xlu0 %v6294, 32
  %v6459 = vpop.permute.xlu0 %6458
  %6460 = vrot.lane.b32.xlu0 %v6295, 32
  %v6461 = vpop.permute.xlu0 %6460
  %6462 = vrot.lane.b32.xlu0 %v6296, 32
  %v6463 = vpop.permute.xlu0 %6462
  %6464 = vrot.lane.b32.xlu0 %v6297, 32
  %v6465 = vpop.permute.xlu0 %6464
  %6466 = vrot.lane.b32.xlu0 %v6298, 32
  %v6467 = vpop.permute.xlu0 %6466
  %6468 = vrot.lane.b32.xlu0 %v6299, 32
  %v6469 = vpop.permute.xlu0 %6468
  %6470 = vrot.lane.b32.xlu0 %v6300, 32
  %v6471 = vpop.permute.xlu0 %6470
  %6472 = vrot.lane.b32.xlu0 %v6301, 32
  %v6473 = vpop.permute.xlu0 %6472
  %6474 = vrot.lane.b32.xlu0 %v6302, 32
  %v6475 = vpop.permute.xlu0 %6474
  %6476 = vrot.lane.b32.xlu0 %v6303, 32
  %v6477 = vpop.permute.xlu0 %6476
  %6478 = vrot.lane.b32.xlu0 %v6304, 32
  %v6479 = vpop.permute.xlu0 %6478
  %6480 = vrot.lane.b32.xlu0 %v6305, 32
  %v6481 = vpop.permute.xlu0 %6480
  %6482 = vrot.lane.b32.xlu0 %v6306, 32
  %v6483 = vpop.permute.xlu0 %6482
  %6484 = vrot.lane.b32.xlu0 %v6307, 32
  %v6485 = vpop.permute.xlu0 %6484
  %6486 = vrot.lane.b32.xlu0 %v6308, 32
  %v6487 = vpop.permute.xlu0 %6486
  %6488 = vrot.lane.b32.xlu0 %v6309, 32
  %v6489 = vpop.permute.xlu0 %6488
  %6490 = vrot.lane.b32.xlu0 %v6310, 32
  %v6491 = vpop.permute.xlu0 %6490
  %6492 = vrot.lane.b32.xlu0 %v6311, 32
  %v6493 = vpop.permute.xlu0 %6492
  %6494 = vrot.lane.b32.xlu0 %v6312, 32
  %v6495 = vpop.permute.xlu0 %6494
  %6496 = vrot.lane.b32.xlu0 %v6313, 32
  %v6497 = vpop.permute.xlu0 %6496
  %6498 = vrot.lane.b32.xlu0 %v6314, 32
  %v6499 = vpop.permute.xlu0 %6498
  %6500 = vrot.lane.b32.xlu0 %v6315, 32
  %v6501 = vpop.permute.xlu0 %6500
  %6502 = vrot.lane.b32.xlu0 %v6316, 32
  %v6503 = vpop.permute.xlu0 %6502
  %6504 = vrot.lane.b32.xlu0 %v6317, 32
  %v6505 = vpop.permute.xlu0 %6504
  %6506 = vrot.lane.b32.xlu0 %v6318, 32
  %v6507 = vpop.permute.xlu0 %6506
  %6508 = vrot.lane.b32.xlu0 %v6319, 32
  %v6509 = vpop.permute.xlu0 %6508
  %6510 = vrot.lane.b32.xlu0 %v6320, 32
  %v6511 = vpop.permute.xlu0 %6510
  %6512 = vrot.lane.b32.xlu0 %v6321, 32
  %v6513 = vpop.permute.xlu0 %6512
  %vm6578 = vcmask 326912
  %6579 = vst.msk [vmem:[#allocation5] sm:$0xff] %vm6578, %v6387
  %6580 = vst.msk [vmem:[#allocation5 + $0x8] sm:$0xff] %vm6578, %v6389
  %6581 = vst.msk [vmem:[#allocation5 + $0x10] sm:$0xff] %vm6578, %v6391
  %6582 = vst.msk [vmem:[#allocation5 + $0x18] sm:$0xff] %vm6578, %v6393
  %6583 = vst.msk [vmem:[#allocation5 + $0x20] sm:$0xff] %vm6578, %v6395
  %6584 = vst.msk [vmem:[#allocation5 + $0x28] sm:$0xff] %vm6578, %v6397
  %6585 = vst.msk [vmem:[#allocation5 + $0x30] sm:$0xff] %vm6578, %v6399
  %6586 = vst.msk [vmem:[#allocation5 + $0x38] sm:$0xff] %vm6578, %v6401
  %6587 = vst.msk [vmem:[#allocation5 + $0x40] sm:$0xff] %vm6578, %v6403
  %6588 = vst.msk [vmem:[#allocation5 + $0x48] sm:$0xff] %vm6578, %v6405
  %6589 = vst.msk [vmem:[#allocation5 + $0x50] sm:$0xff] %vm6578, %v6407
  %6590 = vst.msk [vmem:[#allocation5 + $0x58] sm:$0xff] %vm6578, %v6409
  %6591 = vst.msk [vmem:[#allocation5 + $0x60] sm:$0xff] %vm6578, %v6411
  %6592 = vst.msk [vmem:[#allocation5 + $0x68] sm:$0xff] %vm6578, %v6413
  %6593 = vst.msk [vmem:[#allocation5 + $0x70] sm:$0xff] %vm6578, %v6415
  %6594 = vst.msk [vmem:[#allocation5 + $0x78] sm:$0xff] %vm6578, %v6417
  %6595 = vst.msk [vmem:[#allocation5 + $0x80] sm:$0xff] %vm6578, %v6419
  %6596 = vst.msk [vmem:[#allocation5 + $0x88] sm:$0xff] %vm6578, %v6421
  %6597 = vst.msk [vmem:[#allocation5 + $0x90] sm:$0xff] %vm6578, %v6423
  %6598 = vst.msk [vmem:[#allocation5 + $0x98] sm:$0xff] %vm6578, %v6425
  %6599 = vst.msk [vmem:[#allocation5 + $0xa0] sm:$0xff] %vm6578, %v6427
  %6600 = vst.msk [vmem:[#allocation5 + $0xa8] sm:$0xff] %vm6578, %v6429
  %6601 = vst.msk [vmem:[#allocation5 + $0xb0] sm:$0xff] %vm6578, %v6431
  %6602 = vst.msk [vmem:[#allocation5 + $0xb8] sm:$0xff] %vm6578, %v6433
  %6603 = vst.msk [vmem:[#allocation5 + $0xc0] sm:$0xff] %vm6578, %v6435
  %6604 = vst.msk [vmem:[#allocation5 + $0xc8] sm:$0xff] %vm6578, %v6437
  %6605 = vst.msk [vmem:[#allocation5 + $0xd0] sm:$0xff] %vm6578, %v6439
  %6606 = vst.msk [vmem:[#allocation5 + $0xd8] sm:$0xff] %vm6578, %v6441
  %6607 = vst.msk [vmem:[#allocation5 + $0xe0] sm:$0xff] %vm6578, %v6443
  %6608 = vst.msk [vmem:[#allocation5 + $0xe8] sm:$0xff] %vm6578, %v6445
  %6609 = vst.msk [vmem:[#allocation5 + $0xf0] sm:$0xff] %vm6578, %v6447
  %6610 = vst.msk [vmem:[#allocation5 + $0xf8] sm:$0xff] %vm6578, %v6449
  %6611 = vst.msk [vmem:[#allocation5 + $0x100] sm:$0xff] %vm6578, %v6451
  %6612 = vst.msk [vmem:[#allocation5 + $0x108] sm:$0xff] %vm6578, %v6453
  %6613 = vst.msk [vmem:[#allocation5 + $0x110] sm:$0xff] %vm6578, %v6455
  %6614 = vst.msk [vmem:[#allocation5 + $0x118] sm:$0xff] %vm6578, %v6457
  %6615 = vst.msk [vmem:[#allocation5 + $0x120] sm:$0xff] %vm6578, %v6459
  %6616 = vst.msk [vmem:[#allocation5 + $0x128] sm:$0xff] %vm6578, %v6461
  %6617 = vst.msk [vmem:[#allocation5 + $0x130] sm:$0xff] %vm6578, %v6463
  %6618 = vst.msk [vmem:[#allocation5 + $0x138] sm:$0xff] %vm6578, %v6465
  %6619 = vst.msk [vmem:[#allocation5 + $0x140] sm:$0xff] %vm6578, %v6467
  %6620 = vst.msk [vmem:[#allocation5 + $0x148] sm:$0xff] %vm6578, %v6469
  %6621 = vst.msk [vmem:[#allocation5 + $0x150] sm:$0xff] %vm6578, %v6471
  %6622 = vst.msk [vmem:[#allocation5 + $0x158] sm:$0xff] %vm6578, %v6473
  %6623 = vst.msk [vmem:[#allocation5 + $0x160] sm:$0xff] %vm6578, %v6475
  %6624 = vst.msk [vmem:[#allocation5 + $0x168] sm:$0xff] %vm6578, %v6477
  %6625 = vst.msk [vmem:[#allocation5 + $0x170] sm:$0xff] %vm6578, %v6479
  %6626 = vst.msk [vmem:[#allocation5 + $0x178] sm:$0xff] %vm6578, %v6481
  %6627 = vst.msk [vmem:[#allocation5 + $0x180] sm:$0xff] %vm6578, %v6483
  %6628 = vst.msk [vmem:[#allocation5 + $0x188] sm:$0xff] %vm6578, %v6485
  %6629 = vst.msk [vmem:[#allocation5 + $0x190] sm:$0xff] %vm6578, %v6487
  %6630 = vst.msk [vmem:[#allocation5 + $0x198] sm:$0xff] %vm6578, %v6489
  %6631 = vst.msk [vmem:[#allocation5 + $0x1a0] sm:$0xff] %vm6578, %v6491
  %6632 = vst.msk [vmem:[#allocation5 + $0x1a8] sm:$0xff] %vm6578, %v6493
  %6633 = vst.msk [vmem:[#allocation5 + $0x1b0] sm:$0xff] %vm6578, %v6495
  %6634 = vst.msk [vmem:[#allocation5 + $0x1b8] sm:$0xff] %vm6578, %v6497
  %6635 = vst.msk [vmem:[#allocation5 + $0x1c0] sm:$0xff] %vm6578, %v6499
  %6636 = vst.msk [vmem:[#allocation5 + $0x1c8] sm:$0xff] %vm6578, %v6501
  %6637 = vst.msk [vmem:[#allocation5 + $0x1d0] sm:$0xff] %vm6578, %v6503
  %6638 = vst.msk [vmem:[#allocation5 + $0x1d8] sm:$0xff] %vm6578, %v6505
  %6639 = vst.msk [vmem:[#allocation5 + $0x1e0] sm:$0xff] %vm6578, %v6507
  %6640 = vst.msk [vmem:[#allocation5 + $0x1e8] sm:$0xff] %vm6578, %v6509
  %6641 = vst.msk [vmem:[#allocation5 + $0x1f0] sm:$0xff] %vm6578, %v6511
  %6642 = vst.msk [vmem:[#allocation5 + $0x1f8] sm:$0xff] %vm6578, %v6513
  %v6643 = vld [vmem:[%s4910 + $0x2] sm:$0xff]
  %v6644 = vld [vmem:[%s4910 + $0xa] sm:$0xff]
  %v6645 = vld [vmem:[%s4910 + $0x1a] sm:$0xff]
  %v6646 = vld [vmem:[%s4910 + $0x22] sm:$0xff]
  %v6647 = vld [vmem:[%s4910 + $0x32] sm:$0xff]
  %v6648 = vld [vmem:[%s4910 + $0x3a] sm:$0xff]
  %v6649 = vld [vmem:[%s4910 + $0x4a] sm:$0xff]
  %v6650 = vld [vmem:[%s4910 + $0x52] sm:$0xff]
  %v6651 = vld [vmem:[%s4910 + $0x62] sm:$0xff]
  %v6652 = vld [vmem:[%s4910 + $0x6a] sm:$0xff]
  %v6653 = vld [vmem:[%s4910 + $0x7a] sm:$0xff]
  %v6654 = vld [vmem:[%s4910 + $0x82] sm:$0xff]
  %v6655 = vld [vmem:[%s4910 + $0x92] sm:$0xff]
  %v6656 = vld [vmem:[%s4910 + $0x9a] sm:$0xff]
  %v6657 = vld [vmem:[%s4910 + $0xaa] sm:$0xff]
  %v6658 = vld [vmem:[%s4910 + $0xb2] sm:$0xff]
  %v6659 = vld [vmem:[%s4910 + $0xc2] sm:$0xff]
  %v6660 = vld [vmem:[%s4910 + $0xca] sm:$0xff]
  %v6661 = vld [vmem:[%s4910 + $0xda] sm:$0xff]
  %v6662 = vld [vmem:[%s4910 + $0xe2] sm:$0xff]
  %v6663 = vld [vmem:[%s4910 + $0xf2] sm:$0xff]
  %v6664 = vld [vmem:[%s4910 + $0xfa] sm:$0xff]
  %v6665 = vld [vmem:[%s4910 + $0x10a] sm:$0xff]
  %v6666 = vld [vmem:[%s4910 + $0x112] sm:$0xff]
  %v6667 = vld [vmem:[%s4910 + $0x122] sm:$0xff]
  %v6668 = vld [vmem:[%s4910 + $0x12a] sm:$0xff]
  %v6669 = vld [vmem:[%s4910 + $0x13a] sm:$0xff]
  %v6670 = vld [vmem:[%s4910 + $0x142] sm:$0xff]
  %v6671 = vld [vmem:[%s4910 + $0x152] sm:$0xff]
  %v6672 = vld [vmem:[%s4910 + $0x15a] sm:$0xff]
  %v6673 = vld [vmem:[%s4910 + $0x16a] sm:$0xff]
  %v6674 = vld [vmem:[%s4910 + $0x172] sm:$0xff]
  %v6675 = vld [vmem:[%s4910 + $0x1b2] sm:$0xff]
  %v6676 = vld [vmem:[%s4910 + $0x1ba] sm:$0xff]
  %v6677 = vld [vmem:[%s4910 + $0x1ca] sm:$0xff]
  %v6678 = vld [vmem:[%s4910 + $0x1d2] sm:$0xff]
  %v6679 = vld [vmem:[%s4910 + $0x1e2] sm:$0xff]
  %v6680 = vld [vmem:[%s4910 + $0x1ea] sm:$0xff]
  %v6681 = vld [vmem:[%s4910 + $0x1fa] sm:$0xff]
  %v6682 = vld [vmem:[%s4910 + $0x202] sm:$0xff]
  %v6683 = vld [vmem:[%s4910 + $0x212] sm:$0xff]
  %v6684 = vld [vmem:[%s4910 + $0x21a] sm:$0xff]
  %v6685 = vld [vmem:[%s4910 + $0x22a] sm:$0xff]
  %v6686 = vld [vmem:[%s4910 + $0x232] sm:$0xff]
  %v6687 = vld [vmem:[%s4910 + $0x242] sm:$0xff]
  %v6688 = vld [vmem:[%s4910 + $0x24a] sm:$0xff]
  %v6689 = vld [vmem:[%s4910 + $0x25a] sm:$0xff]
  %v6690 = vld [vmem:[%s4910 + $0x262] sm:$0xff]
  %v6691 = vld [vmem:[%s4910 + $0x272] sm:$0xff]
  %v6692 = vld [vmem:[%s4910 + $0x27a] sm:$0xff]
  %v6693 = vld [vmem:[%s4910 + $0x28a] sm:$0xff]
  %v6694 = vld [vmem:[%s4910 + $0x292] sm:$0xff]
  %v6695 = vld [vmem:[%s4910 + $0x2a2] sm:$0xff]
  %v6696 = vld [vmem:[%s4910 + $0x2aa] sm:$0xff]
  %v6697 = vld [vmem:[%s4910 + $0x2ba] sm:$0xff]
  %v6698 = vld [vmem:[%s4910 + $0x2c2] sm:$0xff]
  %v6699 = vld [vmem:[%s4910 + $0x2d2] sm:$0xff]
  %v6700 = vld [vmem:[%s4910 + $0x2da] sm:$0xff]
  %v6701 = vld [vmem:[%s4910 + $0x2ea] sm:$0xff]
  %v6702 = vld [vmem:[%s4910 + $0x2f2] sm:$0xff]
  %v6703 = vld [vmem:[%s4910 + $0x302] sm:$0xff]
  %v6704 = vld [vmem:[%s4910 + $0x30a] sm:$0xff]
  %v6705 = vld [vmem:[%s4910 + $0x31a] sm:$0xff]
  %v6706 = vld [vmem:[%s4910 + $0x322] sm:$0xff]
  %6771 = vrot.lane.b32.xlu0 %v6643, 40
  %v6772 = vpop.permute.xlu0 %6771
  %6773 = vrot.lane.b32.xlu0 %v6644, 40
  %v6774 = vpop.permute.xlu0 %6773
  %6775 = vrot.lane.b32.xlu0 %v6645, 40
  %v6776 = vpop.permute.xlu0 %6775
  %6777 = vrot.lane.b32.xlu0 %v6646, 40
  %v6778 = vpop.permute.xlu0 %6777
  %6779 = vrot.lane.b32.xlu0 %v6647, 40
  %v6780 = vpop.permute.xlu0 %6779
  %6781 = vrot.lane.b32.xlu0 %v6648, 40
  %v6782 = vpop.permute.xlu0 %6781
  %6783 = vrot.lane.b32.xlu0 %v6649, 40
  %v6784 = vpop.permute.xlu0 %6783
  %6785 = vrot.lane.b32.xlu0 %v6650, 40
  %v6786 = vpop.permute.xlu0 %6785
  %6787 = vrot.lane.b32.xlu0 %v6651, 40
  %v6788 = vpop.permute.xlu0 %6787
  %6789 = vrot.lane.b32.xlu0 %v6652, 40
  %v6790 = vpop.permute.xlu0 %6789
  %6791 = vrot.lane.b32.xlu0 %v6653, 40
  %v6792 = vpop.permute.xlu0 %6791
  %6793 = vrot.lane.b32.xlu0 %v6654, 40
  %v6794 = vpop.permute.xlu0 %6793
  %6795 = vrot.lane.b32.xlu0 %v6655, 40
  %v6796 = vpop.permute.xlu0 %6795
  %6797 = vrot.lane.b32.xlu0 %v6656, 40
  %v6798 = vpop.permute.xlu0 %6797
  %6799 = vrot.lane.b32.xlu0 %v6657, 40
  %v6800 = vpop.permute.xlu0 %6799
  %6801 = vrot.lane.b32.xlu0 %v6658, 40
  %v6802 = vpop.permute.xlu0 %6801
  %6803 = vrot.lane.b32.xlu0 %v6659, 40
  %v6804 = vpop.permute.xlu0 %6803
  %6805 = vrot.lane.b32.xlu0 %v6660, 40
  %v6806 = vpop.permute.xlu0 %6805
  %6807 = vrot.lane.b32.xlu0 %v6661, 40
  %v6808 = vpop.permute.xlu0 %6807
  %6809 = vrot.lane.b32.xlu0 %v6662, 40
  %v6810 = vpop.permute.xlu0 %6809
  %6811 = vrot.lane.b32.xlu0 %v6663, 40
  %v6812 = vpop.permute.xlu0 %6811
  %6813 = vrot.lane.b32.xlu0 %v6664, 40
  %v6814 = vpop.permute.xlu0 %6813
  %6815 = vrot.lane.b32.xlu0 %v6665, 40
  %v6816 = vpop.permute.xlu0 %6815
  %6817 = vrot.lane.b32.xlu0 %v6666, 40
  %v6818 = vpop.permute.xlu0 %6817
  %6819 = vrot.lane.b32.xlu0 %v6667, 40
  %v6820 = vpop.permute.xlu0 %6819
  %6821 = vrot.lane.b32.xlu0 %v6668, 40
  %v6822 = vpop.permute.xlu0 %6821
  %6823 = vrot.lane.b32.xlu0 %v6669, 40
  %v6824 = vpop.permute.xlu0 %6823
  %6825 = vrot.lane.b32.xlu0 %v6670, 40
  %v6826 = vpop.permute.xlu0 %6825
  %6827 = vrot.lane.b32.xlu0 %v6671, 40
  %v6828 = vpop.permute.xlu0 %6827
  %6829 = vrot.lane.b32.xlu0 %v6672, 40
  %v6830 = vpop.permute.xlu0 %6829
  %6831 = vrot.lane.b32.xlu0 %v6673, 40
  %v6832 = vpop.permute.xlu0 %6831
  %6833 = vrot.lane.b32.xlu0 %v6674, 40
  %v6834 = vpop.permute.xlu0 %6833
  %6835 = vrot.lane.b32.xlu0 %v6675, 40
  %v6836 = vpop.permute.xlu0 %6835
  %6837 = vrot.lane.b32.xlu0 %v6676, 40
  %v6838 = vpop.permute.xlu0 %6837
  %6839 = vrot.lane.b32.xlu0 %v6677, 40
  %v6840 = vpop.permute.xlu0 %6839
  %6841 = vrot.lane.b32.xlu0 %v6678, 40
  %v6842 = vpop.permute.xlu0 %6841
  %6843 = vrot.lane.b32.xlu0 %v6679, 40
  %v6844 = vpop.permute.xlu0 %6843
  %6845 = vrot.lane.b32.xlu0 %v6680, 40
  %v6846 = vpop.permute.xlu0 %6845
  %6847 = vrot.lane.b32.xlu0 %v6681, 40
  %v6848 = vpop.permute.xlu0 %6847
  %6849 = vrot.lane.b32.xlu0 %v6682, 40
  %v6850 = vpop.permute.xlu0 %6849
  %6851 = vrot.lane.b32.xlu0 %v6683, 40
  %v6852 = vpop.permute.xlu0 %6851
  %6853 = vrot.lane.b32.xlu0 %v6684, 40
  %v6854 = vpop.permute.xlu0 %6853
  %6855 = vrot.lane.b32.xlu0 %v6685, 40
  %v6856 = vpop.permute.xlu0 %6855
  %6857 = vrot.lane.b32.xlu0 %v6686, 40
  %v6858 = vpop.permute.xlu0 %6857
  %6859 = vrot.lane.b32.xlu0 %v6687, 40
  %v6860 = vpop.permute.xlu0 %6859
  %6861 = vrot.lane.b32.xlu0 %v6688, 40
  %v6862 = vpop.permute.xlu0 %6861
  %6863 = vrot.lane.b32.xlu0 %v6689, 40
  %v6864 = vpop.permute.xlu0 %6863
  %6865 = vrot.lane.b32.xlu0 %v6690, 40
  %v6866 = vpop.permute.xlu0 %6865
  %6867 = vrot.lane.b32.xlu0 %v6691, 40
  %v6868 = vpop.permute.xlu0 %6867
  %6869 = vrot.lane.b32.xlu0 %v6692, 40
  %v6870 = vpop.permute.xlu0 %6869
  %6871 = vrot.lane.b32.xlu0 %v6693, 40
  %v6872 = vpop.permute.xlu0 %6871
  %6873 = vrot.lane.b32.xlu0 %v6694, 40
  %v6874 = vpop.permute.xlu0 %6873
  %6875 = vrot.lane.b32.xlu0 %v6695, 40
  %v6876 = vpop.permute.xlu0 %6875
  %6877 = vrot.lane.b32.xlu0 %v6696, 40
  %v6878 = vpop.permute.xlu0 %6877
  %6879 = vrot.lane.b32.xlu0 %v6697, 40
  %v6880 = vpop.permute.xlu0 %6879
  %6881 = vrot.lane.b32.xlu0 %v6698, 40
  %v6882 = vpop.permute.xlu0 %6881
  %6883 = vrot.lane.b32.xlu0 %v6699, 40
  %v6884 = vpop.permute.xlu0 %6883
  %6885 = vrot.lane.b32.xlu0 %v6700, 40
  %v6886 = vpop.permute.xlu0 %6885
  %6887 = vrot.lane.b32.xlu0 %v6701, 40
  %v6888 = vpop.permute.xlu0 %6887
  %6889 = vrot.lane.b32.xlu0 %v6702, 40
  %v6890 = vpop.permute.xlu0 %6889
  %6891 = vrot.lane.b32.xlu0 %v6703, 40
  %v6892 = vpop.permute.xlu0 %6891
  %6893 = vrot.lane.b32.xlu0 %v6704, 40
  %v6894 = vpop.permute.xlu0 %6893
  %6895 = vrot.lane.b32.xlu0 %v6705, 40
  %v6896 = vpop.permute.xlu0 %6895
  %6897 = vrot.lane.b32.xlu0 %v6706, 40
  %v6898 = vpop.permute.xlu0 %6897
  %vm6963 = vcmask 392512
  %6964 = vst.msk [vmem:[#allocation5] sm:$0xff] %vm6963, %v6772
  %6965 = vst.msk [vmem:[#allocation5 + $0x8] sm:$0xff] %vm6963, %v6774
  %6966 = vst.msk [vmem:[#allocation5 + $0x10] sm:$0xff] %vm6963, %v6776
  %6967 = vst.msk [vmem:[#allocation5 + $0x18] sm:$0xff] %vm6963, %v6778
  %6968 = vst.msk [vmem:[#allocation5 + $0x20] sm:$0xff] %vm6963, %v6780
  %6969 = vst.msk [vmem:[#allocation5 + $0x28] sm:$0xff] %vm6963, %v6782
  %6970 = vst.msk [vmem:[#allocation5 + $0x30] sm:$0xff] %vm6963, %v6784
  %6971 = vst.msk [vmem:[#allocation5 + $0x38] sm:$0xff] %vm6963, %v6786
  %6972 = vst.msk [vmem:[#allocation5 + $0x40] sm:$0xff] %vm6963, %v6788
  %6973 = vst.msk [vmem:[#allocation5 + $0x48] sm:$0xff] %vm6963, %v6790
  %6974 = vst.msk [vmem:[#allocation5 + $0x50] sm:$0xff] %vm6963, %v6792
  %6975 = vst.msk [vmem:[#allocation5 + $0x58] sm:$0xff] %vm6963, %v6794
  %6976 = vst.msk [vmem:[#allocation5 + $0x60] sm:$0xff] %vm6963, %v6796
  %6977 = vst.msk [vmem:[#allocation5 + $0x68] sm:$0xff] %vm6963, %v6798
  %6978 = vst.msk [vmem:[#allocation5 + $0x70] sm:$0xff] %vm6963, %v6800
  %6979 = vst.msk [vmem:[#allocation5 + $0x78] sm:$0xff] %vm6963, %v6802
  %6980 = vst.msk [vmem:[#allocation5 + $0x80] sm:$0xff] %vm6963, %v6804
  %6981 = vst.msk [vmem:[#allocation5 + $0x88] sm:$0xff] %vm6963, %v6806
  %6982 = vst.msk [vmem:[#allocation5 + $0x90] sm:$0xff] %vm6963, %v6808
  %6983 = vst.msk [vmem:[#allocation5 + $0x98] sm:$0xff] %vm6963, %v6810
  %6984 = vst.msk [vmem:[#allocation5 + $0xa0] sm:$0xff] %vm6963, %v6812
  %6985 = vst.msk [vmem:[#allocation5 + $0xa8] sm:$0xff] %vm6963, %v6814
  %6986 = vst.msk [vmem:[#allocation5 + $0xb0] sm:$0xff] %vm6963, %v6816
  %6987 = vst.msk [vmem:[#allocation5 + $0xb8] sm:$0xff] %vm6963, %v6818
  %6988 = vst.msk [vmem:[#allocation5 + $0xc0] sm:$0xff] %vm6963, %v6820
  %6989 = vst.msk [vmem:[#allocation5 + $0xc8] sm:$0xff] %vm6963, %v6822
  %6990 = vst.msk [vmem:[#allocation5 + $0xd0] sm:$0xff] %vm6963, %v6824
  %6991 = vst.msk [vmem:[#allocation5 + $0xd8] sm:$0xff] %vm6963, %v6826
  %6992 = vst.msk [vmem:[#allocation5 + $0xe0] sm:$0xff] %vm6963, %v6828
  %6993 = vst.msk [vmem:[#allocation5 + $0xe8] sm:$0xff] %vm6963, %v6830
  %6994 = vst.msk [vmem:[#allocation5 + $0xf0] sm:$0xff] %vm6963, %v6832
  %6995 = vst.msk [vmem:[#allocation5 + $0xf8] sm:$0xff] %vm6963, %v6834
  %6996 = vst.msk [vmem:[#allocation5 + $0x100] sm:$0xff] %vm6963, %v6836
  %6997 = vst.msk [vmem:[#allocation5 + $0x108] sm:$0xff] %vm6963, %v6838
  %6998 = vst.msk [vmem:[#allocation5 + $0x110] sm:$0xff] %vm6963, %v6840
  %6999 = vst.msk [vmem:[#allocation5 + $0x118] sm:$0xff] %vm6963, %v6842
  %7000 = vst.msk [vmem:[#allocation5 + $0x120] sm:$0xff] %vm6963, %v6844
  %7001 = vst.msk [vmem:[#allocation5 + $0x128] sm:$0xff] %vm6963, %v6846
  %7002 = vst.msk [vmem:[#allocation5 + $0x130] sm:$0xff] %vm6963, %v6848
  %7003 = vst.msk [vmem:[#allocation5 + $0x138] sm:$0xff] %vm6963, %v6850
  %7004 = vst.msk [vmem:[#allocation5 + $0x140] sm:$0xff] %vm6963, %v6852
  %7005 = vst.msk [vmem:[#allocation5 + $0x148] sm:$0xff] %vm6963, %v6854
  %7006 = vst.msk [vmem:[#allocation5 + $0x150] sm:$0xff] %vm6963, %v6856
  %7007 = vst.msk [vmem:[#allocation5 + $0x158] sm:$0xff] %vm6963, %v6858
  %7008 = vst.msk [vmem:[#allocation5 + $0x160] sm:$0xff] %vm6963, %v6860
  %7009 = vst.msk [vmem:[#allocation5 + $0x168] sm:$0xff] %vm6963, %v6862
  %7010 = vst.msk [vmem:[#allocation5 + $0x170] sm:$0xff] %vm6963, %v6864
  %7011 = vst.msk [vmem:[#allocation5 + $0x178] sm:$0xff] %vm6963, %v6866
  %7012 = vst.msk [vmem:[#allocation5 + $0x180] sm:$0xff] %vm6963, %v6868
  %7013 = vst.msk [vmem:[#allocation5 + $0x188] sm:$0xff] %vm6963, %v6870
  %7014 = vst.msk [vmem:[#allocation5 + $0x190] sm:$0xff] %vm6963, %v6872
  %7015 = vst.msk [vmem:[#allocation5 + $0x198] sm:$0xff] %vm6963, %v6874
  %7016 = vst.msk [vmem:[#allocation5 + $0x1a0] sm:$0xff] %vm6963, %v6876
  %7017 = vst.msk [vmem:[#allocation5 + $0x1a8] sm:$0xff] %vm6963, %v6878
  %7018 = vst.msk [vmem:[#allocation5 + $0x1b0] sm:$0xff] %vm6963, %v6880
  %7019 = vst.msk [vmem:[#allocation5 + $0x1b8] sm:$0xff] %vm6963, %v6882
  %7020 = vst.msk [vmem:[#allocation5 + $0x1c0] sm:$0xff] %vm6963, %v6884
  %7021 = vst.msk [vmem:[#allocation5 + $0x1c8] sm:$0xff] %vm6963, %v6886
  %7022 = vst.msk [vmem:[#allocation5 + $0x1d0] sm:$0xff] %vm6963, %v6888
  %7023 = vst.msk [vmem:[#allocation5 + $0x1d8] sm:$0xff] %vm6963, %v6890
  %7024 = vst.msk [vmem:[#allocation5 + $0x1e0] sm:$0xff] %vm6963, %v6892
  %7025 = vst.msk [vmem:[#allocation5 + $0x1e8] sm:$0xff] %vm6963, %v6894
  %7026 = vst.msk [vmem:[#allocation5 + $0x1f0] sm:$0xff] %vm6963, %v6896
  %7027 = vst.msk [vmem:[#allocation5 + $0x1f8] sm:$0xff] %vm6963, %v6898
  %s7028 = scalar_lea.vmem [#allocation3], 48
  %v7029 = vld [vmem:[%s7028] sm:$0xff]
  %v7030 = vld [vmem:[%s7028 + $0x8] sm:$0xff]
  %v7031 = vld [vmem:[%s7028 + $0x18] sm:$0xff]
  %v7032 = vld [vmem:[%s7028 + $0x20] sm:$0xff]
  %v7033 = vld [vmem:[%s7028 + $0x30] sm:$0xff]
  %v7034 = vld [vmem:[%s7028 + $0x38] sm:$0xff]
  %v7035 = vld [vmem:[%s7028 + $0x48] sm:$0xff]
  %v7036 = vld [vmem:[%s7028 + $0x50] sm:$0xff]
  %v7037 = vld [vmem:[%s7028 + $0x60] sm:$0xff]
  %v7038 = vld [vmem:[%s7028 + $0x68] sm:$0xff]
  %v7039 = vld [vmem:[%s7028 + $0x78] sm:$0xff]
  %v7040 = vld [vmem:[%s7028 + $0x80] sm:$0xff]
  %v7041 = vld [vmem:[%s7028 + $0x90] sm:$0xff]
  %v7042 = vld [vmem:[%s7028 + $0x98] sm:$0xff]
  %v7043 = vld [vmem:[%s7028 + $0xa8] sm:$0xff]
  %v7044 = vld [vmem:[%s7028 + $0xb0] sm:$0xff]
  %v7045 = vld [vmem:[%s7028 + $0xc0] sm:$0xff]
  %v7046 = vld [vmem:[%s7028 + $0xc8] sm:$0xff]
  %v7047 = vld [vmem:[%s7028 + $0xd8] sm:$0xff]
  %v7048 = vld [vmem:[%s7028 + $0xe0] sm:$0xff]
  %v7049 = vld [vmem:[%s7028 + $0xf0] sm:$0xff]
  %v7050 = vld [vmem:[%s7028 + $0xf8] sm:$0xff]
  %v7051 = vld [vmem:[%s7028 + $0x108] sm:$0xff]
  %v7052 = vld [vmem:[%s7028 + $0x110] sm:$0xff]
  %v7053 = vld [vmem:[%s7028 + $0x120] sm:$0xff]
  %v7054 = vld [vmem:[%s7028 + $0x128] sm:$0xff]
  %v7055 = vld [vmem:[%s7028 + $0x138] sm:$0xff]
  %v7056 = vld [vmem:[%s7028 + $0x140] sm:$0xff]
  %v7057 = vld [vmem:[%s7028 + $0x150] sm:$0xff]
  %v7058 = vld [vmem:[%s7028 + $0x158] sm:$0xff]
  %v7059 = vld [vmem:[%s7028 + $0x168] sm:$0xff]
  %v7060 = vld [vmem:[%s7028 + $0x170] sm:$0xff]
  %v7061 = vld [vmem:[%s7028 + $0x1b0] sm:$0xff]
  %v7062 = vld [vmem:[%s7028 + $0x1b8] sm:$0xff]
  %v7063 = vld [vmem:[%s7028 + $0x1c8] sm:$0xff]
  %v7064 = vld [vmem:[%s7028 + $0x1d0] sm:$0xff]
  %v7065 = vld [vmem:[%s7028 + $0x1e0] sm:$0xff]
  %v7066 = vld [vmem:[%s7028 + $0x1e8] sm:$0xff]
  %v7067 = vld [vmem:[%s7028 + $0x1f8] sm:$0xff]
  %v7068 = vld [vmem:[%s7028 + $0x200] sm:$0xff]
  %v7069 = vld [vmem:[%s7028 + $0x210] sm:$0xff]
  %v7070 = vld [vmem:[%s7028 + $0x218] sm:$0xff]
  %v7071 = vld [vmem:[%s7028 + $0x228] sm:$0xff]
  %v7072 = vld [vmem:[%s7028 + $0x230] sm:$0xff]
  %v7073 = vld [vmem:[%s7028 + $0x240] sm:$0xff]
  %v7074 = vld [vmem:[%s7028 + $0x248] sm:$0xff]
  %v7075 = vld [vmem:[%s7028 + $0x258] sm:$0xff]
  %v7076 = vld [vmem:[%s7028 + $0x260] sm:$0xff]
  %v7077 = vld [vmem:[%s7028 + $0x270] sm:$0xff]
  %v7078 = vld [vmem:[%s7028 + $0x278] sm:$0xff]
  %v7079 = vld [vmem:[%s7028 + $0x288] sm:$0xff]
  %v7080 = vld [vmem:[%s7028 + $0x290] sm:$0xff]
  %v7081 = vld [vmem:[%s7028 + $0x2a0] sm:$0xff]
  %v7082 = vld [vmem:[%s7028 + $0x2a8] sm:$0xff]
  %v7083 = vld [vmem:[%s7028 + $0x2b8] sm:$0xff]
  %v7084 = vld [vmem:[%s7028 + $0x2c0] sm:$0xff]
  %v7085 = vld [vmem:[%s7028 + $0x2d0] sm:$0xff]
  %v7086 = vld [vmem:[%s7028 + $0x2d8] sm:$0xff]
  %v7087 = vld [vmem:[%s7028 + $0x2e8] sm:$0xff]
  %v7088 = vld [vmem:[%s7028 + $0x2f0] sm:$0xff]
  %v7089 = vld [vmem:[%s7028 + $0x300] sm:$0xff]
  %v7090 = vld [vmem:[%s7028 + $0x308] sm:$0xff]
  %v7091 = vld [vmem:[%s7028 + $0x318] sm:$0xff]
  %v7092 = vld [vmem:[%s7028 + $0x320] sm:$0xff]
  %7157 = vrot.lane.b32.xlu0 %v7029, 48
  %v7158 = vpop.permute.xlu0 %7157
  %7159 = vrot.lane.b32.xlu0 %v7030, 48
  %v7160 = vpop.permute.xlu0 %7159
  %7161 = vrot.lane.b32.xlu0 %v7031, 48
  %v7162 = vpop.permute.xlu0 %7161
  %7163 = vrot.lane.b32.xlu0 %v7032, 48
  %v7164 = vpop.permute.xlu0 %7163
  %7165 = vrot.lane.b32.xlu0 %v7033, 48
  %v7166 = vpop.permute.xlu0 %7165
  %7167 = vrot.lane.b32.xlu0 %v7034, 48
  %v7168 = vpop.permute.xlu0 %7167
  %7169 = vrot.lane.b32.xlu0 %v7035, 48
  %v7170 = vpop.permute.xlu0 %7169
  %7171 = vrot.lane.b32.xlu0 %v7036, 48
  %v7172 = vpop.permute.xlu0 %7171
  %7173 = vrot.lane.b32.xlu0 %v7037, 48
  %v7174 = vpop.permute.xlu0 %7173
  %7175 = vrot.lane.b32.xlu0 %v7038, 48
  %v7176 = vpop.permute.xlu0 %7175
  %7177 = vrot.lane.b32.xlu0 %v7039, 48
  %v7178 = vpop.permute.xlu0 %7177
  %7179 = vrot.lane.b32.xlu0 %v7040, 48
  %v7180 = vpop.permute.xlu0 %7179
  %7181 = vrot.lane.b32.xlu0 %v7041, 48
  %v7182 = vpop.permute.xlu0 %7181
  %7183 = vrot.lane.b32.xlu0 %v7042, 48
  %v7184 = vpop.permute.xlu0 %7183
  %7185 = vrot.lane.b32.xlu0 %v7043, 48
  %v7186 = vpop.permute.xlu0 %7185
  %7187 = vrot.lane.b32.xlu0 %v7044, 48
  %v7188 = vpop.permute.xlu0 %7187
  %7189 = vrot.lane.b32.xlu0 %v7045, 48
  %v7190 = vpop.permute.xlu0 %7189
  %7191 = vrot.lane.b32.xlu0 %v7046, 48
  %v7192 = vpop.permute.xlu0 %7191
  %7193 = vrot.lane.b32.xlu0 %v7047, 48
  %v7194 = vpop.permute.xlu0 %7193
  %7195 = vrot.lane.b32.xlu0 %v7048, 48
  %v7196 = vpop.permute.xlu0 %7195
  %7197 = vrot.lane.b32.xlu0 %v7049, 48
  %v7198 = vpop.permute.xlu0 %7197
  %7199 = vrot.lane.b32.xlu0 %v7050, 48
  %v7200 = vpop.permute.xlu0 %7199
  %7201 = vrot.lane.b32.xlu0 %v7051, 48
  %v7202 = vpop.permute.xlu0 %7201
  %7203 = vrot.lane.b32.xlu0 %v7052, 48
  %v7204 = vpop.permute.xlu0 %7203
  %7205 = vrot.lane.b32.xlu0 %v7053, 48
  %v7206 = vpop.permute.xlu0 %7205
  %7207 = vrot.lane.b32.xlu0 %v7054, 48
  %v7208 = vpop.permute.xlu0 %7207
  %7209 = vrot.lane.b32.xlu0 %v7055, 48
  %v7210 = vpop.permute.xlu0 %7209
  %7211 = vrot.lane.b32.xlu0 %v7056, 48
  %v7212 = vpop.permute.xlu0 %7211
  %7213 = vrot.lane.b32.xlu0 %v7057, 48
  %v7214 = vpop.permute.xlu0 %7213
  %7215 = vrot.lane.b32.xlu0 %v7058, 48
  %v7216 = vpop.permute.xlu0 %7215
  %7217 = vrot.lane.b32.xlu0 %v7059, 48
  %v7218 = vpop.permute.xlu0 %7217
  %7219 = vrot.lane.b32.xlu0 %v7060, 48
  %v7220 = vpop.permute.xlu0 %7219
  %7221 = vrot.lane.b32.xlu0 %v7061, 48
  %v7222 = vpop.permute.xlu0 %7221
  %7223 = vrot.lane.b32.xlu0 %v7062, 48
  %v7224 = vpop.permute.xlu0 %7223
  %7225 = vrot.lane.b32.xlu0 %v7063, 48
  %v7226 = vpop.permute.xlu0 %7225
  %7227 = vrot.lane.b32.xlu0 %v7064, 48
  %v7228 = vpop.permute.xlu0 %7227
  %7229 = vrot.lane.b32.xlu0 %v7065, 48
  %v7230 = vpop.permute.xlu0 %7229
  %7231 = vrot.lane.b32.xlu0 %v7066, 48
  %v7232 = vpop.permute.xlu0 %7231
  %7233 = vrot.lane.b32.xlu0 %v7067, 48
  %v7234 = vpop.permute.xlu0 %7233
  %7235 = vrot.lane.b32.xlu0 %v7068, 48
  %v7236 = vpop.permute.xlu0 %7235
  %7237 = vrot.lane.b32.xlu0 %v7069, 48
  %v7238 = vpop.permute.xlu0 %7237
  %7239 = vrot.lane.b32.xlu0 %v7070, 48
  %v7240 = vpop.permute.xlu0 %7239
  %7241 = vrot.lane.b32.xlu0 %v7071, 48
  %v7242 = vpop.permute.xlu0 %7241
  %7243 = vrot.lane.b32.xlu0 %v7072, 48
  %v7244 = vpop.permute.xlu0 %7243
  %7245 = vrot.lane.b32.xlu0 %v7073, 48
  %v7246 = vpop.permute.xlu0 %7245
  %7247 = vrot.lane.b32.xlu0 %v7074, 48
  %v7248 = vpop.permute.xlu0 %7247
  %7249 = vrot.lane.b32.xlu0 %v7075, 48
  %v7250 = vpop.permute.xlu0 %7249
  %7251 = vrot.lane.b32.xlu0 %v7076, 48
  %v7252 = vpop.permute.xlu0 %7251
  %7253 = vrot.lane.b32.xlu0 %v7077, 48
  %v7254 = vpop.permute.xlu0 %7253
  %7255 = vrot.lane.b32.xlu0 %v7078, 48
  %v7256 = vpop.permute.xlu0 %7255
  %7257 = vrot.lane.b32.xlu0 %v7079, 48
  %v7258 = vpop.permute.xlu0 %7257
  %7259 = vrot.lane.b32.xlu0 %v7080, 48
  %v7260 = vpop.permute.xlu0 %7259
  %7261 = vrot.lane.b32.xlu0 %v7081, 48
  %v7262 = vpop.permute.xlu0 %7261
  %7263 = vrot.lane.b32.xlu0 %v7082, 48
  %v7264 = vpop.permute.xlu0 %7263
  %7265 = vrot.lane.b32.xlu0 %v7083, 48
  %v7266 = vpop.permute.xlu0 %7265
  %7267 = vrot.lane.b32.xlu0 %v7084, 48
  %v7268 = vpop.permute.xlu0 %7267
  %7269 = vrot.lane.b32.xlu0 %v7085, 48
  %v7270 = vpop.permute.xlu0 %7269
  %7271 = vrot.lane.b32.xlu0 %v7086, 48
  %v7272 = vpop.permute.xlu0 %7271
  %7273 = vrot.lane.b32.xlu0 %v7087, 48
  %v7274 = vpop.permute.xlu0 %7273
  %7275 = vrot.lane.b32.xlu0 %v7088, 48
  %v7276 = vpop.permute.xlu0 %7275
  %7277 = vrot.lane.b32.xlu0 %v7089, 48
  %v7278 = vpop.permute.xlu0 %7277
  %7279 = vrot.lane.b32.xlu0 %v7090, 48
  %v7280 = vpop.permute.xlu0 %7279
  %7281 = vrot.lane.b32.xlu0 %v7091, 48
  %v7282 = vpop.permute.xlu0 %7281
  %7283 = vrot.lane.b32.xlu0 %v7092, 48
  %v7284 = vpop.permute.xlu0 %7283
  %vm7349 = vcmask 458112
  %7350 = vst.msk [vmem:[#allocation5] sm:$0xff] %vm7349, %v7158
  %7351 = vst.msk [vmem:[#allocation5 + $0x8] sm:$0xff] %vm7349, %v7160
  %7352 = vst.msk [vmem:[#allocation5 + $0x10] sm:$0xff] %vm7349, %v7162
  %7353 = vst.msk [vmem:[#allocation5 + $0x18] sm:$0xff] %vm7349, %v7164
  %7354 = vst.msk [vmem:[#allocation5 + $0x20] sm:$0xff] %vm7349, %v7166
  %7355 = vst.msk [vmem:[#allocation5 + $0x28] sm:$0xff] %vm7349, %v7168
  %7356 = vst.msk [vmem:[#allocation5 + $0x30] sm:$0xff] %vm7349, %v7170
  %7357 = vst.msk [vmem:[#allocation5 + $0x38] sm:$0xff] %vm7349, %v7172
  %7358 = vst.msk [vmem:[#allocation5 + $0x40] sm:$0xff] %vm7349, %v7174
  %7359 = vst.msk [vmem:[#allocation5 + $0x48] sm:$0xff] %vm7349, %v7176
  %7360 = vst.msk [vmem:[#allocation5 + $0x50] sm:$0xff] %vm7349, %v7178
  %7361 = vst.msk [vmem:[#allocation5 + $0x58] sm:$0xff] %vm7349, %v7180
  %7362 = vst.msk [vmem:[#allocation5 + $0x60] sm:$0xff] %vm7349, %v7182
  %7363 = vst.msk [vmem:[#allocation5 + $0x68] sm:$0xff] %vm7349, %v7184
  %7364 = vst.msk [vmem:[#allocation5 + $0x70] sm:$0xff] %vm7349, %v7186
  %7365 = vst.msk [vmem:[#allocation5 + $0x78] sm:$0xff] %vm7349, %v7188
  %7366 = vst.msk [vmem:[#allocation5 + $0x80] sm:$0xff] %vm7349, %v7190
  %7367 = vst.msk [vmem:[#allocation5 + $0x88] sm:$0xff] %vm7349, %v7192
  %7368 = vst.msk [vmem:[#allocation5 + $0x90] sm:$0xff] %vm7349, %v7194
  %7369 = vst.msk [vmem:[#allocation5 + $0x98] sm:$0xff] %vm7349, %v7196
  %7370 = vst.msk [vmem:[#allocation5 + $0xa0] sm:$0xff] %vm7349, %v7198
  %7371 = vst.msk [vmem:[#allocation5 + $0xa8] sm:$0xff] %vm7349, %v7200
  %7372 = vst.msk [vmem:[#allocation5 + $0xb0] sm:$0xff] %vm7349, %v7202
  %7373 = vst.msk [vmem:[#allocation5 + $0xb8] sm:$0xff] %vm7349, %v7204
  %7374 = vst.msk [vmem:[#allocation5 + $0xc0] sm:$0xff] %vm7349, %v7206
  %7375 = vst.msk [vmem:[#allocation5 + $0xc8] sm:$0xff] %vm7349, %v7208
  %7376 = vst.msk [vmem:[#allocation5 + $0xd0] sm:$0xff] %vm7349, %v7210
  %7377 = vst.msk [vmem:[#allocation5 + $0xd8] sm:$0xff] %vm7349, %v7212
  %7378 = vst.msk [vmem:[#allocation5 + $0xe0] sm:$0xff] %vm7349, %v7214
  %7379 = vst.msk [vmem:[#allocation5 + $0xe8] sm:$0xff] %vm7349, %v7216
  %7380 = vst.msk [vmem:[#allocation5 + $0xf0] sm:$0xff] %vm7349, %v7218
  %7381 = vst.msk [vmem:[#allocation5 + $0xf8] sm:$0xff] %vm7349, %v7220
  %7382 = vst.msk [vmem:[#allocation5 + $0x100] sm:$0xff] %vm7349, %v7222
  %7383 = vst.msk [vmem:[#allocation5 + $0x108] sm:$0xff] %vm7349, %v7224
  %7384 = vst.msk [vmem:[#allocation5 + $0x110] sm:$0xff] %vm7349, %v7226
  %7385 = vst.msk [vmem:[#allocation5 + $0x118] sm:$0xff] %vm7349, %v7228
  %7386 = vst.msk [vmem:[#allocation5 + $0x120] sm:$0xff] %vm7349, %v7230
  %7387 = vst.msk [vmem:[#allocation5 + $0x128] sm:$0xff] %vm7349, %v7232
  %7388 = vst.msk [vmem:[#allocation5 + $0x130] sm:$0xff] %vm7349, %v7234
  %7389 = vst.msk [vmem:[#allocation5 + $0x138] sm:$0xff] %vm7349, %v7236
  %7390 = vst.msk [vmem:[#allocation5 + $0x140] sm:$0xff] %vm7349, %v7238
  %7391 = vst.msk [vmem:[#allocation5 + $0x148] sm:$0xff] %vm7349, %v7240
  %7392 = vst.msk [vmem:[#allocation5 + $0x150] sm:$0xff] %vm7349, %v7242
  %7393 = vst.msk [vmem:[#allocation5 + $0x158] sm:$0xff] %vm7349, %v7244
  %7394 = vst.msk [vmem:[#allocation5 + $0x160] sm:$0xff] %vm7349, %v7246
  %7395 = vst.msk [vmem:[#allocation5 + $0x168] sm:$0xff] %vm7349, %v7248
  %7396 = vst.msk [vmem:[#allocation5 + $0x170] sm:$0xff] %vm7349, %v7250
  %7397 = vst.msk [vmem:[#allocation5 + $0x178] sm:$0xff] %vm7349, %v7252
  %7398 = vst.msk [vmem:[#allocation5 + $0x180] sm:$0xff] %vm7349, %v7254
  %7399 = vst.msk [vmem:[#allocation5 + $0x188] sm:$0xff] %vm7349, %v7256
  %7400 = vst.msk [vmem:[#allocation5 + $0x190] sm:$0xff] %vm7349, %v7258
  %7401 = vst.msk [vmem:[#allocation5 + $0x198] sm:$0xff] %vm7349, %v7260
  %7402 = vst.msk [vmem:[#allocation5 + $0x1a0] sm:$0xff] %vm7349, %v7262
  %7403 = vst.msk [vmem:[#allocation5 + $0x1a8] sm:$0xff] %vm7349, %v7264
  %7404 = vst.msk [vmem:[#allocation5 + $0x1b0] sm:$0xff] %vm7349, %v7266
  %7405 = vst.msk [vmem:[#allocation5 + $0x1b8] sm:$0xff] %vm7349, %v7268
  %7406 = vst.msk [vmem:[#allocation5 + $0x1c0] sm:$0xff] %vm7349, %v7270
  %7407 = vst.msk [vmem:[#allocation5 + $0x1c8] sm:$0xff] %vm7349, %v7272
  %7408 = vst.msk [vmem:[#allocation5 + $0x1d0] sm:$0xff] %vm7349, %v7274
  %7409 = vst.msk [vmem:[#allocation5 + $0x1d8] sm:$0xff] %vm7349, %v7276
  %7410 = vst.msk [vmem:[#allocation5 + $0x1e0] sm:$0xff] %vm7349, %v7278
  %7411 = vst.msk [vmem:[#allocation5 + $0x1e8] sm:$0xff] %vm7349, %v7280
  %7412 = vst.msk [vmem:[#allocation5 + $0x1f0] sm:$0xff] %vm7349, %v7282
  %7413 = vst.msk [vmem:[#allocation5 + $0x1f8] sm:$0xff] %vm7349, %v7284
  %v7414 = vld [vmem:[%s7028 + $0x1] sm:$0xff]
  %v7415 = vld [vmem:[%s7028 + $0x9] sm:$0xff]
  %v7416 = vld [vmem:[%s7028 + $0x19] sm:$0xff]
  %v7417 = vld [vmem:[%s7028 + $0x21] sm:$0xff]
  %v7418 = vld [vmem:[%s7028 + $0x31] sm:$0xff]
  %v7419 = vld [vmem:[%s7028 + $0x39] sm:$0xff]
  %v7420 = vld [vmem:[%s7028 + $0x49] sm:$0xff]
  %v7421 = vld [vmem:[%s7028 + $0x51] sm:$0xff]
  %v7422 = vld [vmem:[%s7028 + $0x61] sm:$0xff]
  %v7423 = vld [vmem:[%s7028 + $0x69] sm:$0xff]
  %v7424 = vld [vmem:[%s7028 + $0x79] sm:$0xff]
  %v7425 = vld [vmem:[%s7028 + $0x81] sm:$0xff]
  %v7426 = vld [vmem:[%s7028 + $0x91] sm:$0xff]
  %v7427 = vld [vmem:[%s7028 + $0x99] sm:$0xff]
  %v7428 = vld [vmem:[%s7028 + $0xa9] sm:$0xff]
  %v7429 = vld [vmem:[%s7028 + $0xb1] sm:$0xff]
  %v7430 = vld [vmem:[%s7028 + $0xc1] sm:$0xff]
  %v7431 = vld [vmem:[%s7028 + $0xc9] sm:$0xff]
  %v7432 = vld [vmem:[%s7028 + $0xd9] sm:$0xff]
  %v7433 = vld [vmem:[%s7028 + $0xe1] sm:$0xff]
  %v7434 = vld [vmem:[%s7028 + $0xf1] sm:$0xff]
  %v7435 = vld [vmem:[%s7028 + $0xf9] sm:$0xff]
  %v7436 = vld [vmem:[%s7028 + $0x109] sm:$0xff]
  %v7437 = vld [vmem:[%s7028 + $0x111] sm:$0xff]
  %v7438 = vld [vmem:[%s7028 + $0x121] sm:$0xff]
  %v7439 = vld [vmem:[%s7028 + $0x129] sm:$0xff]
  %v7440 = vld [vmem:[%s7028 + $0x139] sm:$0xff]
  %v7441 = vld [vmem:[%s7028 + $0x141] sm:$0xff]
  %v7442 = vld [vmem:[%s7028 + $0x151] sm:$0xff]
  %v7443 = vld [vmem:[%s7028 + $0x159] sm:$0xff]
  %v7444 = vld [vmem:[%s7028 + $0x169] sm:$0xff]
  %v7445 = vld [vmem:[%s7028 + $0x171] sm:$0xff]
  %v7446 = vld [vmem:[%s7028 + $0x1b1] sm:$0xff]
  %v7447 = vld [vmem:[%s7028 + $0x1b9] sm:$0xff]
  %v7448 = vld [vmem:[%s7028 + $0x1c9] sm:$0xff]
  %v7449 = vld [vmem:[%s7028 + $0x1d1] sm:$0xff]
  %v7450 = vld [vmem:[%s7028 + $0x1e1] sm:$0xff]
  %v7451 = vld [vmem:[%s7028 + $0x1e9] sm:$0xff]
  %v7452 = vld [vmem:[%s7028 + $0x1f9] sm:$0xff]
  %v7453 = vld [vmem:[%s7028 + $0x201] sm:$0xff]
  %v7454 = vld [vmem:[%s7028 + $0x211] sm:$0xff]
  %v7455 = vld [vmem:[%s7028 + $0x219] sm:$0xff]
  %v7456 = vld [vmem:[%s7028 + $0x229] sm:$0xff]
  %v7457 = vld [vmem:[%s7028 + $0x231] sm:$0xff]
  %v7458 = vld [vmem:[%s7028 + $0x241] sm:$0xff]
  %v7459 = vld [vmem:[%s7028 + $0x249] sm:$0xff]
  %v7460 = vld [vmem:[%s7028 + $0x259] sm:$0xff]
  %v7461 = vld [vmem:[%s7028 + $0x261] sm:$0xff]
  %v7462 = vld [vmem:[%s7028 + $0x271] sm:$0xff]
  %v7463 = vld [vmem:[%s7028 + $0x279] sm:$0xff]
  %v7464 = vld [vmem:[%s7028 + $0x289] sm:$0xff]
  %v7465 = vld [vmem:[%s7028 + $0x291] sm:$0xff]
  %v7466 = vld [vmem:[%s7028 + $0x2a1] sm:$0xff]
  %v7467 = vld [vmem:[%s7028 + $0x2a9] sm:$0xff]
  %v7468 = vld [vmem:[%s7028 + $0x2b9] sm:$0xff]
  %v7469 = vld [vmem:[%s7028 + $0x2c1] sm:$0xff]
  %v7470 = vld [vmem:[%s7028 + $0x2d1] sm:$0xff]
  %v7471 = vld [vmem:[%s7028 + $0x2d9] sm:$0xff]
  %v7472 = vld [vmem:[%s7028 + $0x2e9] sm:$0xff]
  %v7473 = vld [vmem:[%s7028 + $0x2f1] sm:$0xff]
  %v7474 = vld [vmem:[%s7028 + $0x301] sm:$0xff]
  %v7475 = vld [vmem:[%s7028 + $0x309] sm:$0xff]
  %v7476 = vld [vmem:[%s7028 + $0x319] sm:$0xff]
  %v7477 = vld [vmem:[%s7028 + $0x321] sm:$0xff]
  %7542 = vrot.lane.b32.xlu0 %v7414, 56
  %v7543 = vpop.permute.xlu0 %7542
  %7544 = vrot.lane.b32.xlu0 %v7415, 56
  %v7545 = vpop.permute.xlu0 %7544
  %7546 = vrot.lane.b32.xlu0 %v7416, 56
  %v7547 = vpop.permute.xlu0 %7546
  %7548 = vrot.lane.b32.xlu0 %v7417, 56
  %v7549 = vpop.permute.xlu0 %7548
  %7550 = vrot.lane.b32.xlu0 %v7418, 56
  %v7551 = vpop.permute.xlu0 %7550
  %7552 = vrot.lane.b32.xlu0 %v7419, 56
  %v7553 = vpop.permute.xlu0 %7552
  %7554 = vrot.lane.b32.xlu0 %v7420, 56
  %v7555 = vpop.permute.xlu0 %7554
  %7556 = vrot.lane.b32.xlu0 %v7421, 56
  %v7557 = vpop.permute.xlu0 %7556
  %7558 = vrot.lane.b32.xlu0 %v7422, 56
  %v7559 = vpop.permute.xlu0 %7558
  %7560 = vrot.lane.b32.xlu0 %v7423, 56
  %v7561 = vpop.permute.xlu0 %7560
  %7562 = vrot.lane.b32.xlu0 %v7424, 56
  %v7563 = vpop.permute.xlu0 %7562
  %7564 = vrot.lane.b32.xlu0 %v7425, 56
  %v7565 = vpop.permute.xlu0 %7564
  %7566 = vrot.lane.b32.xlu0 %v7426, 56
  %v7567 = vpop.permute.xlu0 %7566
  %7568 = vrot.lane.b32.xlu0 %v7427, 56
  %v7569 = vpop.permute.xlu0 %7568
  %7570 = vrot.lane.b32.xlu0 %v7428, 56
  %v7571 = vpop.permute.xlu0 %7570
  %7572 = vrot.lane.b32.xlu0 %v7429, 56
  %v7573 = vpop.permute.xlu0 %7572
  %7574 = vrot.lane.b32.xlu0 %v7430, 56
  %v7575 = vpop.permute.xlu0 %7574
  %7576 = vrot.lane.b32.xlu0 %v7431, 56
  %v7577 = vpop.permute.xlu0 %7576
  %7578 = vrot.lane.b32.xlu0 %v7432, 56
  %v7579 = vpop.permute.xlu0 %7578
  %7580 = vrot.lane.b32.xlu0 %v7433, 56
  %v7581 = vpop.permute.xlu0 %7580
  %7582 = vrot.lane.b32.xlu0 %v7434, 56
  %v7583 = vpop.permute.xlu0 %7582
  %7584 = vrot.lane.b32.xlu0 %v7435, 56
  %v7585 = vpop.permute.xlu0 %7584
  %7586 = vrot.lane.b32.xlu0 %v7436, 56
  %v7587 = vpop.permute.xlu0 %7586
  %7588 = vrot.lane.b32.xlu0 %v7437, 56
  %v7589 = vpop.permute.xlu0 %7588
  %7590 = vrot.lane.b32.xlu0 %v7438, 56
  %v7591 = vpop.permute.xlu0 %7590
  %7592 = vrot.lane.b32.xlu0 %v7439, 56
  %v7593 = vpop.permute.xlu0 %7592
  %7594 = vrot.lane.b32.xlu0 %v7440, 56
  %v7595 = vpop.permute.xlu0 %7594
  %7596 = vrot.lane.b32.xlu0 %v7441, 56
  %v7597 = vpop.permute.xlu0 %7596
  %7598 = vrot.lane.b32.xlu0 %v7442, 56
  %v7599 = vpop.permute.xlu0 %7598
  %7600 = vrot.lane.b32.xlu0 %v7443, 56
  %v7601 = vpop.permute.xlu0 %7600
  %7602 = vrot.lane.b32.xlu0 %v7444, 56
  %v7603 = vpop.permute.xlu0 %7602
  %7604 = vrot.lane.b32.xlu0 %v7445, 56
  %v7605 = vpop.permute.xlu0 %7604
  %7606 = vrot.lane.b32.xlu0 %v7446, 56
  %v7607 = vpop.permute.xlu0 %7606
  %7608 = vrot.lane.b32.xlu0 %v7447, 56
  %v7609 = vpop.permute.xlu0 %7608
  %7610 = vrot.lane.b32.xlu0 %v7448, 56
  %v7611 = vpop.permute.xlu0 %7610
  %7612 = vrot.lane.b32.xlu0 %v7449, 56
  %v7613 = vpop.permute.xlu0 %7612
  %7614 = vrot.lane.b32.xlu0 %v7450, 56
  %v7615 = vpop.permute.xlu0 %7614
  %7616 = vrot.lane.b32.xlu0 %v7451, 56
  %v7617 = vpop.permute.xlu0 %7616
  %7618 = vrot.lane.b32.xlu0 %v7452, 56
  %v7619 = vpop.permute.xlu0 %7618
  %7620 = vrot.lane.b32.xlu0 %v7453, 56
  %v7621 = vpop.permute.xlu0 %7620
  %7622 = vrot.lane.b32.xlu0 %v7454, 56
  %v7623 = vpop.permute.xlu0 %7622
  %7624 = vrot.lane.b32.xlu0 %v7455, 56
  %v7625 = vpop.permute.xlu0 %7624
  %7626 = vrot.lane.b32.xlu0 %v7456, 56
  %v7627 = vpop.permute.xlu0 %7626
  %7628 = vrot.lane.b32.xlu0 %v7457, 56
  %v7629 = vpop.permute.xlu0 %7628
  %7630 = vrot.lane.b32.xlu0 %v7458, 56
  %v7631 = vpop.permute.xlu0 %7630
  %7632 = vrot.lane.b32.xlu0 %v7459, 56
  %v7633 = vpop.permute.xlu0 %7632
  %7634 = vrot.lane.b32.xlu0 %v7460, 56
  %v7635 = vpop.permute.xlu0 %7634
  %7636 = vrot.lane.b32.xlu0 %v7461, 56
  %v7637 = vpop.permute.xlu0 %7636
  %7638 = vrot.lane.b32.xlu0 %v7462, 56
  %v7639 = vpop.permute.xlu0 %7638
  %7640 = vrot.lane.b32.xlu0 %v7463, 56
  %v7641 = vpop.permute.xlu0 %7640
  %7642 = vrot.lane.b32.xlu0 %v7464, 56
  %v7643 = vpop.permute.xlu0 %7642
  %7644 = vrot.lane.b32.xlu0 %v7465, 56
  %v7645 = vpop.permute.xlu0 %7644
  %7646 = vrot.lane.b32.xlu0 %v7466, 56
  %v7647 = vpop.permute.xlu0 %7646
  %7648 = vrot.lane.b32.xlu0 %v7467, 56
  %v7649 = vpop.permute.xlu0 %7648
  %7650 = vrot.lane.b32.xlu0 %v7468, 56
  %v7651 = vpop.permute.xlu0 %7650
  %7652 = vrot.lane.b32.xlu0 %v7469, 56
  %v7653 = vpop.permute.xlu0 %7652
  %7654 = vrot.lane.b32.xlu0 %v7470, 56
  %v7655 = vpop.permute.xlu0 %7654
  %7656 = vrot.lane.b32.xlu0 %v7471, 56
  %v7657 = vpop.permute.xlu0 %7656
  %7658 = vrot.lane.b32.xlu0 %v7472, 56
  %v7659 = vpop.permute.xlu0 %7658
  %7660 = vrot.lane.b32.xlu0 %v7473, 56
  %v7661 = vpop.permute.xlu0 %7660
  %7662 = vrot.lane.b32.xlu0 %v7474, 56
  %v7663 = vpop.permute.xlu0 %7662
  %7664 = vrot.lane.b32.xlu0 %v7475, 56
  %v7665 = vpop.permute.xlu0 %7664
  %7666 = vrot.lane.b32.xlu0 %v7476, 56
  %v7667 = vpop.permute.xlu0 %7666
  %7668 = vrot.lane.b32.xlu0 %v7477, 56
  %v7669 = vpop.permute.xlu0 %7668
  %vm7734 = vcmask 523712
  %7735 = vst.msk [vmem:[#allocation5] sm:$0xff] %vm7734, %v7543
  %7736 = vst.msk [vmem:[#allocation5 + $0x8] sm:$0xff] %vm7734, %v7545
  %7737 = vst.msk [vmem:[#allocation5 + $0x10] sm:$0xff] %vm7734, %v7547
  %7738 = vst.msk [vmem:[#allocation5 + $0x18] sm:$0xff] %vm7734, %v7549
  %7739 = vst.msk [vmem:[#allocation5 + $0x20] sm:$0xff] %vm7734, %v7551
  %7740 = vst.msk [vmem:[#allocation5 + $0x28] sm:$0xff] %vm7734, %v7553
  %7741 = vst.msk [vmem:[#allocation5 + $0x30] sm:$0xff] %vm7734, %v7555
  %7742 = vst.msk [vmem:[#allocation5 + $0x38] sm:$0xff] %vm7734, %v7557
  %7743 = vst.msk [vmem:[#allocation5 + $0x40] sm:$0xff] %vm7734, %v7559
  %7744 = vst.msk [vmem:[#allocation5 + $0x48] sm:$0xff] %vm7734, %v7561
  %7745 = vst.msk [vmem:[#allocation5 + $0x50] sm:$0xff] %vm7734, %v7563
  %7746 = vst.msk [vmem:[#allocation5 + $0x58] sm:$0xff] %vm7734, %v7565
  %7747 = vst.msk [vmem:[#allocation5 + $0x60] sm:$0xff] %vm7734, %v7567
  %7748 = vst.msk [vmem:[#allocation5 + $0x68] sm:$0xff] %vm7734, %v7569
  %7749 = vst.msk [vmem:[#allocation5 + $0x70] sm:$0xff] %vm7734, %v7571
  %7750 = vst.msk [vmem:[#allocation5 + $0x78] sm:$0xff] %vm7734, %v7573
  %7751 = vst.msk [vmem:[#allocation5 + $0x80] sm:$0xff] %vm7734, %v7575
  %7752 = vst.msk [vmem:[#allocation5 + $0x88] sm:$0xff] %vm7734, %v7577
  %7753 = vst.msk [vmem:[#allocation5 + $0x90] sm:$0xff] %vm7734, %v7579
  %7754 = vst.msk [vmem:[#allocation5 + $0x98] sm:$0xff] %vm7734, %v7581
  %7755 = vst.msk [vmem:[#allocation5 + $0xa0] sm:$0xff] %vm7734, %v7583
  %7756 = vst.msk [vmem:[#allocation5 + $0xa8] sm:$0xff] %vm7734, %v7585
  %7757 = vst.msk [vmem:[#allocation5 + $0xb0] sm:$0xff] %vm7734, %v7587
  %7758 = vst.msk [vmem:[#allocation5 + $0xb8] sm:$0xff] %vm7734, %v7589
  %7759 = vst.msk [vmem:[#allocation5 + $0xc0] sm:$0xff] %vm7734, %v7591
  %7760 = vst.msk [vmem:[#allocation5 + $0xc8] sm:$0xff] %vm7734, %v7593
  %7761 = vst.msk [vmem:[#allocation5 + $0xd0] sm:$0xff] %vm7734, %v7595
  %7762 = vst.msk [vmem:[#allocation5 + $0xd8] sm:$0xff] %vm7734, %v7597
  %7763 = vst.msk [vmem:[#allocation5 + $0xe0] sm:$0xff] %vm7734, %v7599
  %7764 = vst.msk [vmem:[#allocation5 + $0xe8] sm:$0xff] %vm7734, %v7601
  %7765 = vst.msk [vmem:[#allocation5 + $0xf0] sm:$0xff] %vm7734, %v7603
  %7766 = vst.msk [vmem:[#allocation5 + $0xf8] sm:$0xff] %vm7734, %v7605
  %7767 = vst.msk [vmem:[#allocation5 + $0x100] sm:$0xff] %vm7734, %v7607
  %7768 = vst.msk [vmem:[#allocation5 + $0x108] sm:$0xff] %vm7734, %v7609
  %7769 = vst.msk [vmem:[#allocation5 + $0x110] sm:$0xff] %vm7734, %v7611
  %7770 = vst.msk [vmem:[#allocation5 + $0x118] sm:$0xff] %vm7734, %v7613
  %7771 = vst.msk [vmem:[#allocation5 + $0x120] sm:$0xff] %vm7734, %v7615
  %7772 = vst.msk [vmem:[#allocation5 + $0x128] sm:$0xff] %vm7734, %v7617
  %7773 = vst.msk [vmem:[#allocation5 + $0x130] sm:$0xff] %vm7734, %v7619
  %7774 = vst.msk [vmem:[#allocation5 + $0x138] sm:$0xff] %vm7734, %v7621
  %7775 = vst.msk [vmem:[#allocation5 + $0x140] sm:$0xff] %vm7734, %v7623
  %7776 = vst.msk [vmem:[#allocation5 + $0x148] sm:$0xff] %vm7734, %v7625
  %7777 = vst.msk [vmem:[#allocation5 + $0x150] sm:$0xff] %vm7734, %v7627
  %7778 = vst.msk [vmem:[#allocation5 + $0x158] sm:$0xff] %vm7734, %v7629
  %7779 = vst.msk [vmem:[#allocation5 + $0x160] sm:$0xff] %vm7734, %v7631
  %7780 = vst.msk [vmem:[#allocation5 + $0x168] sm:$0xff] %vm7734, %v7633
  %7781 = vst.msk [vmem:[#allocation5 + $0x170] sm:$0xff] %vm7734, %v7635
  %7782 = vst.msk [vmem:[#allocation5 + $0x178] sm:$0xff] %vm7734, %v7637
  %7783 = vst.msk [vmem:[#allocation5 + $0x180] sm:$0xff] %vm7734, %v7639
  %7784 = vst.msk [vmem:[#allocation5 + $0x188] sm:$0xff] %vm7734, %v7641
  %7785 = vst.msk [vmem:[#allocation5 + $0x190] sm:$0xff] %vm7734, %v7643
  %7786 = vst.msk [vmem:[#allocation5 + $0x198] sm:$0xff] %vm7734, %v7645
  %7787 = vst.msk [vmem:[#allocation5 + $0x1a0] sm:$0xff] %vm7734, %v7647
  %7788 = vst.msk [vmem:[#allocation5 + $0x1a8] sm:$0xff] %vm7734, %v7649
  %7789 = vst.msk [vmem:[#allocation5 + $0x1b0] sm:$0xff] %vm7734, %v7651
  %7790 = vst.msk [vmem:[#allocation5 + $0x1b8] sm:$0xff] %vm7734, %v7653
  %7791 = vst.msk [vmem:[#allocation5 + $0x1c0] sm:$0xff] %vm7734, %v7655
  %7792 = vst.msk [vmem:[#allocation5 + $0x1c8] sm:$0xff] %vm7734, %v7657
  %7793 = vst.msk [vmem:[#allocation5 + $0x1d0] sm:$0xff] %vm7734, %v7659
  %7794 = vst.msk [vmem:[#allocation5 + $0x1d8] sm:$0xff] %vm7734, %v7661
  %7795 = vst.msk [vmem:[#allocation5 + $0x1e0] sm:$0xff] %vm7734, %v7663
  %7796 = vst.msk [vmem:[#allocation5 + $0x1e8] sm:$0xff] %vm7734, %v7665
  %7797 = vst.msk [vmem:[#allocation5 + $0x1f0] sm:$0xff] %vm7734, %v7667
  %7798 = vst.msk [vmem:[#allocation5 + $0x1f8] sm:$0xff] %vm7734, %v7669
  %v7799 = vld [vmem:[%s7028 + $0x2] sm:$0xff]
  %v7800 = vld [vmem:[%s7028 + $0xa] sm:$0xff]
  %v7801 = vld [vmem:[%s7028 + $0x1a] sm:$0xff]
  %v7802 = vld [vmem:[%s7028 + $0x22] sm:$0xff]
  %v7803 = vld [vmem:[%s7028 + $0x32] sm:$0xff]
  %v7804 = vld [vmem:[%s7028 + $0x3a] sm:$0xff]
  %v7805 = vld [vmem:[%s7028 + $0x4a] sm:$0xff]
  %v7806 = vld [vmem:[%s7028 + $0x52] sm:$0xff]
  %v7807 = vld [vmem:[%s7028 + $0x62] sm:$0xff]
  %v7808 = vld [vmem:[%s7028 + $0x6a] sm:$0xff]
  %v7809 = vld [vmem:[%s7028 + $0x7a] sm:$0xff]
  %v7810 = vld [vmem:[%s7028 + $0x82] sm:$0xff]
  %v7811 = vld [vmem:[%s7028 + $0x92] sm:$0xff]
  %v7812 = vld [vmem:[%s7028 + $0x9a] sm:$0xff]
  %v7813 = vld [vmem:[%s7028 + $0xaa] sm:$0xff]
  %v7814 = vld [vmem:[%s7028 + $0xb2] sm:$0xff]
  %v7815 = vld [vmem:[%s7028 + $0xc2] sm:$0xff]
  %v7816 = vld [vmem:[%s7028 + $0xca] sm:$0xff]
  %v7817 = vld [vmem:[%s7028 + $0xda] sm:$0xff]
  %v7818 = vld [vmem:[%s7028 + $0xe2] sm:$0xff]
  %v7819 = vld [vmem:[%s7028 + $0xf2] sm:$0xff]
  %v7820 = vld [vmem:[%s7028 + $0xfa] sm:$0xff]
  %v7821 = vld [vmem:[%s7028 + $0x10a] sm:$0xff]
  %v7822 = vld [vmem:[%s7028 + $0x112] sm:$0xff]
  %v7823 = vld [vmem:[%s7028 + $0x122] sm:$0xff]
  %v7824 = vld [vmem:[%s7028 + $0x12a] sm:$0xff]
  %v7825 = vld [vmem:[%s7028 + $0x13a] sm:$0xff]
  %v7826 = vld [vmem:[%s7028 + $0x142] sm:$0xff]
  %v7827 = vld [vmem:[%s7028 + $0x152] sm:$0xff]
  %v7828 = vld [vmem:[%s7028 + $0x15a] sm:$0xff]
  %v7829 = vld [vmem:[%s7028 + $0x16a] sm:$0xff]
  %v7830 = vld [vmem:[%s7028 + $0x172] sm:$0xff]
  %v7831 = vld [vmem:[%s7028 + $0x1b2] sm:$0xff]
  %v7832 = vld [vmem:[%s7028 + $0x1ba] sm:$0xff]
  %v7833 = vld [vmem:[%s7028 + $0x1ca] sm:$0xff]
  %v7834 = vld [vmem:[%s7028 + $0x1d2] sm:$0xff]
  %v7835 = vld [vmem:[%s7028 + $0x1e2] sm:$0xff]
  %v7836 = vld [vmem:[%s7028 + $0x1ea] sm:$0xff]
  %v7837 = vld [vmem:[%s7028 + $0x1fa] sm:$0xff]
  %v7838 = vld [vmem:[%s7028 + $0x202] sm:$0xff]
  %v7839 = vld [vmem:[%s7028 + $0x212] sm:$0xff]
  %v7840 = vld [vmem:[%s7028 + $0x21a] sm:$0xff]
  %v7841 = vld [vmem:[%s7028 + $0x22a] sm:$0xff]
  %v7842 = vld [vmem:[%s7028 + $0x232] sm:$0xff]
  %v7843 = vld [vmem:[%s7028 + $0x242] sm:$0xff]
  %v7844 = vld [vmem:[%s7028 + $0x24a] sm:$0xff]
  %v7845 = vld [vmem:[%s7028 + $0x25a] sm:$0xff]
  %v7846 = vld [vmem:[%s7028 + $0x262] sm:$0xff]
  %v7847 = vld [vmem:[%s7028 + $0x272] sm:$0xff]
  %v7848 = vld [vmem:[%s7028 + $0x27a] sm:$0xff]
  %v7849 = vld [vmem:[%s7028 + $0x28a] sm:$0xff]
  %v7850 = vld [vmem:[%s7028 + $0x292] sm:$0xff]
  %v7851 = vld [vmem:[%s7028 + $0x2a2] sm:$0xff]
  %v7852 = vld [vmem:[%s7028 + $0x2aa] sm:$0xff]
  %v7853 = vld [vmem:[%s7028 + $0x2ba] sm:$0xff]
  %v7854 = vld [vmem:[%s7028 + $0x2c2] sm:$0xff]
  %v7855 = vld [vmem:[%s7028 + $0x2d2] sm:$0xff]
  %v7856 = vld [vmem:[%s7028 + $0x2da] sm:$0xff]
  %v7857 = vld [vmem:[%s7028 + $0x2ea] sm:$0xff]
  %v7858 = vld [vmem:[%s7028 + $0x2f2] sm:$0xff]
  %v7859 = vld [vmem:[%s7028 + $0x302] sm:$0xff]
  %v7860 = vld [vmem:[%s7028 + $0x30a] sm:$0xff]
  %v7861 = vld [vmem:[%s7028 + $0x31a] sm:$0xff]
  %v7862 = vld [vmem:[%s7028 + $0x322] sm:$0xff]
  %7927 = vrot.lane.b32.xlu0 %v7799, 64
  %v7928 = vpop.permute.xlu0 %7927
  %7929 = vrot.lane.b32.xlu0 %v7800, 64
  %v7930 = vpop.permute.xlu0 %7929
  %7931 = vrot.lane.b32.xlu0 %v7801, 64
  %v7932 = vpop.permute.xlu0 %7931
  %7933 = vrot.lane.b32.xlu0 %v7802, 64
  %v7934 = vpop.permute.xlu0 %7933
  %7935 = vrot.lane.b32.xlu0 %v7803, 64
  %v7936 = vpop.permute.xlu0 %7935
  %7937 = vrot.lane.b32.xlu0 %v7804, 64
  %v7938 = vpop.permute.xlu0 %7937
  %7939 = vrot.lane.b32.xlu0 %v7805, 64
  %v7940 = vpop.permute.xlu0 %7939
  %7941 = vrot.lane.b32.xlu0 %v7806, 64
  %v7942 = vpop.permute.xlu0 %7941
  %7943 = vrot.lane.b32.xlu0 %v7807, 64
  %v7944 = vpop.permute.xlu0 %7943
  %7945 = vrot.lane.b32.xlu0 %v7808, 64
  %v7946 = vpop.permute.xlu0 %7945
  %7947 = vrot.lane.b32.xlu0 %v7809, 64
  %v7948 = vpop.permute.xlu0 %7947
  %7949 = vrot.lane.b32.xlu0 %v7810, 64
  %v7950 = vpop.permute.xlu0 %7949
  %7951 = vrot.lane.b32.xlu0 %v7811, 64
  %v7952 = vpop.permute.xlu0 %7951
  %7953 = vrot.lane.b32.xlu0 %v7812, 64
  %v7954 = vpop.permute.xlu0 %7953
  %7955 = vrot.lane.b32.xlu0 %v7813, 64
  %v7956 = vpop.permute.xlu0 %7955
  %7957 = vrot.lane.b32.xlu0 %v7814, 64
  %v7958 = vpop.permute.xlu0 %7957
  %7959 = vrot.lane.b32.xlu0 %v7815, 64
  %v7960 = vpop.permute.xlu0 %7959
  %7961 = vrot.lane.b32.xlu0 %v7816, 64
  %v7962 = vpop.permute.xlu0 %7961
  %7963 = vrot.lane.b32.xlu0 %v7817, 64
  %v7964 = vpop.permute.xlu0 %7963
  %7965 = vrot.lane.b32.xlu0 %v7818, 64
  %v7966 = vpop.permute.xlu0 %7965
  %7967 = vrot.lane.b32.xlu0 %v7819, 64
  %v7968 = vpop.permute.xlu0 %7967
  %7969 = vrot.lane.b32.xlu0 %v7820, 64
  %v7970 = vpop.permute.xlu0 %7969
  %7971 = vrot.lane.b32.xlu0 %v7821, 64
  %v7972 = vpop.permute.xlu0 %7971
  %7973 = vrot.lane.b32.xlu0 %v7822, 64
  %v7974 = vpop.permute.xlu0 %7973
  %7975 = vrot.lane.b32.xlu0 %v7823, 64
  %v7976 = vpop.permute.xlu0 %7975
  %7977 = vrot.lane.b32.xlu0 %v7824, 64
  %v7978 = vpop.permute.xlu0 %7977
  %7979 = vrot.lane.b32.xlu0 %v7825, 64
  %v7980 = vpop.permute.xlu0 %7979
  %7981 = vrot.lane.b32.xlu0 %v7826, 64
  %v7982 = vpop.permute.xlu0 %7981
  %7983 = vrot.lane.b32.xlu0 %v7827, 64
  %v7984 = vpop.permute.xlu0 %7983
  %7985 = vrot.lane.b32.xlu0 %v7828, 64
  %v7986 = vpop.permute.xlu0 %7985
  %7987 = vrot.lane.b32.xlu0 %v7829, 64
  %v7988 = vpop.permute.xlu0 %7987
  %7989 = vrot.lane.b32.xlu0 %v7830, 64
  %v7990 = vpop.permute.xlu0 %7989
  %7991 = vrot.lane.b32.xlu0 %v7831, 64
  %v7992 = vpop.permute.xlu0 %7991
  %7993 = vrot.lane.b32.xlu0 %v7832, 64
  %v7994 = vpop.permute.xlu0 %7993
  %7995 = vrot.lane.b32.xlu0 %v7833, 64
  %v7996 = vpop.permute.xlu0 %7995
  %7997 = vrot.lane.b32.xlu0 %v7834, 64
  %v7998 = vpop.permute.xlu0 %7997
  %7999 = vrot.lane.b32.xlu0 %v7835, 64
  %v8000 = vpop.permute.xlu0 %7999
  %8001 = vrot.lane.b32.xlu0 %v7836, 64
  %v8002 = vpop.permute.xlu0 %8001
  %8003 = vrot.lane.b32.xlu0 %v7837, 64
  %v8004 = vpop.permute.xlu0 %8003
  %8005 = vrot.lane.b32.xlu0 %v7838, 64
  %v8006 = vpop.permute.xlu0 %8005
  %8007 = vrot.lane.b32.xlu0 %v7839, 64
  %v8008 = vpop.permute.xlu0 %8007
  %8009 = vrot.lane.b32.xlu0 %v7840, 64
  %v8010 = vpop.permute.xlu0 %8009
  %8011 = vrot.lane.b32.xlu0 %v7841, 64
  %v8012 = vpop.permute.xlu0 %8011
  %8013 = vrot.lane.b32.xlu0 %v7842, 64
  %v8014 = vpop.permute.xlu0 %8013
  %8015 = vrot.lane.b32.xlu0 %v7843, 64
  %v8016 = vpop.permute.xlu0 %8015
  %8017 = vrot.lane.b32.xlu0 %v7844, 64
  %v8018 = vpop.permute.xlu0 %8017
  %8019 = vrot.lane.b32.xlu0 %v7845, 64
  %v8020 = vpop.permute.xlu0 %8019
  %8021 = vrot.lane.b32.xlu0 %v7846, 64
  %v8022 = vpop.permute.xlu0 %8021
  %8023 = vrot.lane.b32.xlu0 %v7847, 64
  %v8024 = vpop.permute.xlu0 %8023
  %8025 = vrot.lane.b32.xlu0 %v7848, 64
  %v8026 = vpop.permute.xlu0 %8025
  %8027 = vrot.lane.b32.xlu0 %v7849, 64
  %v8028 = vpop.permute.xlu0 %8027
  %8029 = vrot.lane.b32.xlu0 %v7850, 64
  %v8030 = vpop.permute.xlu0 %8029
  %8031 = vrot.lane.b32.xlu0 %v7851, 64
  %v8032 = vpop.permute.xlu0 %8031
  %8033 = vrot.lane.b32.xlu0 %v7852, 64
  %v8034 = vpop.permute.xlu0 %8033
  %8035 = vrot.lane.b32.xlu0 %v7853, 64
  %v8036 = vpop.permute.xlu0 %8035
  %8037 = vrot.lane.b32.xlu0 %v7854, 64
  %v8038 = vpop.permute.xlu0 %8037
  %8039 = vrot.lane.b32.xlu0 %v7855, 64
  %v8040 = vpop.permute.xlu0 %8039
  %8041 = vrot.lane.b32.xlu0 %v7856, 64
  %v8042 = vpop.permute.xlu0 %8041
  %8043 = vrot.lane.b32.xlu0 %v7857, 64
  %v8044 = vpop.permute.xlu0 %8043
  %8045 = vrot.lane.b32.xlu0 %v7858, 64
  %v8046 = vpop.permute.xlu0 %8045
  %8047 = vrot.lane.b32.xlu0 %v7859, 64
  %v8048 = vpop.permute.xlu0 %8047
  %8049 = vrot.lane.b32.xlu0 %v7860, 64
  %v8050 = vpop.permute.xlu0 %8049
  %8051 = vrot.lane.b32.xlu0 %v7861, 64
  %v8052 = vpop.permute.xlu0 %8051
  %8053 = vrot.lane.b32.xlu0 %v7862, 64
  %v8054 = vpop.permute.xlu0 %8053
  %vm8119 = vcmask 589312
  %8120 = vst.msk [vmem:[#allocation5] sm:$0xff] %vm8119, %v7928
  %8121 = vst.msk [vmem:[#allocation5 + $0x8] sm:$0xff] %vm8119, %v7930
  %8122 = vst.msk [vmem:[#allocation5 + $0x10] sm:$0xff] %vm8119, %v7932
  %8123 = vst.msk [vmem:[#allocation5 + $0x18] sm:$0xff] %vm8119, %v7934
  %8124 = vst.msk [vmem:[#allocation5 + $0x20] sm:$0xff] %vm8119, %v7936
  %8125 = vst.msk [vmem:[#allocation5 + $0x28] sm:$0xff] %vm8119, %v7938
  %8126 = vst.msk [vmem:[#allocation5 + $0x30] sm:$0xff] %vm8119, %v7940
  %8127 = vst.msk [vmem:[#allocation5 + $0x38] sm:$0xff] %vm8119, %v7942
  %8128 = vst.msk [vmem:[#allocation5 + $0x40] sm:$0xff] %vm8119, %v7944
  %8129 = vst.msk [vmem:[#allocation5 + $0x48] sm:$0xff] %vm8119, %v7946
  %8130 = vst.msk [vmem:[#allocation5 + $0x50] sm:$0xff] %vm8119, %v7948
  %8131 = vst.msk [vmem:[#allocation5 + $0x58] sm:$0xff] %vm8119, %v7950
  %8132 = vst.msk [vmem:[#allocation5 + $0x60] sm:$0xff] %vm8119, %v7952
  %8133 = vst.msk [vmem:[#allocation5 + $0x68] sm:$0xff] %vm8119, %v7954
  %8134 = vst.msk [vmem:[#allocation5 + $0x70] sm:$0xff] %vm8119, %v7956
  %8135 = vst.msk [vmem:[#allocation5 + $0x78] sm:$0xff] %vm8119, %v7958
  %8136 = vst.msk [vmem:[#allocation5 + $0x80] sm:$0xff] %vm8119, %v7960
  %8137 = vst.msk [vmem:[#allocation5 + $0x88] sm:$0xff] %vm8119, %v7962
  %8138 = vst.msk [vmem:[#allocation5 + $0x90] sm:$0xff] %vm8119, %v7964
  %8139 = vst.msk [vmem:[#allocation5 + $0x98] sm:$0xff] %vm8119, %v7966
  %8140 = vst.msk [vmem:[#allocation5 + $0xa0] sm:$0xff] %vm8119, %v7968
  %8141 = vst.msk [vmem:[#allocation5 + $0xa8] sm:$0xff] %vm8119, %v7970
  %8142 = vst.msk [vmem:[#allocation5 + $0xb0] sm:$0xff] %vm8119, %v7972
  %8143 = vst.msk [vmem:[#allocation5 + $0xb8] sm:$0xff] %vm8119, %v7974
  %8144 = vst.msk [vmem:[#allocation5 + $0xc0] sm:$0xff] %vm8119, %v7976
  %8145 = vst.msk [vmem:[#allocation5 + $0xc8] sm:$0xff] %vm8119, %v7978
  %8146 = vst.msk [vmem:[#allocation5 + $0xd0] sm:$0xff] %vm8119, %v7980
  %8147 = vst.msk [vmem:[#allocation5 + $0xd8] sm:$0xff] %vm8119, %v7982
  %8148 = vst.msk [vmem:[#allocation5 + $0xe0] sm:$0xff] %vm8119, %v7984
  %8149 = vst.msk [vmem:[#allocation5 + $0xe8] sm:$0xff] %vm8119, %v7986
  %8150 = vst.msk [vmem:[#allocation5 + $0xf0] sm:$0xff] %vm8119, %v7988
  %8151 = vst.msk [vmem:[#allocation5 + $0xf8] sm:$0xff] %vm8119, %v7990
  %8152 = vst.msk [vmem:[#allocation5 + $0x100] sm:$0xff] %vm8119, %v7992
  %8153 = vst.msk [vmem:[#allocation5 + $0x108] sm:$0xff] %vm8119, %v7994
  %8154 = vst.msk [vmem:[#allocation5 + $0x110] sm:$0xff] %vm8119, %v7996
  %8155 = vst.msk [vmem:[#allocation5 + $0x118] sm:$0xff] %vm8119, %v7998
  %8156 = vst.msk [vmem:[#allocation5 + $0x120] sm:$0xff] %vm8119, %v8000
  %8157 = vst.msk [vmem:[#allocation5 + $0x128] sm:$0xff] %vm8119, %v8002
  %8158 = vst.msk [vmem:[#allocation5 + $0x130] sm:$0xff] %vm8119, %v8004
  %8159 = vst.msk [vmem:[#allocation5 + $0x138] sm:$0xff] %vm8119, %v8006
  %8160 = vst.msk [vmem:[#allocation5 + $0x140] sm:$0xff] %vm8119, %v8008
  %8161 = vst.msk [vmem:[#allocation5 + $0x148] sm:$0xff] %vm8119, %v8010
  %8162 = vst.msk [vmem:[#allocation5 + $0x150] sm:$0xff] %vm8119, %v8012
  %8163 = vst.msk [vmem:[#allocation5 + $0x158] sm:$0xff] %vm8119, %v8014
  %8164 = vst.msk [vmem:[#allocation5 + $0x160] sm:$0xff] %vm8119, %v8016
  %8165 = vst.msk [vmem:[#allocation5 + $0x168] sm:$0xff] %vm8119, %v8018
  %8166 = vst.msk [vmem:[#allocation5 + $0x170] sm:$0xff] %vm8119, %v8020
  %8167 = vst.msk [vmem:[#allocation5 + $0x178] sm:$0xff] %vm8119, %v8022
  %8168 = vst.msk [vmem:[#allocation5 + $0x180] sm:$0xff] %vm8119, %v8024
  %8169 = vst.msk [vmem:[#allocation5 + $0x188] sm:$0xff] %vm8119, %v8026
  %8170 = vst.msk [vmem:[#allocation5 + $0x190] sm:$0xff] %vm8119, %v8028
  %8171 = vst.msk [vmem:[#allocation5 + $0x198] sm:$0xff] %vm8119, %v8030
  %8172 = vst.msk [vmem:[#allocation5 + $0x1a0] sm:$0xff] %vm8119, %v8032
  %8173 = vst.msk [vmem:[#allocation5 + $0x1a8] sm:$0xff] %vm8119, %v8034
  %8174 = vst.msk [vmem:[#allocation5 + $0x1b0] sm:$0xff] %vm8119, %v8036
  %8175 = vst.msk [vmem:[#allocation5 + $0x1b8] sm:$0xff] %vm8119, %v8038
  %8176 = vst.msk [vmem:[#allocation5 + $0x1c0] sm:$0xff] %vm8119, %v8040
  %8177 = vst.msk [vmem:[#allocation5 + $0x1c8] sm:$0xff] %vm8119, %v8042
  %8178 = vst.msk [vmem:[#allocation5 + $0x1d0] sm:$0xff] %vm8119, %v8044
  %8179 = vst.msk [vmem:[#allocation5 + $0x1d8] sm:$0xff] %vm8119, %v8046
  %8180 = vst.msk [vmem:[#allocation5 + $0x1e0] sm:$0xff] %vm8119, %v8048
  %8181 = vst.msk [vmem:[#allocation5 + $0x1e8] sm:$0xff] %vm8119, %v8050
  %8182 = vst.msk [vmem:[#allocation5 + $0x1f0] sm:$0xff] %vm8119, %v8052
  %8183 = vst.msk [vmem:[#allocation5 + $0x1f8] sm:$0xff] %vm8119, %v8054
  %v8184 = vld [vmem:[#allocation5] sm:$0xff]
  %v8185 = vld [vmem:[#allocation5 + $0x8] sm:$0xff]
  %v8186 = vld [vmem:[#allocation5 + $0x10] sm:$0xff]
  %v8187 = vld [vmem:[#allocation5 + $0x18] sm:$0xff]
  %v8188 = vld [vmem:[#allocation5 + $0x20] sm:$0xff]
  %v8189 = vld [vmem:[#allocation5 + $0x28] sm:$0xff]
  %v8190 = vld [vmem:[#allocation5 + $0x30] sm:$0xff]
  %v8191 = vld [vmem:[#allocation5 + $0x38] sm:$0xff]
  %v8192 = vld [vmem:[#allocation5 + $0x40] sm:$0xff]
  %v8193 = vld [vmem:[#allocation5 + $0x48] sm:$0xff]
  %v8194 = vld [vmem:[#allocation5 + $0x50] sm:$0xff]
  %v8195 = vld [vmem:[#allocation5 + $0x58] sm:$0xff]
  %v8196 = vld [vmem:[#allocation5 + $0x60] sm:$0xff]
  %v8197 = vld [vmem:[#allocation5 + $0x68] sm:$0xff]
  %v8198 = vld [vmem:[#allocation5 + $0x70] sm:$0xff]
  %v8199 = vld [vmem:[#allocation5 + $0x78] sm:$0xff]
  %v8200 = vld [vmem:[#allocation5 + $0x80] sm:$0xff]
  %v8201 = vld [vmem:[#allocation5 + $0x88] sm:$0xff]
  %v8202 = vld [vmem:[#allocation5 + $0x90] sm:$0xff]
  %v8203 = vld [vmem:[#allocation5 + $0x98] sm:$0xff]
  %v8204 = vld [vmem:[#allocation5 + $0xa0] sm:$0xff]
  %v8205 = vld [vmem:[#allocation5 + $0xa8] sm:$0xff]
  %v8206 = vld [vmem:[#allocation5 + $0xb0] sm:$0xff]
  %v8207 = vld [vmem:[#allocation5 + $0xb8] sm:$0xff]
  %v8208 = vld [vmem:[#allocation5 + $0xc0] sm:$0xff]
  %v8209 = vld [vmem:[#allocation5 + $0xc8] sm:$0xff]
  %v8210 = vld [vmem:[#allocation5 + $0xd0] sm:$0xff]
  %v8211 = vld [vmem:[#allocation5 + $0xd8] sm:$0xff]
  %v8212 = vld [vmem:[#allocation5 + $0xe0] sm:$0xff]
  %v8213 = vld [vmem:[#allocation5 + $0xe8] sm:$0xff]
  %v8214 = vld [vmem:[#allocation5 + $0xf0] sm:$0xff]
  %v8215 = vld [vmem:[#allocation5 + $0xf8] sm:$0xff]
  %v8216 = vld [vmem:[#allocation5 + $0x100] sm:$0xff]
  %v8217 = vld [vmem:[#allocation5 + $0x108] sm:$0xff]
  %v8218 = vld [vmem:[#allocation5 + $0x110] sm:$0xff]
  %v8219 = vld [vmem:[#allocation5 + $0x118] sm:$0xff]
  %v8220 = vld [vmem:[#allocation5 + $0x120] sm:$0xff]
  %v8221 = vld [vmem:[#allocation5 + $0x128] sm:$0xff]
  %v8222 = vld [vmem:[#allocation5 + $0x130] sm:$0xff]
  %v8223 = vld [vmem:[#allocation5 + $0x138] sm:$0xff]
  %v8224 = vld [vmem:[#allocation5 + $0x140] sm:$0xff]
  %v8225 = vld [vmem:[#allocation5 + $0x148] sm:$0xff]
  %v8226 = vld [vmem:[#allocation5 + $0x150] sm:$0xff]
  %v8227 = vld [vmem:[#allocation5 + $0x158] sm:$0xff]
  %v8228 = vld [vmem:[#allocation5 + $0x160] sm:$0xff]
  %v8229 = vld [vmem:[#allocation5 + $0x168] sm:$0xff]
  %v8230 = vld [vmem:[#allocation5 + $0x170] sm:$0xff]
  %v8231 = vld [vmem:[#allocation5 + $0x178] sm:$0xff]
  %v8232 = vld [vmem:[#allocation5 + $0x180] sm:$0xff]
  %v8233 = vld [vmem:[#allocation5 + $0x188] sm:$0xff]
  %v8234 = vld [vmem:[#allocation5 + $0x190] sm:$0xff]
  %v8235 = vld [vmem:[#allocation5 + $0x198] sm:$0xff]
  %v8236 = vld [vmem:[#allocation5 + $0x1a0] sm:$0xff]
  %v8237 = vld [vmem:[#allocation5 + $0x1a8] sm:$0xff]
  %v8238 = vld [vmem:[#allocation5 + $0x1b0] sm:$0xff]
  %v8239 = vld [vmem:[#allocation5 + $0x1b8] sm:$0xff]
  %v8240 = vld [vmem:[#allocation5 + $0x1c0] sm:$0xff]
  %v8241 = vld [vmem:[#allocation5 + $0x1c8] sm:$0xff]
  %v8242 = vld [vmem:[#allocation5 + $0x1d0] sm:$0xff]
  %v8243 = vld [vmem:[#allocation5 + $0x1d8] sm:$0xff]
  %v8244 = vld [vmem:[#allocation5 + $0x1e0] sm:$0xff]
  %v8245 = vld [vmem:[#allocation5 + $0x1e8] sm:$0xff]
  %v8246 = vld [vmem:[#allocation5 + $0x1f0] sm:$0xff]
  %v8247 = vld [vmem:[#allocation5 + $0x1f8] sm:$0xff]
  %v8248 = vld [vmem:[%s3] sm:$0xff]
  %v8249 = vld [vmem:[%s3 + $0x8] sm:$0xff]
  %v8250 = vld [vmem:[%s3 + $0x10] sm:$0xff]
  %v8251 = vld [vmem:[%s3 + $0x18] sm:$0xff]
  %v8252 = vld [vmem:[%s3 + $0x20] sm:$0xff]
  %v8253 = vld [vmem:[%s3 + $0x28] sm:$0xff]
  %v8254 = vld [vmem:[%s3 + $0x30] sm:$0xff]
  %v8255 = vld [vmem:[%s3 + $0x38] sm:$0xff]
  %v8256 = vld [vmem:[%s3 + $0x40] sm:$0xff]
  %v8257 = vld [vmem:[%s4] sm:$0x1]
  %v8259 = vlaneseq
  %v8260 = vshrl.u32 %v8259, 7
  %v8261 = vsub.s32 0, %v8260
  %v8262 = vrot.slane %v8257, %v8261
  %vm8264 = vcmask 588800
  %v8266 = vsel %vm8264, %v8184, 0
  %v8269 = vsel %vm8264, %v8185, 0
  %v8272 = vsel %vm8264, %v8186, 0
  %v8275 = vsel %vm8264, %v8187, 0
  %v8278 = vsel %vm8264, %v8188, 0
  %v8281 = vsel %vm8264, %v8189, 0
  %v8284 = vsel %vm8264, %v8190, 0
  %v8287 = vsel %vm8264, %v8191, 0
  %v8290 = vsel %vm8264, %v8192, 0
  %v8293 = vsel %vm8264, %v8193, 0
  %v8296 = vsel %vm8264, %v8194, 0
  %v8299 = vsel %vm8264, %v8195, 0
  %v8302 = vsel %vm8264, %v8196, 0
  %v8305 = vsel %vm8264, %v8197, 0
  %v8308 = vsel %vm8264, %v8198, 0
  %v8311 = vsel %vm8264, %v8199, 0
  %v8314 = vsel %vm8264, %v8200, 0
  %v8317 = vsel %vm8264, %v8201, 0
  %v8320 = vsel %vm8264, %v8202, 0
  %v8323 = vsel %vm8264, %v8203, 0
  %v8326 = vsel %vm8264, %v8204, 0
  %v8329 = vsel %vm8264, %v8205, 0
  %v8332 = vsel %vm8264, %v8206, 0
  %v8335 = vsel %vm8264, %v8207, 0
  %v8338 = vsel %vm8264, %v8208, 0
  %v8341 = vsel %vm8264, %v8209, 0
  %v8344 = vsel %vm8264, %v8210, 0
  %v8347 = vsel %vm8264, %v8211, 0
  %v8350 = vsel %vm8264, %v8212, 0
  %v8353 = vsel %vm8264, %v8213, 0
  %v8356 = vsel %vm8264, %v8214, 0
  %v8359 = vsel %vm8264, %v8215, 0
  %v8362 = vsel %vm8264, %v8216, 0
  %v8365 = vsel %vm8264, %v8217, 0
  %v8368 = vsel %vm8264, %v8218, 0
  %v8371 = vsel %vm8264, %v8219, 0
  %v8374 = vsel %vm8264, %v8220, 0
  %v8377 = vsel %vm8264, %v8221, 0
  %v8380 = vsel %vm8264, %v8222, 0
  %v8383 = vsel %vm8264, %v8223, 0
  %v8386 = vsel %vm8264, %v8224, 0
  %v8389 = vsel %vm8264, %v8225, 0
  %v8392 = vsel %vm8264, %v8226, 0
  %v8395 = vsel %vm8264, %v8227, 0
  %v8398 = vsel %vm8264, %v8228, 0
  %v8401 = vsel %vm8264, %v8229, 0
  %v8404 = vsel %vm8264, %v8230, 0
  %v8407 = vsel %vm8264, %v8231, 0
  %v8410 = vsel %vm8264, %v8232, 0
  %v8413 = vsel %vm8264, %v8233, 0
  %v8416 = vsel %vm8264, %v8234, 0
  %v8419 = vsel %vm8264, %v8235, 0
  %v8422 = vsel %vm8264, %v8236, 0
  %v8425 = vsel %vm8264, %v8237, 0
  %v8428 = vsel %vm8264, %v8238, 0
  %v8431 = vsel %vm8264, %v8239, 0
  %v8434 = vsel %vm8264, %v8240, 0
  %v8437 = vsel %vm8264, %v8241, 0
  %v8440 = vsel %vm8264, %v8242, 0
  %v8443 = vsel %vm8264, %v8243, 0
  %v8446 = vsel %vm8264, %v8244, 0
  %v8449 = vsel %vm8264, %v8245, 0
  %v8452 = vsel %vm8264, %v8246, 0
  %v8455 = vsel %vm8264, %v8247, 0
  %8457 = vmatprep.subr.mxu0 0.0
  %8458 = vmatpush1.msra.mxu0 0.0
  %8459 = vmatprep.subr.mxu0 0.0
  %8460 = vmatpush1.msra.mxu0 0.0
  %8461 = vmatprep.subr.mxu0 0.0
  %8462 = vmatpush1.msra.mxu0 0.0
  %8463 = vmatprep.subr.mxu0 0.0
  %8464 = vmatpush1.msra.mxu0 0.0
  %8465 = vmatprep.subr.mxu0 0.0
  %8466 = vmatpush1.msra.mxu0 0.0
  %8467 = vmatprep.subr.mxu0 0.0
  %8468 = vmatpush1.msra.mxu0 0.0
  %8469 = vmatprep.subr.mxu0 0.0
  %8470 = vmatpush1.msra.mxu0 0.0
  %8471 = vmatprep.subr.mxu0 0.0
  %8472 = vmatpush1.msra.mxu0 %v8256
  %8473 = vmatprep.subr.mxu0 0.0
  %8474 = vmatpush1.msra.mxu0 %v8255
  %8475 = vmatprep.subr.mxu0 0.0
  %8476 = vmatpush1.msra.mxu0 %v8254
  %8477 = vmatprep.subr.mxu0 0.0
  %8478 = vmatpush1.msra.mxu0 %v8253
  %8479 = vmatprep.subr.mxu0 0.0
  %8480 = vmatpush1.msra.mxu0 %v8252
  %8481 = vmatprep.subr.mxu0 0.0
  %8482 = vmatpush1.msra.mxu0 %v8251
  %8483 = vmatprep.subr.mxu0 0.0
  %8484 = vmatpush1.msra.mxu0 %v8250
  %8485 = vmatprep.subr.mxu0 0.0
  %8486 = vmatpush1.msra.mxu0 %v8249
  %8487 = vmatprep.subr.mxu0 0.0
  %8488 = vmatpush1.msra.mxu0 %v8248
  %8489 = vmatprep.subr.mxu0 0.0
  %8490 = vmatpush2.msra.mxu0 0.0
  %8491 = vmatprep.subr.mxu0 0.0
  %8492 = vmatpush2.msra.mxu0 0.0
  %8493 = vmatprep.subr.mxu0 0.0
  %8494 = vmatpush2.msra.mxu0 0.0
  %8495 = vmatprep.subr.mxu0 0.0
  %8496 = vmatpush2.msra.mxu0 0.0
  %8497 = vmatprep.subr.mxu0 0.0
  %8498 = vmatpush2.msra.mxu0 0.0
  %8499 = vmatprep.subr.mxu0 0.0
  %8500 = vmatpush2.msra.mxu0 0.0
  %8501 = vmatprep.subr.mxu0 0.0
  %8502 = vmatpush2.msra.mxu0 0.0
  %8503 = vmatprep.subr.mxu0 0.0
  %8504 = vmatpush2.msra.mxu0 0.0
  %8505 = vmatprep.subr.mxu0 0.0
  %8506 = vmatpush2.msra.mxu0 0.0
  %8507 = vmatprep.subr.mxu0 0.0
  %8508 = vmatpush2.msra.mxu0 0.0
  %8509 = vmatprep.subr.mxu0 0.0
  %8510 = vmatpush2.msra.mxu0 0.0
  %8511 = vmatprep.subr.mxu0 0.0
  %8512 = vmatpush2.msra.mxu0 0.0
  %8513 = vmatprep.subr.mxu0 0.0
  %8514 = vmatpush2.msra.mxu0 0.0
  %8515 = vmatprep.subr.mxu0 0.0
  %8516 = vmatpush2.msra.mxu0 0.0
  %8517 = vmatprep.subr.mxu0 0.0
  %8518 = vmatpush2.msra.mxu0 0.0
  %8519 = vmatprep.subr.mxu0 0.0
  %8520 = vmatpush2.msra.mxu0 0.0
  %8521 = vmatprep.mubr.f32.mxu0 0.0
  %8522 = vmatmul.mubr.f32.gmra.mxu0 %v8266
  %v8523 = vpop.f32.mrf.mxu0
  %v8524 = vadd.f32 %v8262, %v8523
  %v8525 = vpop.f32.mrf.mxu0
  %8526 = vmatprep.mubr.f32.mxu0 0.0
  %8527 = vmatmul.mubr.f32.gmra.mxu0 %v8269
  %v8528 = vpop.f32.mrf.mxu0
  %v8529 = vadd.f32 %v8262, %v8528
  %v8530 = vpop.f32.mrf.mxu0
  %8531 = vmatprep.mubr.f32.mxu0 0.0
  %8532 = vmatmul.mubr.f32.gmra.mxu0 %v8272
  %v8533 = vpop.f32.mrf.mxu0
  %v8534 = vadd.f32 %v8262, %v8533
  %v8535 = vpop.f32.mrf.mxu0
  %8536 = vmatprep.mubr.f32.mxu0 0.0
  %8537 = vmatmul.mubr.f32.gmra.mxu0 %v8275
  %v8538 = vpop.f32.mrf.mxu0
  %v8539 = vadd.f32 %v8262, %v8538
  %v8540 = vpop.f32.mrf.mxu0
  %8541 = vmatprep.mubr.f32.mxu0 0.0
  %8542 = vmatmul.mubr.f32.gmra.mxu0 %v8278
  %v8543 = vpop.f32.mrf.mxu0
  %v8544 = vadd.f32 %v8262, %v8543
  %v8545 = vpop.f32.mrf.mxu0
  %8546 = vmatprep.mubr.f32.mxu0 0.0
  %8547 = vmatmul.mubr.f32.gmra.mxu0 %v8281
  %v8548 = vpop.f32.mrf.mxu0
  %v8549 = vadd.f32 %v8262, %v8548
  %v8550 = vpop.f32.mrf.mxu0
  %8551 = vmatprep.mubr.f32.mxu0 0.0
  %8552 = vmatmul.mubr.f32.gmra.mxu0 %v8284
  %v8553 = vpop.f32.mrf.mxu0
  %v8554 = vadd.f32 %v8262, %v8553
  %v8555 = vpop.f32.mrf.mxu0
  %8556 = vmatprep.mubr.f32.mxu0 0.0
  %8557 = vmatmul.mubr.f32.gmra.mxu0 %v8287
  %v8558 = vpop.f32.mrf.mxu0
  %v8559 = vadd.f32 %v8262, %v8558
  %v8560 = vpop.f32.mrf.mxu0
  %8561 = vmatprep.mubr.f32.mxu0 0.0
  %8562 = vmatmul.mubr.f32.gmra.mxu0 %v8290
  %v8563 = vpop.f32.mrf.mxu0
  %v8564 = vadd.f32 %v8262, %v8563
  %v8565 = vpop.f32.mrf.mxu0
  %8566 = vmatprep.mubr.f32.mxu0 0.0
  %8567 = vmatmul.mubr.f32.gmra.mxu0 %v8293
  %v8568 = vpop.f32.mrf.mxu0
  %v8569 = vadd.f32 %v8262, %v8568
  %v8570 = vpop.f32.mrf.mxu0
  %8571 = vmatprep.mubr.f32.mxu0 0.0
  %8572 = vmatmul.mubr.f32.gmra.mxu0 %v8296
  %v8573 = vpop.f32.mrf.mxu0
  %v8574 = vadd.f32 %v8262, %v8573
  %v8575 = vpop.f32.mrf.mxu0
  %8576 = vmatprep.mubr.f32.mxu0 0.0
  %8577 = vmatmul.mubr.f32.gmra.mxu0 %v8299
  %v8578 = vpop.f32.mrf.mxu0
  %v8579 = vadd.f32 %v8262, %v8578
  %v8580 = vpop.f32.mrf.mxu0
  %8581 = vmatprep.mubr.f32.mxu0 0.0
  %8582 = vmatmul.mubr.f32.gmra.mxu0 %v8302
  %v8583 = vpop.f32.mrf.mxu0
  %v8584 = vadd.f32 %v8262, %v8583
  %v8585 = vpop.f32.mrf.mxu0
  %8586 = vmatprep.mubr.f32.mxu0 0.0
  %8587 = vmatmul.mubr.f32.gmra.mxu0 %v8305
  %v8588 = vpop.f32.mrf.mxu0
  %v8589 = vadd.f32 %v8262, %v8588
  %v8590 = vpop.f32.mrf.mxu0
  %8591 = vmatprep.mubr.f32.mxu0 0.0
  %8592 = vmatmul.mubr.f32.gmra.mxu0 %v8308
  %v8593 = vpop.f32.mrf.mxu0
  %v8594 = vadd.f32 %v8262, %v8593
  %v8595 = vpop.f32.mrf.mxu0
  %8596 = vmatprep.mubr.f32.mxu0 0.0
  %8597 = vmatmul.mubr.f32.gmra.mxu0 %v8311
  %v8598 = vpop.f32.mrf.mxu0
  %v8599 = vadd.f32 %v8262, %v8598
  %v8600 = vpop.f32.mrf.mxu0
  %8601 = vmatprep.mubr.f32.mxu0 0.0
  %8602 = vmatmul.mubr.f32.gmra.mxu0 %v8314
  %v8603 = vpop.f32.mrf.mxu0
  %v8604 = vadd.f32 %v8262, %v8603
  %v8605 = vpop.f32.mrf.mxu0
  %8606 = vmatprep.mubr.f32.mxu0 0.0
  %8607 = vmatmul.mubr.f32.gmra.mxu0 %v8317
  %v8608 = vpop.f32.mrf.mxu0
  %v8609 = vadd.f32 %v8262, %v8608
  %v8610 = vpop.f32.mrf.mxu0
  %8611 = vmatprep.mubr.f32.mxu0 0.0
  %8612 = vmatmul.mubr.f32.gmra.mxu0 %v8320
  %v8613 = vpop.f32.mrf.mxu0
  %v8614 = vadd.f32 %v8262, %v8613
  %v8615 = vpop.f32.mrf.mxu0
  %8616 = vmatprep.mubr.f32.mxu0 0.0
  %8617 = vmatmul.mubr.f32.gmra.mxu0 %v8323
  %v8618 = vpop.f32.mrf.mxu0
  %v8619 = vadd.f32 %v8262, %v8618
  %v8620 = vpop.f32.mrf.mxu0
  %8621 = vmatprep.mubr.f32.mxu0 0.0
  %8622 = vmatmul.mubr.f32.gmra.mxu0 %v8326
  %v8623 = vpop.f32.mrf.mxu0
  %v8624 = vadd.f32 %v8262, %v8623
  %v8625 = vpop.f32.mrf.mxu0
  %8626 = vmatprep.mubr.f32.mxu0 0.0
  %8627 = vmatmul.mubr.f32.gmra.mxu0 %v8329
  %v8628 = vpop.f32.mrf.mxu0
  %v8629 = vadd.f32 %v8262, %v8628
  %v8630 = vpop.f32.mrf.mxu0
  %8631 = vmatprep.mubr.f32.mxu0 0.0
  %8632 = vmatmul.mubr.f32.gmra.mxu0 %v8332
  %v8633 = vpop.f32.mrf.mxu0
  %v8634 = vadd.f32 %v8262, %v8633
  %v8635 = vpop.f32.mrf.mxu0
  %8636 = vmatprep.mubr.f32.mxu0 0.0
  %8637 = vmatmul.mubr.f32.gmra.mxu0 %v8335
  %v8638 = vpop.f32.mrf.mxu0
  %v8639 = vadd.f32 %v8262, %v8638
  %v8640 = vpop.f32.mrf.mxu0
  %8641 = vmatprep.mubr.f32.mxu0 0.0
  %8642 = vmatmul.mubr.f32.gmra.mxu0 %v8338
  %v8643 = vpop.f32.mrf.mxu0
  %v8644 = vadd.f32 %v8262, %v8643
  %v8645 = vpop.f32.mrf.mxu0
  %8646 = vmatprep.mubr.f32.mxu0 0.0
  %8647 = vmatmul.mubr.f32.gmra.mxu0 %v8341
  %v8648 = vpop.f32.mrf.mxu0
  %v8649 = vadd.f32 %v8262, %v8648
  %v8650 = vpop.f32.mrf.mxu0
  %8651 = vmatprep.mubr.f32.mxu0 0.0
  %8652 = vmatmul.mubr.f32.gmra.mxu0 %v8344
  %v8653 = vpop.f32.mrf.mxu0
  %v8654 = vadd.f32 %v8262, %v8653
  %v8655 = vpop.f32.mrf.mxu0
  %8656 = vmatprep.mubr.f32.mxu0 0.0
  %8657 = vmatmul.mubr.f32.gmra.mxu0 %v8347
  %v8658 = vpop.f32.mrf.mxu0
  %v8659 = vadd.f32 %v8262, %v8658
  %v8660 = vpop.f32.mrf.mxu0
  %8661 = vmatprep.mubr.f32.mxu0 0.0
  %8662 = vmatmul.mubr.f32.gmra.mxu0 %v8350
  %v8663 = vpop.f32.mrf.mxu0
  %v8664 = vadd.f32 %v8262, %v8663
  %v8665 = vpop.f32.mrf.mxu0
  %8666 = vmatprep.mubr.f32.mxu0 0.0
  %8667 = vmatmul.mubr.f32.gmra.mxu0 %v8353
  %v8668 = vpop.f32.mrf.mxu0
  %v8669 = vadd.f32 %v8262, %v8668
  %v8670 = vpop.f32.mrf.mxu0
  %8671 = vmatprep.mubr.f32.mxu0 0.0
  %8672 = vmatmul.mubr.f32.gmra.mxu0 %v8356
  %v8673 = vpop.f32.mrf.mxu0
  %v8674 = vadd.f32 %v8262, %v8673
  %v8675 = vpop.f32.mrf.mxu0
  %8676 = vmatprep.mubr.f32.mxu0 0.0
  %8677 = vmatmul.mubr.f32.gmra.mxu0 %v8359
  %v8678 = vpop.f32.mrf.mxu0
  %v8679 = vadd.f32 %v8262, %v8678
  %v8680 = vpop.f32.mrf.mxu0
  %8681 = vmatprep.mubr.f32.mxu0 0.0
  %8682 = vmatmul.mubr.f32.gmra.mxu0 %v8362
  %v8683 = vpop.f32.mrf.mxu0
  %v8684 = vadd.f32 %v8262, %v8683
  %v8685 = vpop.f32.mrf.mxu0
  %8686 = vmatprep.mubr.f32.mxu0 0.0
  %8687 = vmatmul.mubr.f32.gmra.mxu0 %v8365
  %v8688 = vpop.f32.mrf.mxu0
  %v8689 = vadd.f32 %v8262, %v8688
  %v8690 = vpop.f32.mrf.mxu0
  %8691 = vmatprep.mubr.f32.mxu0 0.0
  %8692 = vmatmul.mubr.f32.gmra.mxu0 %v8368
  %v8693 = vpop.f32.mrf.mxu0
  %v8694 = vadd.f32 %v8262, %v8693
  %v8695 = vpop.f32.mrf.mxu0
  %8696 = vmatprep.mubr.f32.mxu0 0.0
  %8697 = vmatmul.mubr.f32.gmra.mxu0 %v8371
  %v8698 = vpop.f32.mrf.mxu0
  %v8699 = vadd.f32 %v8262, %v8698
  %v8700 = vpop.f32.mrf.mxu0
  %8701 = vmatprep.mubr.f32.mxu0 0.0
  %8702 = vmatmul.mubr.f32.gmra.mxu0 %v8374
  %v8703 = vpop.f32.mrf.mxu0
  %v8704 = vadd.f32 %v8262, %v8703
  %v8705 = vpop.f32.mrf.mxu0
  %8706 = vmatprep.mubr.f32.mxu0 0.0
  %8707 = vmatmul.mubr.f32.gmra.mxu0 %v8377
  %v8708 = vpop.f32.mrf.mxu0
  %v8709 = vadd.f32 %v8262, %v8708
  %v8710 = vpop.f32.mrf.mxu0
  %8711 = vmatprep.mubr.f32.mxu0 0.0
  %8712 = vmatmul.mubr.f32.gmra.mxu0 %v8380
  %v8713 = vpop.f32.mrf.mxu0
  %v8714 = vadd.f32 %v8262, %v8713
  %v8715 = vpop.f32.mrf.mxu0
  %8716 = vmatprep.mubr.f32.mxu0 0.0
  %8717 = vmatmul.mubr.f32.gmra.mxu0 %v8383
  %v8718 = vpop.f32.mrf.mxu0
  %v8719 = vadd.f32 %v8262, %v8718
  %v8720 = vpop.f32.mrf.mxu0
  %8721 = vmatprep.mubr.f32.mxu0 0.0
  %8722 = vmatmul.mubr.f32.gmra.mxu0 %v8386
  %v8723 = vpop.f32.mrf.mxu0
  %v8724 = vadd.f32 %v8262, %v8723
  %v8725 = vpop.f32.mrf.mxu0
  %8726 = vmatprep.mubr.f32.mxu0 0.0
  %8727 = vmatmul.mubr.f32.gmra.mxu0 %v8389
  %v8728 = vpop.f32.mrf.mxu0
  %v8729 = vadd.f32 %v8262, %v8728
  %v8730 = vpop.f32.mrf.mxu0
  %8731 = vmatprep.mubr.f32.mxu0 0.0
  %8732 = vmatmul.mubr.f32.gmra.mxu0 %v8392
  %v8733 = vpop.f32.mrf.mxu0
  %v8734 = vadd.f32 %v8262, %v8733
  %v8735 = vpop.f32.mrf.mxu0
  %8736 = vmatprep.mubr.f32.mxu0 0.0
  %8737 = vmatmul.mubr.f32.gmra.mxu0 %v8395
  %v8738 = vpop.f32.mrf.mxu0
  %v8739 = vadd.f32 %v8262, %v8738
  %v8740 = vpop.f32.mrf.mxu0
  %8741 = vmatprep.mubr.f32.mxu0 0.0
  %8742 = vmatmul.mubr.f32.gmra.mxu0 %v8398
  %v8743 = vpop.f32.mrf.mxu0
  %v8744 = vadd.f32 %v8262, %v8743
  %v8745 = vpop.f32.mrf.mxu0
  %8746 = vmatprep.mubr.f32.mxu0 0.0
  %8747 = vmatmul.mubr.f32.gmra.mxu0 %v8401
  %v8748 = vpop.f32.mrf.mxu0
  %v8749 = vadd.f32 %v8262, %v8748
  %v8750 = vpop.f32.mrf.mxu0
  %8751 = vmatprep.mubr.f32.mxu0 0.0
  %8752 = vmatmul.mubr.f32.gmra.mxu0 %v8404
  %v8753 = vpop.f32.mrf.mxu0
  %v8754 = vadd.f32 %v8262, %v8753
  %v8755 = vpop.f32.mrf.mxu0
  %8756 = vmatprep.mubr.f32.mxu0 0.0
  %8757 = vmatmul.mubr.f32.gmra.mxu0 %v8407
  %v8758 = vpop.f32.mrf.mxu0
  %v8759 = vadd.f32 %v8262, %v8758
  %v8760 = vpop.f32.mrf.mxu0
  %8761 = vmatprep.mubr.f32.mxu0 0.0
  %8762 = vmatmul.mubr.f32.gmra.mxu0 %v8410
  %v8763 = vpop.f32.mrf.mxu0
  %v8764 = vadd.f32 %v8262, %v8763
  %v8765 = vpop.f32.mrf.mxu0
  %8766 = vmatprep.mubr.f32.mxu0 0.0
  %8767 = vmatmul.mubr.f32.gmra.mxu0 %v8413
  %v8768 = vpop.f32.mrf.mxu0
  %v8769 = vadd.f32 %v8262, %v8768
  %v8770 = vpop.f32.mrf.mxu0
  %8771 = vmatprep.mubr.f32.mxu0 0.0
  %8772 = vmatmul.mubr.f32.gmra.mxu0 %v8416
  %v8773 = vpop.f32.mrf.mxu0
  %v8774 = vadd.f32 %v8262, %v8773
  %v8775 = vpop.f32.mrf.mxu0
  %8776 = vmatprep.mubr.f32.mxu0 0.0
  %8777 = vmatmul.mubr.f32.gmra.mxu0 %v8419
  %v8778 = vpop.f32.mrf.mxu0
  %v8779 = vadd.f32 %v8262, %v8778
  %v8780 = vpop.f32.mrf.mxu0
  %8781 = vmatprep.mubr.f32.mxu0 0.0
  %8782 = vmatmul.mubr.f32.gmra.mxu0 %v8422
  %v8783 = vpop.f32.mrf.mxu0
  %v8784 = vadd.f32 %v8262, %v8783
  %v8785 = vpop.f32.mrf.mxu0
  %8786 = vmatprep.mubr.f32.mxu0 0.0
  %8787 = vmatmul.mubr.f32.gmra.mxu0 %v8425
  %v8788 = vpop.f32.mrf.mxu0
  %v8789 = vadd.f32 %v8262, %v8788
  %v8790 = vpop.f32.mrf.mxu0
  %8791 = vmatprep.mubr.f32.mxu0 0.0
  %8792 = vmatmul.mubr.f32.gmra.mxu0 %v8428
  %v8793 = vpop.f32.mrf.mxu0
  %v8794 = vadd.f32 %v8262, %v8793
  %v8795 = vpop.f32.mrf.mxu0
  %8796 = vmatprep.mubr.f32.mxu0 0.0
  %8797 = vmatmul.mubr.f32.gmra.mxu0 %v8431
  %v8798 = vpop.f32.mrf.mxu0
  %v8799 = vadd.f32 %v8262, %v8798
  %v8800 = vpop.f32.mrf.mxu0
  %8801 = vmatprep.mubr.f32.mxu0 0.0
  %8802 = vmatmul.mubr.f32.gmra.mxu0 %v8434
  %v8803 = vpop.f32.mrf.mxu0
  %v8804 = vadd.f32 %v8262, %v8803
  %v8805 = vpop.f32.mrf.mxu0
  %8806 = vmatprep.mubr.f32.mxu0 0.0
  %8807 = vmatmul.mubr.f32.gmra.mxu0 %v8437
  %v8808 = vpop.f32.mrf.mxu0
  %v8809 = vadd.f32 %v8262, %v8808
  %v8810 = vpop.f32.mrf.mxu0
  %8811 = vmatprep.mubr.f32.mxu0 0.0
  %8812 = vmatmul.mubr.f32.gmra.mxu0 %v8440
  %v8813 = vpop.f32.mrf.mxu0
  %v8814 = vadd.f32 %v8262, %v8813
  %v8815 = vpop.f32.mrf.mxu0
  %8816 = vmatprep.mubr.f32.mxu0 0.0
  %8817 = vmatmul.mubr.f32.gmra.mxu0 %v8443
  %v8818 = vpop.f32.mrf.mxu0
  %v8819 = vadd.f32 %v8262, %v8818
  %v8820 = vpop.f32.mrf.mxu0
  %8821 = vmatprep.mubr.f32.mxu0 0.0
  %8822 = vmatmul.mubr.f32.gmra.mxu0 %v8446
  %v8823 = vpop.f32.mrf.mxu0
  %v8824 = vadd.f32 %v8262, %v8823
  %v8825 = vpop.f32.mrf.mxu0
  %8826 = vmatprep.mubr.f32.mxu0 0.0
  %8827 = vmatmul.mubr.f32.gmra.mxu0 %v8449
  %v8828 = vpop.f32.mrf.mxu0
  %v8829 = vadd.f32 %v8262, %v8828
  %v8830 = vpop.f32.mrf.mxu0
  %8831 = vmatprep.mubr.f32.mxu0 0.0
  %8832 = vmatmul.mubr.f32.gmra.mxu0 %v8452
  %v8833 = vpop.f32.mrf.mxu0
  %v8834 = vadd.f32 %v8262, %v8833
  %v8835 = vpop.f32.mrf.mxu0
  %8836 = vmatprep.mubr.f32.mxu0 0.0
  %8837 = vmatmul.mubr.f32.gmra.mxu0 %v8455
  %v8838 = vpop.f32.mrf.mxu0
  %v8839 = vadd.f32 %v8262, %v8838
  %v8840 = vpop.f32.mrf.mxu0
  %8841 = vdwg.mxu0
  %v8842 = vsel %vm4132, %v8524, 0.0
  %v8843 = vsel %vm4132, %v8529, 0.0
  %v8844 = vadd.f32 %v8842, %v8843
  %v8845 = vsel %vm4132, %v8534, 0.0
  %v8846 = vadd.f32 %v8844, %v8845
  %v8847 = vsel %vm4132, %v8539, 0.0
  %v8848 = vadd.f32 %v8846, %v8847
  %v8849 = vsel %vm4132, %v8544, 0.0
  %v8850 = vadd.f32 %v8848, %v8849
  %v8851 = vsel %vm4132, %v8549, 0.0
  %v8852 = vadd.f32 %v8850, %v8851
  %v8853 = vsel %vm4132, %v8554, 0.0
  %v8854 = vadd.f32 %v8852, %v8853
  %v8855 = vsel %vm4132, %v8559, 0.0
  %v8856 = vadd.f32 %v8854, %v8855
  %v8857 = vsel %vm4132, %v8564, 0.0
  %v8858 = vadd.f32 %v8856, %v8857
  %v8859 = vsel %vm4132, %v8569, 0.0
  %v8860 = vadd.f32 %v8858, %v8859
  %v8861 = vsel %vm4132, %v8574, 0.0
  %v8862 = vadd.f32 %v8860, %v8861
  %v8863 = vsel %vm4132, %v8579, 0.0
  %v8864 = vadd.f32 %v8862, %v8863
  %v8865 = vsel %vm4132, %v8584, 0.0
  %v8866 = vadd.f32 %v8864, %v8865
  %v8867 = vsel %vm4132, %v8589, 0.0
  %v8868 = vadd.f32 %v8866, %v8867
  %v8869 = vsel %vm4132, %v8594, 0.0
  %v8870 = vadd.f32 %v8868, %v8869
  %v8871 = vsel %vm4132, %v8599, 0.0
  %v8872 = vadd.f32 %v8870, %v8871
  %v8873 = vsel %vm4132, %v8604, 0.0
  %v8874 = vadd.f32 %v8872, %v8873
  %v8875 = vsel %vm4132, %v8609, 0.0
  %v8876 = vadd.f32 %v8874, %v8875
  %v8877 = vsel %vm4132, %v8614, 0.0
  %v8878 = vadd.f32 %v8876, %v8877
  %v8879 = vsel %vm4132, %v8619, 0.0
  %v8880 = vadd.f32 %v8878, %v8879
  %v8881 = vsel %vm4132, %v8624, 0.0
  %v8882 = vadd.f32 %v8880, %v8881
  %v8883 = vsel %vm4132, %v8629, 0.0
  %v8884 = vadd.f32 %v8882, %v8883
  %v8885 = vsel %vm4132, %v8634, 0.0
  %v8886 = vadd.f32 %v8884, %v8885
  %v8887 = vsel %vm4132, %v8639, 0.0
  %v8888 = vadd.f32 %v8886, %v8887
  %v8889 = vsel %vm4132, %v8644, 0.0
  %v8890 = vadd.f32 %v8888, %v8889
  %v8891 = vsel %vm4132, %v8649, 0.0
  %v8892 = vadd.f32 %v8890, %v8891
  %v8893 = vsel %vm4132, %v8654, 0.0
  %v8894 = vadd.f32 %v8892, %v8893
  %v8895 = vsel %vm4132, %v8659, 0.0
  %v8896 = vadd.f32 %v8894, %v8895
  %v8897 = vsel %vm4132, %v8664, 0.0
  %v8898 = vadd.f32 %v8896, %v8897
  %v8899 = vsel %vm4132, %v8669, 0.0
  %v8900 = vadd.f32 %v8898, %v8899
  %v8901 = vsel %vm4132, %v8674, 0.0
  %v8902 = vadd.f32 %v8900, %v8901
  %v8903 = vsel %vm4132, %v8679, 0.0
  %v8904 = vadd.f32 %v8902, %v8903
  %v8905 = vsel %vm4132, %v8684, 0.0
  %v8906 = vadd.f32 %v8904, %v8905
  %v8907 = vsel %vm4132, %v8689, 0.0
  %v8908 = vadd.f32 %v8906, %v8907
  %v8909 = vsel %vm4132, %v8694, 0.0
  %v8910 = vadd.f32 %v8908, %v8909
  %v8911 = vsel %vm4132, %v8699, 0.0
  %v8912 = vadd.f32 %v8910, %v8911
  %v8913 = vsel %vm4132, %v8704, 0.0
  %v8914 = vadd.f32 %v8912, %v8913
  %v8915 = vsel %vm4132, %v8709, 0.0
  %v8916 = vadd.f32 %v8914, %v8915
  %v8917 = vsel %vm4132, %v8714, 0.0
  %v8918 = vadd.f32 %v8916, %v8917
  %v8919 = vsel %vm4132, %v8719, 0.0
  %v8920 = vadd.f32 %v8918, %v8919
  %v8921 = vsel %vm4132, %v8724, 0.0
  %v8922 = vadd.f32 %v8920, %v8921
  %v8923 = vsel %vm4132, %v8729, 0.0
  %v8924 = vadd.f32 %v8922, %v8923
  %v8925 = vsel %vm4132, %v8734, 0.0
  %v8926 = vadd.f32 %v8924, %v8925
  %v8927 = vsel %vm4132, %v8739, 0.0
  %v8928 = vadd.f32 %v8926, %v8927
  %v8929 = vsel %vm4132, %v8744, 0.0
  %v8930 = vadd.f32 %v8928, %v8929
  %v8931 = vsel %vm4132, %v8749, 0.0
  %v8932 = vadd.f32 %v8930, %v8931
  %v8933 = vsel %vm4132, %v8754, 0.0
  %v8934 = vadd.f32 %v8932, %v8933
  %v8935 = vsel %vm4132, %v8759, 0.0
  %v8936 = vadd.f32 %v8934, %v8935
  %v8937 = vsel %vm4132, %v8764, 0.0
  %v8938 = vadd.f32 %v8936, %v8937
  %v8939 = vsel %vm4132, %v8769, 0.0
  %v8940 = vadd.f32 %v8938, %v8939
  %v8941 = vsel %vm4132, %v8774, 0.0
  %v8942 = vadd.f32 %v8940, %v8941
  %v8943 = vsel %vm4132, %v8779, 0.0
  %v8944 = vadd.f32 %v8942, %v8943
  %v8945 = vsel %vm4132, %v8784, 0.0
  %v8946 = vadd.f32 %v8944, %v8945
  %v8947 = vsel %vm4132, %v8789, 0.0
  %v8948 = vadd.f32 %v8946, %v8947
  %v8949 = vsel %vm4132, %v8794, 0.0
  %v8950 = vadd.f32 %v8948, %v8949
  %v8951 = vsel %vm4132, %v8799, 0.0
  %v8952 = vadd.f32 %v8950, %v8951
  %v8953 = vsel %vm4132, %v8804, 0.0
  %v8954 = vadd.f32 %v8952, %v8953
  %v8955 = vsel %vm4132, %v8809, 0.0
  %v8956 = vadd.f32 %v8954, %v8955
  %v8957 = vsel %vm4132, %v8814, 0.0
  %v8958 = vadd.f32 %v8956, %v8957
  %v8959 = vsel %vm4132, %v8819, 0.0
  %v8960 = vadd.f32 %v8958, %v8959
  %v8961 = vsel %vm4132, %v8824, 0.0
  %v8962 = vadd.f32 %v8960, %v8961
  %v8963 = vsel %vm4132, %v8829, 0.0
  %v8964 = vadd.f32 %v8962, %v8963
  %v8965 = vsel %vm4132, %v8834, 0.0
  %v8966 = vadd.f32 %v8964, %v8965
  %v8967 = vsel %vm4132, %v8839, 0.0
  %v8968 = vadd.f32 %v8966, %v8967
  %v8969 = vrot.slane %v8968, 4
  %v8970 = vadd.f32 %v8968, %v8969
  %v8971 = vrot.slane %v8970, 2
  %v8972 = vadd.f32 %v8970, %v8971
  %v8973 = vrot.slane %v8972, 1
  %v8974 = vadd.f32 %v8972, %v8973
  %v8975 = vmul.f32 %v8974, 0.001953125
  %v8976 = vsub.f32 %v8524, %v8975
  %v8977 = vsub.f32 %v8529, %v8975
  %v8978 = vsub.f32 %v8534, %v8975
  %v8979 = vsub.f32 %v8539, %v8975
  %v8980 = vsub.f32 %v8544, %v8975
  %v8981 = vsub.f32 %v8549, %v8975
  %v8982 = vsub.f32 %v8554, %v8975
  %v8983 = vsub.f32 %v8559, %v8975
  %v8984 = vsub.f32 %v8564, %v8975
  %v8985 = vsub.f32 %v8569, %v8975
  %v8986 = vsub.f32 %v8574, %v8975
  %v8987 = vsub.f32 %v8579, %v8975
  %v8988 = vsub.f32 %v8584, %v8975
  %v8989 = vsub.f32 %v8589, %v8975
  %v8990 = vsub.f32 %v8594, %v8975
  %v8991 = vsub.f32 %v8599, %v8975
  %v8992 = vsub.f32 %v8604, %v8975
  %v8993 = vsub.f32 %v8609, %v8975
  %v8994 = vsub.f32 %v8614, %v8975
  %v8995 = vsub.f32 %v8619, %v8975
  %v8996 = vsub.f32 %v8624, %v8975
  %v8997 = vsub.f32 %v8629, %v8975
  %v8998 = vsub.f32 %v8634, %v8975
  %v8999 = vsub.f32 %v8639, %v8975
  %v9000 = vsub.f32 %v8644, %v8975
  %v9001 = vsub.f32 %v8649, %v8975
  %v9002 = vsub.f32 %v8654, %v8975
  %v9003 = vsub.f32 %v8659, %v8975
  %v9004 = vsub.f32 %v8664, %v8975
  %v9005 = vsub.f32 %v8669, %v8975
  %v9006 = vsub.f32 %v8674, %v8975
  %v9007 = vsub.f32 %v8679, %v8975
  %v9008 = vsub.f32 %v8684, %v8975
  %v9009 = vsub.f32 %v8689, %v8975
  %v9010 = vsub.f32 %v8694, %v8975
  %v9011 = vsub.f32 %v8699, %v8975
  %v9012 = vsub.f32 %v8704, %v8975
  %v9013 = vsub.f32 %v8709, %v8975
  %v9014 = vsub.f32 %v8714, %v8975
  %v9015 = vsub.f32 %v8719, %v8975
  %v9016 = vsub.f32 %v8724, %v8975
  %v9017 = vsub.f32 %v8729, %v8975
  %v9018 = vsub.f32 %v8734, %v8975
  %v9019 = vsub.f32 %v8739, %v8975
  %v9020 = vsub.f32 %v8744, %v8975
  %v9021 = vsub.f32 %v8749, %v8975
  %v9022 = vsub.f32 %v8754, %v8975
  %v9023 = vsub.f32 %v8759, %v8975
  %v9024 = vsub.f32 %v8764, %v8975
  %v9025 = vsub.f32 %v8769, %v8975
  %v9026 = vsub.f32 %v8774, %v8975
  %v9027 = vsub.f32 %v8779, %v8975
  %v9028 = vsub.f32 %v8784, %v8975
  %v9029 = vsub.f32 %v8789, %v8975
  %v9030 = vsub.f32 %v8794, %v8975
  %v9031 = vsub.f32 %v8799, %v8975
  %v9032 = vsub.f32 %v8804, %v8975
  %v9033 = vsub.f32 %v8809, %v8975
  %v9034 = vsub.f32 %v8814, %v8975
  %v9035 = vsub.f32 %v8819, %v8975
  %v9036 = vsub.f32 %v8824, %v8975
  %v9037 = vsub.f32 %v8829, %v8975
  %v9038 = vsub.f32 %v8834, %v8975
  %v9039 = vsub.f32 %v8839, %v8975
  %v9040 = vmul.f32 %v8976, %v8976
  %v9041 = vmul.f32 %v8977, %v8977
  %v9042 = vmul.f32 %v8978, %v8978
  %v9043 = vmul.f32 %v8979, %v8979
  %v9044 = vmul.f32 %v8980, %v8980
  %v9045 = vmul.f32 %v8981, %v8981
  %v9046 = vmul.f32 %v8982, %v8982
  %v9047 = vmul.f32 %v8983, %v8983
  %v9048 = vmul.f32 %v8984, %v8984
  %v9049 = vmul.f32 %v8985, %v8985
  %v9050 = vmul.f32 %v8986, %v8986
  %v9051 = vmul.f32 %v8987, %v8987
  %v9052 = vmul.f32 %v8988, %v8988
  %v9053 = vmul.f32 %v8989, %v8989
  %v9054 = vmul.f32 %v8990, %v8990
  %v9055 = vmul.f32 %v8991, %v8991
  %v9056 = vmul.f32 %v8992, %v8992
  %v9057 = vmul.f32 %v8993, %v8993
  %v9058 = vmul.f32 %v8994, %v8994
  %v9059 = vmul.f32 %v8995, %v8995
  %v9060 = vmul.f32 %v8996, %v8996
  %v9061 = vmul.f32 %v8997, %v8997
  %v9062 = vmul.f32 %v8998, %v8998
  %v9063 = vmul.f32 %v8999, %v8999
  %v9064 = vmul.f32 %v9000, %v9000
  %v9065 = vmul.f32 %v9001, %v9001
  %v9066 = vmul.f32 %v9002, %v9002
  %v9067 = vmul.f32 %v9003, %v9003
  %v9068 = vmul.f32 %v9004, %v9004
  %v9069 = vmul.f32 %v9005, %v9005
  %v9070 = vmul.f32 %v9006, %v9006
  %v9071 = vmul.f32 %v9007, %v9007
  %v9072 = vmul.f32 %v9008, %v9008
  %v9073 = vmul.f32 %v9009, %v9009
  %v9074 = vmul.f32 %v9010, %v9010
  %v9075 = vmul.f32 %v9011, %v9011
  %v9076 = vmul.f32 %v9012, %v9012
  %v9077 = vmul.f32 %v9013, %v9013
  %v9078 = vmul.f32 %v9014, %v9014
  %v9079 = vmul.f32 %v9015, %v9015
  %v9080 = vmul.f32 %v9016, %v9016
  %v9081 = vmul.f32 %v9017, %v9017
  %v9082 = vmul.f32 %v9018, %v9018
  %v9083 = vmul.f32 %v9019, %v9019
  %v9084 = vmul.f32 %v9020, %v9020
  %v9085 = vmul.f32 %v9021, %v9021
  %v9086 = vmul.f32 %v9022, %v9022
  %v9087 = vmul.f32 %v9023, %v9023
  %v9088 = vmul.f32 %v9024, %v9024
  %v9089 = vmul.f32 %v9025, %v9025
  %v9090 = vmul.f32 %v9026, %v9026
  %v9091 = vmul.f32 %v9027, %v9027
  %v9092 = vmul.f32 %v9028, %v9028
  %v9093 = vmul.f32 %v9029, %v9029
  %v9094 = vmul.f32 %v9030, %v9030
  %v9095 = vmul.f32 %v9031, %v9031
  %v9096 = vmul.f32 %v9032, %v9032
  %v9097 = vmul.f32 %v9033, %v9033
  %v9098 = vmul.f32 %v9034, %v9034
  %v9099 = vmul.f32 %v9035, %v9035
  %v9100 = vmul.f32 %v9036, %v9036
  %v9101 = vmul.f32 %v9037, %v9037
  %v9102 = vmul.f32 %v9038, %v9038
  %v9103 = vmul.f32 %v9039, %v9039
  %v9104 = vsel %vm4132, %v9040, 0.0
  %v9105 = vsel %vm4132, %v9041, 0.0
  %v9106 = vadd.f32 %v9104, %v9105
  %v9107 = vsel %vm4132, %v9042, 0.0
  %v9108 = vadd.f32 %v9106, %v9107
  %v9109 = vsel %vm4132, %v9043, 0.0
  %v9110 = vadd.f32 %v9108, %v9109
  %v9111 = vsel %vm4132, %v9044, 0.0
  %v9112 = vadd.f32 %v9110, %v9111
  %v9113 = vsel %vm4132, %v9045, 0.0
  %v9114 = vadd.f32 %v9112, %v9113
  %v9115 = vsel %vm4132, %v9046, 0.0
  %v9116 = vadd.f32 %v9114, %v9115
  %v9117 = vsel %vm4132, %v9047, 0.0
  %v9118 = vadd.f32 %v9116, %v9117
  %v9119 = vsel %vm4132, %v9048, 0.0
  %v9120 = vadd.f32 %v9118, %v9119
  %v9121 = vsel %vm4132, %v9049, 0.0
  %v9122 = vadd.f32 %v9120, %v9121
  %v9123 = vsel %vm4132, %v9050, 0.0
  %v9124 = vadd.f32 %v9122, %v9123
  %v9125 = vsel %vm4132, %v9051, 0.0
  %v9126 = vadd.f32 %v9124, %v9125
  %v9127 = vsel %vm4132, %v9052, 0.0
  %v9128 = vadd.f32 %v9126, %v9127
  %v9129 = vsel %vm4132, %v9053, 0.0
  %v9130 = vadd.f32 %v9128, %v9129
  %v9131 = vsel %vm4132, %v9054, 0.0
  %v9132 = vadd.f32 %v9130, %v9131
  %v9133 = vsel %vm4132, %v9055, 0.0
  %v9134 = vadd.f32 %v9132, %v9133
  %v9135 = vsel %vm4132, %v9056, 0.0
  %v9136 = vadd.f32 %v9134, %v9135
  %v9137 = vsel %vm4132, %v9057, 0.0
  %v9138 = vadd.f32 %v9136, %v9137
  %v9139 = vsel %vm4132, %v9058, 0.0
  %v9140 = vadd.f32 %v9138, %v9139
  %v9141 = vsel %vm4132, %v9059, 0.0
  %v9142 = vadd.f32 %v9140, %v9141
  %v9143 = vsel %vm4132, %v9060, 0.0
  %v9144 = vadd.f32 %v9142, %v9143
  %v9145 = vsel %vm4132, %v9061, 0.0
  %v9146 = vadd.f32 %v9144, %v9145
  %v9147 = vsel %vm4132, %v9062, 0.0
  %v9148 = vadd.f32 %v9146, %v9147
  %v9149 = vsel %vm4132, %v9063, 0.0
  %v9150 = vadd.f32 %v9148, %v9149
  %v9151 = vsel %vm4132, %v9064, 0.0
  %v9152 = vadd.f32 %v9150, %v9151
  %v9153 = vsel %vm4132, %v9065, 0.0
  %v9154 = vadd.f32 %v9152, %v9153
  %v9155 = vsel %vm4132, %v9066, 0.0
  %v9156 = vadd.f32 %v9154, %v9155
  %v9157 = vsel %vm4132, %v9067, 0.0
  %v9158 = vadd.f32 %v9156, %v9157
  %v9159 = vsel %vm4132, %v9068, 0.0
  %v9160 = vadd.f32 %v9158, %v9159
  %v9161 = vsel %vm4132, %v9069, 0.0
  %v9162 = vadd.f32 %v9160, %v9161
  %v9163 = vsel %vm4132, %v9070, 0.0
  %v9164 = vadd.f32 %v9162, %v9163
  %v9165 = vsel %vm4132, %v9071, 0.0
  %v9166 = vadd.f32 %v9164, %v9165
  %v9167 = vsel %vm4132, %v9072, 0.0
  %v9168 = vadd.f32 %v9166, %v9167
  %v9169 = vsel %vm4132, %v9073, 0.0
  %v9170 = vadd.f32 %v9168, %v9169
  %v9171 = vsel %vm4132, %v9074, 0.0
  %v9172 = vadd.f32 %v9170, %v9171
  %v9173 = vsel %vm4132, %v9075, 0.0
  %v9174 = vadd.f32 %v9172, %v9173
  %v9175 = vsel %vm4132, %v9076, 0.0
  %v9176 = vadd.f32 %v9174, %v9175
  %v9177 = vsel %vm4132, %v9077, 0.0
  %v9178 = vadd.f32 %v9176, %v9177
  %v9179 = vsel %vm4132, %v9078, 0.0
  %v9180 = vadd.f32 %v9178, %v9179
  %v9181 = vsel %vm4132, %v9079, 0.0
  %v9182 = vadd.f32 %v9180, %v9181
  %v9183 = vsel %vm4132, %v9080, 0.0
  %v9184 = vadd.f32 %v9182, %v9183
  %v9185 = vsel %vm4132, %v9081, 0.0
  %v9186 = vadd.f32 %v9184, %v9185
  %v9187 = vsel %vm4132, %v9082, 0.0
  %v9188 = vadd.f32 %v9186, %v9187
  %v9189 = vsel %vm4132, %v9083, 0.0
  %v9190 = vadd.f32 %v9188, %v9189
  %v9191 = vsel %vm4132, %v9084, 0.0
  %v9192 = vadd.f32 %v9190, %v9191
  %v9193 = vsel %vm4132, %v9085, 0.0
  %v9194 = vadd.f32 %v9192, %v9193
  %v9195 = vsel %vm4132, %v9086, 0.0
  %v9196 = vadd.f32 %v9194, %v9195
  %v9197 = vsel %vm4132, %v9087, 0.0
  %v9198 = vadd.f32 %v9196, %v9197
  %v9199 = vsel %vm4132, %v9088, 0.0
  %v9200 = vadd.f32 %v9198, %v9199
  %v9201 = vsel %vm4132, %v9089, 0.0
  %v9202 = vadd.f32 %v9200, %v9201
  %v9203 = vsel %vm4132, %v9090, 0.0
  %v9204 = vadd.f32 %v9202, %v9203
  %v9205 = vsel %vm4132, %v9091, 0.0
  %v9206 = vadd.f32 %v9204, %v9205
  %v9207 = vsel %vm4132, %v9092, 0.0
  %v9208 = vadd.f32 %v9206, %v9207
  %v9209 = vsel %vm4132, %v9093, 0.0
  %v9210 = vadd.f32 %v9208, %v9209
  %v9211 = vsel %vm4132, %v9094, 0.0
  %v9212 = vadd.f32 %v9210, %v9211
  %v9213 = vsel %vm4132, %v9095, 0.0
  %v9214 = vadd.f32 %v9212, %v9213
  %v9215 = vsel %vm4132, %v9096, 0.0
  %v9216 = vadd.f32 %v9214, %v9215
  %v9217 = vsel %vm4132, %v9097, 0.0
  %v9218 = vadd.f32 %v9216, %v9217
  %v9219 = vsel %vm4132, %v9098, 0.0
  %v9220 = vadd.f32 %v9218, %v9219
  %v9221 = vsel %vm4132, %v9099, 0.0
  %v9222 = vadd.f32 %v9220, %v9221
  %v9223 = vsel %vm4132, %v9100, 0.0
  %v9224 = vadd.f32 %v9222, %v9223
  %v9225 = vsel %vm4132, %v9101, 0.0
  %v9226 = vadd.f32 %v9224, %v9225
  %v9227 = vsel %vm4132, %v9102, 0.0
  %v9228 = vadd.f32 %v9226, %v9227
  %v9229 = vsel %vm4132, %v9103, 0.0
  %v9230 = vadd.f32 %v9228, %v9229
  %v9231 = vrot.slane %v9230, 4
  %v9232 = vadd.f32 %v9230, %v9231
  %v9233 = vrot.slane %v9232, 2
  %v9234 = vadd.f32 %v9232, %v9233
  %v9235 = vrot.slane %v9234, 1
  %v9236 = vadd.f32 %v9234, %v9235
  %v9237 = vmul.f32 %v9236, 0.001953125
  %v9238 = vadd.f32 %v9237, 1e-05
  %v9239 = vrsqrt.pop %v9238
  %v9240 = vmul.f32 %v8976, %v9239
  %v9241 = vmul.f32 %v8977, %v9239
  %v9242 = vmul.f32 %v8978, %v9239
  %v9243 = vmul.f32 %v8979, %v9239
  %v9244 = vmul.f32 %v8980, %v9239
  %v9245 = vmul.f32 %v8981, %v9239
  %v9246 = vmul.f32 %v8982, %v9239
  %v9247 = vmul.f32 %v8983, %v9239
  %v9248 = vmul.f32 %v8984, %v9239
  %v9249 = vmul.f32 %v8985, %v9239
  %v9250 = vmul.f32 %v8986, %v9239
  %v9251 = vmul.f32 %v8987, %v9239
  %v9252 = vmul.f32 %v8988, %v9239
  %v9253 = vmul.f32 %v8989, %v9239
  %v9254 = vmul.f32 %v8990, %v9239
  %v9255 = vmul.f32 %v8991, %v9239
  %v9256 = vmul.f32 %v8992, %v9239
  %v9257 = vmul.f32 %v8993, %v9239
  %v9258 = vmul.f32 %v8994, %v9239
  %v9259 = vmul.f32 %v8995, %v9239
  %v9260 = vmul.f32 %v8996, %v9239
  %v9261 = vmul.f32 %v8997, %v9239
  %v9262 = vmul.f32 %v8998, %v9239
  %v9263 = vmul.f32 %v8999, %v9239
  %v9264 = vmul.f32 %v9000, %v9239
  %v9265 = vmul.f32 %v9001, %v9239
  %v9266 = vmul.f32 %v9002, %v9239
  %v9267 = vmul.f32 %v9003, %v9239
  %v9268 = vmul.f32 %v9004, %v9239
  %v9269 = vmul.f32 %v9005, %v9239
  %v9270 = vmul.f32 %v9006, %v9239
  %v9271 = vmul.f32 %v9007, %v9239
  %v9272 = vmul.f32 %v9008, %v9239
  %v9273 = vmul.f32 %v9009, %v9239
  %v9274 = vmul.f32 %v9010, %v9239
  %v9275 = vmul.f32 %v9011, %v9239
  %v9276 = vmul.f32 %v9012, %v9239
  %v9277 = vmul.f32 %v9013, %v9239
  %v9278 = vmul.f32 %v9014, %v9239
  %v9279 = vmul.f32 %v9015, %v9239
  %v9280 = vmul.f32 %v9016, %v9239
  %v9281 = vmul.f32 %v9017, %v9239
  %v9282 = vmul.f32 %v9018, %v9239
  %v9283 = vmul.f32 %v9019, %v9239
  %v9284 = vmul.f32 %v9020, %v9239
  %v9285 = vmul.f32 %v9021, %v9239
  %v9286 = vmul.f32 %v9022, %v9239
  %v9287 = vmul.f32 %v9023, %v9239
  %v9288 = vmul.f32 %v9024, %v9239
  %v9289 = vmul.f32 %v9025, %v9239
  %v9290 = vmul.f32 %v9026, %v9239
  %v9291 = vmul.f32 %v9027, %v9239
  %v9292 = vmul.f32 %v9028, %v9239
  %v9293 = vmul.f32 %v9029, %v9239
  %v9294 = vmul.f32 %v9030, %v9239
  %v9295 = vmul.f32 %v9031, %v9239
  %v9296 = vmul.f32 %v9032, %v9239
  %v9297 = vmul.f32 %v9033, %v9239
  %v9298 = vmul.f32 %v9034, %v9239
  %v9299 = vmul.f32 %v9035, %v9239
  %v9300 = vmul.f32 %v9036, %v9239
  %v9301 = vmul.f32 %v9037, %v9239
  %v9302 = vmul.f32 %v9038, %v9239
  %v9303 = vmul.f32 %v9039, %v9239
  %v9304 = vld [vmem:[%s5] sm:$0x1]
  %v9306 = vlaneseq
  %v9307 = vshrl.u32 %v9306, 7
  %v9308 = vsub.s32 0, %v9307
  %v9309 = vrot.slane %v9304, %v9308
  %v9311 = vmul.f32 %v9240, %v9309
  %v9312 = vmul.f32 %v9241, %v9309
  %v9313 = vmul.f32 %v9242, %v9309
  %v9314 = vmul.f32 %v9243, %v9309
  %v9315 = vmul.f32 %v9244, %v9309
  %v9316 = vmul.f32 %v9245, %v9309
  %v9317 = vmul.f32 %v9246, %v9309
  %v9318 = vmul.f32 %v9247, %v9309
  %v9319 = vmul.f32 %v9248, %v9309
  %v9320 = vmul.f32 %v9249, %v9309
  %v9321 = vmul.f32 %v9250, %v9309
  %v9322 = vmul.f32 %v9251, %v9309
  %v9323 = vmul.f32 %v9252, %v9309
  %v9324 = vmul.f32 %v9253, %v9309
  %v9325 = vmul.f32 %v9254, %v9309
  %v9326 = vmul.f32 %v9255, %v9309
  %v9327 = vmul.f32 %v9256, %v9309
  %v9328 = vmul.f32 %v9257, %v9309
  %v9329 = vmul.f32 %v9258, %v9309
  %v9330 = vmul.f32 %v9259, %v9309
  %v9331 = vmul.f32 %v9260, %v9309
  %v9332 = vmul.f32 %v9261, %v9309
  %v9333 = vmul.f32 %v9262, %v9309
  %v9334 = vmul.f32 %v9263, %v9309
  %v9335 = vmul.f32 %v9264, %v9309
  %v9336 = vmul.f32 %v9265, %v9309
  %v9337 = vmul.f32 %v9266, %v9309
  %v9338 = vmul.f32 %v9267, %v9309
  %v9339 = vmul.f32 %v9268, %v9309
  %v9340 = vmul.f32 %v9269, %v9309
  %v9341 = vmul.f32 %v9270, %v9309
  %v9342 = vmul.f32 %v9271, %v9309
  %v9343 = vmul.f32 %v9272, %v9309
  %v9344 = vmul.f32 %v9273, %v9309
  %v9345 = vmul.f32 %v9274, %v9309
  %v9346 = vmul.f32 %v9275, %v9309
  %v9347 = vmul.f32 %v9276, %v9309
  %v9348 = vmul.f32 %v9277, %v9309
  %v9349 = vmul.f32 %v9278, %v9309
  %v9350 = vmul.f32 %v9279, %v9309
  %v9351 = vmul.f32 %v9280, %v9309
  %v9352 = vmul.f32 %v9281, %v9309
  %v9353 = vmul.f32 %v9282, %v9309
  %v9354 = vmul.f32 %v9283, %v9309
  %v9355 = vmul.f32 %v9284, %v9309
  %v9356 = vmul.f32 %v9285, %v9309
  %v9357 = vmul.f32 %v9286, %v9309
  %v9358 = vmul.f32 %v9287, %v9309
  %v9359 = vmul.f32 %v9288, %v9309
  %v9360 = vmul.f32 %v9289, %v9309
  %v9361 = vmul.f32 %v9290, %v9309
  %v9362 = vmul.f32 %v9291, %v9309
  %v9363 = vmul.f32 %v9292, %v9309
  %v9364 = vmul.f32 %v9293, %v9309
  %v9365 = vmul.f32 %v9294, %v9309
  %v9366 = vmul.f32 %v9295, %v9309
  %v9367 = vmul.f32 %v9296, %v9309
  %v9368 = vmul.f32 %v9297, %v9309
  %v9369 = vmul.f32 %v9298, %v9309
  %v9370 = vmul.f32 %v9299, %v9309
  %v9371 = vmul.f32 %v9300, %v9309
  %v9372 = vmul.f32 %v9301, %v9309
  %v9373 = vmul.f32 %v9302, %v9309
  %v9374 = vmul.f32 %v9303, %v9309
  %v9375 = vld [vmem:[%s6] sm:$0x1]
  %v9377 = vlaneseq
  %v9378 = vshrl.u32 %v9377, 7
  %v9379 = vsub.s32 0, %v9378
  %v9380 = vrot.slane %v9375, %v9379
  %v9382 = vadd.f32 %v9311, %v9380
  %v9383 = vadd.f32 %v9312, %v9380
  %v9384 = vadd.f32 %v9313, %v9380
  %v9385 = vadd.f32 %v9314, %v9380
  %v9386 = vadd.f32 %v9315, %v9380
  %v9387 = vadd.f32 %v9316, %v9380
  %v9388 = vadd.f32 %v9317, %v9380
  %v9389 = vadd.f32 %v9318, %v9380
  %v9390 = vadd.f32 %v9319, %v9380
  %v9391 = vadd.f32 %v9320, %v9380
  %v9392 = vadd.f32 %v9321, %v9380
  %v9393 = vadd.f32 %v9322, %v9380
  %v9394 = vadd.f32 %v9323, %v9380
  %v9395 = vadd.f32 %v9324, %v9380
  %v9396 = vadd.f32 %v9325, %v9380
  %v9397 = vadd.f32 %v9326, %v9380
  %v9398 = vadd.f32 %v9327, %v9380
  %v9399 = vadd.f32 %v9328, %v9380
  %v9400 = vadd.f32 %v9329, %v9380
  %v9401 = vadd.f32 %v9330, %v9380
  %v9402 = vadd.f32 %v9331, %v9380
  %v9403 = vadd.f32 %v9332, %v9380
  %v9404 = vadd.f32 %v9333, %v9380
  %v9405 = vadd.f32 %v9334, %v9380
  %v9406 = vadd.f32 %v9335, %v9380
  %v9407 = vadd.f32 %v9336, %v9380
  %v9408 = vadd.f32 %v9337, %v9380
  %v9409 = vadd.f32 %v9338, %v9380
  %v9410 = vadd.f32 %v9339, %v9380
  %v9411 = vadd.f32 %v9340, %v9380
  %v9412 = vadd.f32 %v9341, %v9380
  %v9413 = vadd.f32 %v9342, %v9380
  %v9414 = vadd.f32 %v9343, %v9380
  %v9415 = vadd.f32 %v9344, %v9380
  %v9416 = vadd.f32 %v9345, %v9380
  %v9417 = vadd.f32 %v9346, %v9380
  %v9418 = vadd.f32 %v9347, %v9380
  %v9419 = vadd.f32 %v9348, %v9380
  %v9420 = vadd.f32 %v9349, %v9380
  %v9421 = vadd.f32 %v9350, %v9380
  %v9422 = vadd.f32 %v9351, %v9380
  %v9423 = vadd.f32 %v9352, %v9380
  %v9424 = vadd.f32 %v9353, %v9380
  %v9425 = vadd.f32 %v9354, %v9380
  %v9426 = vadd.f32 %v9355, %v9380
  %v9427 = vadd.f32 %v9356, %v9380
  %v9428 = vadd.f32 %v9357, %v9380
  %v9429 = vadd.f32 %v9358, %v9380
  %v9430 = vadd.f32 %v9359, %v9380
  %v9431 = vadd.f32 %v9360, %v9380
  %v9432 = vadd.f32 %v9361, %v9380
  %v9433 = vadd.f32 %v9362, %v9380
  %v9434 = vadd.f32 %v9363, %v9380
  %v9435 = vadd.f32 %v9364, %v9380
  %v9436 = vadd.f32 %v9365, %v9380
  %v9437 = vadd.f32 %v9366, %v9380
  %v9438 = vadd.f32 %v9367, %v9380
  %v9439 = vadd.f32 %v9368, %v9380
  %v9440 = vadd.f32 %v9369, %v9380
  %v9441 = vadd.f32 %v9370, %v9380
  %v9442 = vadd.f32 %v9371, %v9380
  %v9443 = vadd.f32 %v9372, %v9380
  %v9444 = vadd.f32 %v9373, %v9380
  %v9445 = vadd.f32 %v9374, %v9380
  %v9446 = vmax.f32 %v9382, 0.0
  %v9447 = vmax.f32 %v9383, 0.0
  %v9448 = vmax.f32 %v9384, 0.0
  %v9449 = vmax.f32 %v9385, 0.0
  %v9450 = vmax.f32 %v9386, 0.0
  %v9451 = vmax.f32 %v9387, 0.0
  %v9452 = vmax.f32 %v9388, 0.0
  %v9453 = vmax.f32 %v9389, 0.0
  %v9454 = vmax.f32 %v9390, 0.0
  %v9455 = vmax.f32 %v9391, 0.0
  %v9456 = vmax.f32 %v9392, 0.0
  %v9457 = vmax.f32 %v9393, 0.0
  %v9458 = vmax.f32 %v9394, 0.0
  %v9459 = vmax.f32 %v9395, 0.0
  %v9460 = vmax.f32 %v9396, 0.0
  %v9461 = vmax.f32 %v9397, 0.0
  %v9462 = vmax.f32 %v9398, 0.0
  %v9463 = vmax.f32 %v9399, 0.0
  %v9464 = vmax.f32 %v9400, 0.0
  %v9465 = vmax.f32 %v9401, 0.0
  %v9466 = vmax.f32 %v9402, 0.0
  %v9467 = vmax.f32 %v9403, 0.0
  %v9468 = vmax.f32 %v9404, 0.0
  %v9469 = vmax.f32 %v9405, 0.0
  %v9470 = vmax.f32 %v9406, 0.0
  %v9471 = vmax.f32 %v9407, 0.0
  %v9472 = vmax.f32 %v9408, 0.0
  %v9473 = vmax.f32 %v9409, 0.0
  %v9474 = vmax.f32 %v9410, 0.0
  %v9475 = vmax.f32 %v9411, 0.0
  %v9476 = vmax.f32 %v9412, 0.0
  %v9477 = vmax.f32 %v9413, 0.0
  %v9478 = vmax.f32 %v9414, 0.0
  %v9479 = vmax.f32 %v9415, 0.0
  %v9480 = vmax.f32 %v9416, 0.0
  %v9481 = vmax.f32 %v9417, 0.0
  %v9482 = vmax.f32 %v9418, 0.0
  %v9483 = vmax.f32 %v9419, 0.0
  %v9484 = vmax.f32 %v9420, 0.0
  %v9485 = vmax.f32 %v9421, 0.0
  %v9486 = vmax.f32 %v9422, 0.0
  %v9487 = vmax.f32 %v9423, 0.0
  %v9488 = vmax.f32 %v9424, 0.0
  %v9489 = vmax.f32 %v9425, 0.0
  %v9490 = vmax.f32 %v9426, 0.0
  %v9491 = vmax.f32 %v9427, 0.0
  %v9492 = vmax.f32 %v9428, 0.0
  %v9493 = vmax.f32 %v9429, 0.0
  %v9494 = vmax.f32 %v9430, 0.0
  %v9495 = vmax.f32 %v9431, 0.0
  %v9496 = vmax.f32 %v9432, 0.0
  %v9497 = vmax.f32 %v9433, 0.0
  %v9498 = vmax.f32 %v9434, 0.0
  %v9499 = vmax.f32 %v9435, 0.0
  %v9500 = vmax.f32 %v9436, 0.0
  %v9501 = vmax.f32 %v9437, 0.0
  %v9502 = vmax.f32 %v9438, 0.0
  %v9503 = vmax.f32 %v9439, 0.0
  %v9504 = vmax.f32 %v9440, 0.0
  %v9505 = vmax.f32 %v9441, 0.0
  %v9506 = vmax.f32 %v9442, 0.0
  %v9507 = vmax.f32 %v9443, 0.0
  %v9508 = vmax.f32 %v9444, 0.0
  %v9509 = vmax.f32 %v9445, 0.0
  %9510 = vst.msk [vmem:[%s7] sm:$0xff] %vm4132, %v9446
  %9511 = vst.msk [vmem:[%s7 + $0x8] sm:$0xff] %vm4132, %v9447
  %9512 = vst.msk [vmem:[%s7 + $0x10] sm:$0xff] %vm4132, %v9448
  %9513 = vst.msk [vmem:[%s7 + $0x18] sm:$0xff] %vm4132, %v9449
  %9514 = vst.msk [vmem:[%s7 + $0x20] sm:$0xff] %vm4132, %v9450
  %9515 = vst.msk [vmem:[%s7 + $0x28] sm:$0xff] %vm4132, %v9451
  %9516 = vst.msk [vmem:[%s7 + $0x30] sm:$0xff] %vm4132, %v9452
  %9517 = vst.msk [vmem:[%s7 + $0x38] sm:$0xff] %vm4132, %v9453
  %9518 = vst.msk [vmem:[%s7 + $0x40] sm:$0xff] %vm4132, %v9454
  %9519 = vst.msk [vmem:[%s7 + $0x48] sm:$0xff] %vm4132, %v9455
  %9520 = vst.msk [vmem:[%s7 + $0x50] sm:$0xff] %vm4132, %v9456
  %9521 = vst.msk [vmem:[%s7 + $0x58] sm:$0xff] %vm4132, %v9457
  %9522 = vst.msk [vmem:[%s7 + $0x60] sm:$0xff] %vm4132, %v9458
  %9523 = vst.msk [vmem:[%s7 + $0x68] sm:$0xff] %vm4132, %v9459
  %9524 = vst.msk [vmem:[%s7 + $0x70] sm:$0xff] %vm4132, %v9460
  %9525 = vst.msk [vmem:[%s7 + $0x78] sm:$0xff] %vm4132, %v9461
  %9526 = vst.msk [vmem:[%s7 + $0x80] sm:$0xff] %vm4132, %v9462
  %9527 = vst.msk [vmem:[%s7 + $0x88] sm:$0xff] %vm4132, %v9463
  %9528 = vst.msk [vmem:[%s7 + $0x90] sm:$0xff] %vm4132, %v9464
  %9529 = vst.msk [vmem:[%s7 + $0x98] sm:$0xff] %vm4132, %v9465
  %9530 = vst.msk [vmem:[%s7 + $0xa0] sm:$0xff] %vm4132, %v9466
  %9531 = vst.msk [vmem:[%s7 + $0xa8] sm:$0xff] %vm4132, %v9467
  %9532 = vst.msk [vmem:[%s7 + $0xb0] sm:$0xff] %vm4132, %v9468
  %9533 = vst.msk [vmem:[%s7 + $0xb8] sm:$0xff] %vm4132, %v9469
  %9534 = vst.msk [vmem:[%s7 + $0xc0] sm:$0xff] %vm4132, %v9470
  %9535 = vst.msk [vmem:[%s7 + $0xc8] sm:$0xff] %vm4132, %v9471
  %9536 = vst.msk [vmem:[%s7 + $0xd0] sm:$0xff] %vm4132, %v9472
  %9537 = vst.msk [vmem:[%s7 + $0xd8] sm:$0xff] %vm4132, %v9473
  %9538 = vst.msk [vmem:[%s7 + $0xe0] sm:$0xff] %vm4132, %v9474
  %9539 = vst.msk [vmem:[%s7 + $0xe8] sm:$0xff] %vm4132, %v9475
  %9540 = vst.msk [vmem:[%s7 + $0xf0] sm:$0xff] %vm4132, %v9476
  %9541 = vst.msk [vmem:[%s7 + $0xf8] sm:$0xff] %vm4132, %v9477
  %9542 = vst.msk [vmem:[%s7 + $0x100] sm:$0xff] %vm4132, %v9478
  %9543 = vst.msk [vmem:[%s7 + $0x108] sm:$0xff] %vm4132, %v9479
  %9544 = vst.msk [vmem:[%s7 + $0x110] sm:$0xff] %vm4132, %v9480
  %9545 = vst.msk [vmem:[%s7 + $0x118] sm:$0xff] %vm4132, %v9481
  %9546 = vst.msk [vmem:[%s7 + $0x120] sm:$0xff] %vm4132, %v9482
  %9547 = vst.msk [vmem:[%s7 + $0x128] sm:$0xff] %vm4132, %v9483
  %9548 = vst.msk [vmem:[%s7 + $0x130] sm:$0xff] %vm4132, %v9484
  %9549 = vst.msk [vmem:[%s7 + $0x138] sm:$0xff] %vm4132, %v9485
  %9550 = vst.msk [vmem:[%s7 + $0x140] sm:$0xff] %vm4132, %v9486
  %9551 = vst.msk [vmem:[%s7 + $0x148] sm:$0xff] %vm4132, %v9487
  %9552 = vst.msk [vmem:[%s7 + $0x150] sm:$0xff] %vm4132, %v9488
  %9553 = vst.msk [vmem:[%s7 + $0x158] sm:$0xff] %vm4132, %v9489
  %9554 = vst.msk [vmem:[%s7 + $0x160] sm:$0xff] %vm4132, %v9490
  %9555 = vst.msk [vmem:[%s7 + $0x168] sm:$0xff] %vm4132, %v9491
  %9556 = vst.msk [vmem:[%s7 + $0x170] sm:$0xff] %vm4132, %v9492
  %9557 = vst.msk [vmem:[%s7 + $0x178] sm:$0xff] %vm4132, %v9493
  %9558 = vst.msk [vmem:[%s7 + $0x180] sm:$0xff] %vm4132, %v9494
  %9559 = vst.msk [vmem:[%s7 + $0x188] sm:$0xff] %vm4132, %v9495
  %9560 = vst.msk [vmem:[%s7 + $0x190] sm:$0xff] %vm4132, %v9496
  %9561 = vst.msk [vmem:[%s7 + $0x198] sm:$0xff] %vm4132, %v9497
  %9562 = vst.msk [vmem:[%s7 + $0x1a0] sm:$0xff] %vm4132, %v9498
  %9563 = vst.msk [vmem:[%s7 + $0x1a8] sm:$0xff] %vm4132, %v9499
  %9564 = vst.msk [vmem:[%s7 + $0x1b0] sm:$0xff] %vm4132, %v9500
  %9565 = vst.msk [vmem:[%s7 + $0x1b8] sm:$0xff] %vm4132, %v9501
  %9566 = vst.msk [vmem:[%s7 + $0x1c0] sm:$0xff] %vm4132, %v9502
  %9567 = vst.msk [vmem:[%s7 + $0x1c8] sm:$0xff] %vm4132, %v9503
  %9568 = vst.msk [vmem:[%s7 + $0x1d0] sm:$0xff] %vm4132, %v9504
  %9569 = vst.msk [vmem:[%s7 + $0x1d8] sm:$0xff] %vm4132, %v9505
  %9570 = vst.msk [vmem:[%s7 + $0x1e0] sm:$0xff] %vm4132, %v9506
  %9571 = vst.msk [vmem:[%s7 + $0x1e8] sm:$0xff] %vm4132, %v9507
  %9572 = vst.msk [vmem:[%s7 + $0x1f0] sm:$0xff] %vm4132, %v9508
  %9573 = vst.msk [vmem:[%s7 + $0x1f8] sm:$0xff] %vm4132, %v9509
  // Predicated region
  $region30: #{double_conv_forward.1} parent=0 // pred_check
    _
  $region31: #{double_conv_forward.1} parent=0 // pred_check_branch
    %9575 = sbr.rel (0) target = $region33
  $region32: #{double_conv_forward.1} parent=0 // pred_region
    _
  $region33: #{double_conv_forward.1} parent=0 // pred_fallthru
    _
  // Predicated region
  $region34: #{double_conv_forward.1} parent=0 // pred_check
    _
  $region35: #{double_conv_forward.1} parent=0 // pred_check_branch
    %9577 = sbr.rel (0) target = $region37
  $region36: #{double_conv_forward.1} parent=0 // pred_region
    _
  $region37: #{double_conv_forward.1} parent=0 // pred_fallthru
    _

</llo_original>
